<compile_context>
chip_gen: v6e
topology: v6e:2x2x1
jax: 0.10.0
libtpu: 0.0.40
codegen_flags: <defaults>
</compile_context>

<pallas_src>
import functools

import numpy as np
import jax
import jax.numpy as jnp
from jax.experimental import pallas as pl
from jax.experimental.pallas import tpu as pltpu

LEAK = 0.2
BN_EPS = 1e-5

IN_H = IN_W = 28
OH1 = OW1 = 15          # conv1: k=3, s=2, p=2  -> 15x15
OH2 = OW2 = 7           # conv2: k=3, s=2, p=0  -> 7x7
S1 = OH1 * OW1          # 225 conv1 output positions
S2 = OH2 * OW2          # 49  conv2 output positions
C1 = C2 = 16
FC1_OUT = 256


def _leaky(x):
    return jnp.where(x >= 0.0, x, LEAK * x)


# ----------------------------- fused Pallas kernel ------------------------------

def _encoder_kernel(col1_ref, w1_ref, b1_ref,
                    gat_ref, w2_ref, b2_ref, g2_ref, be2_ref,
                    fc1w_ref, fc1b_ref, g1_ref, be1_ref,
                    fc2w_ref, fc2b_ref,
                    out_ref, h2_ref):
    n = out_ref.shape[0]

    # --- conv1 (im2col matmul) + LeakyReLU: rows ordered (n, s1), lanes = out channel ---
    h1 = jnp.dot(col1_ref[...], w1_ref[...], preferred_element_type=jnp.float32) + b1_ref[...]
    h1 = _leaky(h1)                                                   # (n*225, 16)

    # --- conv2: 9 kernel taps.  The patch gather is done on the MXU with constant 0/1
    #     selection matrices (in-kernel im2col, no strided slices, no HBM traffic).
    #     Output rows ordered (s2, n) so later per-position slices are contiguous. ---
    rows2 = gat_ref.shape[1]                                          # 49 * n
    acc = jnp.zeros((rows2, C2), jnp.float32)
    for k in range(9):
        tap = jnp.dot(gat_ref[k], h1, preferred_element_type=jnp.float32)        # (49n, 16)
        acc = acc + jnp.dot(tap, w2_ref[k], preferred_element_type=jnp.float32)  # @ (16, 16)
    y2 = acc + b2_ref[...]

    # BatchNorm2d, training-mode: per-channel stats over all N*7*7 rows, biased variance.
    m2 = jnp.mean(y2, axis=0, keepdims=True)
    v2 = jnp.mean((y2 - m2) * (y2 - m2), axis=0, keepdims=True)
    y2 = g2_ref[...] * ((y2 - m2) * jax.lax.rsqrt(v2 + BN_EPS)) + be2_ref[...]
    h2_ref[...] = _leaky(y2)                                          # VMEM scratch (49n, 16)

    # --- flatten + fc1: the PyTorch NCHW flatten permutation is absorbed in the
    #     (49, 16, 256) fc1 weight layout:  f1[n] = sum_s2 h2[(s2, n), :] @ fc1w[s2] ---
    f1 = jnp.zeros((n, fc1w_ref.shape[2]), jnp.float32)
    for s2 in range(fc1w_ref.shape[0]):
        f1 = f1 + jnp.dot(h2_ref[s2 * n:(s2 + 1) * n, :], fc1w_ref[s2],
                          preferred_element_type=jnp.float32)
    f1 = f1 + fc1b_ref[...]

    # BatchNorm1d (stats over the N rows) + LeakyReLU.
    m1 = jnp.mean(f1, axis=0, keepdims=True)
    v1 = jnp.mean((f1 - m1) * (f1 - m1), axis=0, keepdims=True)
    f1 = g1_ref[...] * ((f1 - m1) * jax.lax.rsqrt(v1 + BN_EPS)) + be1_ref[...]
    f1 = _leaky(f1)

    # --- fc2 with a lane-dense (128-wide) padded output; sliced to z_dim in the wrapper ---
    out_ref[...] = jnp.dot(f1, fc2w_ref[...], preferred_element_type=jnp.float32) + fc2b_ref[...]


# ----------------------------- trace-time constants ------------------------------

@functools.lru_cache(maxsize=None)
def _conv1_patch_indices():
    """Gather indices (225*9,) into the zero-extended (785,) flat 28x28 image (pad=2 -> zero)."""
    idx = np.full((S1, 9), IN_H * IN_W, dtype=np.int32)   # default -> appended zero element
    for s1 in range(S1):
        oh, ow = divmod(s1, OW1)
        for k in range(9):
            i, j = divmod(k, 3)
            r = 2 * oh + i - 2
            c = 2 * ow + j - 2
            if 0 <= r < IN_H and 0 <= c < IN_W:
                idx[s1, k] = r * IN_W + c
    return idx.reshape(-1)


@functools.lru_cache(maxsize=None)
def _conv2_gather(n):
    """0/1 selection matrices (9, 49n, 225n): tap k of conv2 gathers rows of h1 (rows (n, s1))."""
    g = np.zeros((9, S2 * n, S1 * n), dtype=np.float32)
    for k in range(9):
        i, j = divmod(k, 3)
        for s2 in range(S2):
            oh, ow = divmod(s2, OW2)
            s1 = (2 * oh + i) * OW1 + (2 * ow + j)
            for nn in range(n):
                g[k, s2 * n + nn, nn * S1 + s1] = 1.0
    return g


# ----------------------------- params & wrapper ------------------------------

def init_params(key, z_dim=62):
    zp = ((z_dim + 127) // 128) * 128            # lane-dense fc2 output width (62 -> 128)
    ks = jax.random.split(key, 8)
    # PyTorch-layout weights, permuted once here (free) into kernel-friendly layouts.
    w1 = 0.1 * jax.random.normal(ks[0], (16, 1, 3, 3), jnp.float32)       # OIHW
    w2 = 0.1 * jax.random.normal(ks[1], (16, 16, 3, 3), jnp.float32)      # OIHW
    fc1 = 0.05 * jax.random.normal(ks[2], (256, 784), jnp.float32)        # (out, NCHW-flat in)
    fc2 = 0.05 * jax.random.normal(ks[3], (z_dim, 256), jnp.float32)
    return {
        # conv1: [k=i*3+j, cout]
        "conv1_w": w1.reshape(16, 9).T,
        "conv1_b": 0.1 * jax.random.normal(ks[4], (1, 16), jnp.float32),
        # conv2: [k, cin, cout]
        "conv2_w": jnp.transpose(w2, (2, 3, 1, 0)).reshape(9, 16, 16),
        "conv2_b": 0.1 * jax.random.normal(ks[5], (1, 16), jnp.float32),
        "bn2_g": jnp.ones((1, 16), jnp.float32),
        "bn2_b": jnp.zeros((1, 16), jnp.float32),
        # fc1: NCHW flatten permutation absorbed at init -> [s2, c, out]
        "fc1_w": jnp.transpose(fc1.reshape(256, 16, 49), (2, 1, 0)),
        "fc1_b": 0.05 * jax.random.normal(ks[6], (1, 256), jnp.float32),
        "bn1_g": jnp.ones((1, 256), jnp.float32),
        "bn1_b": jnp.zeros((1, 256), jnp.float32),
        # fc2: zero-padded to 128 lanes; wrapper slices back to z_dim
        "fc2_w": jnp.pad(fc2.T, ((0, 0), (0, zp - z_dim))),
        "fc2_b": jnp.pad(0.05 * jax.random.normal(ks[7], (1, z_dim), jnp.float32),
                         ((0, 0), (0, zp - z_dim))),
    }


@functools.partial(jax.jit, static_argnames=("z_dim",))
def encoder_forward(x, params, z_dim=62):
    # input.view(-1, 1, 28, 28) -> flat (N, 784) row-major (NCHW with C=1)
    x = x.reshape(-1, IN_H * IN_W).astype(jnp.float32)
    n = x.shape[0]

    # conv1 im2col as one tiny XLA gather on the raw input (padding taps hit the appended zero).
    xz = jnp.concatenate([x, jnp.zeros((n, 1), jnp.float32)], axis=1)
    col1 = jnp.take(xz, jnp.asarray(_conv1_patch_indices()), axis=1).reshape(n * S1, 9)

    gat = _conv2_gather(n)                       # trace-time constant (9, 49n, 225n)
    zp = params["fc2_w"].shape[1]

    out = pl.pallas_call(
        _encoder_kernel,
        out_shape=jax.ShapeDtypeStruct((n, zp), jnp.float32),
        in_specs=[pl.BlockSpec(memory_space=pltpu.MemorySpace.VMEM)] * 14,
        out_specs=pl.BlockSpec(memory_space=pltpu.MemorySpace.VMEM),
        scratch_shapes=[pltpu.VMEM((S2 * n, C2), jnp.float32)],   # h2 (post-BN2 conv output)
    )(col1, params["conv1_w"], params["conv1_b"],
      gat, params["conv2_w"], params["conv2_b"], params["bn2_g"], params["bn2_b"],
      params["fc1_w"], params["fc1_b"], params["bn1_g"], params["bn1_b"],
      params["fc2_w"], params["fc2_b"])

    return out[:, :z_dim]


if __name__ == "__main__":
    key = jax.random.PRNGKey(0)
    k_x, k_p = jax.random.split(key)
    # Deterministic small input consistent with the mnist branch: (batch=2, 1, 28, 28)
    x = jax.random.normal(k_x, (2, 1, 28, 28), jnp.float32)
    params = init_params(k_p, z_dim=62)

    out = encoder_forward(x, params, z_dim=62)
    out = jax.block_until_ready(out)
    assert out.shape == (2, 62), out.shape
    assert bool(jnp.all(jnp.isfinite(out)))
    print("KERNEL_OK")
</pallas_src>

<mosaic_0001>
module attributes {stable_mosaic.version = 11 : i64} {
  func.func @_encoder_kernel(%arg0: memref<450x9xf32, #tpu.memory_space<vmem>>, %arg1: memref<9x16xf32, #tpu.memory_space<vmem>>, %arg2: memref<1x16xf32, #tpu.memory_space<vmem>>, %arg3: memref<9x98x450xf32, #tpu.memory_space<vmem>>, %arg4: memref<9x16x16xf32, #tpu.memory_space<vmem>>, %arg5: memref<1x16xf32, #tpu.memory_space<vmem>>, %arg6: memref<1x16xf32, #tpu.memory_space<vmem>>, %arg7: memref<1x16xf32, #tpu.memory_space<vmem>>, %arg8: memref<49x16x256xf32, #tpu.memory_space<vmem>>, %arg9: memref<1x256xf32, #tpu.memory_space<vmem>>, %arg10: memref<1x256xf32, #tpu.memory_space<vmem>>, %arg11: memref<1x256xf32, #tpu.memory_space<vmem>>, %arg12: memref<256x128xf32, #tpu.memory_space<vmem>>, %arg13: memref<1x128xf32, #tpu.memory_space<vmem>>, %arg14: memref<2x128xf32, #tpu.memory_space<vmem>>, %arg15: memref<98x16xf32, #tpu.memory_space<vmem>>) attributes {dimension_semantics = [], scalar_prefetch = 0 : i64, scratch_operands = 1 : i64, tpu.core_type = #tpu.core_type<tc>} {
    %c0 = arith.constant 0 : index
    %c0_0 = arith.constant 0 : index
    %0 = vector.load %arg0[%c0, %c0_0] : memref<450x9xf32, #tpu.memory_space<vmem>>, vector<450x9xf32>
    %c0_1 = arith.constant 0 : index
    %c0_2 = arith.constant 0 : index
    %1 = vector.load %arg1[%c0_1, %c0_2] : memref<9x16xf32, #tpu.memory_space<vmem>>, vector<9x16xf32>
    %cst = arith.constant dense<0.000000e+00> : vector<450x16xf32>
    %2 = tpu.matmul %0, %1, %cst {dimension_numbers = #tpu.dot_dimension_numbers<[1], [0], [0], [1], [0, 0, 1, 1], [], []>} : vector<450x9xf32>, vector<9x16xf32>, vector<450x16xf32> -> vector<450x16xf32>
    %c0_3 = arith.constant 0 : index
    %c0_4 = arith.constant 0 : index
    %3 = vector.load %arg2[%c0_3, %c0_4] : memref<1x16xf32, #tpu.memory_space<vmem>>, vector<1x16xf32>
    %4 = vector.broadcast %3 : vector<1x16xf32> to vector<450x16xf32>
    %5 = arith.addf %2, %4 : vector<450x16xf32>
    %cst_5 = arith.constant 0.000000e+00 : f32
    %6 = vector.broadcast %cst_5 : f32 to vector<450x16xf32>
    %7 = arith.cmpf oge, %5, %6 : vector<450x16xf32>
    %cst_6 = arith.constant 2.000000e-01 : f32
    %8 = vector.broadcast %cst_6 : f32 to vector<450x16xf32>
    %9 = arith.mulf %8, %5 : vector<450x16xf32>
    %10 = arith.select %7, %5, %9 : vector<450x16xi1>, vector<450x16xf32>
    %cst_7 = arith.constant 0.000000e+00 : f32
    %11 = vector.broadcast %cst_7 : f32 to vector<98x16xf32>
    %c0_8 = arith.constant 0 : index
    %c0_9 = arith.constant 0 : index
    %c0_10 = arith.constant 0 : index
    %12 = vector.load %arg3[%c0_8, %c0_9, %c0_10] : memref<9x98x450xf32, #tpu.memory_space<vmem>>, vector<1x98x450xf32>
    %13 = vector.shape_cast %12 : vector<1x98x450xf32> to vector<98x450xf32>
    %cst_11 = arith.constant dense<0.000000e+00> : vector<98x16xf32>
    %14 = tpu.matmul %13, %10, %cst_11 {dimension_numbers = #tpu.dot_dimension_numbers<[1], [0], [0], [1], [0, 0, 1, 1], [], []>} : vector<98x450xf32>, vector<450x16xf32>, vector<98x16xf32> -> vector<98x16xf32>
    %c0_12 = arith.constant 0 : index
    %c0_13 = arith.constant 0 : index
    %c0_14 = arith.constant 0 : index
    %15 = vector.load %arg4[%c0_12, %c0_13, %c0_14] : memref<9x16x16xf32, #tpu.memory_space<vmem>>, vector<1x16x16xf32>
    %16 = vector.shape_cast %15 : vector<1x16x16xf32> to vector<16x16xf32>
    %cst_15 = arith.constant dense<0.000000e+00> : vector<98x16xf32>
    %17 = tpu.matmul %14, %16, %cst_15 {dimension_numbers = #tpu.dot_dimension_numbers<[1], [0], [0], [1], [0, 0, 1, 1], [], []>} : vector<98x16xf32>, vector<16x16xf32>, vector<98x16xf32> -> vector<98x16xf32>
    %18 = arith.addf %11, %17 : vector<98x16xf32>
    %c1 = arith.constant 1 : index
    %c0_16 = arith.constant 0 : index
    %c0_17 = arith.constant 0 : index
    %19 = vector.load %arg3[%c1, %c0_16, %c0_17] : memref<9x98x450xf32, #tpu.memory_space<vmem>>, vector<1x98x450xf32>
    %20 = vector.shape_cast %19 : vector<1x98x450xf32> to vector<98x450xf32>
    %cst_18 = arith.constant dense<0.000000e+00> : vector<98x16xf32>
    %21 = tpu.matmul %20, %10, %cst_18 {dimension_numbers = #tpu.dot_dimension_numbers<[1], [0], [0], [1], [0, 0, 1, 1], [], []>} : vector<98x450xf32>, vector<450x16xf32>, vector<98x16xf32> -> vector<98x16xf32>
    %c1_19 = arith.constant 1 : index
    %c0_20 = arith.constant 0 : index
    %c0_21 = arith.constant 0 : index
    %22 = vector.load %arg4[%c1_19, %c0_20, %c0_21] : memref<9x16x16xf32, #tpu.memory_space<vmem>>, vector<1x16x16xf32>
    %23 = vector.shape_cast %22 : vector<1x16x16xf32> to vector<16x16xf32>
    %cst_22 = arith.constant dense<0.000000e+00> : vector<98x16xf32>
    %24 = tpu.matmul %21, %23, %cst_22 {dimension_numbers = #tpu.dot_dimension_numbers<[1], [0], [0], [1], [0, 0, 1, 1], [], []>} : vector<98x16xf32>, vector<16x16xf32>, vector<98x16xf32> -> vector<98x16xf32>
    %25 = arith.addf %18, %24 : vector<98x16xf32>
    %c2 = arith.constant 2 : index
    %c0_23 = arith.constant 0 : index
    %c0_24 = arith.constant 0 : index
    %26 = vector.load %arg3[%c2, %c0_23, %c0_24] : memref<9x98x450xf32, #tpu.memory_space<vmem>>, vector<1x98x450xf32>
    %27 = vector.shape_cast %26 : vector<1x98x450xf32> to vector<98x450xf32>
    %cst_25 = arith.constant dense<0.000000e+00> : vector<98x16xf32>
    %28 = tpu.matmul %27, %10, %cst_25 {dimension_numbers = #tpu.dot_dimension_numbers<[1], [0], [0], [1], [0, 0, 1, 1], [], []>} : vector<98x450xf32>, vector<450x16xf32>, vector<98x16xf32> -> vector<98x16xf32>
    %c2_26 = arith.constant 2 : index
    %c0_27 = arith.constant 0 : index
    %c0_28 = arith.constant 0 : index
    %29 = vector.load %arg4[%c2_26, %c0_27, %c0_28] : memref<9x16x16xf32, #tpu.memory_space<vmem>>, vector<1x16x16xf32>
    %30 = vector.shape_cast %29 : vector<1x16x16xf32> to vector<16x16xf32>
    %cst_29 = arith.constant dense<0.000000e+00> : vector<98x16xf32>
    %31 = tpu.matmul %28, %30, %cst_29 {dimension_numbers = #tpu.dot_dimension_numbers<[1], [0], [0], [1], [0, 0, 1, 1], [], []>} : vector<98x16xf32>, vector<16x16xf32>, vector<98x16xf32> -> vector<98x16xf32>
    %32 = arith.addf %25, %31 : vector<98x16xf32>
    %c3 = arith.constant 3 : index
    %c0_30 = arith.constant 0 : index
    %c0_31 = arith.constant 0 : index
    %33 = vector.load %arg3[%c3, %c0_30, %c0_31] : memref<9x98x450xf32, #tpu.memory_space<vmem>>, vector<1x98x450xf32>
    %34 = vector.shape_cast %33 : vector<1x98x450xf32> to vector<98x450xf32>
    %cst_32 = arith.constant dense<0.000000e+00> : vector<98x16xf32>
    %35 = tpu.matmul %34, %10, %cst_32 {dimension_numbers = #tpu.dot_dimension_numbers<[1], [0], [0], [1], [0, 0, 1, 1], [], []>} : vector<98x450xf32>, vector<450x16xf32>, vector<98x16xf32> -> vector<98x16xf32>
    %c3_33 = arith.constant 3 : index
    %c0_34 = arith.constant 0 : index
    %c0_35 = arith.constant 0 : index
    %36 = vector.load %arg4[%c3_33, %c0_34, %c0_35] : memref<9x16x16xf32, #tpu.memory_space<vmem>>, vector<1x16x16xf32>
    %37 = vector.shape_cast %36 : vector<1x16x16xf32> to vector<16x16xf32>
    %cst_36 = arith.constant dense<0.000000e+00> : vector<98x16xf32>
    %38 = tpu.matmul %35, %37, %cst_36 {dimension_numbers = #tpu.dot_dimension_numbers<[1], [0], [0], [1], [0, 0, 1, 1], [], []>} : vector<98x16xf32>, vector<16x16xf32>, vector<98x16xf32> -> vector<98x16xf32>
    %39 = arith.addf %32, %38 : vector<98x16xf32>
    %c4 = arith.constant 4 : index
    %c0_37 = arith.constant 0 : index
    %c0_38 = arith.constant 0 : index
    %40 = vector.load %arg3[%c4, %c0_37, %c0_38] : memref<9x98x450xf32, #tpu.memory_space<vmem>>, vector<1x98x450xf32>
    %41 = vector.shape_cast %40 : vector<1x98x450xf32> to vector<98x450xf32>
    %cst_39 = arith.constant dense<0.000000e+00> : vector<98x16xf32>
    %42 = tpu.matmul %41, %10, %cst_39 {dimension_numbers = #tpu.dot_dimension_numbers<[1], [0], [0], [1], [0, 0, 1, 1], [], []>} : vector<98x450xf32>, vector<450x16xf32>, vector<98x16xf32> -> vector<98x16xf32>
    %c4_40 = arith.constant 4 : index
    %c0_41 = arith.constant 0 : index
    %c0_42 = arith.constant 0 : index
    %43 = vector.load %arg4[%c4_40, %c0_41, %c0_42] : memref<9x16x16xf32, #tpu.memory_space<vmem>>, vector<1x16x16xf32>
    %44 = vector.shape_cast %43 : vector<1x16x16xf32> to vector<16x16xf32>
    %cst_43 = arith.constant dense<0.000000e+00> : vector<98x16xf32>
    %45 = tpu.matmul %42, %44, %cst_43 {dimension_numbers = #tpu.dot_dimension_numbers<[1], [0], [0], [1], [0, 0, 1, 1], [], []>} : vector<98x16xf32>, vector<16x16xf32>, vector<98x16xf32> -> vector<98x16xf32>
    %46 = arith.addf %39, %45 : vector<98x16xf32>
    %c5 = arith.constant 5 : index
    %c0_44 = arith.constant 0 : index
    %c0_45 = arith.constant 0 : index
    %47 = vector.load %arg3[%c5, %c0_44, %c0_45] : memref<9x98x450xf32, #tpu.memory_space<vmem>>, vector<1x98x450xf32>
    %48 = vector.shape_cast %47 : vector<1x98x450xf32> to vector<98x450xf32>
    %cst_46 = arith.constant dense<0.000000e+00> : vector<98x16xf32>
    %49 = tpu.matmul %48, %10, %cst_46 {dimension_numbers = #tpu.dot_dimension_numbers<[1], [0], [0], [1], [0, 0, 1, 1], [], []>} : vector<98x450xf32>, vector<450x16xf32>, vector<98x16xf32> -> vector<98x16xf32>
    %c5_47 = arith.constant 5 : index
    %c0_48 = arith.constant 0 : index
    %c0_49 = arith.constant 0 : index
    %50 = vector.load %arg4[%c5_47, %c0_48, %c0_49] : memref<9x16x16xf32, #tpu.memory_space<vmem>>, vector<1x16x16xf32>
    %51 = vector.shape_cast %50 : vector<1x16x16xf32> to vector<16x16xf32>
    %cst_50 = arith.constant dense<0.000000e+00> : vector<98x16xf32>
    %52 = tpu.matmul %49, %51, %cst_50 {dimension_numbers = #tpu.dot_dimension_numbers<[1], [0], [0], [1], [0, 0, 1, 1], [], []>} : vector<98x16xf32>, vector<16x16xf32>, vector<98x16xf32> -> vector<98x16xf32>
    %53 = arith.addf %46, %52 : vector<98x16xf32>
    %c6 = arith.constant 6 : index
    %c0_51 = arith.constant 0 : index
    %c0_52 = arith.constant 0 : index
    %54 = vector.load %arg3[%c6, %c0_51, %c0_52] : memref<9x98x450xf32, #tpu.memory_space<vmem>>, vector<1x98x450xf32>
    %55 = vector.shape_cast %54 : vector<1x98x450xf32> to vector<98x450xf32>
    %cst_53 = arith.constant dense<0.000000e+00> : vector<98x16xf32>
    %56 = tpu.matmul %55, %10, %cst_53 {dimension_numbers = #tpu.dot_dimension_numbers<[1], [0], [0], [1], [0, 0, 1, 1], [], []>} : vector<98x450xf32>, vector<450x16xf32>, vector<98x16xf32> -> vector<98x16xf32>
    %c6_54 = arith.constant 6 : index
    %c0_55 = arith.constant 0 : index
    %c0_56 = arith.constant 0 : index
    %57 = vector.load %arg4[%c6_54, %c0_55, %c0_56] : memref<9x16x16xf32, #tpu.memory_space<vmem>>, vector<1x16x16xf32>
    %58 = vector.shape_cast %57 : vector<1x16x16xf32> to vector<16x16xf32>
    %cst_57 = arith.constant dense<0.000000e+00> : vector<98x16xf32>
    %59 = tpu.matmul %56, %58, %cst_57 {dimension_numbers = #tpu.dot_dimension_numbers<[1], [0], [0], [1], [0, 0, 1, 1], [], []>} : vector<98x16xf32>, vector<16x16xf32>, vector<98x16xf32> -> vector<98x16xf32>
    %60 = arith.addf %53, %59 : vector<98x16xf32>
    %c7 = arith.constant 7 : index
    %c0_58 = arith.constant 0 : index
    %c0_59 = arith.constant 0 : index
    %61 = vector.load %arg3[%c7, %c0_58, %c0_59] : memref<9x98x450xf32, #tpu.memory_space<vmem>>, vector<1x98x450xf32>
    %62 = vector.shape_cast %61 : vector<1x98x450xf32> to vector<98x450xf32>
    %cst_60 = arith.constant dense<0.000000e+00> : vector<98x16xf32>
    %63 = tpu.matmul %62, %10, %cst_60 {dimension_numbers = #tpu.dot_dimension_numbers<[1], [0], [0], [1], [0, 0, 1, 1], [], []>} : vector<98x450xf32>, vector<450x16xf32>, vector<98x16xf32> -> vector<98x16xf32>
    %c7_61 = arith.constant 7 : index
    %c0_62 = arith.constant 0 : index
    %c0_63 = arith.constant 0 : index
    %64 = vector.load %arg4[%c7_61, %c0_62, %c0_63] : memref<9x16x16xf32, #tpu.memory_space<vmem>>, vector<1x16x16xf32>
    %65 = vector.shape_cast %64 : vector<1x16x16xf32> to vector<16x16xf32>
    %cst_64 = arith.constant dense<0.000000e+00> : vector<98x16xf32>
    %66 = tpu.matmul %63, %65, %cst_64 {dimension_numbers = #tpu.dot_dimension_numbers<[1], [0], [0], [1], [0, 0, 1, 1], [], []>} : vector<98x16xf32>, vector<16x16xf32>, vector<98x16xf32> -> vector<98x16xf32>
    %67 = arith.addf %60, %66 : vector<98x16xf32>
    %c8 = arith.constant 8 : index
    %c0_65 = arith.constant 0 : index
    %c0_66 = arith.constant 0 : index
    %68 = vector.load %arg3[%c8, %c0_65, %c0_66] : memref<9x98x450xf32, #tpu.memory_space<vmem>>, vector<1x98x450xf32>
    %69 = vector.shape_cast %68 : vector<1x98x450xf32> to vector<98x450xf32>
    %cst_67 = arith.constant dense<0.000000e+00> : vector<98x16xf32>
    %70 = tpu.matmul %69, %10, %cst_67 {dimension_numbers = #tpu.dot_dimension_numbers<[1], [0], [0], [1], [0, 0, 1, 1], [], []>} : vector<98x450xf32>, vector<450x16xf32>, vector<98x16xf32> -> vector<98x16xf32>
    %c8_68 = arith.constant 8 : index
    %c0_69 = arith.constant 0 : index
    %c0_70 = arith.constant 0 : index
    %71 = vector.load %arg4[%c8_68, %c0_69, %c0_70] : memref<9x16x16xf32, #tpu.memory_space<vmem>>, vector<1x16x16xf32>
    %72 = vector.shape_cast %71 : vector<1x16x16xf32> to vector<16x16xf32>
    %cst_71 = arith.constant dense<0.000000e+00> : vector<98x16xf32>
    %73 = tpu.matmul %70, %72, %cst_71 {dimension_numbers = #tpu.dot_dimension_numbers<[1], [0], [0], [1], [0, 0, 1, 1], [], []>} : vector<98x16xf32>, vector<16x16xf32>, vector<98x16xf32> -> vector<98x16xf32>
    %74 = arith.addf %67, %73 : vector<98x16xf32>
    %c0_72 = arith.constant 0 : index
    %c0_73 = arith.constant 0 : index
    %75 = vector.load %arg5[%c0_72, %c0_73] : memref<1x16xf32, #tpu.memory_space<vmem>>, vector<1x16xf32>
    %76 = vector.broadcast %75 : vector<1x16xf32> to vector<98x16xf32>
    %77 = arith.addf %74, %76 : vector<98x16xf32>
    %cst_74 = arith.constant dense<0.000000e+00> : vector<16xf32>
    %78 = vector.multi_reduction <add>, %77, %cst_74 [0] : vector<98x16xf32> to vector<16xf32>
    %79 = vector.shape_cast %78 : vector<16xf32> to vector<1x16xf32>
    %cst_75 = arith.constant 9.800000e+01 : f32
    %80 = vector.broadcast %cst_75 : f32 to vector<1x16xf32>
    %81 = arith.divf %79, %80 : vector<1x16xf32>
    %82 = vector.broadcast %81 : vector<1x16xf32> to vector<98x16xf32>
    %83 = arith.subf %77, %82 : vector<98x16xf32>
    %84 = vector.broadcast %81 : vector<1x16xf32> to vector<98x16xf32>
    %85 = arith.subf %77, %84 : vector<98x16xf32>
    %86 = arith.mulf %83, %85 : vector<98x16xf32>
    %cst_76 = arith.constant dense<0.000000e+00> : vector<16xf32>
    %87 = vector.multi_reduction <add>, %86, %cst_76 [0] : vector<98x16xf32> to vector<16xf32>
    %88 = vector.shape_cast %87 : vector<16xf32> to vector<1x16xf32>
    %cst_77 = arith.constant 9.800000e+01 : f32
    %89 = vector.broadcast %cst_77 : f32 to vector<1x16xf32>
    %90 = arith.divf %88, %89 : vector<1x16xf32>
    %c0_78 = arith.constant 0 : index
    %c0_79 = arith.constant 0 : index
    %91 = vector.load %arg6[%c0_78, %c0_79] : memref<1x16xf32, #tpu.memory_space<vmem>>, vector<1x16xf32>
    %92 = vector.broadcast %81 : vector<1x16xf32> to vector<98x16xf32>
    %93 = arith.subf %77, %92 : vector<98x16xf32>
    %cst_80 = arith.constant 9.99999974E-6 : f32
    %94 = vector.broadcast %cst_80 : f32 to vector<1x16xf32>
    %95 = arith.addf %90, %94 : vector<1x16xf32>
    %96 = math.rsqrt %95 : vector<1x16xf32>
    %97 = vector.broadcast %96 : vector<1x16xf32> to vector<98x16xf32>
    %98 = arith.mulf %93, %97 : vector<98x16xf32>
    %99 = vector.broadcast %91 : vector<1x16xf32> to vector<98x16xf32>
    %100 = arith.mulf %99, %98 : vector<98x16xf32>
    %c0_81 = arith.constant 0 : index
    %c0_82 = arith.constant 0 : index
    %101 = vector.load %arg7[%c0_81, %c0_82] : memref<1x16xf32, #tpu.memory_space<vmem>>, vector<1x16xf32>
    %102 = vector.broadcast %101 : vector<1x16xf32> to vector<98x16xf32>
    %103 = arith.addf %100, %102 : vector<98x16xf32>
    %cst_83 = arith.constant 0.000000e+00 : f32
    %104 = vector.broadcast %cst_83 : f32 to vector<98x16xf32>
    %105 = arith.cmpf oge, %103, %104 : vector<98x16xf32>
    %cst_84 = arith.constant 2.000000e-01 : f32
    %106 = vector.broadcast %cst_84 : f32 to vector<98x16xf32>
    %107 = arith.mulf %106, %103 : vector<98x16xf32>
    %108 = arith.select %105, %103, %107 : vector<98x16xi1>, vector<98x16xf32>
    %c0_85 = arith.constant 0 : index
    %c0_86 = arith.constant 0 : index
    %109 = vector.load %arg15[%c0_85, %c0_86] : memref<98x16xf32, #tpu.memory_space<vmem>>, vector<98x16xf32>
    tpu.vector_store %arg15[%c0_85, %c0_86], %108 {strides = array<i32>} : memref<98x16xf32, #tpu.memory_space<vmem>>, vector<98x16xf32>,
    %cst_87 = arith.constant 0.000000e+00 : f32
    %110 = vector.broadcast %cst_87 : f32 to vector<2x256xf32>
    %c0_88 = arith.constant 0 : index
    %c0_89 = arith.constant 0 : index
    %111 = vector.load %arg15[%c0_88, %c0_89] : memref<98x16xf32, #tpu.memory_space<vmem>>, vector<2x16xf32>
    %c0_90 = arith.constant 0 : index
    %c0_91 = arith.constant 0 : index
    %c0_92 = arith.constant 0 : index
    %112 = vector.load %arg8[%c0_90, %c0_91, %c0_92] : memref<49x16x256xf32, #tpu.memory_space<vmem>>, vector<1x16x256xf32>
    %113 = vector.shape_cast %112 : vector<1x16x256xf32> to vector<16x256xf32>
    %cst_93 = arith.constant dense<0.000000e+00> : vector<2x256xf32>
    %114 = tpu.matmul %111, %113, %cst_93 {dimension_numbers = #tpu.dot_dimension_numbers<[1], [0], [0], [1], [0, 0, 1, 1], [], []>} : vector<2x16xf32>, vector<16x256xf32>, vector<2x256xf32> -> vector<2x256xf32>
    %115 = arith.addf %110, %114 : vector<2x256xf32>
    %c2_94 = arith.constant 2 : index
    %c0_95 = arith.constant 0 : index
    %116 = vector.load %arg15[%c2_94, %c0_95] : memref<98x16xf32, #tpu.memory_space<vmem>>, vector<2x16xf32>
    %c1_96 = arith.constant 1 : index
    %c0_97 = arith.constant 0 : index
    %c0_98 = arith.constant 0 : index
    %117 = vector.load %arg8[%c1_96, %c0_97, %c0_98] : memref<49x16x256xf32, #tpu.memory_space<vmem>>, vector<1x16x256xf32>
    %118 = vector.shape_cast %117 : vector<1x16x256xf32> to vector<16x256xf32>
    %cst_99 = arith.constant dense<0.000000e+00> : vector<2x256xf32>
    %119 = tpu.matmul %116, %118, %cst_99 {dimension_numbers = #tpu.dot_dimension_numbers<[1], [0], [0], [1], [0, 0, 1, 1], [], []>} : vector<2x16xf32>, vector<16x256xf32>, vector<2x256xf32> -> vector<2x256xf32>
    %120 = arith.addf %115, %119 : vector<2x256xf32>
    %c4_100 = arith.constant 4 : index
    %c0_101 = arith.constant 0 : index
    %121 = vector.load %arg15[%c4_100, %c0_101] : memref<98x16xf32, #tpu.memory_space<vmem>>, vector<2x16xf32>
    %c2_102 = arith.constant 2 : index
    %c0_103 = arith.constant 0 : index
    %c0_104 = arith.constant 0 : index
    %122 = vector.load %arg8[%c2_102, %c0_103, %c0_104] : memref<49x16x256xf32, #tpu.memory_space<vmem>>, vector<1x16x256xf32>
    %123 = vector.shape_cast %122 : vector<1x16x256xf32> to vector<16x256xf32>
    %cst_105 = arith.constant dense<0.000000e+00> : vector<2x256xf32>
    %124 = tpu.matmul %121, %123, %cst_105 {dimension_numbers = #tpu.dot_dimension_numbers<[1], [0], [0], [1], [0, 0, 1, 1], [], []>} : vector<2x16xf32>, vector<16x256xf32>, vector<2x256xf32> -> vector<2x256xf32>
    %125 = arith.addf %120, %124 : vector<2x256xf32>
    %c6_106 = arith.constant 6 : index
    %c0_107 = arith.constant 0 : index
    %126 = vector.load %arg15[%c6_106, %c0_107] : memref<98x16xf32, #tpu.memory_space<vmem>>, vector<2x16xf32>
    %c3_108 = arith.constant 3 : index
    %c0_109 = arith.constant 0 : index
    %c0_110 = arith.constant 0 : index
    %127 = vector.load %arg8[%c3_108, %c0_109, %c0_110] : memref<49x16x256xf32, #tpu.memory_space<vmem>>, vector<1x16x256xf32>
    %128 = vector.shape_cast %127 : vector<1x16x256xf32> to vector<16x256xf32>
    %cst_111 = arith.constant dense<0.000000e+00> : vector<2x256xf32>
    %129 = tpu.matmul %126, %128, %cst_111 {dimension_numbers = #tpu.dot_dimension_numbers<[1], [0], [0], [1], [0, 0, 1, 1], [], []>} : vector<2x16xf32>, vector<16x256xf32>, vector<2x256xf32> -> vector<2x256xf32>
    %130 = arith.addf %125, %129 : vector<2x256xf32>
    %c8_112 = arith.constant 8 : index
    %c0_113 = arith.constant 0 : index
    %131 = vector.load %arg15[%c8_112, %c0_113] : memref<98x16xf32, #tpu.memory_space<vmem>>, vector<2x16xf32>
    %c4_114 = arith.constant 4 : index
    %c0_115 = arith.constant 0 : index
    %c0_116 = arith.constant 0 : index
    %132 = vector.load %arg8[%c4_114, %c0_115, %c0_116] : memref<49x16x256xf32, #tpu.memory_space<vmem>>, vector<1x16x256xf32>
    %133 = vector.shape_cast %132 : vector<1x16x256xf32> to vector<16x256xf32>
    %cst_117 = arith.constant dense<0.000000e+00> : vector<2x256xf32>
    %134 = tpu.matmul %131, %133, %cst_117 {dimension_numbers = #tpu.dot_dimension_numbers<[1], [0], [0], [1], [0, 0, 1, 1], [], []>} : vector<2x16xf32>, vector<16x256xf32>, vector<2x256xf32> -> vector<2x256xf32>
    %135 = arith.addf %130, %134 : vector<2x256xf32>
    %c10 = arith.constant 10 : index
    %c0_118 = arith.constant 0 : index
    %136 = vector.load %arg15[%c10, %c0_118] : memref<98x16xf32, #tpu.memory_space<vmem>>, vector<2x16xf32>
    %c5_119 = arith.constant 5 : index
    %c0_120 = arith.constant 0 : index
    %c0_121 = arith.constant 0 : index
    %137 = vector.load %arg8[%c5_119, %c0_120, %c0_121] : memref<49x16x256xf32, #tpu.memory_space<vmem>>, vector<1x16x256xf32>
    %138 = vector.shape_cast %137 : vector<1x16x256xf32> to vector<16x256xf32>
    %cst_122 = arith.constant dense<0.000000e+00> : vector<2x256xf32>
    %139 = tpu.matmul %136, %138, %cst_122 {dimension_numbers = #tpu.dot_dimension_numbers<[1], [0], [0], [1], [0, 0, 1, 1], [], []>} : vector<2x16xf32>, vector<16x256xf32>, vector<2x256xf32> -> vector<2x256xf32>
    %140 = arith.addf %135, %139 : vector<2x256xf32>
    %c12 = arith.constant 12 : index
    %c0_123 = arith.constant 0 : index
    %141 = vector.load %arg15[%c12, %c0_123] : memref<98x16xf32, #tpu.memory_space<vmem>>, vector<2x16xf32>
    %c6_124 = arith.constant 6 : index
    %c0_125 = arith.constant 0 : index
    %c0_126 = arith.constant 0 : index
    %142 = vector.load %arg8[%c6_124, %c0_125, %c0_126] : memref<49x16x256xf32, #tpu.memory_space<vmem>>, vector<1x16x256xf32>
    %143 = vector.shape_cast %142 : vector<1x16x256xf32> to vector<16x256xf32>
    %cst_127 = arith.constant dense<0.000000e+00> : vector<2x256xf32>
    %144 = tpu.matmul %141, %143, %cst_127 {dimension_numbers = #tpu.dot_dimension_numbers<[1], [0], [0], [1], [0, 0, 1, 1], [], []>} : vector<2x16xf32>, vector<16x256xf32>, vector<2x256xf32> -> vector<2x256xf32>
    %145 = arith.addf %140, %144 : vector<2x256xf32>
    %c14 = arith.constant 14 : index
    %c0_128 = arith.constant 0 : index
    %146 = vector.load %arg15[%c14, %c0_128] : memref<98x16xf32, #tpu.memory_space<vmem>>, vector<2x16xf32>
    %c7_129 = arith.constant 7 : index
    %c0_130 = arith.constant 0 : index
    %c0_131 = arith.constant 0 : index
    %147 = vector.load %arg8[%c7_129, %c0_130, %c0_131] : memref<49x16x256xf32, #tpu.memory_space<vmem>>, vector<1x16x256xf32>
    %148 = vector.shape_cast %147 : vector<1x16x256xf32> to vector<16x256xf32>
    %cst_132 = arith.constant dense<0.000000e+00> : vector<2x256xf32>
    %149 = tpu.matmul %146, %148, %cst_132 {dimension_numbers = #tpu.dot_dimension_numbers<[1], [0], [0], [1], [0, 0, 1, 1], [], []>} : vector<2x16xf32>, vector<16x256xf32>, vector<2x256xf32> -> vector<2x256xf32>
    %150 = arith.addf %145, %149 : vector<2x256xf32>
    %c16 = arith.constant 16 : index
    %c0_133 = arith.constant 0 : index
    %151 = vector.load %arg15[%c16, %c0_133] : memref<98x16xf32, #tpu.memory_space<vmem>>, vector<2x16xf32>
    %c8_134 = arith.constant 8 : index
    %c0_135 = arith.constant 0 : index
    %c0_136 = arith.constant 0 : index
    %152 = vector.load %arg8[%c8_134, %c0_135, %c0_136] : memref<49x16x256xf32, #tpu.memory_space<vmem>>, vector<1x16x256xf32>
    %153 = vector.shape_cast %152 : vector<1x16x256xf32> to vector<16x256xf32>
    %cst_137 = arith.constant dense<0.000000e+00> : vector<2x256xf32>
    %154 = tpu.matmul %151, %153, %cst_137 {dimension_numbers = #tpu.dot_dimension_numbers<[1], [0], [0], [1], [0, 0, 1, 1], [], []>} : vector<2x16xf32>, vector<16x256xf32>, vector<2x256xf32> -> vector<2x256xf32>
    %155 = arith.addf %150, %154 : vector<2x256xf32>
    %c18 = arith.constant 18 : index
    %c0_138 = arith.constant 0 : index
    %156 = vector.load %arg15[%c18, %c0_138] : memref<98x16xf32, #tpu.memory_space<vmem>>, vector<2x16xf32>
    %c9 = arith.constant 9 : index
    %c0_139 = arith.constant 0 : index
    %c0_140 = arith.constant 0 : index
    %157 = vector.load %arg8[%c9, %c0_139, %c0_140] : memref<49x16x256xf32, #tpu.memory_space<vmem>>, vector<1x16x256xf32>
    %158 = vector.shape_cast %157 : vector<1x16x256xf32> to vector<16x256xf32>
    %cst_141 = arith.constant dense<0.000000e+00> : vector<2x256xf32>
    %159 = tpu.matmul %156, %158, %cst_141 {dimension_numbers = #tpu.dot_dimension_numbers<[1], [0], [0], [1], [0, 0, 1, 1], [], []>} : vector<2x16xf32>, vector<16x256xf32>, vector<2x256xf32> -> vector<2x256xf32>
    %160 = arith.addf %155, %159 : vector<2x256xf32>
    %c20 = arith.constant 20 : index
    %c0_142 = arith.constant 0 : index
    %161 = vector.load %arg15[%c20, %c0_142] : memref<98x16xf32, #tpu.memory_space<vmem>>, vector<2x16xf32>
    %c10_143 = arith.constant 10 : index
    %c0_144 = arith.constant 0 : index
    %c0_145 = arith.constant 0 : index
    %162 = vector.load %arg8[%c10_143, %c0_144, %c0_145] : memref<49x16x256xf32, #tpu.memory_space<vmem>>, vector<1x16x256xf32>
    %163 = vector.shape_cast %162 : vector<1x16x256xf32> to vector<16x256xf32>
    %cst_146 = arith.constant dense<0.000000e+00> : vector<2x256xf32>
    %164 = tpu.matmul %161, %163, %cst_146 {dimension_numbers = #tpu.dot_dimension_numbers<[1], [0], [0], [1], [0, 0, 1, 1], [], []>} : vector<2x16xf32>, vector<16x256xf32>, vector<2x256xf32> -> vector<2x256xf32>
    %165 = arith.addf %160, %164 : vector<2x256xf32>
    %c22 = arith.constant 22 : index
    %c0_147 = arith.constant 0 : index
    %166 = vector.load %arg15[%c22, %c0_147] : memref<98x16xf32, #tpu.memory_space<vmem>>, vector<2x16xf32>
    %c11 = arith.constant 11 : index
    %c0_148 = arith.constant 0 : index
    %c0_149 = arith.constant 0 : index
    %167 = vector.load %arg8[%c11, %c0_148, %c0_149] : memref<49x16x256xf32, #tpu.memory_space<vmem>>, vector<1x16x256xf32>
    %168 = vector.shape_cast %167 : vector<1x16x256xf32> to vector<16x256xf32>
    %cst_150 = arith.constant dense<0.000000e+00> : vector<2x256xf32>
    %169 = tpu.matmul %166, %168, %cst_150 {dimension_numbers = #tpu.dot_dimension_numbers<[1], [0], [0], [1], [0, 0, 1, 1], [], []>} : vector<2x16xf32>, vector<16x256xf32>, vector<2x256xf32> -> vector<2x256xf32>
    %170 = arith.addf %165, %169 : vector<2x256xf32>
    %c24 = arith.constant 24 : index
    %c0_151 = arith.constant 0 : index
    %171 = vector.load %arg15[%c24, %c0_151] : memref<98x16xf32, #tpu.memory_space<vmem>>, vector<2x16xf32>
    %c12_152 = arith.constant 12 : index
    %c0_153 = arith.constant 0 : index
    %c0_154 = arith.constant 0 : index
    %172 = vector.load %arg8[%c12_152, %c0_153, %c0_154] : memref<49x16x256xf32, #tpu.memory_space<vmem>>, vector<1x16x256xf32>
    %173 = vector.shape_cast %172 : vector<1x16x256xf32> to vector<16x256xf32>
    %cst_155 = arith.constant dense<0.000000e+00> : vector<2x256xf32>
    %174 = tpu.matmul %171, %173, %cst_155 {dimension_numbers = #tpu.dot_dimension_numbers<[1], [0], [0], [1], [0, 0, 1, 1], [], []>} : vector<2x16xf32>, vector<16x256xf32>, vector<2x256xf32> -> vector<2x256xf32>
    %175 = arith.addf %170, %174 : vector<2x256xf32>
    %c26 = arith.constant 26 : index
    %c0_156 = arith.constant 0 : index
    %176 = vector.load %arg15[%c26, %c0_156] : memref<98x16xf32, #tpu.memory_space<vmem>>, vector<2x16xf32>
    %c13 = arith.constant 13 : index
    %c0_157 = arith.constant 0 : index
    %c0_158 = arith.constant 0 : index
    %177 = vector.load %arg8[%c13, %c0_157, %c0_158] : memref<49x16x256xf32, #tpu.memory_space<vmem>>, vector<1x16x256xf32>
    %178 = vector.shape_cast %177 : vector<1x16x256xf32> to vector<16x256xf32>
    %cst_159 = arith.constant dense<0.000000e+00> : vector<2x256xf32>
    %179 = tpu.matmul %176, %178, %cst_159 {dimension_numbers = #tpu.dot_dimension_numbers<[1], [0], [0], [1], [0, 0, 1, 1], [], []>} : vector<2x16xf32>, vector<16x256xf32>, vector<2x256xf32> -> vector<2x256xf32>
    %180 = arith.addf %175, %179 : vector<2x256xf32>
    %c28 = arith.constant 28 : index
    %c0_160 = arith.constant 0 : index
    %181 = vector.load %arg15[%c28, %c0_160] : memref<98x16xf32, #tpu.memory_space<vmem>>, vector<2x16xf32>
    %c14_161 = arith.constant 14 : index
    %c0_162 = arith.constant 0 : index
    %c0_163 = arith.constant 0 : index
    %182 = vector.load %arg8[%c14_161, %c0_162, %c0_163] : memref<49x16x256xf32, #tpu.memory_space<vmem>>, vector<1x16x256xf32>
    %183 = vector.shape_cast %182 : vector<1x16x256xf32> to vector<16x256xf32>
    %cst_164 = arith.constant dense<0.000000e+00> : vector<2x256xf32>
    %184 = tpu.matmul %181, %183, %cst_164 {dimension_numbers = #tpu.dot_dimension_numbers<[1], [0], [0], [1], [0, 0, 1, 1], [], []>} : vector<2x16xf32>, vector<16x256xf32>, vector<2x256xf32> -> vector<2x256xf32>
    %185 = arith.addf %180, %184 : vector<2x256xf32>
    %c30 = arith.constant 30 : index
    %c0_165 = arith.constant 0 : index
    %186 = vector.load %arg15[%c30, %c0_165] : memref<98x16xf32, #tpu.memory_space<vmem>>, vector<2x16xf32>
    %c15 = arith.constant 15 : index
    %c0_166 = arith.constant 0 : index
    %c0_167 = arith.constant 0 : index
    %187 = vector.load %arg8[%c15, %c0_166, %c0_167] : memref<49x16x256xf32, #tpu.memory_space<vmem>>, vector<1x16x256xf32>
    %188 = vector.shape_cast %187 : vector<1x16x256xf32> to vector<16x256xf32>
    %cst_168 = arith.constant dense<0.000000e+00> : vector<2x256xf32>
    %189 = tpu.matmul %186, %188, %cst_168 {dimension_numbers = #tpu.dot_dimension_numbers<[1], [0], [0], [1], [0, 0, 1, 1], [], []>} : vector<2x16xf32>, vector<16x256xf32>, vector<2x256xf32> -> vector<2x256xf32>
    %190 = arith.addf %185, %189 : vector<2x256xf32>
    %c32 = arith.constant 32 : index
    %c0_169 = arith.constant 0 : index
    %191 = vector.load %arg15[%c32, %c0_169] : memref<98x16xf32, #tpu.memory_space<vmem>>, vector<2x16xf32>
    %c16_170 = arith.constant 16 : index
    %c0_171 = arith.constant 0 : index
    %c0_172 = arith.constant 0 : index
    %192 = vector.load %arg8[%c16_170, %c0_171, %c0_172] : memref<49x16x256xf32, #tpu.memory_space<vmem>>, vector<1x16x256xf32>
    %193 = vector.shape_cast %192 : vector<1x16x256xf32> to vector<16x256xf32>
    %cst_173 = arith.constant dense<0.000000e+00> : vector<2x256xf32>
    %194 = tpu.matmul %191, %193, %cst_173 {dimension_numbers = #tpu.dot_dimension_numbers<[1], [0], [0], [1], [0, 0, 1, 1], [], []>} : vector<2x16xf32>, vector<16x256xf32>, vector<2x256xf32> -> vector<2x256xf32>
    %195 = arith.addf %190, %194 : vector<2x256xf32>
    %c34 = arith.constant 34 : index
    %c0_174 = arith.constant 0 : index
    %196 = vector.load %arg15[%c34, %c0_174] : memref<98x16xf32, #tpu.memory_space<vmem>>, vector<2x16xf32>
    %c17 = arith.constant 17 : index
    %c0_175 = arith.constant 0 : index
    %c0_176 = arith.constant 0 : index
    %197 = vector.load %arg8[%c17, %c0_175, %c0_176] : memref<49x16x256xf32, #tpu.memory_space<vmem>>, vector<1x16x256xf32>
    %198 = vector.shape_cast %197 : vector<1x16x256xf32> to vector<16x256xf32>
    %cst_177 = arith.constant dense<0.000000e+00> : vector<2x256xf32>
    %199 = tpu.matmul %196, %198, %cst_177 {dimension_numbers = #tpu.dot_dimension_numbers<[1], [0], [0], [1], [0, 0, 1, 1], [], []>} : vector<2x16xf32>, vector<16x256xf32>, vector<2x256xf32> -> vector<2x256xf32>
    %200 = arith.addf %195, %199 : vector<2x256xf32>
    %c36 = arith.constant 36 : index
    %c0_178 = arith.constant 0 : index
    %201 = vector.load %arg15[%c36, %c0_178] : memref<98x16xf32, #tpu.memory_space<vmem>>, vector<2x16xf32>
    %c18_179 = arith.constant 18 : index
    %c0_180 = arith.constant 0 : index
    %c0_181 = arith.constant 0 : index
    %202 = vector.load %arg8[%c18_179, %c0_180, %c0_181] : memref<49x16x256xf32, #tpu.memory_space<vmem>>, vector<1x16x256xf32>
    %203 = vector.shape_cast %202 : vector<1x16x256xf32> to vector<16x256xf32>
    %cst_182 = arith.constant dense<0.000000e+00> : vector<2x256xf32>
    %204 = tpu.matmul %201, %203, %cst_182 {dimension_numbers = #tpu.dot_dimension_numbers<[1], [0], [0], [1], [0, 0, 1, 1], [], []>} : vector<2x16xf32>, vector<16x256xf32>, vector<2x256xf32> -> vector<2x256xf32>
    %205 = arith.addf %200, %204 : vector<2x256xf32>
    %c38 = arith.constant 38 : index
    %c0_183 = arith.constant 0 : index
    %206 = vector.load %arg15[%c38, %c0_183] : memref<98x16xf32, #tpu.memory_space<vmem>>, vector<2x16xf32>
    %c19 = arith.constant 19 : index
    %c0_184 = arith.constant 0 : index
    %c0_185 = arith.constant 0 : index
    %207 = vector.load %arg8[%c19, %c0_184, %c0_185] : memref<49x16x256xf32, #tpu.memory_space<vmem>>, vector<1x16x256xf32>
    %208 = vector.shape_cast %207 : vector<1x16x256xf32> to vector<16x256xf32>
    %cst_186 = arith.constant dense<0.000000e+00> : vector<2x256xf32>
    %209 = tpu.matmul %206, %208, %cst_186 {dimension_numbers = #tpu.dot_dimension_numbers<[1], [0], [0], [1], [0, 0, 1, 1], [], []>} : vector<2x16xf32>, vector<16x256xf32>, vector<2x256xf32> -> vector<2x256xf32>
    %210 = arith.addf %205, %209 : vector<2x256xf32>
    %c40 = arith.constant 40 : index
    %c0_187 = arith.constant 0 : index
    %211 = vector.load %arg15[%c40, %c0_187] : memref<98x16xf32, #tpu.memory_space<vmem>>, vector<2x16xf32>
    %c20_188 = arith.constant 20 : index
    %c0_189 = arith.constant 0 : index
    %c0_190 = arith.constant 0 : index
    %212 = vector.load %arg8[%c20_188, %c0_189, %c0_190] : memref<49x16x256xf32, #tpu.memory_space<vmem>>, vector<1x16x256xf32>
    %213 = vector.shape_cast %212 : vector<1x16x256xf32> to vector<16x256xf32>
    %cst_191 = arith.constant dense<0.000000e+00> : vector<2x256xf32>
    %214 = tpu.matmul %211, %213, %cst_191 {dimension_numbers = #tpu.dot_dimension_numbers<[1], [0], [0], [1], [0, 0, 1, 1], [], []>} : vector<2x16xf32>, vector<16x256xf32>, vector<2x256xf32> -> vector<2x256xf32>
    %215 = arith.addf %210, %214 : vector<2x256xf32>
    %c42 = arith.constant 42 : index
    %c0_192 = arith.constant 0 : index
    %216 = vector.load %arg15[%c42, %c0_192] : memref<98x16xf32, #tpu.memory_space<vmem>>, vector<2x16xf32>
    %c21 = arith.constant 21 : index
    %c0_193 = arith.constant 0 : index
    %c0_194 = arith.constant 0 : index
    %217 = vector.load %arg8[%c21, %c0_193, %c0_194] : memref<49x16x256xf32, #tpu.memory_space<vmem>>, vector<1x16x256xf32>
    %218 = vector.shape_cast %217 : vector<1x16x256xf32> to vector<16x256xf32>
    %cst_195 = arith.constant dense<0.000000e+00> : vector<2x256xf32>
    %219 = tpu.matmul %216, %218, %cst_195 {dimension_numbers = #tpu.dot_dimension_numbers<[1], [0], [0], [1], [0, 0, 1, 1], [], []>} : vector<2x16xf32>, vector<16x256xf32>, vector<2x256xf32> -> vector<2x256xf32>
    %220 = arith.addf %215, %219 : vector<2x256xf32>
    %c44 = arith.constant 44 : index
    %c0_196 = arith.constant 0 : index
    %221 = vector.load %arg15[%c44, %c0_196] : memref<98x16xf32, #tpu.memory_space<vmem>>, vector<2x16xf32>
    %c22_197 = arith.constant 22 : index
    %c0_198 = arith.constant 0 : index
    %c0_199 = arith.constant 0 : index
    %222 = vector.load %arg8[%c22_197, %c0_198, %c0_199] : memref<49x16x256xf32, #tpu.memory_space<vmem>>, vector<1x16x256xf32>
    %223 = vector.shape_cast %222 : vector<1x16x256xf32> to vector<16x256xf32>
    %cst_200 = arith.constant dense<0.000000e+00> : vector<2x256xf32>
    %224 = tpu.matmul %221, %223, %cst_200 {dimension_numbers = #tpu.dot_dimension_numbers<[1], [0], [0], [1], [0, 0, 1, 1], [], []>} : vector<2x16xf32>, vector<16x256xf32>, vector<2x256xf32> -> vector<2x256xf32>
    %225 = arith.addf %220, %224 : vector<2x256xf32>
    %c46 = arith.constant 46 : index
    %c0_201 = arith.constant 0 : index
    %226 = vector.load %arg15[%c46, %c0_201] : memref<98x16xf32, #tpu.memory_space<vmem>>, vector<2x16xf32>
    %c23 = arith.constant 23 : index
    %c0_202 = arith.constant 0 : index
    %c0_203 = arith.constant 0 : index
    %227 = vector.load %arg8[%c23, %c0_202, %c0_203] : memref<49x16x256xf32, #tpu.memory_space<vmem>>, vector<1x16x256xf32>
    %228 = vector.shape_cast %227 : vector<1x16x256xf32> to vector<16x256xf32>
    %cst_204 = arith.constant dense<0.000000e+00> : vector<2x256xf32>
    %229 = tpu.matmul %226, %228, %cst_204 {dimension_numbers = #tpu.dot_dimension_numbers<[1], [0], [0], [1], [0, 0, 1, 1], [], []>} : vector<2x16xf32>, vector<16x256xf32>, vector<2x256xf32> -> vector<2x256xf32>
    %230 = arith.addf %225, %229 : vector<2x256xf32>
    %c48 = arith.constant 48 : index
    %c0_205 = arith.constant 0 : index
    %231 = vector.load %arg15[%c48, %c0_205] : memref<98x16xf32, #tpu.memory_space<vmem>>, vector<2x16xf32>
    %c24_206 = arith.constant 24 : index
    %c0_207 = arith.constant 0 : index
    %c0_208 = arith.constant 0 : index
    %232 = vector.load %arg8[%c24_206, %c0_207, %c0_208] : memref<49x16x256xf32, #tpu.memory_space<vmem>>, vector<1x16x256xf32>
    %233 = vector.shape_cast %232 : vector<1x16x256xf32> to vector<16x256xf32>
    %cst_209 = arith.constant dense<0.000000e+00> : vector<2x256xf32>
    %234 = tpu.matmul %231, %233, %cst_209 {dimension_numbers = #tpu.dot_dimension_numbers<[1], [0], [0], [1], [0, 0, 1, 1], [], []>} : vector<2x16xf32>, vector<16x256xf32>, vector<2x256xf32> -> vector<2x256xf32>
    %235 = arith.addf %230, %234 : vector<2x256xf32>
    %c50 = arith.constant 50 : index
    %c0_210 = arith.constant 0 : index
    %236 = vector.load %arg15[%c50, %c0_210] : memref<98x16xf32, #tpu.memory_space<vmem>>, vector<2x16xf32>
    %c25 = arith.constant 25 : index
    %c0_211 = arith.constant 0 : index
    %c0_212 = arith.constant 0 : index
    %237 = vector.load %arg8[%c25, %c0_211, %c0_212] : memref<49x16x256xf32, #tpu.memory_space<vmem>>, vector<1x16x256xf32>
    %238 = vector.shape_cast %237 : vector<1x16x256xf32> to vector<16x256xf32>
    %cst_213 = arith.constant dense<0.000000e+00> : vector<2x256xf32>
    %239 = tpu.matmul %236, %238, %cst_213 {dimension_numbers = #tpu.dot_dimension_numbers<[1], [0], [0], [1], [0, 0, 1, 1], [], []>} : vector<2x16xf32>, vector<16x256xf32>, vector<2x256xf32> -> vector<2x256xf32>
    %240 = arith.addf %235, %239 : vector<2x256xf32>
    %c52 = arith.constant 52 : index
    %c0_214 = arith.constant 0 : index
    %241 = vector.load %arg15[%c52, %c0_214] : memref<98x16xf32, #tpu.memory_space<vmem>>, vector<2x16xf32>
    %c26_215 = arith.constant 26 : index
    %c0_216 = arith.constant 0 : index
    %c0_217 = arith.constant 0 : index
    %242 = vector.load %arg8[%c26_215, %c0_216, %c0_217] : memref<49x16x256xf32, #tpu.memory_space<vmem>>, vector<1x16x256xf32>
    %243 = vector.shape_cast %242 : vector<1x16x256xf32> to vector<16x256xf32>
    %cst_218 = arith.constant dense<0.000000e+00> : vector<2x256xf32>
    %244 = tpu.matmul %241, %243, %cst_218 {dimension_numbers = #tpu.dot_dimension_numbers<[1], [0], [0], [1], [0, 0, 1, 1], [], []>} : vector<2x16xf32>, vector<16x256xf32>, vector<2x256xf32> -> vector<2x256xf32>
    %245 = arith.addf %240, %244 : vector<2x256xf32>
    %c54 = arith.constant 54 : index
    %c0_219 = arith.constant 0 : index
    %246 = vector.load %arg15[%c54, %c0_219] : memref<98x16xf32, #tpu.memory_space<vmem>>, vector<2x16xf32>
    %c27 = arith.constant 27 : index
    %c0_220 = arith.constant 0 : index
    %c0_221 = arith.constant 0 : index
    %247 = vector.load %arg8[%c27, %c0_220, %c0_221] : memref<49x16x256xf32, #tpu.memory_space<vmem>>, vector<1x16x256xf32>
    %248 = vector.shape_cast %247 : vector<1x16x256xf32> to vector<16x256xf32>
    %cst_222 = arith.constant dense<0.000000e+00> : vector<2x256xf32>
    %249 = tpu.matmul %246, %248, %cst_222 {dimension_numbers = #tpu.dot_dimension_numbers<[1], [0], [0], [1], [0, 0, 1, 1], [], []>} : vector<2x16xf32>, vector<16x256xf32>, vector<2x256xf32> -> vector<2x256xf32>
    %250 = arith.addf %245, %249 : vector<2x256xf32>
    %c56 = arith.constant 56 : index
    %c0_223 = arith.constant 0 : index
    %251 = vector.load %arg15[%c56, %c0_223] : memref<98x16xf32, #tpu.memory_space<vmem>>, vector<2x16xf32>
    %c28_224 = arith.constant 28 : index
    %c0_225 = arith.constant 0 : index
    %c0_226 = arith.constant 0 : index
    %252 = vector.load %arg8[%c28_224, %c0_225, %c0_226] : memref<49x16x256xf32, #tpu.memory_space<vmem>>, vector<1x16x256xf32>
    %253 = vector.shape_cast %252 : vector<1x16x256xf32> to vector<16x256xf32>
    %cst_227 = arith.constant dense<0.000000e+00> : vector<2x256xf32>
    %254 = tpu.matmul %251, %253, %cst_227 {dimension_numbers = #tpu.dot_dimension_numbers<[1], [0], [0], [1], [0, 0, 1, 1], [], []>} : vector<2x16xf32>, vector<16x256xf32>, vector<2x256xf32> -> vector<2x256xf32>
    %255 = arith.addf %250, %254 : vector<2x256xf32>
    %c58 = arith.constant 58 : index
    %c0_228 = arith.constant 0 : index
    %256 = vector.load %arg15[%c58, %c0_228] : memref<98x16xf32, #tpu.memory_space<vmem>>, vector<2x16xf32>
    %c29 = arith.constant 29 : index
    %c0_229 = arith.constant 0 : index
    %c0_230 = arith.constant 0 : index
    %257 = vector.load %arg8[%c29, %c0_229, %c0_230] : memref<49x16x256xf32, #tpu.memory_space<vmem>>, vector<1x16x256xf32>
    %258 = vector.shape_cast %257 : vector<1x16x256xf32> to vector<16x256xf32>
    %cst_231 = arith.constant dense<0.000000e+00> : vector<2x256xf32>
    %259 = tpu.matmul %256, %258, %cst_231 {dimension_numbers = #tpu.dot_dimension_numbers<[1], [0], [0], [1], [0, 0, 1, 1], [], []>} : vector<2x16xf32>, vector<16x256xf32>, vector<2x256xf32> -> vector<2x256xf32>
    %260 = arith.addf %255, %259 : vector<2x256xf32>
    %c60 = arith.constant 60 : index
    %c0_232 = arith.constant 0 : index
    %261 = vector.load %arg15[%c60, %c0_232] : memref<98x16xf32, #tpu.memory_space<vmem>>, vector<2x16xf32>
    %c30_233 = arith.constant 30 : index
    %c0_234 = arith.constant 0 : index
    %c0_235 = arith.constant 0 : index
    %262 = vector.load %arg8[%c30_233, %c0_234, %c0_235] : memref<49x16x256xf32, #tpu.memory_space<vmem>>, vector<1x16x256xf32>
    %263 = vector.shape_cast %262 : vector<1x16x256xf32> to vector<16x256xf32>
    %cst_236 = arith.constant dense<0.000000e+00> : vector<2x256xf32>
    %264 = tpu.matmul %261, %263, %cst_236 {dimension_numbers = #tpu.dot_dimension_numbers<[1], [0], [0], [1], [0, 0, 1, 1], [], []>} : vector<2x16xf32>, vector<16x256xf32>, vector<2x256xf32> -> vector<2x256xf32>
    %265 = arith.addf %260, %264 : vector<2x256xf32>
    %c62 = arith.constant 62 : index
    %c0_237 = arith.constant 0 : index
    %266 = vector.load %arg15[%c62, %c0_237] : memref<98x16xf32, #tpu.memory_space<vmem>>, vector<2x16xf32>
    %c31 = arith.constant 31 : index
    %c0_238 = arith.constant 0 : index
    %c0_239 = arith.constant 0 : index
    %267 = vector.load %arg8[%c31, %c0_238, %c0_239] : memref<49x16x256xf32, #tpu.memory_space<vmem>>, vector<1x16x256xf32>
    %268 = vector.shape_cast %267 : vector<1x16x256xf32> to vector<16x256xf32>
    %cst_240 = arith.constant dense<0.000000e+00> : vector<2x256xf32>
    %269 = tpu.matmul %266, %268, %cst_240 {dimension_numbers = #tpu.dot_dimension_numbers<[1], [0], [0], [1], [0, 0, 1, 1], [], []>} : vector<2x16xf32>, vector<16x256xf32>, vector<2x256xf32> -> vector<2x256xf32>
    %270 = arith.addf %265, %269 : vector<2x256xf32>
    %c64 = arith.constant 64 : index
    %c0_241 = arith.constant 0 : index
    %271 = vector.load %arg15[%c64, %c0_241] : memref<98x16xf32, #tpu.memory_space<vmem>>, vector<2x16xf32>
    %c32_242 = arith.constant 32 : index
    %c0_243 = arith.constant 0 : index
    %c0_244 = arith.constant 0 : index
    %272 = vector.load %arg8[%c32_242, %c0_243, %c0_244] : memref<49x16x256xf32, #tpu.memory_space<vmem>>, vector<1x16x256xf32>
    %273 = vector.shape_cast %272 : vector<1x16x256xf32> to vector<16x256xf32>
    %cst_245 = arith.constant dense<0.000000e+00> : vector<2x256xf32>
    %274 = tpu.matmul %271, %273, %cst_245 {dimension_numbers = #tpu.dot_dimension_numbers<[1], [0], [0], [1], [0, 0, 1, 1], [], []>} : vector<2x16xf32>, vector<16x256xf32>, vector<2x256xf32> -> vector<2x256xf32>
    %275 = arith.addf %270, %274 : vector<2x256xf32>
    %c66 = arith.constant 66 : index
    %c0_246 = arith.constant 0 : index
    %276 = vector.load %arg15[%c66, %c0_246] : memref<98x16xf32, #tpu.memory_space<vmem>>, vector<2x16xf32>
    %c33 = arith.constant 33 : index
    %c0_247 = arith.constant 0 : index
    %c0_248 = arith.constant 0 : index
    %277 = vector.load %arg8[%c33, %c0_247, %c0_248] : memref<49x16x256xf32, #tpu.memory_space<vmem>>, vector<1x16x256xf32>
    %278 = vector.shape_cast %277 : vector<1x16x256xf32> to vector<16x256xf32>
    %cst_249 = arith.constant dense<0.000000e+00> : vector<2x256xf32>
    %279 = tpu.matmul %276, %278, %cst_249 {dimension_numbers = #tpu.dot_dimension_numbers<[1], [0], [0], [1], [0, 0, 1, 1], [], []>} : vector<2x16xf32>, vector<16x256xf32>, vector<2x256xf32> -> vector<2x256xf32>
    %280 = arith.addf %275, %279 : vector<2x256xf32>
    %c68 = arith.constant 68 : index
    %c0_250 = arith.constant 0 : index
    %281 = vector.load %arg15[%c68, %c0_250] : memref<98x16xf32, #tpu.memory_space<vmem>>, vector<2x16xf32>
    %c34_251 = arith.constant 34 : index
    %c0_252 = arith.constant 0 : index
    %c0_253 = arith.constant 0 : index
    %282 = vector.load %arg8[%c34_251, %c0_252, %c0_253] : memref<49x16x256xf32, #tpu.memory_space<vmem>>, vector<1x16x256xf32>
    %283 = vector.shape_cast %282 : vector<1x16x256xf32> to vector<16x256xf32>
    %cst_254 = arith.constant dense<0.000000e+00> : vector<2x256xf32>
    %284 = tpu.matmul %281, %283, %cst_254 {dimension_numbers = #tpu.dot_dimension_numbers<[1], [0], [0], [1], [0, 0, 1, 1], [], []>} : vector<2x16xf32>, vector<16x256xf32>, vector<2x256xf32> -> vector<2x256xf32>
    %285 = arith.addf %280, %284 : vector<2x256xf32>
    %c70 = arith.constant 70 : index
    %c0_255 = arith.constant 0 : index
    %286 = vector.load %arg15[%c70, %c0_255] : memref<98x16xf32, #tpu.memory_space<vmem>>, vector<2x16xf32>
    %c35 = arith.constant 35 : index
    %c0_256 = arith.constant 0 : index
    %c0_257 = arith.constant 0 : index
    %287 = vector.load %arg8[%c35, %c0_256, %c0_257] : memref<49x16x256xf32, #tpu.memory_space<vmem>>, vector<1x16x256xf32>
    %288 = vector.shape_cast %287 : vector<1x16x256xf32> to vector<16x256xf32>
    %cst_258 = arith.constant dense<0.000000e+00> : vector<2x256xf32>
    %289 = tpu.matmul %286, %288, %cst_258 {dimension_numbers = #tpu.dot_dimension_numbers<[1], [0], [0], [1], [0, 0, 1, 1], [], []>} : vector<2x16xf32>, vector<16x256xf32>, vector<2x256xf32> -> vector<2x256xf32>
    %290 = arith.addf %285, %289 : vector<2x256xf32>
    %c72 = arith.constant 72 : index
    %c0_259 = arith.constant 0 : index
    %291 = vector.load %arg15[%c72, %c0_259] : memref<98x16xf32, #tpu.memory_space<vmem>>, vector<2x16xf32>
    %c36_260 = arith.constant 36 : index
    %c0_261 = arith.constant 0 : index
    %c0_262 = arith.constant 0 : index
    %292 = vector.load %arg8[%c36_260, %c0_261, %c0_262] : memref<49x16x256xf32, #tpu.memory_space<vmem>>, vector<1x16x256xf32>
    %293 = vector.shape_cast %292 : vector<1x16x256xf32> to vector<16x256xf32>
    %cst_263 = arith.constant dense<0.000000e+00> : vector<2x256xf32>
    %294 = tpu.matmul %291, %293, %cst_263 {dimension_numbers = #tpu.dot_dimension_numbers<[1], [0], [0], [1], [0, 0, 1, 1], [], []>} : vector<2x16xf32>, vector<16x256xf32>, vector<2x256xf32> -> vector<2x256xf32>
    %295 = arith.addf %290, %294 : vector<2x256xf32>
    %c74 = arith.constant 74 : index
    %c0_264 = arith.constant 0 : index
    %296 = vector.load %arg15[%c74, %c0_264] : memref<98x16xf32, #tpu.memory_space<vmem>>, vector<2x16xf32>
    %c37 = arith.constant 37 : index
    %c0_265 = arith.constant 0 : index
    %c0_266 = arith.constant 0 : index
    %297 = vector.load %arg8[%c37, %c0_265, %c0_266] : memref<49x16x256xf32, #tpu.memory_space<vmem>>, vector<1x16x256xf32>
    %298 = vector.shape_cast %297 : vector<1x16x256xf32> to vector<16x256xf32>
    %cst_267 = arith.constant dense<0.000000e+00> : vector<2x256xf32>
    %299 = tpu.matmul %296, %298, %cst_267 {dimension_numbers = #tpu.dot_dimension_numbers<[1], [0], [0], [1], [0, 0, 1, 1], [], []>} : vector<2x16xf32>, vector<16x256xf32>, vector<2x256xf32> -> vector<2x256xf32>
    %300 = arith.addf %295, %299 : vector<2x256xf32>
    %c76 = arith.constant 76 : index
    %c0_268 = arith.constant 0 : index
    %301 = vector.load %arg15[%c76, %c0_268] : memref<98x16xf32, #tpu.memory_space<vmem>>, vector<2x16xf32>
    %c38_269 = arith.constant 38 : index
    %c0_270 = arith.constant 0 : index
    %c0_271 = arith.constant 0 : index
    %302 = vector.load %arg8[%c38_269, %c0_270, %c0_271] : memref<49x16x256xf32, #tpu.memory_space<vmem>>, vector<1x16x256xf32>
    %303 = vector.shape_cast %302 : vector<1x16x256xf32> to vector<16x256xf32>
    %cst_272 = arith.constant dense<0.000000e+00> : vector<2x256xf32>
    %304 = tpu.matmul %301, %303, %cst_272 {dimension_numbers = #tpu.dot_dimension_numbers<[1], [0], [0], [1], [0, 0, 1, 1], [], []>} : vector<2x16xf32>, vector<16x256xf32>, vector<2x256xf32> -> vector<2x256xf32>
    %305 = arith.addf %300, %304 : vector<2x256xf32>
    %c78 = arith.constant 78 : index
    %c0_273 = arith.constant 0 : index
    %306 = vector.load %arg15[%c78, %c0_273] : memref<98x16xf32, #tpu.memory_space<vmem>>, vector<2x16xf32>
    %c39 = arith.constant 39 : index
    %c0_274 = arith.constant 0 : index
    %c0_275 = arith.constant 0 : index
    %307 = vector.load %arg8[%c39, %c0_274, %c0_275] : memref<49x16x256xf32, #tpu.memory_space<vmem>>, vector<1x16x256xf32>
    %308 = vector.shape_cast %307 : vector<1x16x256xf32> to vector<16x256xf32>
    %cst_276 = arith.constant dense<0.000000e+00> : vector<2x256xf32>
    %309 = tpu.matmul %306, %308, %cst_276 {dimension_numbers = #tpu.dot_dimension_numbers<[1], [0], [0], [1], [0, 0, 1, 1], [], []>} : vector<2x16xf32>, vector<16x256xf32>, vector<2x256xf32> -> vector<2x256xf32>
    %310 = arith.addf %305, %309 : vector<2x256xf32>
    %c80 = arith.constant 80 : index
    %c0_277 = arith.constant 0 : index
    %311 = vector.load %arg15[%c80, %c0_277] : memref<98x16xf32, #tpu.memory_space<vmem>>, vector<2x16xf32>
    %c40_278 = arith.constant 40 : index
    %c0_279 = arith.constant 0 : index
    %c0_280 = arith.constant 0 : index
    %312 = vector.load %arg8[%c40_278, %c0_279, %c0_280] : memref<49x16x256xf32, #tpu.memory_space<vmem>>, vector<1x16x256xf32>
    %313 = vector.shape_cast %312 : vector<1x16x256xf32> to vector<16x256xf32>
    %cst_281 = arith.constant dense<0.000000e+00> : vector<2x256xf32>
    %314 = tpu.matmul %311, %313, %cst_281 {dimension_numbers = #tpu.dot_dimension_numbers<[1], [0], [0], [1], [0, 0, 1, 1], [], []>} : vector<2x16xf32>, vector<16x256xf32>, vector<2x256xf32> -> vector<2x256xf32>
    %315 = arith.addf %310, %314 : vector<2x256xf32>
    %c82 = arith.constant 82 : index
    %c0_282 = arith.constant 0 : index
    %316 = vector.load %arg15[%c82, %c0_282] : memref<98x16xf32, #tpu.memory_space<vmem>>, vector<2x16xf32>
    %c41 = arith.constant 41 : index
    %c0_283 = arith.constant 0 : index
    %c0_284 = arith.constant 0 : index
    %317 = vector.load %arg8[%c41, %c0_283, %c0_284] : memref<49x16x256xf32, #tpu.memory_space<vmem>>, vector<1x16x256xf32>
    %318 = vector.shape_cast %317 : vector<1x16x256xf32> to vector<16x256xf32>
    %cst_285 = arith.constant dense<0.000000e+00> : vector<2x256xf32>
    %319 = tpu.matmul %316, %318, %cst_285 {dimension_numbers = #tpu.dot_dimension_numbers<[1], [0], [0], [1], [0, 0, 1, 1], [], []>} : vector<2x16xf32>, vector<16x256xf32>, vector<2x256xf32> -> vector<2x256xf32>
    %320 = arith.addf %315, %319 : vector<2x256xf32>
    %c84 = arith.constant 84 : index
    %c0_286 = arith.constant 0 : index
    %321 = vector.load %arg15[%c84, %c0_286] : memref<98x16xf32, #tpu.memory_space<vmem>>, vector<2x16xf32>
    %c42_287 = arith.constant 42 : index
    %c0_288 = arith.constant 0 : index
    %c0_289 = arith.constant 0 : index
    %322 = vector.load %arg8[%c42_287, %c0_288, %c0_289] : memref<49x16x256xf32, #tpu.memory_space<vmem>>, vector<1x16x256xf32>
    %323 = vector.shape_cast %322 : vector<1x16x256xf32> to vector<16x256xf32>
    %cst_290 = arith.constant dense<0.000000e+00> : vector<2x256xf32>
    %324 = tpu.matmul %321, %323, %cst_290 {dimension_numbers = #tpu.dot_dimension_numbers<[1], [0], [0], [1], [0, 0, 1, 1], [], []>} : vector<2x16xf32>, vector<16x256xf32>, vector<2x256xf32> -> vector<2x256xf32>
    %325 = arith.addf %320, %324 : vector<2x256xf32>
    %c86 = arith.constant 86 : index
    %c0_291 = arith.constant 0 : index
    %326 = vector.load %arg15[%c86, %c0_291] : memref<98x16xf32, #tpu.memory_space<vmem>>, vector<2x16xf32>
    %c43 = arith.constant 43 : index
    %c0_292 = arith.constant 0 : index
    %c0_293 = arith.constant 0 : index
    %327 = vector.load %arg8[%c43, %c0_292, %c0_293] : memref<49x16x256xf32, #tpu.memory_space<vmem>>, vector<1x16x256xf32>
    %328 = vector.shape_cast %327 : vector<1x16x256xf32> to vector<16x256xf32>
    %cst_294 = arith.constant dense<0.000000e+00> : vector<2x256xf32>
    %329 = tpu.matmul %326, %328, %cst_294 {dimension_numbers = #tpu.dot_dimension_numbers<[1], [0], [0], [1], [0, 0, 1, 1], [], []>} : vector<2x16xf32>, vector<16x256xf32>, vector<2x256xf32> -> vector<2x256xf32>
    %330 = arith.addf %325, %329 : vector<2x256xf32>
    %c88 = arith.constant 88 : index
    %c0_295 = arith.constant 0 : index
    %331 = vector.load %arg15[%c88, %c0_295] : memref<98x16xf32, #tpu.memory_space<vmem>>, vector<2x16xf32>
    %c44_296 = arith.constant 44 : index
    %c0_297 = arith.constant 0 : index
    %c0_298 = arith.constant 0 : index
    %332 = vector.load %arg8[%c44_296, %c0_297, %c0_298] : memref<49x16x256xf32, #tpu.memory_space<vmem>>, vector<1x16x256xf32>
    %333 = vector.shape_cast %332 : vector<1x16x256xf32> to vector<16x256xf32>
    %cst_299 = arith.constant dense<0.000000e+00> : vector<2x256xf32>
    %334 = tpu.matmul %331, %333, %cst_299 {dimension_numbers = #tpu.dot_dimension_numbers<[1], [0], [0], [1], [0, 0, 1, 1], [], []>} : vector<2x16xf32>, vector<16x256xf32>, vector<2x256xf32> -> vector<2x256xf32>
    %335 = arith.addf %330, %334 : vector<2x256xf32>
    %c90 = arith.constant 90 : index
    %c0_300 = arith.constant 0 : index
    %336 = vector.load %arg15[%c90, %c0_300] : memref<98x16xf32, #tpu.memory_space<vmem>>, vector<2x16xf32>
    %c45 = arith.constant 45 : index
    %c0_301 = arith.constant 0 : index
    %c0_302 = arith.constant 0 : index
    %337 = vector.load %arg8[%c45, %c0_301, %c0_302] : memref<49x16x256xf32, #tpu.memory_space<vmem>>, vector<1x16x256xf32>
    %338 = vector.shape_cast %337 : vector<1x16x256xf32> to vector<16x256xf32>
    %cst_303 = arith.constant dense<0.000000e+00> : vector<2x256xf32>
    %339 = tpu.matmul %336, %338, %cst_303 {dimension_numbers = #tpu.dot_dimension_numbers<[1], [0], [0], [1], [0, 0, 1, 1], [], []>} : vector<2x16xf32>, vector<16x256xf32>, vector<2x256xf32> -> vector<2x256xf32>
    %340 = arith.addf %335, %339 : vector<2x256xf32>
    %c92 = arith.constant 92 : index
    %c0_304 = arith.constant 0 : index
    %341 = vector.load %arg15[%c92, %c0_304] : memref<98x16xf32, #tpu.memory_space<vmem>>, vector<2x16xf32>
    %c46_305 = arith.constant 46 : index
    %c0_306 = arith.constant 0 : index
    %c0_307 = arith.constant 0 : index
    %342 = vector.load %arg8[%c46_305, %c0_306, %c0_307] : memref<49x16x256xf32, #tpu.memory_space<vmem>>, vector<1x16x256xf32>
    %343 = vector.shape_cast %342 : vector<1x16x256xf32> to vector<16x256xf32>
    %cst_308 = arith.constant dense<0.000000e+00> : vector<2x256xf32>
    %344 = tpu.matmul %341, %343, %cst_308 {dimension_numbers = #tpu.dot_dimension_numbers<[1], [0], [0], [1], [0, 0, 1, 1], [], []>} : vector<2x16xf32>, vector<16x256xf32>, vector<2x256xf32> -> vector<2x256xf32>
    %345 = arith.addf %340, %344 : vector<2x256xf32>
    %c94 = arith.constant 94 : index
    %c0_309 = arith.constant 0 : index
    %346 = vector.load %arg15[%c94, %c0_309] : memref<98x16xf32, #tpu.memory_space<vmem>>, vector<2x16xf32>
    %c47 = arith.constant 47 : index
    %c0_310 = arith.constant 0 : index
    %c0_311 = arith.constant 0 : index
    %347 = vector.load %arg8[%c47, %c0_310, %c0_311] : memref<49x16x256xf32, #tpu.memory_space<vmem>>, vector<1x16x256xf32>
    %348 = vector.shape_cast %347 : vector<1x16x256xf32> to vector<16x256xf32>
    %cst_312 = arith.constant dense<0.000000e+00> : vector<2x256xf32>
    %349 = tpu.matmul %346, %348, %cst_312 {dimension_numbers = #tpu.dot_dimension_numbers<[1], [0], [0], [1], [0, 0, 1, 1], [], []>} : vector<2x16xf32>, vector<16x256xf32>, vector<2x256xf32> -> vector<2x256xf32>
    %350 = arith.addf %345, %349 : vector<2x256xf32>
    %c96 = arith.constant 96 : index
    %c0_313 = arith.constant 0 : index
    %351 = vector.load %arg15[%c96, %c0_313] : memref<98x16xf32, #tpu.memory_space<vmem>>, vector<2x16xf32>
    %c48_314 = arith.constant 48 : index
    %c0_315 = arith.constant 0 : index
    %c0_316 = arith.constant 0 : index
    %352 = vector.load %arg8[%c48_314, %c0_315, %c0_316] : memref<49x16x256xf32, #tpu.memory_space<vmem>>, vector<1x16x256xf32>
    %353 = vector.shape_cast %352 : vector<1x16x256xf32> to vector<16x256xf32>
    %cst_317 = arith.constant dense<0.000000e+00> : vector<2x256xf32>
    %354 = tpu.matmul %351, %353, %cst_317 {dimension_numbers = #tpu.dot_dimension_numbers<[1], [0], [0], [1], [0, 0, 1, 1], [], []>} : vector<2x16xf32>, vector<16x256xf32>, vector<2x256xf32> -> vector<2x256xf32>
    %355 = arith.addf %350, %354 : vector<2x256xf32>
    %c0_318 = arith.constant 0 : index
    %c0_319 = arith.constant 0 : index
    %356 = vector.load %arg9[%c0_318, %c0_319] : memref<1x256xf32, #tpu.memory_space<vmem>>, vector<1x256xf32>
    %357 = vector.broadcast %356 : vector<1x256xf32> to vector<2x256xf32>
    %358 = arith.addf %355, %357 : vector<2x256xf32>
    %cst_320 = arith.constant dense<0.000000e+00> : vector<256xf32>
    %359 = vector.multi_reduction <add>, %358, %cst_320 [0] : vector<2x256xf32> to vector<256xf32>
    %360 = vector.shape_cast %359 : vector<256xf32> to vector<1x256xf32>
    %cst_321 = arith.constant 2.000000e+00 : f32
    %361 = vector.broadcast %cst_321 : f32 to vector<1x256xf32>
    %362 = arith.divf %360, %361 : vector<1x256xf32>
    %363 = vector.broadcast %362 : vector<1x256xf32> to vector<2x256xf32>
    %364 = arith.subf %358, %363 : vector<2x256xf32>
    %365 = vector.broadcast %362 : vector<1x256xf32> to vector<2x256xf32>
    %366 = arith.subf %358, %365 : vector<2x256xf32>
    %367 = arith.mulf %364, %366 : vector<2x256xf32>
    %cst_322 = arith.constant dense<0.000000e+00> : vector<256xf32>
    %368 = vector.multi_reduction <add>, %367, %cst_322 [0] : vector<2x256xf32> to vector<256xf32>
    %369 = vector.shape_cast %368 : vector<256xf32> to vector<1x256xf32>
    %cst_323 = arith.constant 2.000000e+00 : f32
    %370 = vector.broadcast %cst_323 : f32 to vector<1x256xf32>
    %371 = arith.divf %369, %370 : vector<1x256xf32>
    %c0_324 = arith.constant 0 : index
    %c0_325 = arith.constant 0 : index
    %372 = vector.load %arg10[%c0_324, %c0_325] : memref<1x256xf32, #tpu.memory_space<vmem>>, vector<1x256xf32>
    %373 = vector.broadcast %362 : vector<1x256xf32> to vector<2x256xf32>
    %374 = arith.subf %358, %373 : vector<2x256xf32>
    %cst_326 = arith.constant 9.99999974E-6 : f32
    %375 = vector.broadcast %cst_326 : f32 to vector<1x256xf32>
    %376 = arith.addf %371, %375 : vector<1x256xf32>
    %377 = math.rsqrt %376 : vector<1x256xf32>
    %378 = vector.broadcast %377 : vector<1x256xf32> to vector<2x256xf32>
    %379 = arith.mulf %374, %378 : vector<2x256xf32>
    %380 = vector.broadcast %372 : vector<1x256xf32> to vector<2x256xf32>
    %381 = arith.mulf %380, %379 : vector<2x256xf32>
    %c0_327 = arith.constant 0 : index
    %c0_328 = arith.constant 0 : index
    %382 = vector.load %arg11[%c0_327, %c0_328] : memref<1x256xf32, #tpu.memory_space<vmem>>, vector<1x256xf32>
    %383 = vector.broadcast %382 : vector<1x256xf32> to vector<2x256xf32>
    %384 = arith.addf %381, %383 : vector<2x256xf32>
    %cst_329 = arith.constant 0.000000e+00 : f32
    %385 = vector.broadcast %cst_329 : f32 to vector<2x256xf32>
    %386 = arith.cmpf oge, %384, %385 : vector<2x256xf32>
    %cst_330 = arith.constant 2.000000e-01 : f32
    %387 = vector.broadcast %cst_330 : f32 to vector<2x256xf32>
    %388 = arith.mulf %387, %384 : vector<2x256xf32>
    %389 = arith.select %386, %384, %388 : vector<2x256xi1>, vector<2x256xf32>
    %c0_331 = arith.constant 0 : index
    %c0_332 = arith.constant 0 : index
    %390 = vector.load %arg12[%c0_331, %c0_332] : memref<256x128xf32, #tpu.memory_space<vmem>>, vector<256x128xf32>
    %cst_333 = arith.constant dense<0.000000e+00> : vector<2x128xf32>
    %391 = tpu.matmul %389, %390, %cst_333 {dimension_numbers = #tpu.dot_dimension_numbers<[1], [0], [0], [1], [0, 0, 1, 1], [], []>} : vector<2x256xf32>, vector<256x128xf32>, vector<2x128xf32> -> vector<2x128xf32>
    %c0_334 = arith.constant 0 : index
    %c0_335 = arith.constant 0 : index
    %392 = vector.load %arg13[%c0_334, %c0_335] : memref<1x128xf32, #tpu.memory_space<vmem>>, vector<1x128xf32>
    %393 = vector.broadcast %392 : vector<1x128xf32> to vector<2x128xf32>
    %394 = arith.addf %391, %393 : vector<2x128xf32>
    %c0_336 = arith.constant 0 : index
    %c0_337 = arith.constant 0 : index
    %395 = vector.load %arg14[%c0_336, %c0_337] : memref<2x128xf32, #tpu.memory_space<vmem>>, vector<2x128xf32>
    tpu.vector_store %arg14[%c0_336, %c0_337], %394 {strides = array<i32>} : memref<2x128xf32, #tpu.memory_space<vmem>>, vector<2x128xf32>,
    return
  }
}

</mosaic_0001>

<llo_original>
// kernel: encoder_forward.1
$region0: #{encoder_forward.1}
  #allocation0 [shape = 'u32[]', space=smem, size = 0x4, offset = 0x4, fixed_abs, tag = 'smem constant byte address 0x4 - core index']
  #allocation1 [shape = 'u32[144,128]{1,0:T(1,128)}', space=vmem, size = 0x12000, scoped, tag = 'internal scratch']
  #allocation2 [shape = 'f32[98,16]{1,0:T(8,128)}', space=vmem, size = 0xd000, scoped, tag = 'scratch operand']
  %s0 = inlined_call_operand.vmem [shape: f32[450,9], index: 0, kind: input, shape index: {}]
  %s1 = inlined_call_operand.vmem [shape: f32[9,16], index: 1, kind: input, shape index: {}]
  %s2 = inlined_call_operand.vmem [shape: f32[1,16], index: 2, kind: input, shape index: {}]
  %s3 = inlined_call_operand.vmem [shape: f32[9,98,450], index: 3, kind: input, shape index: {}]
  %s4 = inlined_call_operand.vmem [shape: f32[9,16,16], index: 4, kind: input, shape index: {}]
  %s5 = inlined_call_operand.vmem [shape: f32[1,16], index: 5, kind: input, shape index: {}]
  %s6 = inlined_call_operand.vmem [shape: f32[1,16], index: 6, kind: input, shape index: {}]
  %s7 = inlined_call_operand.vmem [shape: f32[1,16], index: 7, kind: input, shape index: {}]
  %s8 = inlined_call_operand.vmem [shape: f32[49,16,256], index: 8, kind: input, shape index: {}]
  %s9 = inlined_call_operand.vmem [shape: f32[1,256], index: 9, kind: input, shape index: {}]
  %s10 = inlined_call_operand.vmem [shape: f32[1,256], index: 10, kind: input, shape index: {}]
  %s11 = inlined_call_operand.vmem [shape: f32[1,256], index: 11, kind: input, shape index: {}]
  %s12 = inlined_call_operand.hbm [shape: f32[256,128], index: 12, kind: input, shape index: {}]
  %s13 = inlined_call_operand.vmem [shape: f32[1,128], index: 13, kind: input, shape index: {}]
  %s14 = inlined_call_operand.hbm [shape: f32[2,128], index: 14, kind: output, shape index: {}]
  %s15 = sld [smem:[#allocation0]]
  $region70: #{encoder_forward.1} parent=0
    _
  %s17 = ssub.s32 1, %s15
  %s18 = scalar_select 0, %s17, %s15
  $region1: #{encoder_forward.1} parent=0
    #allocation3 [shape = 'u8[131072]{0}', space=vmem, size = 0x20000, scoped, tag = 'input window, operand 12, single buffered']
    #allocation4 [shape = 's32[1]{0}', space=sflag, size = 0x4, scoped, tag = 'scoped memory for encoder_forward.1']
    #allocation5 [shape = 's32[1]{0}', space=sflag, size = 0x4, scoped, tag = 'scoped memory for encoder_forward.1']
    #allocation6 [shape = 'u8[1024]{0}', space=vmem, size = 0x400, scoped, tag = 'output window, operand 0, single buffered']
    %19 = vsyncpa [#allocation4], 0
    %20 = vsyncpa [#allocation5], 0
    // Predicated region
    $region2: #{encoder_forward.1} parent=1 // pred_check
      _
    $region3: #{encoder_forward.1} parent=1 // pred_check_branch
      %22 = sbr.rel (0) target = $region5
    $region4: #{encoder_forward.1} parent=1 // pred_region
      _
    $region5: #{encoder_forward.1} parent=1 // pred_fallthru
      _
    // Predicated region
    $region6: #{encoder_forward.1} parent=1 // pred_check
      _
    $region7: #{encoder_forward.1} parent=1 // pred_check_branch
      %24 = sbr.rel (0) target = $region9
    $region8: #{encoder_forward.1} parent=1 // pred_region
      _
    $region9: #{encoder_forward.1} parent=1 // pred_fallthru
      _
    // Predicated region
    $region10: #{encoder_forward.1} parent=1 // pred_check
      _
    $region11: #{encoder_forward.1} parent=1 // pred_check_branch
      %26 = sbr.rel (0) target = $region13
    $region12: #{encoder_forward.1} parent=1 // pred_region
      _
    $region13: #{encoder_forward.1} parent=1 // pred_fallthru
      _
    // Predicated region
    $region14: #{encoder_forward.1} parent=1 // pred_check
      _
    $region15: #{encoder_forward.1} parent=1 // pred_check_branch
      %28 = sbr.rel (0) target = $region17
    $region16: #{encoder_forward.1} parent=1 // pred_region
      _
    $region17: #{encoder_forward.1} parent=1 // pred_fallthru
      _
    // Predicated region
    $region18: #{encoder_forward.1} parent=1 // pred_check
      _
    $region19: #{encoder_forward.1} parent=1 // pred_check_branch
      %30 = sbr.rel (0) target = $region21
    $region20: #{encoder_forward.1} parent=1 // pred_region
      _
    $region21: #{encoder_forward.1} parent=1 // pred_fallthru
      _
    // Predicated region
    $region22: #{encoder_forward.1} parent=1 // pred_check
      _
    $region23: #{encoder_forward.1} parent=1 // pred_check_branch
      %32 = sbr.rel (0) target = $region25
    $region24: #{encoder_forward.1} parent=1 // pred_region
      _
    $region25: #{encoder_forward.1} parent=1 // pred_fallthru
      _
    // Predicated region
    $region26: #{encoder_forward.1} parent=1 // pred_check
      _
    $region27: #{encoder_forward.1} parent=1 // pred_check_branch
      %34 = sbr.rel (0) target = $region29
    $region28: #{encoder_forward.1} parent=1 // pred_region
      _
    $region29: #{encoder_forward.1} parent=1 // pred_fallthru
      _
    // Predicated region
    $region30: #{encoder_forward.1} parent=1 // pred_check
      _
    $region31: #{encoder_forward.1} parent=1 // pred_check_branch
      %36 = sbr.rel (0) target = $region33
    $region32: #{encoder_forward.1} parent=1 // pred_region
      _
    $region33: #{encoder_forward.1} parent=1 // pred_fallthru
      _
    // Predicated region
    $region34: #{encoder_forward.1} parent=1 // pred_check
      _
    $region35: #{encoder_forward.1} parent=1 // pred_check_branch
      %38 = sbr.rel (0) target = $region37
    $region36: #{encoder_forward.1} parent=1 // pred_region
      _
    $region37: #{encoder_forward.1} parent=1 // pred_fallthru
      _
    // Predicated region
    $region38: #{encoder_forward.1} parent=1 // pred_check
      _
    $region39: #{encoder_forward.1} parent=1 // pred_check_branch
      %40 = sbr.rel (0) target = $region41
    $region40: #{encoder_forward.1} parent=1 // pred_region
      _
    $region41: #{encoder_forward.1} parent=1 // pred_fallthru
      _
    // Predicated region
    $region42: #{encoder_forward.1} parent=1 // pred_check
      _
    $region43: #{encoder_forward.1} parent=1 // pred_check_branch
      %42 = sbr.rel (0) target = $region45
    $region44: #{encoder_forward.1} parent=1 // pred_region
      _
    $region45: #{encoder_forward.1} parent=1 // pred_fallthru
      _
    // Predicated region
    $region46: #{encoder_forward.1} parent=1 // pred_check
      _
    $region47: #{encoder_forward.1} parent=1 // pred_check_branch
      %44 = sbr.rel (0) target = $region49
    $region48: #{encoder_forward.1} parent=1 // pred_region
      _
    $region49: #{encoder_forward.1} parent=1 // pred_fallthru
      _
    // Predicated region
    $region50: #{encoder_forward.1} parent=1 // pred_check
      _
    $region51: #{encoder_forward.1} parent=1 // pred_check_branch
      %46 = sbr.rel (0) target = $region53
    $region52: #{encoder_forward.1} parent=1 // pred_region
      %s48 = ssub.s32 4096, 4096
      %49 = vsyncadd [#allocation4], %s48
      %s50 = sshll.u32 [#allocation3], 4
      %s51 = int_to_ptr.vmem [resolvable:$true] %s50
      %56 = dma.hbm_to_vmem [thread:$0]  %s12, 4096, %s51, [#allocation4], 128, 128, 8
    $region53: #{encoder_forward.1} parent=1 // pred_fallthru
      _
    // Predicated region
    $region54: #{encoder_forward.1} parent=1 // pred_check
      _
    $region55: #{encoder_forward.1} parent=1 // pred_check_branch
      %58 = sbr.rel (0) target = $region57
    $region56: #{encoder_forward.1} parent=1 // pred_region
      _
    $region57: #{encoder_forward.1} parent=1 // pred_fallthru
      _
    // Predicated region
    $region58: #{encoder_forward.1} parent=1 // pred_check
      _
    $region59: #{encoder_forward.1} parent=1 // pred_check_branch
      %60 = sbr.rel (0) target = $region61
    $region60: #{encoder_forward.1} parent=1 // pred_region
      %61 = dma.done [#allocation4], 4096
    $region61: #{encoder_forward.1} parent=1 // pred_fallthru
      _
    %v62 = vld [vmem:[%s0] sm:$0xff]
    %v63 = vld [vmem:[%s0 + $0x8] sm:$0xff]
    %v64 = vld [vmem:[%s0 + $0x10] sm:$0xff]
    %v65 = vld [vmem:[%s0 + $0x18] sm:$0xff]
    %v66 = vld [vmem:[%s0 + $0x20] sm:$0xff]
    %v67 = vld [vmem:[%s0 + $0x28] sm:$0xff]
    %v68 = vld [vmem:[%s0 + $0x30] sm:$0xff]
    %v69 = vld [vmem:[%s0 + $0x38] sm:$0xff]
    %v70 = vld [vmem:[%s0 + $0x40] sm:$0xff]
    %v71 = vld [vmem:[%s0 + $0x48] sm:$0xff]
    %v72 = vld [vmem:[%s0 + $0x50] sm:$0xff]
    %v73 = vld [vmem:[%s0 + $0x58] sm:$0xff]
    %v74 = vld [vmem:[%s0 + $0x60] sm:$0xff]
    %v75 = vld [vmem:[%s0 + $0x68] sm:$0xff]
    %v76 = vld [vmem:[%s0 + $0x70] sm:$0xff]
    %v77 = vld [vmem:[%s0 + $0x78] sm:$0xff]
    %v78 = vld [vmem:[%s0 + $0x80] sm:$0xff]
    %v79 = vld [vmem:[%s0 + $0x88] sm:$0xff]
    %v80 = vld [vmem:[%s0 + $0x90] sm:$0xff]
    %v81 = vld [vmem:[%s0 + $0x98] sm:$0xff]
    %v82 = vld [vmem:[%s0 + $0xa0] sm:$0xff]
    %v83 = vld [vmem:[%s0 + $0xa8] sm:$0xff]
    %v84 = vld [vmem:[%s0 + $0xb0] sm:$0xff]
    %v85 = vld [vmem:[%s0 + $0xb8] sm:$0xff]
    %v86 = vld [vmem:[%s0 + $0xc0] sm:$0xff]
    %v87 = vld [vmem:[%s0 + $0xc8] sm:$0xff]
    %v88 = vld [vmem:[%s0 + $0xd0] sm:$0xff]
    %v89 = vld [vmem:[%s0 + $0xd8] sm:$0xff]
    %v90 = vld [vmem:[%s0 + $0xe0] sm:$0xff]
    %v91 = vld [vmem:[%s0 + $0xe8] sm:$0xff]
    %v92 = vld [vmem:[%s0 + $0xf0] sm:$0xff]
    %v93 = vld [vmem:[%s0 + $0xf8] sm:$0xff]
    %v94 = vld [vmem:[%s0 + $0x100] sm:$0xff]
    %v95 = vld [vmem:[%s0 + $0x108] sm:$0xff]
    %v96 = vld [vmem:[%s0 + $0x110] sm:$0xff]
    %v97 = vld [vmem:[%s0 + $0x118] sm:$0xff]
    %v98 = vld [vmem:[%s0 + $0x120] sm:$0xff]
    %v99 = vld [vmem:[%s0 + $0x128] sm:$0xff]
    %v100 = vld [vmem:[%s0 + $0x130] sm:$0xff]
    %v101 = vld [vmem:[%s0 + $0x138] sm:$0xff]
    %v102 = vld [vmem:[%s0 + $0x140] sm:$0xff]
    %v103 = vld [vmem:[%s0 + $0x148] sm:$0xff]
    %v104 = vld [vmem:[%s0 + $0x150] sm:$0xff]
    %v105 = vld [vmem:[%s0 + $0x158] sm:$0xff]
    %v106 = vld [vmem:[%s0 + $0x160] sm:$0xff]
    %v107 = vld [vmem:[%s0 + $0x168] sm:$0xff]
    %v108 = vld [vmem:[%s0 + $0x170] sm:$0xff]
    %v109 = vld [vmem:[%s0 + $0x178] sm:$0xff]
    %v110 = vld [vmem:[%s0 + $0x180] sm:$0xff]
    %v111 = vld [vmem:[%s0 + $0x188] sm:$0xff]
    %v112 = vld [vmem:[%s0 + $0x190] sm:$0xff]
    %v113 = vld [vmem:[%s0 + $0x198] sm:$0xff]
    %v114 = vld [vmem:[%s0 + $0x1a0] sm:$0xff]
    %v115 = vld [vmem:[%s0 + $0x1a8] sm:$0xff]
    %v116 = vld [vmem:[%s0 + $0x1b0] sm:$0xff]
    %v117 = vld [vmem:[%s0 + $0x1b8] sm:$0xff]
    %v118 = vld [vmem:[%s0 + $0x1c0] sm:$0x3]
    %v119 = vld [vmem:[%s1] sm:$0xff]
    %v120 = vld [vmem:[%s1 + $0x8] sm:$0x1]
    %v121 = vld [vmem:[%s2] sm:$0x1]
    %v123 = vlaneseq
    %v124 = vshrl.u32 %v123, 7
    %v125 = vsub.s32 0, %v124
    %v126 = vrot.slane %v121, %v125
    %vm128 = vcmask 72704
    %v130 = vsel %vm128, %v62, 0
    %v133 = vsel %vm128, %v63, 0
    %v136 = vsel %vm128, %v64, 0
    %v139 = vsel %vm128, %v65, 0
    %v142 = vsel %vm128, %v66, 0
    %v145 = vsel %vm128, %v67, 0
    %v148 = vsel %vm128, %v68, 0
    %v151 = vsel %vm128, %v69, 0
    %v154 = vsel %vm128, %v70, 0
    %v157 = vsel %vm128, %v71, 0
    %v160 = vsel %vm128, %v72, 0
    %v163 = vsel %vm128, %v73, 0
    %v166 = vsel %vm128, %v74, 0
    %v169 = vsel %vm128, %v75, 0
    %v172 = vsel %vm128, %v76, 0
    %v175 = vsel %vm128, %v77, 0
    %v178 = vsel %vm128, %v78, 0
    %v181 = vsel %vm128, %v79, 0
    %v184 = vsel %vm128, %v80, 0
    %v187 = vsel %vm128, %v81, 0
    %v190 = vsel %vm128, %v82, 0
    %v193 = vsel %vm128, %v83, 0
    %v196 = vsel %vm128, %v84, 0
    %v199 = vsel %vm128, %v85, 0
    %v202 = vsel %vm128, %v86, 0
    %v205 = vsel %vm128, %v87, 0
    %v208 = vsel %vm128, %v88, 0
    %v211 = vsel %vm128, %v89, 0
    %v214 = vsel %vm128, %v90, 0
    %v217 = vsel %vm128, %v91, 0
    %v220 = vsel %vm128, %v92, 0
    %v223 = vsel %vm128, %v93, 0
    %v226 = vsel %vm128, %v94, 0
    %v229 = vsel %vm128, %v95, 0
    %v232 = vsel %vm128, %v96, 0
    %v235 = vsel %vm128, %v97, 0
    %v238 = vsel %vm128, %v98, 0
    %v241 = vsel %vm128, %v99, 0
    %v244 = vsel %vm128, %v100, 0
    %v247 = vsel %vm128, %v101, 0
    %v250 = vsel %vm128, %v102, 0
    %v253 = vsel %vm128, %v103, 0
    %v256 = vsel %vm128, %v104, 0
    %v259 = vsel %vm128, %v105, 0
    %v262 = vsel %vm128, %v106, 0
    %v265 = vsel %vm128, %v107, 0
    %v268 = vsel %vm128, %v108, 0
    %v271 = vsel %vm128, %v109, 0
    %v274 = vsel %vm128, %v110, 0
    %v277 = vsel %vm128, %v111, 0
    %v280 = vsel %vm128, %v112, 0
    %v283 = vsel %vm128, %v113, 0
    %v286 = vsel %vm128, %v114, 0
    %v289 = vsel %vm128, %v115, 0
    %v292 = vsel %vm128, %v116, 0
    %v295 = vsel %vm128, %v117, 0
    %v298 = vsel %vm128, %v118, 0
    %vm300 = vcmask 1040384
    %v302 = vsel %vm300, %v120, 0
    %304 = vmatprep.subr.mxu0 0.0
    %305 = vmatpush1.msra.mxu0 0.0
    %306 = vmatprep.subr.mxu0 0.0
    %307 = vmatpush1.msra.mxu0 0.0
    %308 = vmatprep.subr.mxu0 0.0
    %309 = vmatpush1.msra.mxu0 0.0
    %310 = vmatprep.subr.mxu0 0.0
    %311 = vmatpush1.msra.mxu0 0.0
    %312 = vmatprep.subr.mxu0 0.0
    %313 = vmatpush1.msra.mxu0 0.0
    %314 = vmatprep.subr.mxu0 0.0
    %315 = vmatpush1.msra.mxu0 0.0
    %316 = vmatprep.subr.mxu0 0.0
    %317 = vmatpush1.msra.mxu0 0.0
    %318 = vmatprep.subr.mxu0 0.0
    %319 = vmatpush1.msra.mxu0 0.0
    %320 = vmatprep.subr.mxu0 0.0
    %321 = vmatpush1.msra.mxu0 0.0
    %322 = vmatprep.subr.mxu0 0.0
    %323 = vmatpush1.msra.mxu0 0.0
    %324 = vmatprep.subr.mxu0 0.0
    %325 = vmatpush1.msra.mxu0 0.0
    %326 = vmatprep.subr.mxu0 0.0
    %327 = vmatpush1.msra.mxu0 0.0
    %328 = vmatprep.subr.mxu0 0.0
    %329 = vmatpush1.msra.mxu0 0.0
    %330 = vmatprep.subr.mxu0 0.0
    %331 = vmatpush1.msra.mxu0 0.0
    %332 = vmatprep.subr.mxu0 0.0
    %333 = vmatpush1.msra.mxu0 %v302
    %334 = vmatprep.subr.mxu0 0.0
    %335 = vmatpush1.msra.mxu0 %v119
    %336 = vmatprep.subr.mxu0 0.0
    %337 = vmatpush2.msra.mxu0 0.0
    %338 = vmatprep.subr.mxu0 0.0
    %339 = vmatpush2.msra.mxu0 0.0
    %340 = vmatprep.subr.mxu0 0.0
    %341 = vmatpush2.msra.mxu0 0.0
    %342 = vmatprep.subr.mxu0 0.0
    %343 = vmatpush2.msra.mxu0 0.0
    %344 = vmatprep.subr.mxu0 0.0
    %345 = vmatpush2.msra.mxu0 0.0
    %346 = vmatprep.subr.mxu0 0.0
    %347 = vmatpush2.msra.mxu0 0.0
    %348 = vmatprep.subr.mxu0 0.0
    %349 = vmatpush2.msra.mxu0 0.0
    %350 = vmatprep.subr.mxu0 0.0
    %351 = vmatpush2.msra.mxu0 0.0
    %352 = vmatprep.subr.mxu0 0.0
    %353 = vmatpush2.msra.mxu0 0.0
    %354 = vmatprep.subr.mxu0 0.0
    %355 = vmatpush2.msra.mxu0 0.0
    %356 = vmatprep.subr.mxu0 0.0
    %357 = vmatpush2.msra.mxu0 0.0
    %358 = vmatprep.subr.mxu0 0.0
    %359 = vmatpush2.msra.mxu0 0.0
    %360 = vmatprep.subr.mxu0 0.0
    %361 = vmatpush2.msra.mxu0 0.0
    %362 = vmatprep.subr.mxu0 0.0
    %363 = vmatpush2.msra.mxu0 0.0
    %364 = vmatprep.subr.mxu0 0.0
    %365 = vmatpush2.msra.mxu0 0.0
    %366 = vmatprep.subr.mxu0 0.0
    %367 = vmatpush2.msra.mxu0 0.0
    %368 = vmatprep.mubr.f32.mxu0 0.0
    %369 = vmatmul.mubr.f32.gmra.mxu0 %v130
    %v370 = vpop.f32.mrf.mxu0
    %v371 = vadd.f32 %v126, %v370
    %v372 = vpop.f32.mrf.mxu0
    %373 = vmatprep.mubr.f32.mxu0 0.0
    %374 = vmatmul.mubr.f32.gmra.mxu0 %v133
    %v375 = vpop.f32.mrf.mxu0
    %v376 = vadd.f32 %v126, %v375
    %v377 = vpop.f32.mrf.mxu0
    %378 = vmatprep.mubr.f32.mxu0 0.0
    %379 = vmatmul.mubr.f32.gmra.mxu0 %v136
    %v380 = vpop.f32.mrf.mxu0
    %v381 = vadd.f32 %v126, %v380
    %v382 = vpop.f32.mrf.mxu0
    %383 = vmatprep.mubr.f32.mxu0 0.0
    %384 = vmatmul.mubr.f32.gmra.mxu0 %v139
    %v385 = vpop.f32.mrf.mxu0
    %v386 = vadd.f32 %v126, %v385
    %v387 = vpop.f32.mrf.mxu0
    %388 = vmatprep.mubr.f32.mxu0 0.0
    %389 = vmatmul.mubr.f32.gmra.mxu0 %v142
    %v390 = vpop.f32.mrf.mxu0
    %v391 = vadd.f32 %v126, %v390
    %v392 = vpop.f32.mrf.mxu0
    %393 = vmatprep.mubr.f32.mxu0 0.0
    %394 = vmatmul.mubr.f32.gmra.mxu0 %v145
    %v395 = vpop.f32.mrf.mxu0
    %v396 = vadd.f32 %v126, %v395
    %v397 = vpop.f32.mrf.mxu0
    %398 = vmatprep.mubr.f32.mxu0 0.0
    %399 = vmatmul.mubr.f32.gmra.mxu0 %v148
    %v400 = vpop.f32.mrf.mxu0
    %v401 = vadd.f32 %v126, %v400
    %v402 = vpop.f32.mrf.mxu0
    %403 = vmatprep.mubr.f32.mxu0 0.0
    %404 = vmatmul.mubr.f32.gmra.mxu0 %v151
    %v405 = vpop.f32.mrf.mxu0
    %v406 = vadd.f32 %v126, %v405
    %v407 = vpop.f32.mrf.mxu0
    %408 = vmatprep.mubr.f32.mxu0 0.0
    %409 = vmatmul.mubr.f32.gmra.mxu0 %v154
    %v410 = vpop.f32.mrf.mxu0
    %v411 = vadd.f32 %v126, %v410
    %v412 = vpop.f32.mrf.mxu0
    %413 = vmatprep.mubr.f32.mxu0 0.0
    %414 = vmatmul.mubr.f32.gmra.mxu0 %v157
    %v415 = vpop.f32.mrf.mxu0
    %v416 = vadd.f32 %v126, %v415
    %v417 = vpop.f32.mrf.mxu0
    %418 = vmatprep.mubr.f32.mxu0 0.0
    %419 = vmatmul.mubr.f32.gmra.mxu0 %v160
    %v420 = vpop.f32.mrf.mxu0
    %v421 = vadd.f32 %v126, %v420
    %v422 = vpop.f32.mrf.mxu0
    %423 = vmatprep.mubr.f32.mxu0 0.0
    %424 = vmatmul.mubr.f32.gmra.mxu0 %v163
    %v425 = vpop.f32.mrf.mxu0
    %v426 = vadd.f32 %v126, %v425
    %v427 = vpop.f32.mrf.mxu0
    %428 = vmatprep.mubr.f32.mxu0 0.0
    %429 = vmatmul.mubr.f32.gmra.mxu0 %v166
    %v430 = vpop.f32.mrf.mxu0
    %v431 = vadd.f32 %v126, %v430
    %v432 = vpop.f32.mrf.mxu0
    %433 = vmatprep.mubr.f32.mxu0 0.0
    %434 = vmatmul.mubr.f32.gmra.mxu0 %v169
    %v435 = vpop.f32.mrf.mxu0
    %v436 = vadd.f32 %v126, %v435
    %v437 = vpop.f32.mrf.mxu0
    %438 = vmatprep.mubr.f32.mxu0 0.0
    %439 = vmatmul.mubr.f32.gmra.mxu0 %v172
    %v440 = vpop.f32.mrf.mxu0
    %v441 = vadd.f32 %v126, %v440
    %v442 = vpop.f32.mrf.mxu0
    %443 = vmatprep.mubr.f32.mxu0 0.0
    %444 = vmatmul.mubr.f32.gmra.mxu0 %v175
    %v445 = vpop.f32.mrf.mxu0
    %v446 = vadd.f32 %v126, %v445
    %v447 = vpop.f32.mrf.mxu0
    %448 = vmatprep.mubr.f32.mxu0 0.0
    %449 = vmatmul.mubr.f32.gmra.mxu0 %v178
    %v450 = vpop.f32.mrf.mxu0
    %v451 = vadd.f32 %v126, %v450
    %v452 = vpop.f32.mrf.mxu0
    %453 = vmatprep.mubr.f32.mxu0 0.0
    %454 = vmatmul.mubr.f32.gmra.mxu0 %v181
    %v455 = vpop.f32.mrf.mxu0
    %v456 = vadd.f32 %v126, %v455
    %v457 = vpop.f32.mrf.mxu0
    %458 = vmatprep.mubr.f32.mxu0 0.0
    %459 = vmatmul.mubr.f32.gmra.mxu0 %v184
    %v460 = vpop.f32.mrf.mxu0
    %v461 = vadd.f32 %v126, %v460
    %v462 = vpop.f32.mrf.mxu0
    %463 = vmatprep.mubr.f32.mxu0 0.0
    %464 = vmatmul.mubr.f32.gmra.mxu0 %v187
    %v465 = vpop.f32.mrf.mxu0
    %v466 = vadd.f32 %v126, %v465
    %v467 = vpop.f32.mrf.mxu0
    %468 = vmatprep.mubr.f32.mxu0 0.0
    %469 = vmatmul.mubr.f32.gmra.mxu0 %v190
    %v470 = vpop.f32.mrf.mxu0
    %v471 = vadd.f32 %v126, %v470
    %v472 = vpop.f32.mrf.mxu0
    %473 = vmatprep.mubr.f32.mxu0 0.0
    %474 = vmatmul.mubr.f32.gmra.mxu0 %v193
    %v475 = vpop.f32.mrf.mxu0
    %v476 = vadd.f32 %v126, %v475
    %v477 = vpop.f32.mrf.mxu0
    %478 = vmatprep.mubr.f32.mxu0 0.0
    %479 = vmatmul.mubr.f32.gmra.mxu0 %v196
    %v480 = vpop.f32.mrf.mxu0
    %v481 = vadd.f32 %v126, %v480
    %v482 = vpop.f32.mrf.mxu0
    %483 = vmatprep.mubr.f32.mxu0 0.0
    %484 = vmatmul.mubr.f32.gmra.mxu0 %v199
    %v485 = vpop.f32.mrf.mxu0
    %v486 = vadd.f32 %v126, %v485
    %v487 = vpop.f32.mrf.mxu0
    %488 = vmatprep.mubr.f32.mxu0 0.0
    %489 = vmatmul.mubr.f32.gmra.mxu0 %v202
    %v490 = vpop.f32.mrf.mxu0
    %v491 = vadd.f32 %v126, %v490
    %v492 = vpop.f32.mrf.mxu0
    %493 = vmatprep.mubr.f32.mxu0 0.0
    %494 = vmatmul.mubr.f32.gmra.mxu0 %v205
    %v495 = vpop.f32.mrf.mxu0
    %v496 = vadd.f32 %v126, %v495
    %v497 = vpop.f32.mrf.mxu0
    %498 = vmatprep.mubr.f32.mxu0 0.0
    %499 = vmatmul.mubr.f32.gmra.mxu0 %v208
    %v500 = vpop.f32.mrf.mxu0
    %v501 = vadd.f32 %v126, %v500
    %v502 = vpop.f32.mrf.mxu0
    %503 = vmatprep.mubr.f32.mxu0 0.0
    %504 = vmatmul.mubr.f32.gmra.mxu0 %v211
    %v505 = vpop.f32.mrf.mxu0
    %v506 = vadd.f32 %v126, %v505
    %v507 = vpop.f32.mrf.mxu0
    %508 = vmatprep.mubr.f32.mxu0 0.0
    %509 = vmatmul.mubr.f32.gmra.mxu0 %v214
    %v510 = vpop.f32.mrf.mxu0
    %v511 = vadd.f32 %v126, %v510
    %v512 = vpop.f32.mrf.mxu0
    %513 = vmatprep.mubr.f32.mxu0 0.0
    %514 = vmatmul.mubr.f32.gmra.mxu0 %v217
    %v515 = vpop.f32.mrf.mxu0
    %v516 = vadd.f32 %v126, %v515
    %v517 = vpop.f32.mrf.mxu0
    %518 = vmatprep.mubr.f32.mxu0 0.0
    %519 = vmatmul.mubr.f32.gmra.mxu0 %v220
    %v520 = vpop.f32.mrf.mxu0
    %v521 = vadd.f32 %v126, %v520
    %v522 = vpop.f32.mrf.mxu0
    %523 = vmatprep.mubr.f32.mxu0 0.0
    %524 = vmatmul.mubr.f32.gmra.mxu0 %v223
    %v525 = vpop.f32.mrf.mxu0
    %v526 = vadd.f32 %v126, %v525
    %v527 = vpop.f32.mrf.mxu0
    %528 = vmatprep.mubr.f32.mxu0 0.0
    %529 = vmatmul.mubr.f32.gmra.mxu0 %v226
    %v530 = vpop.f32.mrf.mxu0
    %v531 = vadd.f32 %v126, %v530
    %v532 = vpop.f32.mrf.mxu0
    %533 = vmatprep.mubr.f32.mxu0 0.0
    %534 = vmatmul.mubr.f32.gmra.mxu0 %v229
    %v535 = vpop.f32.mrf.mxu0
    %v536 = vadd.f32 %v126, %v535
    %v537 = vpop.f32.mrf.mxu0
    %538 = vmatprep.mubr.f32.mxu0 0.0
    %539 = vmatmul.mubr.f32.gmra.mxu0 %v232
    %v540 = vpop.f32.mrf.mxu0
    %v541 = vadd.f32 %v126, %v540
    %v542 = vpop.f32.mrf.mxu0
    %543 = vmatprep.mubr.f32.mxu0 0.0
    %544 = vmatmul.mubr.f32.gmra.mxu0 %v235
    %v545 = vpop.f32.mrf.mxu0
    %v546 = vadd.f32 %v126, %v545
    %v547 = vpop.f32.mrf.mxu0
    %548 = vmatprep.mubr.f32.mxu0 0.0
    %549 = vmatmul.mubr.f32.gmra.mxu0 %v238
    %v550 = vpop.f32.mrf.mxu0
    %v551 = vadd.f32 %v126, %v550
    %v552 = vpop.f32.mrf.mxu0
    %553 = vmatprep.mubr.f32.mxu0 0.0
    %554 = vmatmul.mubr.f32.gmra.mxu0 %v241
    %v555 = vpop.f32.mrf.mxu0
    %v556 = vadd.f32 %v126, %v555
    %v557 = vpop.f32.mrf.mxu0
    %558 = vmatprep.mubr.f32.mxu0 0.0
    %559 = vmatmul.mubr.f32.gmra.mxu0 %v244
    %v560 = vpop.f32.mrf.mxu0
    %v561 = vadd.f32 %v126, %v560
    %v562 = vpop.f32.mrf.mxu0
    %563 = vmatprep.mubr.f32.mxu0 0.0
    %564 = vmatmul.mubr.f32.gmra.mxu0 %v247
    %v565 = vpop.f32.mrf.mxu0
    %v566 = vadd.f32 %v126, %v565
    %v567 = vpop.f32.mrf.mxu0
    %568 = vmatprep.mubr.f32.mxu0 0.0
    %569 = vmatmul.mubr.f32.gmra.mxu0 %v250
    %v570 = vpop.f32.mrf.mxu0
    %v571 = vadd.f32 %v126, %v570
    %v572 = vpop.f32.mrf.mxu0
    %573 = vmatprep.mubr.f32.mxu0 0.0
    %574 = vmatmul.mubr.f32.gmra.mxu0 %v253
    %v575 = vpop.f32.mrf.mxu0
    %v576 = vadd.f32 %v126, %v575
    %v577 = vpop.f32.mrf.mxu0
    %578 = vmatprep.mubr.f32.mxu0 0.0
    %579 = vmatmul.mubr.f32.gmra.mxu0 %v256
    %v580 = vpop.f32.mrf.mxu0
    %v581 = vadd.f32 %v126, %v580
    %v582 = vpop.f32.mrf.mxu0
    %583 = vmatprep.mubr.f32.mxu0 0.0
    %584 = vmatmul.mubr.f32.gmra.mxu0 %v259
    %v585 = vpop.f32.mrf.mxu0
    %v586 = vadd.f32 %v126, %v585
    %v587 = vpop.f32.mrf.mxu0
    %588 = vmatprep.mubr.f32.mxu0 0.0
    %589 = vmatmul.mubr.f32.gmra.mxu0 %v262
    %v590 = vpop.f32.mrf.mxu0
    %v591 = vadd.f32 %v126, %v590
    %v592 = vpop.f32.mrf.mxu0
    %593 = vmatprep.mubr.f32.mxu0 0.0
    %594 = vmatmul.mubr.f32.gmra.mxu0 %v265
    %v595 = vpop.f32.mrf.mxu0
    %v596 = vadd.f32 %v126, %v595
    %v597 = vpop.f32.mrf.mxu0
    %598 = vmatprep.mubr.f32.mxu0 0.0
    %599 = vmatmul.mubr.f32.gmra.mxu0 %v268
    %v600 = vpop.f32.mrf.mxu0
    %v601 = vadd.f32 %v126, %v600
    %v602 = vpop.f32.mrf.mxu0
    %603 = vmatprep.mubr.f32.mxu0 0.0
    %604 = vmatmul.mubr.f32.gmra.mxu0 %v271
    %v605 = vpop.f32.mrf.mxu0
    %v606 = vadd.f32 %v126, %v605
    %v607 = vpop.f32.mrf.mxu0
    %608 = vmatprep.mubr.f32.mxu0 0.0
    %609 = vmatmul.mubr.f32.gmra.mxu0 %v274
    %v610 = vpop.f32.mrf.mxu0
    %v611 = vadd.f32 %v126, %v610
    %v612 = vpop.f32.mrf.mxu0
    %613 = vmatprep.mubr.f32.mxu0 0.0
    %614 = vmatmul.mubr.f32.gmra.mxu0 %v277
    %v615 = vpop.f32.mrf.mxu0
    %v616 = vadd.f32 %v126, %v615
    %v617 = vpop.f32.mrf.mxu0
    %618 = vmatprep.mubr.f32.mxu0 0.0
    %619 = vmatmul.mubr.f32.gmra.mxu0 %v280
    %v620 = vpop.f32.mrf.mxu0
    %v621 = vadd.f32 %v126, %v620
    %v622 = vpop.f32.mrf.mxu0
    %623 = vmatprep.mubr.f32.mxu0 0.0
    %624 = vmatmul.mubr.f32.gmra.mxu0 %v283
    %v625 = vpop.f32.mrf.mxu0
    %v626 = vadd.f32 %v126, %v625
    %v627 = vpop.f32.mrf.mxu0
    %628 = vmatprep.mubr.f32.mxu0 0.0
    %629 = vmatmul.mubr.f32.gmra.mxu0 %v286
    %v630 = vpop.f32.mrf.mxu0
    %v631 = vadd.f32 %v126, %v630
    %v632 = vpop.f32.mrf.mxu0
    %633 = vmatprep.mubr.f32.mxu0 0.0
    %634 = vmatmul.mubr.f32.gmra.mxu0 %v289
    %v635 = vpop.f32.mrf.mxu0
    %v636 = vadd.f32 %v126, %v635
    %v637 = vpop.f32.mrf.mxu0
    %638 = vmatprep.mubr.f32.mxu0 0.0
    %639 = vmatmul.mubr.f32.gmra.mxu0 %v292
    %v640 = vpop.f32.mrf.mxu0
    %v641 = vadd.f32 %v126, %v640
    %v642 = vpop.f32.mrf.mxu0
    %643 = vmatprep.mubr.f32.mxu0 0.0
    %644 = vmatmul.mubr.f32.gmra.mxu0 %v295
    %v645 = vpop.f32.mrf.mxu0
    %v646 = vadd.f32 %v126, %v645
    %v647 = vpop.f32.mrf.mxu0
    %648 = vmatprep.mubr.f32.mxu0 0.0
    %649 = vmatmul.mubr.f32.gmra.mxu0 %v298
    %v650 = vpop.f32.mrf.mxu0
    %v651 = vadd.f32 %v126, %v650
    %v652 = vpop.f32.mrf.mxu0
    %653 = vdwg.mxu0
    %vm654 = vcmp.ge.f32.partialorder %v371, 0.0
    %vm655 = vcmp.ge.f32.partialorder %v376, 0.0
    %vm656 = vcmp.ge.f32.partialorder %v381, 0.0
    %vm657 = vcmp.ge.f32.partialorder %v386, 0.0
    %vm658 = vcmp.ge.f32.partialorder %v391, 0.0
    %vm659 = vcmp.ge.f32.partialorder %v396, 0.0
    %vm660 = vcmp.ge.f32.partialorder %v401, 0.0
    %vm661 = vcmp.ge.f32.partialorder %v406, 0.0
    %vm662 = vcmp.ge.f32.partialorder %v411, 0.0
    %vm663 = vcmp.ge.f32.partialorder %v416, 0.0
    %vm664 = vcmp.ge.f32.partialorder %v421, 0.0
    %vm665 = vcmp.ge.f32.partialorder %v426, 0.0
    %vm666 = vcmp.ge.f32.partialorder %v431, 0.0
    %vm667 = vcmp.ge.f32.partialorder %v436, 0.0
    %vm668 = vcmp.ge.f32.partialorder %v441, 0.0
    %vm669 = vcmp.ge.f32.partialorder %v446, 0.0
    %vm670 = vcmp.ge.f32.partialorder %v451, 0.0
    %vm671 = vcmp.ge.f32.partialorder %v456, 0.0
    %vm672 = vcmp.ge.f32.partialorder %v461, 0.0
    %vm673 = vcmp.ge.f32.partialorder %v466, 0.0
    %vm674 = vcmp.ge.f32.partialorder %v471, 0.0
    %vm675 = vcmp.ge.f32.partialorder %v476, 0.0
    %vm676 = vcmp.ge.f32.partialorder %v481, 0.0
    %vm677 = vcmp.ge.f32.partialorder %v486, 0.0
    %vm678 = vcmp.ge.f32.partialorder %v491, 0.0
    %vm679 = vcmp.ge.f32.partialorder %v496, 0.0
    %vm680 = vcmp.ge.f32.partialorder %v501, 0.0
    %vm681 = vcmp.ge.f32.partialorder %v506, 0.0
    %vm682 = vcmp.ge.f32.partialorder %v511, 0.0
    %vm683 = vcmp.ge.f32.partialorder %v516, 0.0
    %vm684 = vcmp.ge.f32.partialorder %v521, 0.0
    %vm685 = vcmp.ge.f32.partialorder %v526, 0.0
    %vm686 = vcmp.ge.f32.partialorder %v531, 0.0
    %vm687 = vcmp.ge.f32.partialorder %v536, 0.0
    %vm688 = vcmp.ge.f32.partialorder %v541, 0.0
    %vm689 = vcmp.ge.f32.partialorder %v546, 0.0
    %vm690 = vcmp.ge.f32.partialorder %v551, 0.0
    %vm691 = vcmp.ge.f32.partialorder %v556, 0.0
    %vm692 = vcmp.ge.f32.partialorder %v561, 0.0
    %vm693 = vcmp.ge.f32.partialorder %v566, 0.0
    %vm694 = vcmp.ge.f32.partialorder %v571, 0.0
    %vm695 = vcmp.ge.f32.partialorder %v576, 0.0
    %vm696 = vcmp.ge.f32.partialorder %v581, 0.0
    %vm697 = vcmp.ge.f32.partialorder %v586, 0.0
    %vm698 = vcmp.ge.f32.partialorder %v591, 0.0
    %vm699 = vcmp.ge.f32.partialorder %v596, 0.0
    %vm700 = vcmp.ge.f32.partialorder %v601, 0.0
    %vm701 = vcmp.ge.f32.partialorder %v606, 0.0
    %vm702 = vcmp.ge.f32.partialorder %v611, 0.0
    %vm703 = vcmp.ge.f32.partialorder %v616, 0.0
    %vm704 = vcmp.ge.f32.partialorder %v621, 0.0
    %vm705 = vcmp.ge.f32.partialorder %v626, 0.0
    %vm706 = vcmp.ge.f32.partialorder %v631, 0.0
    %vm707 = vcmp.ge.f32.partialorder %v636, 0.0
    %vm708 = vcmp.ge.f32.partialorder %v641, 0.0
    %vm709 = vcmp.ge.f32.partialorder %v646, 0.0
    %vm710 = vcmp.ge.f32.partialorder %v651, 0.0
    %v711 = vmul.f32 %v371, 0.2
    %v712 = vmul.f32 %v376, 0.2
    %v713 = vmul.f32 %v381, 0.2
    %v714 = vmul.f32 %v386, 0.2
    %v715 = vmul.f32 %v391, 0.2
    %v716 = vmul.f32 %v396, 0.2
    %v717 = vmul.f32 %v401, 0.2
    %v718 = vmul.f32 %v406, 0.2
    %v719 = vmul.f32 %v411, 0.2
    %v720 = vmul.f32 %v416, 0.2
    %v721 = vmul.f32 %v421, 0.2
    %v722 = vmul.f32 %v426, 0.2
    %v723 = vmul.f32 %v431, 0.2
    %v724 = vmul.f32 %v436, 0.2
    %v725 = vmul.f32 %v441, 0.2
    %v726 = vmul.f32 %v446, 0.2
    %v727 = vmul.f32 %v451, 0.2
    %v728 = vmul.f32 %v456, 0.2
    %v729 = vmul.f32 %v461, 0.2
    %v730 = vmul.f32 %v466, 0.2
    %v731 = vmul.f32 %v471, 0.2
    %v732 = vmul.f32 %v476, 0.2
    %v733 = vmul.f32 %v481, 0.2
    %v734 = vmul.f32 %v486, 0.2
    %v735 = vmul.f32 %v491, 0.2
    %v736 = vmul.f32 %v496, 0.2
    %v737 = vmul.f32 %v501, 0.2
    %v738 = vmul.f32 %v506, 0.2
    %v739 = vmul.f32 %v511, 0.2
    %v740 = vmul.f32 %v516, 0.2
    %v741 = vmul.f32 %v521, 0.2
    %v742 = vmul.f32 %v526, 0.2
    %v743 = vmul.f32 %v531, 0.2
    %v744 = vmul.f32 %v536, 0.2
    %v745 = vmul.f32 %v541, 0.2
    %v746 = vmul.f32 %v546, 0.2
    %v747 = vmul.f32 %v551, 0.2
    %v748 = vmul.f32 %v556, 0.2
    %v749 = vmul.f32 %v561, 0.2
    %v750 = vmul.f32 %v566, 0.2
    %v751 = vmul.f32 %v571, 0.2
    %v752 = vmul.f32 %v576, 0.2
    %v753 = vmul.f32 %v581, 0.2
    %v754 = vmul.f32 %v586, 0.2
    %v755 = vmul.f32 %v591, 0.2
    %v756 = vmul.f32 %v596, 0.2
    %v757 = vmul.f32 %v601, 0.2
    %v758 = vmul.f32 %v606, 0.2
    %v759 = vmul.f32 %v611, 0.2
    %v760 = vmul.f32 %v616, 0.2
    %v761 = vmul.f32 %v621, 0.2
    %v762 = vmul.f32 %v626, 0.2
    %v763 = vmul.f32 %v631, 0.2
    %v764 = vmul.f32 %v636, 0.2
    %v765 = vmul.f32 %v641, 0.2
    %v766 = vmul.f32 %v646, 0.2
    %v767 = vmul.f32 %v651, 0.2
    %v768 = vsel %vm654, %v371, %v711
    %v769 = vsel %vm655, %v376, %v712
    %v770 = vsel %vm656, %v381, %v713
    %v771 = vsel %vm657, %v386, %v714
    %v772 = vsel %vm658, %v391, %v715
    %v773 = vsel %vm659, %v396, %v716
    %v774 = vsel %vm660, %v401, %v717
    %v775 = vsel %vm661, %v406, %v718
    %v776 = vsel %vm662, %v411, %v719
    %v777 = vsel %vm663, %v416, %v720
    %v778 = vsel %vm664, %v421, %v721
    %v779 = vsel %vm665, %v426, %v722
    %v780 = vsel %vm666, %v431, %v723
    %v781 = vsel %vm667, %v436, %v724
    %v782 = vsel %vm668, %v441, %v725
    %v783 = vsel %vm669, %v446, %v726
    %v784 = vsel %vm670, %v451, %v727
    %v785 = vsel %vm671, %v456, %v728
    %v786 = vsel %vm672, %v461, %v729
    %v787 = vsel %vm673, %v466, %v730
    %v788 = vsel %vm674, %v471, %v731
    %v789 = vsel %vm675, %v476, %v732
    %v790 = vsel %vm676, %v481, %v733
    %v791 = vsel %vm677, %v486, %v734
    %v792 = vsel %vm678, %v491, %v735
    %v793 = vsel %vm679, %v496, %v736
    %v794 = vsel %vm680, %v501, %v737
    %v795 = vsel %vm681, %v506, %v738
    %v796 = vsel %vm682, %v511, %v739
    %v797 = vsel %vm683, %v516, %v740
    %v798 = vsel %vm684, %v521, %v741
    %v799 = vsel %vm685, %v526, %v742
    %v800 = vsel %vm686, %v531, %v743
    %v801 = vsel %vm687, %v536, %v744
    %v802 = vsel %vm688, %v541, %v745
    %v803 = vsel %vm689, %v546, %v746
    %v804 = vsel %vm690, %v551, %v747
    %v805 = vsel %vm691, %v556, %v748
    %v806 = vsel %vm692, %v561, %v749
    %v807 = vsel %vm693, %v566, %v750
    %v808 = vsel %vm694, %v571, %v751
    %v809 = vsel %vm695, %v576, %v752
    %v810 = vsel %vm696, %v581, %v753
    %v811 = vsel %vm697, %v586, %v754
    %v812 = vsel %vm698, %v591, %v755
    %v813 = vsel %vm699, %v596, %v756
    %v814 = vsel %vm700, %v601, %v757
    %v815 = vsel %vm701, %v606, %v758
    %v816 = vsel %vm702, %v611, %v759
    %v817 = vsel %vm703, %v616, %v760
    %v818 = vsel %vm704, %v621, %v761
    %v819 = vsel %vm705, %v626, %v762
    %v820 = vsel %vm706, %v631, %v763
    %v821 = vsel %vm707, %v636, %v764
    %v822 = vsel %vm708, %v641, %v765
    %v823 = vsel %vm709, %v646, %v766
    %v824 = vsel %vm710, %v651, %v767
    %v825 = vld [vmem:[%s3] sm:$0xff]
    %v826 = vld [vmem:[%s3 + $0x8] sm:$0xff]
    %v827 = vld [vmem:[%s3 + $0x10] sm:$0xff]
    %v828 = vld [vmem:[%s3 + $0x18] sm:$0xff]
    %v829 = vld [vmem:[%s3 + $0x20] sm:$0xff]
    %v830 = vld [vmem:[%s3 + $0x28] sm:$0xff]
    %v831 = vld [vmem:[%s3 + $0x30] sm:$0xff]
    %v832 = vld [vmem:[%s3 + $0x38] sm:$0xff]
    %v833 = vld [vmem:[%s3 + $0x40] sm:$0xff]
    %v834 = vld [vmem:[%s3 + $0x48] sm:$0xff]
    %v835 = vld [vmem:[%s3 + $0x50] sm:$0xff]
    %v836 = vld [vmem:[%s3 + $0x58] sm:$0xff]
    %v837 = vld [vmem:[%s3 + $0x60] sm:$0xff]
    %v838 = vld [vmem:[%s3 + $0x68] sm:$0xff]
    %v839 = vld [vmem:[%s3 + $0x70] sm:$0xff]
    %v840 = vld [vmem:[%s3 + $0x78] sm:$0xff]
    %v841 = vld [vmem:[%s3 + $0x80] sm:$0xff]
    %v842 = vld [vmem:[%s3 + $0x88] sm:$0xff]
    %v843 = vld [vmem:[%s3 + $0x90] sm:$0xff]
    %v844 = vld [vmem:[%s3 + $0x98] sm:$0xff]
    %v845 = vld [vmem:[%s3 + $0xa0] sm:$0xff]
    %v846 = vld [vmem:[%s3 + $0xa8] sm:$0xff]
    %v847 = vld [vmem:[%s3 + $0xb0] sm:$0xff]
    %v848 = vld [vmem:[%s3 + $0xb8] sm:$0xff]
    %v849 = vld [vmem:[%s3 + $0xc0] sm:$0xff]
    %v850 = vld [vmem:[%s3 + $0xc8] sm:$0xff]
    %v851 = vld [vmem:[%s3 + $0xd0] sm:$0xff]
    %v852 = vld [vmem:[%s3 + $0xd8] sm:$0xff]
    %v853 = vld [vmem:[%s3 + $0xe0] sm:$0xff]
    %v854 = vld [vmem:[%s3 + $0xe8] sm:$0xff]
    %v855 = vld [vmem:[%s3 + $0xf0] sm:$0xff]
    %v856 = vld [vmem:[%s3 + $0xf8] sm:$0xff]
    %v857 = vld [vmem:[%s3 + $0x100] sm:$0xff]
    %v858 = vld [vmem:[%s3 + $0x108] sm:$0xff]
    %v859 = vld [vmem:[%s3 + $0x110] sm:$0xff]
    %v860 = vld [vmem:[%s3 + $0x118] sm:$0xff]
    %v861 = vld [vmem:[%s3 + $0x120] sm:$0xff]
    %v862 = vld [vmem:[%s3 + $0x128] sm:$0xff]
    %v863 = vld [vmem:[%s3 + $0x130] sm:$0xff]
    %v864 = vld [vmem:[%s3 + $0x138] sm:$0xff]
    %v865 = vld [vmem:[%s3 + $0x140] sm:$0xff]
    %v866 = vld [vmem:[%s3 + $0x148] sm:$0xff]
    %v867 = vld [vmem:[%s3 + $0x150] sm:$0xff]
    %v868 = vld [vmem:[%s3 + $0x158] sm:$0xff]
    %v869 = vld [vmem:[%s3 + $0x160] sm:$0xff]
    %v870 = vld [vmem:[%s3 + $0x168] sm:$0xff]
    %v871 = vld [vmem:[%s3 + $0x170] sm:$0xff]
    %v872 = vld [vmem:[%s3 + $0x178] sm:$0xff]
    %v873 = vld [vmem:[%s3 + $0x180] sm:$0x3]
    %v874 = vld [vmem:[%s3 + $0x188] sm:$0x3]
    %v875 = vld [vmem:[%s3 + $0x190] sm:$0x3]
    %v876 = vld [vmem:[%s3 + $0x198] sm:$0x3]
    %vm877 = vcmask 539648
    %v879 = vsel %vm877, %v828, 0
    %v882 = vsel %vm877, %v832, 0
    %v885 = vsel %vm877, %v836, 0
    %v888 = vsel %vm877, %v840, 0
    %v891 = vsel %vm877, %v844, 0
    %v894 = vsel %vm877, %v848, 0
    %v897 = vsel %vm877, %v852, 0
    %v900 = vsel %vm877, %v856, 0
    %v903 = vsel %vm877, %v860, 0
    %v906 = vsel %vm877, %v864, 0
    %v909 = vsel %vm877, %v868, 0
    %v912 = vsel %vm877, %v872, 0
    %v915 = vsel %vm877, %v876, 0
    %vm917 = vcmask 1041408
    %v919 = vsel %vm917, %v824, 0
    %921 = vmatprep.subr.mxu0 0.0
    %922 = vmatpush1.msra.mxu0 %v783
    %923 = vmatprep.subr.mxu0 0.0
    %924 = vmatpush1.msra.mxu0 %v782
    %925 = vmatprep.subr.mxu0 0.0
    %926 = vmatpush1.msra.mxu0 %v781
    %927 = vmatprep.subr.mxu0 0.0
    %928 = vmatpush1.msra.mxu0 %v780
    %929 = vmatprep.subr.mxu0 0.0
    %930 = vmatpush1.msra.mxu0 %v779
    %931 = vmatprep.subr.mxu0 0.0
    %932 = vmatpush1.msra.mxu0 %v778
    %933 = vmatprep.subr.mxu0 0.0
    %934 = vmatpush1.msra.mxu0 %v777
    %935 = vmatprep.subr.mxu0 0.0
    %936 = vmatpush1.msra.mxu0 %v776
    %937 = vmatprep.subr.mxu0 0.0
    %938 = vmatpush1.msra.mxu0 %v775
    %939 = vmatprep.subr.mxu0 0.0
    %940 = vmatpush1.msra.mxu0 %v774
    %941 = vmatprep.subr.mxu0 0.0
    %942 = vmatpush1.msra.mxu0 %v773
    %943 = vmatprep.subr.mxu0 0.0
    %944 = vmatpush1.msra.mxu0 %v772
    %945 = vmatprep.subr.mxu0 0.0
    %946 = vmatpush1.msra.mxu0 %v771
    %947 = vmatprep.subr.mxu0 0.0
    %948 = vmatpush1.msra.mxu0 %v770
    %949 = vmatprep.subr.mxu0 0.0
    %950 = vmatpush1.msra.mxu0 %v769
    %951 = vmatprep.subr.mxu0 0.0
    %952 = vmatpush1.msra.mxu0 %v768
    %953 = vmatprep.subr.mxu0 0.0
    %954 = vmatpush2.msra.mxu0 %v799
    %955 = vmatprep.subr.mxu0 0.0
    %956 = vmatpush2.msra.mxu0 %v798
    %957 = vmatprep.subr.mxu0 0.0
    %958 = vmatpush2.msra.mxu0 %v797
    %959 = vmatprep.subr.mxu0 0.0
    %960 = vmatpush2.msra.mxu0 %v796
    %961 = vmatprep.subr.mxu0 0.0
    %962 = vmatpush2.msra.mxu0 %v795
    %963 = vmatprep.subr.mxu0 0.0
    %964 = vmatpush2.msra.mxu0 %v794
    %965 = vmatprep.subr.mxu0 0.0
    %966 = vmatpush2.msra.mxu0 %v793
    %967 = vmatprep.subr.mxu0 0.0
    %968 = vmatpush2.msra.mxu0 %v792
    %969 = vmatprep.subr.mxu0 0.0
    %970 = vmatpush2.msra.mxu0 %v791
    %971 = vmatprep.subr.mxu0 0.0
    %972 = vmatpush2.msra.mxu0 %v790
    %973 = vmatprep.subr.mxu0 0.0
    %974 = vmatpush2.msra.mxu0 %v789
    %975 = vmatprep.subr.mxu0 0.0
    %976 = vmatpush2.msra.mxu0 %v788
    %977 = vmatprep.subr.mxu0 0.0
    %978 = vmatpush2.msra.mxu0 %v787
    %979 = vmatprep.subr.mxu0 0.0
    %980 = vmatpush2.msra.mxu0 %v786
    %981 = vmatprep.subr.mxu0 0.0
    %982 = vmatpush2.msra.mxu0 %v785
    %983 = vmatprep.subr.mxu0 0.0
    %984 = vmatpush2.msra.mxu0 %v784
    %985 = vmatprep.mubr.f32.mxu0 %v826
    %986 = vmatmul.mubr.f32.gmra.mxu0 %v825
    %v987 = vpop.f32.mrf.mxu0
    %v988 = vadd.f32 0.0, %v987
    %v989 = vpop.f32.mrf.mxu0
    %990 = vmatprep.mubr.f32.mxu0 %v830
    %991 = vmatmul.mubr.f32.gmra.mxu0 %v829
    %v992 = vpop.f32.mrf.mxu0
    %v993 = vadd.f32 0.0, %v992
    %v994 = vpop.f32.mrf.mxu0
    %995 = vmatprep.mubr.f32.mxu0 %v834
    %996 = vmatmul.mubr.f32.gmra.mxu0 %v833
    %v997 = vpop.f32.mrf.mxu0
    %v998 = vadd.f32 0.0, %v997
    %v999 = vpop.f32.mrf.mxu0
    %1000 = vmatprep.mubr.f32.mxu0 %v838
    %1001 = vmatmul.mubr.f32.gmra.mxu0 %v837
    %v1002 = vpop.f32.mrf.mxu0
    %v1003 = vadd.f32 0.0, %v1002
    %v1004 = vpop.f32.mrf.mxu0
    %1005 = vmatprep.mubr.f32.mxu0 %v842
    %1006 = vmatmul.mubr.f32.gmra.mxu0 %v841
    %v1007 = vpop.f32.mrf.mxu0
    %v1008 = vadd.f32 0.0, %v1007
    %v1009 = vpop.f32.mrf.mxu0
    %1010 = vmatprep.mubr.f32.mxu0 %v846
    %1011 = vmatmul.mubr.f32.gmra.mxu0 %v845
    %v1012 = vpop.f32.mrf.mxu0
    %v1013 = vadd.f32 0.0, %v1012
    %v1014 = vpop.f32.mrf.mxu0
    %1015 = vmatprep.mubr.f32.mxu0 %v850
    %1016 = vmatmul.mubr.f32.gmra.mxu0 %v849
    %v1017 = vpop.f32.mrf.mxu0
    %v1018 = vadd.f32 0.0, %v1017
    %v1019 = vpop.f32.mrf.mxu0
    %1020 = vmatprep.mubr.f32.mxu0 %v854
    %1021 = vmatmul.mubr.f32.gmra.mxu0 %v853
    %v1022 = vpop.f32.mrf.mxu0
    %v1023 = vadd.f32 0.0, %v1022
    %v1024 = vpop.f32.mrf.mxu0
    %1025 = vmatprep.mubr.f32.mxu0 %v858
    %1026 = vmatmul.mubr.f32.gmra.mxu0 %v857
    %v1027 = vpop.f32.mrf.mxu0
    %v1028 = vadd.f32 0.0, %v1027
    %v1029 = vpop.f32.mrf.mxu0
    %1030 = vmatprep.mubr.f32.mxu0 %v862
    %1031 = vmatmul.mubr.f32.gmra.mxu0 %v861
    %v1032 = vpop.f32.mrf.mxu0
    %v1033 = vadd.f32 0.0, %v1032
    %v1034 = vpop.f32.mrf.mxu0
    %1035 = vmatprep.mubr.f32.mxu0 %v866
    %1036 = vmatmul.mubr.f32.gmra.mxu0 %v865
    %v1037 = vpop.f32.mrf.mxu0
    %v1038 = vadd.f32 0.0, %v1037
    %v1039 = vpop.f32.mrf.mxu0
    %1040 = vmatprep.mubr.f32.mxu0 %v870
    %1041 = vmatmul.mubr.f32.gmra.mxu0 %v869
    %v1042 = vpop.f32.mrf.mxu0
    %v1043 = vadd.f32 0.0, %v1042
    %v1044 = vpop.f32.mrf.mxu0
    %1045 = vmatprep.mubr.f32.mxu0 %v874
    %1046 = vmatmul.mubr.f32.gmra.mxu0 %v873
    %v1047 = vpop.f32.mrf.mxu0
    %v1048 = vadd.f32 0.0, %v1047
    %v1049 = vpop.f32.mrf.mxu0
    %1050 = vdwg.mxu0
    %1051 = vmatprep.subr.mxu0 0.0
    %1052 = vmatpush1.msra.mxu0 %v815
    %1053 = vmatprep.subr.mxu0 0.0
    %1054 = vmatpush1.msra.mxu0 %v814
    %1055 = vmatprep.subr.mxu0 0.0
    %1056 = vmatpush1.msra.mxu0 %v813
    %1057 = vmatprep.subr.mxu0 0.0
    %1058 = vmatpush1.msra.mxu0 %v812
    %1059 = vmatprep.subr.mxu0 0.0
    %1060 = vmatpush1.msra.mxu0 %v811
    %1061 = vmatprep.subr.mxu0 0.0
    %1062 = vmatpush1.msra.mxu0 %v810
    %1063 = vmatprep.subr.mxu0 0.0
    %1064 = vmatpush1.msra.mxu0 %v809
    %1065 = vmatprep.subr.mxu0 0.0
    %1066 = vmatpush1.msra.mxu0 %v808
    %1067 = vmatprep.subr.mxu0 0.0
    %1068 = vmatpush1.msra.mxu0 %v807
    %1069 = vmatprep.subr.mxu0 0.0
    %1070 = vmatpush1.msra.mxu0 %v806
    %1071 = vmatprep.subr.mxu0 0.0
    %1072 = vmatpush1.msra.mxu0 %v805
    %1073 = vmatprep.subr.mxu0 0.0
    %1074 = vmatpush1.msra.mxu0 %v804
    %1075 = vmatprep.subr.mxu0 0.0
    %1076 = vmatpush1.msra.mxu0 %v803
    %1077 = vmatprep.subr.mxu0 0.0
    %1078 = vmatpush1.msra.mxu0 %v802
    %1079 = vmatprep.subr.mxu0 0.0
    %1080 = vmatpush1.msra.mxu0 %v801
    %1081 = vmatprep.subr.mxu0 0.0
    %1082 = vmatpush1.msra.mxu0 %v800
    %1083 = vmatprep.subr.mxu0 0.0
    %1084 = vmatpush2.msra.mxu0 0.0
    %1085 = vmatprep.subr.mxu0 0.0
    %1086 = vmatpush2.msra.mxu0 0.0
    %1087 = vmatprep.subr.mxu0 0.0
    %1088 = vmatpush2.msra.mxu0 0.0
    %1089 = vmatprep.subr.mxu0 0.0
    %1090 = vmatpush2.msra.mxu0 0.0
    %1091 = vmatprep.subr.mxu0 0.0
    %1092 = vmatpush2.msra.mxu0 0.0
    %1093 = vmatprep.subr.mxu0 0.0
    %1094 = vmatpush2.msra.mxu0 0.0
    %1095 = vmatprep.subr.mxu0 0.0
    %1096 = vmatpush2.msra.mxu0 0.0
    %1097 = vmatprep.subr.mxu0 0.0
    %1098 = vmatpush2.msra.mxu0 %v919
    %1099 = vmatprep.subr.mxu0 0.0
    %1100 = vmatpush2.msra.mxu0 %v823
    %1101 = vmatprep.subr.mxu0 0.0
    %1102 = vmatpush2.msra.mxu0 %v822
    %1103 = vmatprep.subr.mxu0 0.0
    %1104 = vmatpush2.msra.mxu0 %v821
    %1105 = vmatprep.subr.mxu0 0.0
    %1106 = vmatpush2.msra.mxu0 %v820
    %1107 = vmatprep.subr.mxu0 0.0
    %1108 = vmatpush2.msra.mxu0 %v819
    %1109 = vmatprep.subr.mxu0 0.0
    %1110 = vmatpush2.msra.mxu0 %v818
    %1111 = vmatprep.subr.mxu0 0.0
    %1112 = vmatpush2.msra.mxu0 %v817
    %1113 = vmatprep.subr.mxu0 0.0
    %1114 = vmatpush2.msra.mxu0 %v816
    %1115 = vmatprep.mubr.f32.mxu0 %v879
    %1116 = vmatmul.mubr.f32.gmra.mxu0 %v827
    %v1117 = vpop.f32.mrf.mxu0
    %v1118 = vadd.f32 %v988, %v1117
    %v1119 = vpop.f32.mrf.mxu0
    %1120 = vmatprep.mubr.f32.mxu0 %v882
    %1121 = vmatmul.mubr.f32.gmra.mxu0 %v831
    %v1122 = vpop.f32.mrf.mxu0
    %v1123 = vadd.f32 %v993, %v1122
    %v1124 = vpop.f32.mrf.mxu0
    %1125 = vmatprep.mubr.f32.mxu0 %v885
    %1126 = vmatmul.mubr.f32.gmra.mxu0 %v835
    %v1127 = vpop.f32.mrf.mxu0
    %v1128 = vadd.f32 %v998, %v1127
    %v1129 = vpop.f32.mrf.mxu0
    %1130 = vmatprep.mubr.f32.mxu0 %v888
    %1131 = vmatmul.mubr.f32.gmra.mxu0 %v839
    %v1132 = vpop.f32.mrf.mxu0
    %v1133 = vadd.f32 %v1003, %v1132
    %v1134 = vpop.f32.mrf.mxu0
    %1135 = vmatprep.mubr.f32.mxu0 %v891
    %1136 = vmatmul.mubr.f32.gmra.mxu0 %v843
    %v1137 = vpop.f32.mrf.mxu0
    %v1138 = vadd.f32 %v1008, %v1137
    %v1139 = vpop.f32.mrf.mxu0
    %1140 = vmatprep.mubr.f32.mxu0 %v894
    %1141 = vmatmul.mubr.f32.gmra.mxu0 %v847
    %v1142 = vpop.f32.mrf.mxu0
    %v1143 = vadd.f32 %v1013, %v1142
    %v1144 = vpop.f32.mrf.mxu0
    %1145 = vmatprep.mubr.f32.mxu0 %v897
    %1146 = vmatmul.mubr.f32.gmra.mxu0 %v851
    %v1147 = vpop.f32.mrf.mxu0
    %v1148 = vadd.f32 %v1018, %v1147
    %v1149 = vpop.f32.mrf.mxu0
    %1150 = vmatprep.mubr.f32.mxu0 %v900
    %1151 = vmatmul.mubr.f32.gmra.mxu0 %v855
    %v1152 = vpop.f32.mrf.mxu0
    %v1153 = vadd.f32 %v1023, %v1152
    %v1154 = vpop.f32.mrf.mxu0
    %1155 = vmatprep.mubr.f32.mxu0 %v903
    %1156 = vmatmul.mubr.f32.gmra.mxu0 %v859
    %v1157 = vpop.f32.mrf.mxu0
    %v1158 = vadd.f32 %v1028, %v1157
    %v1159 = vpop.f32.mrf.mxu0
    %1160 = vmatprep.mubr.f32.mxu0 %v906
    %1161 = vmatmul.mubr.f32.gmra.mxu0 %v863
    %v1162 = vpop.f32.mrf.mxu0
    %v1163 = vadd.f32 %v1033, %v1162
    %v1164 = vpop.f32.mrf.mxu0
    %1165 = vmatprep.mubr.f32.mxu0 %v909
    %1166 = vmatmul.mubr.f32.gmra.mxu0 %v867
    %v1167 = vpop.f32.mrf.mxu0
    %v1168 = vadd.f32 %v1038, %v1167
    %v1169 = vpop.f32.mrf.mxu0
    %1170 = vmatprep.mubr.f32.mxu0 %v912
    %1171 = vmatmul.mubr.f32.gmra.mxu0 %v871
    %v1172 = vpop.f32.mrf.mxu0
    %v1173 = vadd.f32 %v1043, %v1172
    %v1174 = vpop.f32.mrf.mxu0
    %1175 = vmatprep.mubr.f32.mxu0 %v915
    %1176 = vmatmul.mubr.f32.gmra.mxu0 %v875
    %v1177 = vpop.f32.mrf.mxu0
    %v1178 = vadd.f32 %v1048, %v1177
    %v1179 = vpop.f32.mrf.mxu0
    %1180 = vdwg.mxu0
    %v1181 = vld [vmem:[%s4] sm:$0xff]
    %v1182 = vld [vmem:[%s4 + $0x8] sm:$0xff]
    %s1183 = scalar_lea.vmem %s3, 416
    %v1184 = vld [vmem:[%s1183] sm:$0xff]
    %v1185 = vld [vmem:[%s1183 + $0x8] sm:$0xff]
    %v1186 = vld [vmem:[%s1183 + $0x10] sm:$0xff]
    %v1187 = vld [vmem:[%s1183 + $0x18] sm:$0xff]
    %v1188 = vld [vmem:[%s1183 + $0x20] sm:$0xff]
    %v1189 = vld [vmem:[%s1183 + $0x28] sm:$0xff]
    %v1190 = vld [vmem:[%s1183 + $0x30] sm:$0xff]
    %v1191 = vld [vmem:[%s1183 + $0x38] sm:$0xff]
    %v1192 = vld [vmem:[%s1183 + $0x40] sm:$0xff]
    %v1193 = vld [vmem:[%s1183 + $0x48] sm:$0xff]
    %v1194 = vld [vmem:[%s1183 + $0x50] sm:$0xff]
    %v1195 = vld [vmem:[%s1183 + $0x58] sm:$0xff]
    %v1196 = vld [vmem:[%s1183 + $0x60] sm:$0xff]
    %v1197 = vld [vmem:[%s1183 + $0x68] sm:$0xff]
    %v1198 = vld [vmem:[%s1183 + $0x70] sm:$0xff]
    %v1199 = vld [vmem:[%s1183 + $0x78] sm:$0xff]
    %v1200 = vld [vmem:[%s1183 + $0x80] sm:$0xff]
    %v1201 = vld [vmem:[%s1183 + $0x88] sm:$0xff]
    %v1202 = vld [vmem:[%s1183 + $0x90] sm:$0xff]
    %v1203 = vld [vmem:[%s1183 + $0x98] sm:$0xff]
    %v1204 = vld [vmem:[%s1183 + $0xa0] sm:$0xff]
    %v1205 = vld [vmem:[%s1183 + $0xa8] sm:$0xff]
    %v1206 = vld [vmem:[%s1183 + $0xb0] sm:$0xff]
    %v1207 = vld [vmem:[%s1183 + $0xb8] sm:$0xff]
    %v1208 = vld [vmem:[%s1183 + $0xc0] sm:$0xff]
    %v1209 = vld [vmem:[%s1183 + $0xc8] sm:$0xff]
    %v1210 = vld [vmem:[%s1183 + $0xd0] sm:$0xff]
    %v1211 = vld [vmem:[%s1183 + $0xd8] sm:$0xff]
    %v1212 = vld [vmem:[%s1183 + $0xe0] sm:$0xff]
    %v1213 = vld [vmem:[%s1183 + $0xe8] sm:$0xff]
    %v1214 = vld [vmem:[%s1183 + $0xf0] sm:$0xff]
    %v1215 = vld [vmem:[%s1183 + $0xf8] sm:$0xff]
    %v1216 = vld [vmem:[%s1183 + $0x100] sm:$0xff]
    %v1217 = vld [vmem:[%s1183 + $0x108] sm:$0xff]
    %v1218 = vld [vmem:[%s1183 + $0x110] sm:$0xff]
    %v1219 = vld [vmem:[%s1183 + $0x118] sm:$0xff]
    %v1220 = vld [vmem:[%s1183 + $0x120] sm:$0xff]
    %v1221 = vld [vmem:[%s1183 + $0x128] sm:$0xff]
    %v1222 = vld [vmem:[%s1183 + $0x130] sm:$0xff]
    %v1223 = vld [vmem:[%s1183 + $0x138] sm:$0xff]
    %v1224 = vld [vmem:[%s1183 + $0x140] sm:$0xff]
    %v1225 = vld [vmem:[%s1183 + $0x148] sm:$0xff]
    %v1226 = vld [vmem:[%s1183 + $0x150] sm:$0xff]
    %v1227 = vld [vmem:[%s1183 + $0x158] sm:$0xff]
    %v1228 = vld [vmem:[%s1183 + $0x160] sm:$0xff]
    %v1229 = vld [vmem:[%s1183 + $0x168] sm:$0xff]
    %v1230 = vld [vmem:[%s1183 + $0x170] sm:$0xff]
    %v1231 = vld [vmem:[%s1183 + $0x178] sm:$0xff]
    %v1232 = vld [vmem:[%s1183 + $0x180] sm:$0x3]
    %v1233 = vld [vmem:[%s1183 + $0x188] sm:$0x3]
    %v1234 = vld [vmem:[%s1183 + $0x190] sm:$0x3]
    %v1235 = vld [vmem:[%s1183 + $0x198] sm:$0x3]
    %v1237 = vsel %vm877, %v1187, 0
    %v1240 = vsel %vm877, %v1191, 0
    %v1243 = vsel %vm877, %v1195, 0
    %v1246 = vsel %vm877, %v1199, 0
    %v1249 = vsel %vm877, %v1203, 0
    %v1252 = vsel %vm877, %v1207, 0
    %v1255 = vsel %vm877, %v1211, 0
    %v1258 = vsel %vm877, %v1215, 0
    %v1261 = vsel %vm877, %v1219, 0
    %v1264 = vsel %vm877, %v1223, 0
    %v1267 = vsel %vm877, %v1227, 0
    %v1270 = vsel %vm877, %v1231, 0
    %v1273 = vsel %vm877, %v1235, 0
    %1275 = vmatprep.subr.mxu0 0.0
    %1276 = vmatpush1.msra.mxu0 %v783
    %1277 = vmatprep.subr.mxu0 0.0
    %1278 = vmatpush1.msra.mxu0 %v782
    %1279 = vmatprep.subr.mxu0 0.0
    %1280 = vmatpush1.msra.mxu0 %v781
    %1281 = vmatprep.subr.mxu0 0.0
    %1282 = vmatpush1.msra.mxu0 %v780
    %1283 = vmatprep.subr.mxu0 0.0
    %1284 = vmatpush1.msra.mxu0 %v779
    %1285 = vmatprep.subr.mxu0 0.0
    %1286 = vmatpush1.msra.mxu0 %v778
    %1287 = vmatprep.subr.mxu0 0.0
    %1288 = vmatpush1.msra.mxu0 %v777
    %1289 = vmatprep.subr.mxu0 0.0
    %1290 = vmatpush1.msra.mxu0 %v776
    %1291 = vmatprep.subr.mxu0 0.0
    %1292 = vmatpush1.msra.mxu0 %v775
    %1293 = vmatprep.subr.mxu0 0.0
    %1294 = vmatpush1.msra.mxu0 %v774
    %1295 = vmatprep.subr.mxu0 0.0
    %1296 = vmatpush1.msra.mxu0 %v773
    %1297 = vmatprep.subr.mxu0 0.0
    %1298 = vmatpush1.msra.mxu0 %v772
    %1299 = vmatprep.subr.mxu0 0.0
    %1300 = vmatpush1.msra.mxu0 %v771
    %1301 = vmatprep.subr.mxu0 0.0
    %1302 = vmatpush1.msra.mxu0 %v770
    %1303 = vmatprep.subr.mxu0 0.0
    %1304 = vmatpush1.msra.mxu0 %v769
    %1305 = vmatprep.subr.mxu0 0.0
    %1306 = vmatpush1.msra.mxu0 %v768
    %1307 = vmatprep.subr.mxu0 0.0
    %1308 = vmatpush2.msra.mxu0 %v799
    %1309 = vmatprep.subr.mxu0 0.0
    %1310 = vmatpush2.msra.mxu0 %v798
    %1311 = vmatprep.subr.mxu0 0.0
    %1312 = vmatpush2.msra.mxu0 %v797
    %1313 = vmatprep.subr.mxu0 0.0
    %1314 = vmatpush2.msra.mxu0 %v796
    %1315 = vmatprep.subr.mxu0 0.0
    %1316 = vmatpush2.msra.mxu0 %v795
    %1317 = vmatprep.subr.mxu0 0.0
    %1318 = vmatpush2.msra.mxu0 %v794
    %1319 = vmatprep.subr.mxu0 0.0
    %1320 = vmatpush2.msra.mxu0 %v793
    %1321 = vmatprep.subr.mxu0 0.0
    %1322 = vmatpush2.msra.mxu0 %v792
    %1323 = vmatprep.subr.mxu0 0.0
    %1324 = vmatpush2.msra.mxu0 %v791
    %1325 = vmatprep.subr.mxu0 0.0
    %1326 = vmatpush2.msra.mxu0 %v790
    %1327 = vmatprep.subr.mxu0 0.0
    %1328 = vmatpush2.msra.mxu0 %v789
    %1329 = vmatprep.subr.mxu0 0.0
    %1330 = vmatpush2.msra.mxu0 %v788
    %1331 = vmatprep.subr.mxu0 0.0
    %1332 = vmatpush2.msra.mxu0 %v787
    %1333 = vmatprep.subr.mxu0 0.0
    %1334 = vmatpush2.msra.mxu0 %v786
    %1335 = vmatprep.subr.mxu0 0.0
    %1336 = vmatpush2.msra.mxu0 %v785
    %1337 = vmatprep.subr.mxu0 0.0
    %1338 = vmatpush2.msra.mxu0 %v784
    %1339 = vmatprep.mubr.f32.mxu0 %v1185
    %1340 = vmatmul.mubr.f32.gmra.mxu0 %v1184
    %v1341 = vpop.f32.mrf.mxu0
    %v1342 = vadd.f32 0.0, %v1341
    %v1343 = vpop.f32.mrf.mxu0
    %1344 = vmatprep.mubr.f32.mxu0 %v1189
    %1345 = vmatmul.mubr.f32.gmra.mxu0 %v1188
    %v1346 = vpop.f32.mrf.mxu0
    %v1347 = vadd.f32 0.0, %v1346
    %v1348 = vpop.f32.mrf.mxu0
    %1349 = vmatprep.mubr.f32.mxu0 %v1193
    %1350 = vmatmul.mubr.f32.gmra.mxu0 %v1192
    %v1351 = vpop.f32.mrf.mxu0
    %v1352 = vadd.f32 0.0, %v1351
    %v1353 = vpop.f32.mrf.mxu0
    %1354 = vmatprep.mubr.f32.mxu0 %v1197
    %1355 = vmatmul.mubr.f32.gmra.mxu0 %v1196
    %v1356 = vpop.f32.mrf.mxu0
    %v1357 = vadd.f32 0.0, %v1356
    %v1358 = vpop.f32.mrf.mxu0
    %1359 = vmatprep.mubr.f32.mxu0 %v1201
    %1360 = vmatmul.mubr.f32.gmra.mxu0 %v1200
    %v1361 = vpop.f32.mrf.mxu0
    %v1362 = vadd.f32 0.0, %v1361
    %v1363 = vpop.f32.mrf.mxu0
    %1364 = vmatprep.mubr.f32.mxu0 %v1205
    %1365 = vmatmul.mubr.f32.gmra.mxu0 %v1204
    %v1366 = vpop.f32.mrf.mxu0
    %v1367 = vadd.f32 0.0, %v1366
    %v1368 = vpop.f32.mrf.mxu0
    %1369 = vmatprep.mubr.f32.mxu0 %v1209
    %1370 = vmatmul.mubr.f32.gmra.mxu0 %v1208
    %v1371 = vpop.f32.mrf.mxu0
    %v1372 = vadd.f32 0.0, %v1371
    %v1373 = vpop.f32.mrf.mxu0
    %1374 = vmatprep.mubr.f32.mxu0 %v1213
    %1375 = vmatmul.mubr.f32.gmra.mxu0 %v1212
    %v1376 = vpop.f32.mrf.mxu0
    %v1377 = vadd.f32 0.0, %v1376
    %v1378 = vpop.f32.mrf.mxu0
    %1379 = vmatprep.mubr.f32.mxu0 %v1217
    %1380 = vmatmul.mubr.f32.gmra.mxu0 %v1216
    %v1381 = vpop.f32.mrf.mxu0
    %v1382 = vadd.f32 0.0, %v1381
    %v1383 = vpop.f32.mrf.mxu0
    %1384 = vmatprep.mubr.f32.mxu0 %v1221
    %1385 = vmatmul.mubr.f32.gmra.mxu0 %v1220
    %v1386 = vpop.f32.mrf.mxu0
    %v1387 = vadd.f32 0.0, %v1386
    %v1388 = vpop.f32.mrf.mxu0
    %1389 = vmatprep.mubr.f32.mxu0 %v1225
    %1390 = vmatmul.mubr.f32.gmra.mxu0 %v1224
    %v1391 = vpop.f32.mrf.mxu0
    %v1392 = vadd.f32 0.0, %v1391
    %v1393 = vpop.f32.mrf.mxu0
    %1394 = vmatprep.mubr.f32.mxu0 %v1229
    %1395 = vmatmul.mubr.f32.gmra.mxu0 %v1228
    %v1396 = vpop.f32.mrf.mxu0
    %v1397 = vadd.f32 0.0, %v1396
    %v1398 = vpop.f32.mrf.mxu0
    %1399 = vmatprep.mubr.f32.mxu0 %v1233
    %1400 = vmatmul.mubr.f32.gmra.mxu0 %v1232
    %v1401 = vpop.f32.mrf.mxu0
    %v1402 = vadd.f32 0.0, %v1401
    %v1403 = vpop.f32.mrf.mxu0
    %1404 = vdwg.mxu0
    %1405 = vmatprep.subr.mxu0 0.0
    %1406 = vmatpush1.msra.mxu0 %v815
    %1407 = vmatprep.subr.mxu0 0.0
    %1408 = vmatpush1.msra.mxu0 %v814
    %1409 = vmatprep.subr.mxu0 0.0
    %1410 = vmatpush1.msra.mxu0 %v813
    %1411 = vmatprep.subr.mxu0 0.0
    %1412 = vmatpush1.msra.mxu0 %v812
    %1413 = vmatprep.subr.mxu0 0.0
    %1414 = vmatpush1.msra.mxu0 %v811
    %1415 = vmatprep.subr.mxu0 0.0
    %1416 = vmatpush1.msra.mxu0 %v810
    %1417 = vmatprep.subr.mxu0 0.0
    %1418 = vmatpush1.msra.mxu0 %v809
    %1419 = vmatprep.subr.mxu0 0.0
    %1420 = vmatpush1.msra.mxu0 %v808
    %1421 = vmatprep.subr.mxu0 0.0
    %1422 = vmatpush1.msra.mxu0 %v807
    %1423 = vmatprep.subr.mxu0 0.0
    %1424 = vmatpush1.msra.mxu0 %v806
    %1425 = vmatprep.subr.mxu0 0.0
    %1426 = vmatpush1.msra.mxu0 %v805
    %1427 = vmatprep.subr.mxu0 0.0
    %1428 = vmatpush1.msra.mxu0 %v804
    %1429 = vmatprep.subr.mxu0 0.0
    %1430 = vmatpush1.msra.mxu0 %v803
    %1431 = vmatprep.subr.mxu0 0.0
    %1432 = vmatpush1.msra.mxu0 %v802
    %1433 = vmatprep.subr.mxu0 0.0
    %1434 = vmatpush1.msra.mxu0 %v801
    %1435 = vmatprep.subr.mxu0 0.0
    %1436 = vmatpush1.msra.mxu0 %v800
    %1437 = vmatprep.subr.mxu0 0.0
    %1438 = vmatpush2.msra.mxu0 0.0
    %1439 = vmatprep.subr.mxu0 0.0
    %1440 = vmatpush2.msra.mxu0 0.0
    %1441 = vmatprep.subr.mxu0 0.0
    %1442 = vmatpush2.msra.mxu0 0.0
    %1443 = vmatprep.subr.mxu0 0.0
    %1444 = vmatpush2.msra.mxu0 0.0
    %1445 = vmatprep.subr.mxu0 0.0
    %1446 = vmatpush2.msra.mxu0 0.0
    %1447 = vmatprep.subr.mxu0 0.0
    %1448 = vmatpush2.msra.mxu0 0.0
    %1449 = vmatprep.subr.mxu0 0.0
    %1450 = vmatpush2.msra.mxu0 0.0
    %1451 = vmatprep.subr.mxu0 0.0
    %1452 = vmatpush2.msra.mxu0 %v919
    %1453 = vmatprep.subr.mxu0 0.0
    %1454 = vmatpush2.msra.mxu0 %v823
    %1455 = vmatprep.subr.mxu0 0.0
    %1456 = vmatpush2.msra.mxu0 %v822
    %1457 = vmatprep.subr.mxu0 0.0
    %1458 = vmatpush2.msra.mxu0 %v821
    %1459 = vmatprep.subr.mxu0 0.0
    %1460 = vmatpush2.msra.mxu0 %v820
    %1461 = vmatprep.subr.mxu0 0.0
    %1462 = vmatpush2.msra.mxu0 %v819
    %1463 = vmatprep.subr.mxu0 0.0
    %1464 = vmatpush2.msra.mxu0 %v818
    %1465 = vmatprep.subr.mxu0 0.0
    %1466 = vmatpush2.msra.mxu0 %v817
    %1467 = vmatprep.subr.mxu0 0.0
    %1468 = vmatpush2.msra.mxu0 %v816
    %1469 = vmatprep.mubr.f32.mxu0 %v1237
    %1470 = vmatmul.mubr.f32.gmra.mxu0 %v1186
    %v1471 = vpop.f32.mrf.mxu0
    %v1472 = vadd.f32 %v1342, %v1471
    %v1473 = vpop.f32.mrf.mxu0
    %1474 = vmatprep.mubr.f32.mxu0 %v1240
    %1475 = vmatmul.mubr.f32.gmra.mxu0 %v1190
    %v1476 = vpop.f32.mrf.mxu0
    %v1477 = vadd.f32 %v1347, %v1476
    %v1478 = vpop.f32.mrf.mxu0
    %1479 = vmatprep.mubr.f32.mxu0 %v1243
    %1480 = vmatmul.mubr.f32.gmra.mxu0 %v1194
    %v1481 = vpop.f32.mrf.mxu0
    %v1482 = vadd.f32 %v1352, %v1481
    %v1483 = vpop.f32.mrf.mxu0
    %1484 = vmatprep.mubr.f32.mxu0 %v1246
    %1485 = vmatmul.mubr.f32.gmra.mxu0 %v1198
    %v1486 = vpop.f32.mrf.mxu0
    %v1487 = vadd.f32 %v1357, %v1486
    %v1488 = vpop.f32.mrf.mxu0
    %1489 = vmatprep.mubr.f32.mxu0 %v1249
    %1490 = vmatmul.mubr.f32.gmra.mxu0 %v1202
    %v1491 = vpop.f32.mrf.mxu0
    %v1492 = vadd.f32 %v1362, %v1491
    %v1493 = vpop.f32.mrf.mxu0
    %1494 = vmatprep.mubr.f32.mxu0 %v1252
    %1495 = vmatmul.mubr.f32.gmra.mxu0 %v1206
    %v1496 = vpop.f32.mrf.mxu0
    %v1497 = vadd.f32 %v1367, %v1496
    %v1498 = vpop.f32.mrf.mxu0
    %1499 = vmatprep.mubr.f32.mxu0 %v1255
    %1500 = vmatmul.mubr.f32.gmra.mxu0 %v1210
    %v1501 = vpop.f32.mrf.mxu0
    %v1502 = vadd.f32 %v1372, %v1501
    %v1503 = vpop.f32.mrf.mxu0
    %1504 = vmatprep.mubr.f32.mxu0 %v1258
    %1505 = vmatmul.mubr.f32.gmra.mxu0 %v1214
    %v1506 = vpop.f32.mrf.mxu0
    %v1507 = vadd.f32 %v1377, %v1506
    %v1508 = vpop.f32.mrf.mxu0
    %1509 = vmatprep.mubr.f32.mxu0 %v1261
    %1510 = vmatmul.mubr.f32.gmra.mxu0 %v1218
    %v1511 = vpop.f32.mrf.mxu0
    %v1512 = vadd.f32 %v1382, %v1511
    %v1513 = vpop.f32.mrf.mxu0
    %1514 = vmatprep.mubr.f32.mxu0 %v1264
    %1515 = vmatmul.mubr.f32.gmra.mxu0 %v1222
    %v1516 = vpop.f32.mrf.mxu0
    %v1517 = vadd.f32 %v1387, %v1516
    %v1518 = vpop.f32.mrf.mxu0
    %1519 = vmatprep.mubr.f32.mxu0 %v1267
    %1520 = vmatmul.mubr.f32.gmra.mxu0 %v1226
    %v1521 = vpop.f32.mrf.mxu0
    %v1522 = vadd.f32 %v1392, %v1521
    %v1523 = vpop.f32.mrf.mxu0
    %1524 = vmatprep.mubr.f32.mxu0 %v1270
    %1525 = vmatmul.mubr.f32.gmra.mxu0 %v1230
    %v1526 = vpop.f32.mrf.mxu0
    %v1527 = vadd.f32 %v1397, %v1526
    %v1528 = vpop.f32.mrf.mxu0
    %1529 = vmatprep.mubr.f32.mxu0 %v1273
    %1530 = vmatmul.mubr.f32.gmra.mxu0 %v1234
    %v1531 = vpop.f32.mrf.mxu0
    %v1532 = vadd.f32 %v1402, %v1531
    %v1533 = vpop.f32.mrf.mxu0
    %1534 = vdwg.mxu0
    %s1535 = scalar_lea.vmem %s4, 16
    %v1536 = vld [vmem:[%s1535] sm:$0xff]
    %v1537 = vld [vmem:[%s1535 + $0x8] sm:$0xff]
    %vm1538 = vcmask 130048
    %v1540 = vsel %vm1538, %v1472, 0
    %v1543 = vsel %vm1538, %v1477, 0
    %v1546 = vsel %vm1538, %v1482, 0
    %v1549 = vsel %vm1538, %v1487, 0
    %v1552 = vsel %vm1538, %v1492, 0
    %v1555 = vsel %vm1538, %v1497, 0
    %v1558 = vsel %vm1538, %v1502, 0
    %v1561 = vsel %vm1538, %v1507, 0
    %v1564 = vsel %vm1538, %v1512, 0
    %v1567 = vsel %vm1538, %v1517, 0
    %v1570 = vsel %vm1538, %v1522, 0
    %v1573 = vsel %vm1538, %v1527, 0
    %v1576 = vsel %vm1538, %v1532, 0
    %1578 = vmatprep.subr.mxu0 0.0
    %1579 = vmatpush1.msra.mxu0 0.0
    %1580 = vmatprep.subr.mxu0 0.0
    %1581 = vmatpush1.msra.mxu0 0.0
    %1582 = vmatprep.subr.mxu0 0.0
    %1583 = vmatpush1.msra.mxu0 0.0
    %1584 = vmatprep.subr.mxu0 0.0
    %1585 = vmatpush1.msra.mxu0 0.0
    %1586 = vmatprep.subr.mxu0 0.0
    %1587 = vmatpush1.msra.mxu0 0.0
    %1588 = vmatprep.subr.mxu0 0.0
    %1589 = vmatpush1.msra.mxu0 0.0
    %1590 = vmatprep.subr.mxu0 0.0
    %1591 = vmatpush1.msra.mxu0 0.0
    %1592 = vmatprep.subr.mxu0 0.0
    %1593 = vmatpush1.msra.mxu0 0.0
    %1594 = vmatprep.subr.mxu0 0.0
    %1595 = vmatpush1.msra.mxu0 0.0
    %1596 = vmatprep.subr.mxu0 0.0
    %1597 = vmatpush1.msra.mxu0 0.0
    %1598 = vmatprep.subr.mxu0 0.0
    %1599 = vmatpush1.msra.mxu0 0.0
    %1600 = vmatprep.subr.mxu0 0.0
    %1601 = vmatpush1.msra.mxu0 0.0
    %1602 = vmatprep.subr.mxu0 0.0
    %1603 = vmatpush1.msra.mxu0 0.0
    %1604 = vmatprep.subr.mxu0 0.0
    %1605 = vmatpush1.msra.mxu0 0.0
    %1606 = vmatprep.subr.mxu0 0.0
    %1607 = vmatpush1.msra.mxu0 %v1537
    %1608 = vmatprep.subr.mxu0 0.0
    %1609 = vmatpush1.msra.mxu0 %v1536
    %1610 = vmatprep.subr.mxu0 0.0
    %1611 = vmatpush2.msra.mxu0 0.0
    %1612 = vmatprep.subr.mxu0 0.0
    %1613 = vmatpush2.msra.mxu0 0.0
    %1614 = vmatprep.subr.mxu0 0.0
    %1615 = vmatpush2.msra.mxu0 0.0
    %1616 = vmatprep.subr.mxu0 0.0
    %1617 = vmatpush2.msra.mxu0 0.0
    %1618 = vmatprep.subr.mxu0 0.0
    %1619 = vmatpush2.msra.mxu0 0.0
    %1620 = vmatprep.subr.mxu0 0.0
    %1621 = vmatpush2.msra.mxu0 0.0
    %1622 = vmatprep.subr.mxu0 0.0
    %1623 = vmatpush2.msra.mxu0 0.0
    %1624 = vmatprep.subr.mxu0 0.0
    %1625 = vmatpush2.msra.mxu0 0.0
    %1626 = vmatprep.subr.mxu0 0.0
    %1627 = vmatpush2.msra.mxu0 0.0
    %1628 = vmatprep.subr.mxu0 0.0
    %1629 = vmatpush2.msra.mxu0 0.0
    %1630 = vmatprep.subr.mxu0 0.0
    %1631 = vmatpush2.msra.mxu0 0.0
    %1632 = vmatprep.subr.mxu0 0.0
    %1633 = vmatpush2.msra.mxu0 0.0
    %1634 = vmatprep.subr.mxu0 0.0
    %1635 = vmatpush2.msra.mxu0 0.0
    %1636 = vmatprep.subr.mxu0 0.0
    %1637 = vmatpush2.msra.mxu0 0.0
    %1638 = vmatprep.subr.mxu0 0.0
    %1639 = vmatpush2.msra.mxu0 0.0
    %1640 = vmatprep.subr.mxu0 0.0
    %1641 = vmatpush2.msra.mxu0 0.0
    %1642 = vmatprep.mubr.f32.mxu0 0.0
    %1643 = vmatmul.mubr.f32.gmra.mxu0 %v1540
    %v1644 = vpop.f32.mrf.mxu0
    %v1645 = vadd.f32 0.0, %v1644
    %v1646 = vpop.f32.mrf.mxu0
    %1647 = vmatprep.mubr.f32.mxu0 0.0
    %1648 = vmatmul.mubr.f32.gmra.mxu0 %v1543
    %v1649 = vpop.f32.mrf.mxu0
    %v1650 = vadd.f32 0.0, %v1649
    %v1651 = vpop.f32.mrf.mxu0
    %1652 = vmatprep.mubr.f32.mxu0 0.0
    %1653 = vmatmul.mubr.f32.gmra.mxu0 %v1546
    %v1654 = vpop.f32.mrf.mxu0
    %v1655 = vadd.f32 0.0, %v1654
    %v1656 = vpop.f32.mrf.mxu0
    %1657 = vmatprep.mubr.f32.mxu0 0.0
    %1658 = vmatmul.mubr.f32.gmra.mxu0 %v1549
    %v1659 = vpop.f32.mrf.mxu0
    %v1660 = vadd.f32 0.0, %v1659
    %v1661 = vpop.f32.mrf.mxu0
    %1662 = vmatprep.mubr.f32.mxu0 0.0
    %1663 = vmatmul.mubr.f32.gmra.mxu0 %v1552
    %v1664 = vpop.f32.mrf.mxu0
    %v1665 = vadd.f32 0.0, %v1664
    %v1666 = vpop.f32.mrf.mxu0
    %1667 = vmatprep.mubr.f32.mxu0 0.0
    %1668 = vmatmul.mubr.f32.gmra.mxu0 %v1555
    %v1669 = vpop.f32.mrf.mxu0
    %v1670 = vadd.f32 0.0, %v1669
    %v1671 = vpop.f32.mrf.mxu0
    %1672 = vmatprep.mubr.f32.mxu0 0.0
    %1673 = vmatmul.mubr.f32.gmra.mxu0 %v1558
    %v1674 = vpop.f32.mrf.mxu0
    %v1675 = vadd.f32 0.0, %v1674
    %v1676 = vpop.f32.mrf.mxu0
    %1677 = vmatprep.mubr.f32.mxu0 0.0
    %1678 = vmatmul.mubr.f32.gmra.mxu0 %v1561
    %v1679 = vpop.f32.mrf.mxu0
    %v1680 = vadd.f32 0.0, %v1679
    %v1681 = vpop.f32.mrf.mxu0
    %1682 = vmatprep.mubr.f32.mxu0 0.0
    %1683 = vmatmul.mubr.f32.gmra.mxu0 %v1564
    %v1684 = vpop.f32.mrf.mxu0
    %v1685 = vadd.f32 0.0, %v1684
    %v1686 = vpop.f32.mrf.mxu0
    %1687 = vmatprep.mubr.f32.mxu0 0.0
    %1688 = vmatmul.mubr.f32.gmra.mxu0 %v1567
    %v1689 = vpop.f32.mrf.mxu0
    %v1690 = vadd.f32 0.0, %v1689
    %v1691 = vpop.f32.mrf.mxu0
    %1692 = vmatprep.mubr.f32.mxu0 0.0
    %1693 = vmatmul.mubr.f32.gmra.mxu0 %v1570
    %v1694 = vpop.f32.mrf.mxu0
    %v1695 = vadd.f32 0.0, %v1694
    %v1696 = vpop.f32.mrf.mxu0
    %1697 = vmatprep.mubr.f32.mxu0 0.0
    %1698 = vmatmul.mubr.f32.gmra.mxu0 %v1573
    %v1699 = vpop.f32.mrf.mxu0
    %v1700 = vadd.f32 0.0, %v1699
    %v1701 = vpop.f32.mrf.mxu0
    %1702 = vmatprep.mubr.f32.mxu0 0.0
    %1703 = vmatmul.mubr.f32.gmra.mxu0 %v1576
    %v1704 = vpop.f32.mrf.mxu0
    %v1705 = vadd.f32 0.0, %v1704
    %v1706 = vpop.f32.mrf.mxu0
    %1707 = vdwg.mxu0
    %v1709 = vsel %vm1538, %v1118, 0
    %v1712 = vsel %vm1538, %v1123, 0
    %v1715 = vsel %vm1538, %v1128, 0
    %v1718 = vsel %vm1538, %v1133, 0
    %v1721 = vsel %vm1538, %v1138, 0
    %v1724 = vsel %vm1538, %v1143, 0
    %v1727 = vsel %vm1538, %v1148, 0
    %v1730 = vsel %vm1538, %v1153, 0
    %v1733 = vsel %vm1538, %v1158, 0
    %v1736 = vsel %vm1538, %v1163, 0
    %v1739 = vsel %vm1538, %v1168, 0
    %v1742 = vsel %vm1538, %v1173, 0
    %v1745 = vsel %vm1538, %v1178, 0
    %1747 = vmatprep.subr.mxu0 0.0
    %1748 = vmatpush1.msra.mxu0 0.0
    %1749 = vmatprep.subr.mxu0 0.0
    %1750 = vmatpush1.msra.mxu0 0.0
    %1751 = vmatprep.subr.mxu0 0.0
    %1752 = vmatpush1.msra.mxu0 0.0
    %1753 = vmatprep.subr.mxu0 0.0
    %1754 = vmatpush1.msra.mxu0 0.0
    %1755 = vmatprep.subr.mxu0 0.0
    %1756 = vmatpush1.msra.mxu0 0.0
    %1757 = vmatprep.subr.mxu0 0.0
    %1758 = vmatpush1.msra.mxu0 0.0
    %1759 = vmatprep.subr.mxu0 0.0
    %1760 = vmatpush1.msra.mxu0 0.0
    %1761 = vmatprep.subr.mxu0 0.0
    %1762 = vmatpush1.msra.mxu0 0.0
    %1763 = vmatprep.subr.mxu0 0.0
    %1764 = vmatpush1.msra.mxu0 0.0
    %1765 = vmatprep.subr.mxu0 0.0
    %1766 = vmatpush1.msra.mxu0 0.0
    %1767 = vmatprep.subr.mxu0 0.0
    %1768 = vmatpush1.msra.mxu0 0.0
    %1769 = vmatprep.subr.mxu0 0.0
    %1770 = vmatpush1.msra.mxu0 0.0
    %1771 = vmatprep.subr.mxu0 0.0
    %1772 = vmatpush1.msra.mxu0 0.0
    %1773 = vmatprep.subr.mxu0 0.0
    %1774 = vmatpush1.msra.mxu0 0.0
    %1775 = vmatprep.subr.mxu0 0.0
    %1776 = vmatpush1.msra.mxu0 %v1182
    %1777 = vmatprep.subr.mxu0 0.0
    %1778 = vmatpush1.msra.mxu0 %v1181
    %1779 = vmatprep.subr.mxu0 0.0
    %1780 = vmatpush2.msra.mxu0 0.0
    %1781 = vmatprep.subr.mxu0 0.0
    %1782 = vmatpush2.msra.mxu0 0.0
    %1783 = vmatprep.subr.mxu0 0.0
    %1784 = vmatpush2.msra.mxu0 0.0
    %1785 = vmatprep.subr.mxu0 0.0
    %1786 = vmatpush2.msra.mxu0 0.0
    %1787 = vmatprep.subr.mxu0 0.0
    %1788 = vmatpush2.msra.mxu0 0.0
    %1789 = vmatprep.subr.mxu0 0.0
    %1790 = vmatpush2.msra.mxu0 0.0
    %1791 = vmatprep.subr.mxu0 0.0
    %1792 = vmatpush2.msra.mxu0 0.0
    %1793 = vmatprep.subr.mxu0 0.0
    %1794 = vmatpush2.msra.mxu0 0.0
    %1795 = vmatprep.subr.mxu0 0.0
    %1796 = vmatpush2.msra.mxu0 0.0
    %1797 = vmatprep.subr.mxu0 0.0
    %1798 = vmatpush2.msra.mxu0 0.0
    %1799 = vmatprep.subr.mxu0 0.0
    %1800 = vmatpush2.msra.mxu0 0.0
    %1801 = vmatprep.subr.mxu0 0.0
    %1802 = vmatpush2.msra.mxu0 0.0
    %1803 = vmatprep.subr.mxu0 0.0
    %1804 = vmatpush2.msra.mxu0 0.0
    %1805 = vmatprep.subr.mxu0 0.0
    %1806 = vmatpush2.msra.mxu0 0.0
    %1807 = vmatprep.subr.mxu0 0.0
    %1808 = vmatpush2.msra.mxu0 0.0
    %1809 = vmatprep.subr.mxu0 0.0
    %1810 = vmatpush2.msra.mxu0 0.0
    %1811 = vmatprep.mubr.f32.mxu0 0.0
    %1812 = vmatmul.mubr.f32.gmra.mxu0 %v1709
    %v1813 = vpop.f32.mrf.mxu0
    %v1814 = vadd.f32 %v1645, %v1813
    %v1815 = vpop.f32.mrf.mxu0
    %1816 = vmatprep.mubr.f32.mxu0 0.0
    %1817 = vmatmul.mubr.f32.gmra.mxu0 %v1712
    %v1818 = vpop.f32.mrf.mxu0
    %v1819 = vadd.f32 %v1650, %v1818
    %v1820 = vpop.f32.mrf.mxu0
    %1821 = vmatprep.mubr.f32.mxu0 0.0
    %1822 = vmatmul.mubr.f32.gmra.mxu0 %v1715
    %v1823 = vpop.f32.mrf.mxu0
    %v1824 = vadd.f32 %v1655, %v1823
    %v1825 = vpop.f32.mrf.mxu0
    %1826 = vmatprep.mubr.f32.mxu0 0.0
    %1827 = vmatmul.mubr.f32.gmra.mxu0 %v1718
    %v1828 = vpop.f32.mrf.mxu0
    %v1829 = vadd.f32 %v1660, %v1828
    %v1830 = vpop.f32.mrf.mxu0
    %1831 = vmatprep.mubr.f32.mxu0 0.0
    %1832 = vmatmul.mubr.f32.gmra.mxu0 %v1721
    %v1833 = vpop.f32.mrf.mxu0
    %v1834 = vadd.f32 %v1665, %v1833
    %v1835 = vpop.f32.mrf.mxu0
    %1836 = vmatprep.mubr.f32.mxu0 0.0
    %1837 = vmatmul.mubr.f32.gmra.mxu0 %v1724
    %v1838 = vpop.f32.mrf.mxu0
    %v1839 = vadd.f32 %v1670, %v1838
    %v1840 = vpop.f32.mrf.mxu0
    %1841 = vmatprep.mubr.f32.mxu0 0.0
    %1842 = vmatmul.mubr.f32.gmra.mxu0 %v1727
    %v1843 = vpop.f32.mrf.mxu0
    %v1844 = vadd.f32 %v1675, %v1843
    %v1845 = vpop.f32.mrf.mxu0
    %1846 = vmatprep.mubr.f32.mxu0 0.0
    %1847 = vmatmul.mubr.f32.gmra.mxu0 %v1730
    %v1848 = vpop.f32.mrf.mxu0
    %v1849 = vadd.f32 %v1680, %v1848
    %v1850 = vpop.f32.mrf.mxu0
    %1851 = vmatprep.mubr.f32.mxu0 0.0
    %1852 = vmatmul.mubr.f32.gmra.mxu0 %v1733
    %v1853 = vpop.f32.mrf.mxu0
    %v1854 = vadd.f32 %v1685, %v1853
    %v1855 = vpop.f32.mrf.mxu0
    %1856 = vmatprep.mubr.f32.mxu0 0.0
    %1857 = vmatmul.mubr.f32.gmra.mxu0 %v1736
    %v1858 = vpop.f32.mrf.mxu0
    %v1859 = vadd.f32 %v1690, %v1858
    %v1860 = vpop.f32.mrf.mxu0
    %1861 = vmatprep.mubr.f32.mxu0 0.0
    %1862 = vmatmul.mubr.f32.gmra.mxu0 %v1739
    %v1863 = vpop.f32.mrf.mxu0
    %v1864 = vadd.f32 %v1695, %v1863
    %v1865 = vpop.f32.mrf.mxu0
    %1866 = vmatprep.mubr.f32.mxu0 0.0
    %1867 = vmatmul.mubr.f32.gmra.mxu0 %v1742
    %v1868 = vpop.f32.mrf.mxu0
    %v1869 = vadd.f32 %v1700, %v1868
    %v1870 = vpop.f32.mrf.mxu0
    %1871 = vmatprep.mubr.f32.mxu0 0.0
    %1872 = vmatmul.mubr.f32.gmra.mxu0 %v1745
    %v1873 = vpop.f32.mrf.mxu0
    %v1874 = vadd.f32 %v1705, %v1873
    %v1875 = vpop.f32.mrf.mxu0
    %1876 = vdwg.mxu0
    %s1877 = scalar_lea.vmem %s3, 832
    %v1878 = vld [vmem:[%s1877] sm:$0xff]
    %v1879 = vld [vmem:[%s1877 + $0x8] sm:$0xff]
    %v1880 = vld [vmem:[%s1877 + $0x10] sm:$0xff]
    %v1881 = vld [vmem:[%s1877 + $0x18] sm:$0xff]
    %v1882 = vld [vmem:[%s1877 + $0x20] sm:$0xff]
    %v1883 = vld [vmem:[%s1877 + $0x28] sm:$0xff]
    %v1884 = vld [vmem:[%s1877 + $0x30] sm:$0xff]
    %v1885 = vld [vmem:[%s1877 + $0x38] sm:$0xff]
    %v1886 = vld [vmem:[%s1877 + $0x40] sm:$0xff]
    %v1887 = vld [vmem:[%s1877 + $0x48] sm:$0xff]
    %v1888 = vld [vmem:[%s1877 + $0x50] sm:$0xff]
    %v1889 = vld [vmem:[%s1877 + $0x58] sm:$0xff]
    %v1890 = vld [vmem:[%s1877 + $0x60] sm:$0xff]
    %v1891 = vld [vmem:[%s1877 + $0x68] sm:$0xff]
    %v1892 = vld [vmem:[%s1877 + $0x70] sm:$0xff]
    %v1893 = vld [vmem:[%s1877 + $0x78] sm:$0xff]
    %v1894 = vld [vmem:[%s1877 + $0x80] sm:$0xff]
    %v1895 = vld [vmem:[%s1877 + $0x88] sm:$0xff]
    %v1896 = vld [vmem:[%s1877 + $0x90] sm:$0xff]
    %v1897 = vld [vmem:[%s1877 + $0x98] sm:$0xff]
    %v1898 = vld [vmem:[%s1877 + $0xa0] sm:$0xff]
    %v1899 = vld [vmem:[%s1877 + $0xa8] sm:$0xff]
    %v1900 = vld [vmem:[%s1877 + $0xb0] sm:$0xff]
    %v1901 = vld [vmem:[%s1877 + $0xb8] sm:$0xff]
    %v1902 = vld [vmem:[%s1877 + $0xc0] sm:$0xff]
    %v1903 = vld [vmem:[%s1877 + $0xc8] sm:$0xff]
    %v1904 = vld [vmem:[%s1877 + $0xd0] sm:$0xff]
    %v1905 = vld [vmem:[%s1877 + $0xd8] sm:$0xff]
    %v1906 = vld [vmem:[%s1877 + $0xe0] sm:$0xff]
    %v1907 = vld [vmem:[%s1877 + $0xe8] sm:$0xff]
    %v1908 = vld [vmem:[%s1877 + $0xf0] sm:$0xff]
    %v1909 = vld [vmem:[%s1877 + $0xf8] sm:$0xff]
    %v1910 = vld [vmem:[%s1877 + $0x100] sm:$0xff]
    %v1911 = vld [vmem:[%s1877 + $0x108] sm:$0xff]
    %v1912 = vld [vmem:[%s1877 + $0x110] sm:$0xff]
    %v1913 = vld [vmem:[%s1877 + $0x118] sm:$0xff]
    %v1914 = vld [vmem:[%s1877 + $0x120] sm:$0xff]
    %v1915 = vld [vmem:[%s1877 + $0x128] sm:$0xff]
    %v1916 = vld [vmem:[%s1877 + $0x130] sm:$0xff]
    %v1917 = vld [vmem:[%s1877 + $0x138] sm:$0xff]
    %v1918 = vld [vmem:[%s1877 + $0x140] sm:$0xff]
    %v1919 = vld [vmem:[%s1877 + $0x148] sm:$0xff]
    %v1920 = vld [vmem:[%s1877 + $0x150] sm:$0xff]
    %v1921 = vld [vmem:[%s1877 + $0x158] sm:$0xff]
    %v1922 = vld [vmem:[%s1877 + $0x160] sm:$0xff]
    %v1923 = vld [vmem:[%s1877 + $0x168] sm:$0xff]
    %v1924 = vld [vmem:[%s1877 + $0x170] sm:$0xff]
    %v1925 = vld [vmem:[%s1877 + $0x178] sm:$0xff]
    %v1926 = vld [vmem:[%s1877 + $0x180] sm:$0x3]
    %v1927 = vld [vmem:[%s1877 + $0x188] sm:$0x3]
    %v1928 = vld [vmem:[%s1877 + $0x190] sm:$0x3]
    %v1929 = vld [vmem:[%s1877 + $0x198] sm:$0x3]
    %v1931 = vsel %vm877, %v1881, 0
    %v1934 = vsel %vm877, %v1885, 0
    %v1937 = vsel %vm877, %v1889, 0
    %v1940 = vsel %vm877, %v1893, 0
    %v1943 = vsel %vm877, %v1897, 0
    %v1946 = vsel %vm877, %v1901, 0
    %v1949 = vsel %vm877, %v1905, 0
    %v1952 = vsel %vm877, %v1909, 0
    %v1955 = vsel %vm877, %v1913, 0
    %v1958 = vsel %vm877, %v1917, 0
    %v1961 = vsel %vm877, %v1921, 0
    %v1964 = vsel %vm877, %v1925, 0
    %v1967 = vsel %vm877, %v1929, 0
    %1969 = vmatprep.subr.mxu0 0.0
    %1970 = vmatpush1.msra.mxu0 %v783
    %1971 = vmatprep.subr.mxu0 0.0
    %1972 = vmatpush1.msra.mxu0 %v782
    %1973 = vmatprep.subr.mxu0 0.0
    %1974 = vmatpush1.msra.mxu0 %v781
    %1975 = vmatprep.subr.mxu0 0.0
    %1976 = vmatpush1.msra.mxu0 %v780
    %1977 = vmatprep.subr.mxu0 0.0
    %1978 = vmatpush1.msra.mxu0 %v779
    %1979 = vmatprep.subr.mxu0 0.0
    %1980 = vmatpush1.msra.mxu0 %v778
    %1981 = vmatprep.subr.mxu0 0.0
    %1982 = vmatpush1.msra.mxu0 %v777
    %1983 = vmatprep.subr.mxu0 0.0
    %1984 = vmatpush1.msra.mxu0 %v776
    %1985 = vmatprep.subr.mxu0 0.0
    %1986 = vmatpush1.msra.mxu0 %v775
    %1987 = vmatprep.subr.mxu0 0.0
    %1988 = vmatpush1.msra.mxu0 %v774
    %1989 = vmatprep.subr.mxu0 0.0
    %1990 = vmatpush1.msra.mxu0 %v773
    %1991 = vmatprep.subr.mxu0 0.0
    %1992 = vmatpush1.msra.mxu0 %v772
    %1993 = vmatprep.subr.mxu0 0.0
    %1994 = vmatpush1.msra.mxu0 %v771
    %1995 = vmatprep.subr.mxu0 0.0
    %1996 = vmatpush1.msra.mxu0 %v770
    %1997 = vmatprep.subr.mxu0 0.0
    %1998 = vmatpush1.msra.mxu0 %v769
    %1999 = vmatprep.subr.mxu0 0.0
    %2000 = vmatpush1.msra.mxu0 %v768
    %2001 = vmatprep.subr.mxu0 0.0
    %2002 = vmatpush2.msra.mxu0 %v799
    %2003 = vmatprep.subr.mxu0 0.0
    %2004 = vmatpush2.msra.mxu0 %v798
    %2005 = vmatprep.subr.mxu0 0.0
    %2006 = vmatpush2.msra.mxu0 %v797
    %2007 = vmatprep.subr.mxu0 0.0
    %2008 = vmatpush2.msra.mxu0 %v796
    %2009 = vmatprep.subr.mxu0 0.0
    %2010 = vmatpush2.msra.mxu0 %v795
    %2011 = vmatprep.subr.mxu0 0.0
    %2012 = vmatpush2.msra.mxu0 %v794
    %2013 = vmatprep.subr.mxu0 0.0
    %2014 = vmatpush2.msra.mxu0 %v793
    %2015 = vmatprep.subr.mxu0 0.0
    %2016 = vmatpush2.msra.mxu0 %v792
    %2017 = vmatprep.subr.mxu0 0.0
    %2018 = vmatpush2.msra.mxu0 %v791
    %2019 = vmatprep.subr.mxu0 0.0
    %2020 = vmatpush2.msra.mxu0 %v790
    %2021 = vmatprep.subr.mxu0 0.0
    %2022 = vmatpush2.msra.mxu0 %v789
    %2023 = vmatprep.subr.mxu0 0.0
    %2024 = vmatpush2.msra.mxu0 %v788
    %2025 = vmatprep.subr.mxu0 0.0
    %2026 = vmatpush2.msra.mxu0 %v787
    %2027 = vmatprep.subr.mxu0 0.0
    %2028 = vmatpush2.msra.mxu0 %v786
    %2029 = vmatprep.subr.mxu0 0.0
    %2030 = vmatpush2.msra.mxu0 %v785
    %2031 = vmatprep.subr.mxu0 0.0
    %2032 = vmatpush2.msra.mxu0 %v784
    %2033 = vmatprep.mubr.f32.mxu0 %v1879
    %2034 = vmatmul.mubr.f32.gmra.mxu0 %v1878
    %v2035 = vpop.f32.mrf.mxu0
    %v2036 = vadd.f32 0.0, %v2035
    %v2037 = vpop.f32.mrf.mxu0
    %2038 = vmatprep.mubr.f32.mxu0 %v1883
    %2039 = vmatmul.mubr.f32.gmra.mxu0 %v1882
    %v2040 = vpop.f32.mrf.mxu0
    %v2041 = vadd.f32 0.0, %v2040
    %v2042 = vpop.f32.mrf.mxu0
    %2043 = vmatprep.mubr.f32.mxu0 %v1887
    %2044 = vmatmul.mubr.f32.gmra.mxu0 %v1886
    %v2045 = vpop.f32.mrf.mxu0
    %v2046 = vadd.f32 0.0, %v2045
    %v2047 = vpop.f32.mrf.mxu0
    %2048 = vmatprep.mubr.f32.mxu0 %v1891
    %2049 = vmatmul.mubr.f32.gmra.mxu0 %v1890
    %v2050 = vpop.f32.mrf.mxu0
    %v2051 = vadd.f32 0.0, %v2050
    %v2052 = vpop.f32.mrf.mxu0
    %2053 = vmatprep.mubr.f32.mxu0 %v1895
    %2054 = vmatmul.mubr.f32.gmra.mxu0 %v1894
    %v2055 = vpop.f32.mrf.mxu0
    %v2056 = vadd.f32 0.0, %v2055
    %v2057 = vpop.f32.mrf.mxu0
    %2058 = vmatprep.mubr.f32.mxu0 %v1899
    %2059 = vmatmul.mubr.f32.gmra.mxu0 %v1898
    %v2060 = vpop.f32.mrf.mxu0
    %v2061 = vadd.f32 0.0, %v2060
    %v2062 = vpop.f32.mrf.mxu0
    %2063 = vmatprep.mubr.f32.mxu0 %v1903
    %2064 = vmatmul.mubr.f32.gmra.mxu0 %v1902
    %v2065 = vpop.f32.mrf.mxu0
    %v2066 = vadd.f32 0.0, %v2065
    %v2067 = vpop.f32.mrf.mxu0
    %2068 = vmatprep.mubr.f32.mxu0 %v1907
    %2069 = vmatmul.mubr.f32.gmra.mxu0 %v1906
    %v2070 = vpop.f32.mrf.mxu0
    %v2071 = vadd.f32 0.0, %v2070
    %v2072 = vpop.f32.mrf.mxu0
    %2073 = vmatprep.mubr.f32.mxu0 %v1911
    %2074 = vmatmul.mubr.f32.gmra.mxu0 %v1910
    %v2075 = vpop.f32.mrf.mxu0
    %v2076 = vadd.f32 0.0, %v2075
    %v2077 = vpop.f32.mrf.mxu0
    %2078 = vmatprep.mubr.f32.mxu0 %v1915
    %2079 = vmatmul.mubr.f32.gmra.mxu0 %v1914
    %v2080 = vpop.f32.mrf.mxu0
    %v2081 = vadd.f32 0.0, %v2080
    %v2082 = vpop.f32.mrf.mxu0
    %2083 = vmatprep.mubr.f32.mxu0 %v1919
    %2084 = vmatmul.mubr.f32.gmra.mxu0 %v1918
    %v2085 = vpop.f32.mrf.mxu0
    %v2086 = vadd.f32 0.0, %v2085
    %v2087 = vpop.f32.mrf.mxu0
    %2088 = vmatprep.mubr.f32.mxu0 %v1923
    %2089 = vmatmul.mubr.f32.gmra.mxu0 %v1922
    %v2090 = vpop.f32.mrf.mxu0
    %v2091 = vadd.f32 0.0, %v2090
    %v2092 = vpop.f32.mrf.mxu0
    %2093 = vmatprep.mubr.f32.mxu0 %v1927
    %2094 = vmatmul.mubr.f32.gmra.mxu0 %v1926
    %v2095 = vpop.f32.mrf.mxu0
    %v2096 = vadd.f32 0.0, %v2095
    %v2097 = vpop.f32.mrf.mxu0
    %2098 = vdwg.mxu0
    %2099 = vmatprep.subr.mxu0 0.0
    %2100 = vmatpush1.msra.mxu0 %v815
    %2101 = vmatprep.subr.mxu0 0.0
    %2102 = vmatpush1.msra.mxu0 %v814
    %2103 = vmatprep.subr.mxu0 0.0
    %2104 = vmatpush1.msra.mxu0 %v813
    %2105 = vmatprep.subr.mxu0 0.0
    %2106 = vmatpush1.msra.mxu0 %v812
    %2107 = vmatprep.subr.mxu0 0.0
    %2108 = vmatpush1.msra.mxu0 %v811
    %2109 = vmatprep.subr.mxu0 0.0
    %2110 = vmatpush1.msra.mxu0 %v810
    %2111 = vmatprep.subr.mxu0 0.0
    %2112 = vmatpush1.msra.mxu0 %v809
    %2113 = vmatprep.subr.mxu0 0.0
    %2114 = vmatpush1.msra.mxu0 %v808
    %2115 = vmatprep.subr.mxu0 0.0
    %2116 = vmatpush1.msra.mxu0 %v807
    %2117 = vmatprep.subr.mxu0 0.0
    %2118 = vmatpush1.msra.mxu0 %v806
    %2119 = vmatprep.subr.mxu0 0.0
    %2120 = vmatpush1.msra.mxu0 %v805
    %2121 = vmatprep.subr.mxu0 0.0
    %2122 = vmatpush1.msra.mxu0 %v804
    %2123 = vmatprep.subr.mxu0 0.0
    %2124 = vmatpush1.msra.mxu0 %v803
    %2125 = vmatprep.subr.mxu0 0.0
    %2126 = vmatpush1.msra.mxu0 %v802
    %2127 = vmatprep.subr.mxu0 0.0
    %2128 = vmatpush1.msra.mxu0 %v801
    %2129 = vmatprep.subr.mxu0 0.0
    %2130 = vmatpush1.msra.mxu0 %v800
    %2131 = vmatprep.subr.mxu0 0.0
    %2132 = vmatpush2.msra.mxu0 0.0
    %2133 = vmatprep.subr.mxu0 0.0
    %2134 = vmatpush2.msra.mxu0 0.0
    %2135 = vmatprep.subr.mxu0 0.0
    %2136 = vmatpush2.msra.mxu0 0.0
    %2137 = vmatprep.subr.mxu0 0.0
    %2138 = vmatpush2.msra.mxu0 0.0
    %2139 = vmatprep.subr.mxu0 0.0
    %2140 = vmatpush2.msra.mxu0 0.0
    %2141 = vmatprep.subr.mxu0 0.0
    %2142 = vmatpush2.msra.mxu0 0.0
    %2143 = vmatprep.subr.mxu0 0.0
    %2144 = vmatpush2.msra.mxu0 0.0
    %2145 = vmatprep.subr.mxu0 0.0
    %2146 = vmatpush2.msra.mxu0 %v919
    %2147 = vmatprep.subr.mxu0 0.0
    %2148 = vmatpush2.msra.mxu0 %v823
    %2149 = vmatprep.subr.mxu0 0.0
    %2150 = vmatpush2.msra.mxu0 %v822
    %2151 = vmatprep.subr.mxu0 0.0
    %2152 = vmatpush2.msra.mxu0 %v821
    %2153 = vmatprep.subr.mxu0 0.0
    %2154 = vmatpush2.msra.mxu0 %v820
    %2155 = vmatprep.subr.mxu0 0.0
    %2156 = vmatpush2.msra.mxu0 %v819
    %2157 = vmatprep.subr.mxu0 0.0
    %2158 = vmatpush2.msra.mxu0 %v818
    %2159 = vmatprep.subr.mxu0 0.0
    %2160 = vmatpush2.msra.mxu0 %v817
    %2161 = vmatprep.subr.mxu0 0.0
    %2162 = vmatpush2.msra.mxu0 %v816
    %2163 = vmatprep.mubr.f32.mxu0 %v1931
    %2164 = vmatmul.mubr.f32.gmra.mxu0 %v1880
    %v2165 = vpop.f32.mrf.mxu0
    %v2166 = vadd.f32 %v2036, %v2165
    %v2167 = vpop.f32.mrf.mxu0
    %2168 = vmatprep.mubr.f32.mxu0 %v1934
    %2169 = vmatmul.mubr.f32.gmra.mxu0 %v1884
    %v2170 = vpop.f32.mrf.mxu0
    %v2171 = vadd.f32 %v2041, %v2170
    %v2172 = vpop.f32.mrf.mxu0
    %2173 = vmatprep.mubr.f32.mxu0 %v1937
    %2174 = vmatmul.mubr.f32.gmra.mxu0 %v1888
    %v2175 = vpop.f32.mrf.mxu0
    %v2176 = vadd.f32 %v2046, %v2175
    %v2177 = vpop.f32.mrf.mxu0
    %2178 = vmatprep.mubr.f32.mxu0 %v1940
    %2179 = vmatmul.mubr.f32.gmra.mxu0 %v1892
    %v2180 = vpop.f32.mrf.mxu0
    %v2181 = vadd.f32 %v2051, %v2180
    %v2182 = vpop.f32.mrf.mxu0
    %2183 = vmatprep.mubr.f32.mxu0 %v1943
    %2184 = vmatmul.mubr.f32.gmra.mxu0 %v1896
    %v2185 = vpop.f32.mrf.mxu0
    %v2186 = vadd.f32 %v2056, %v2185
    %v2187 = vpop.f32.mrf.mxu0
    %2188 = vmatprep.mubr.f32.mxu0 %v1946
    %2189 = vmatmul.mubr.f32.gmra.mxu0 %v1900
    %v2190 = vpop.f32.mrf.mxu0
    %v2191 = vadd.f32 %v2061, %v2190
    %v2192 = vpop.f32.mrf.mxu0
    %2193 = vmatprep.mubr.f32.mxu0 %v1949
    %2194 = vmatmul.mubr.f32.gmra.mxu0 %v1904
    %v2195 = vpop.f32.mrf.mxu0
    %v2196 = vadd.f32 %v2066, %v2195
    %v2197 = vpop.f32.mrf.mxu0
    %2198 = vmatprep.mubr.f32.mxu0 %v1952
    %2199 = vmatmul.mubr.f32.gmra.mxu0 %v1908
    %v2200 = vpop.f32.mrf.mxu0
    %v2201 = vadd.f32 %v2071, %v2200
    %v2202 = vpop.f32.mrf.mxu0
    %2203 = vmatprep.mubr.f32.mxu0 %v1955
    %2204 = vmatmul.mubr.f32.gmra.mxu0 %v1912
    %v2205 = vpop.f32.mrf.mxu0
    %v2206 = vadd.f32 %v2076, %v2205
    %v2207 = vpop.f32.mrf.mxu0
    %2208 = vmatprep.mubr.f32.mxu0 %v1958
    %2209 = vmatmul.mubr.f32.gmra.mxu0 %v1916
    %v2210 = vpop.f32.mrf.mxu0
    %v2211 = vadd.f32 %v2081, %v2210
    %v2212 = vpop.f32.mrf.mxu0
    %2213 = vmatprep.mubr.f32.mxu0 %v1961
    %2214 = vmatmul.mubr.f32.gmra.mxu0 %v1920
    %v2215 = vpop.f32.mrf.mxu0
    %v2216 = vadd.f32 %v2086, %v2215
    %v2217 = vpop.f32.mrf.mxu0
    %2218 = vmatprep.mubr.f32.mxu0 %v1964
    %2219 = vmatmul.mubr.f32.gmra.mxu0 %v1924
    %v2220 = vpop.f32.mrf.mxu0
    %v2221 = vadd.f32 %v2091, %v2220
    %v2222 = vpop.f32.mrf.mxu0
    %2223 = vmatprep.mubr.f32.mxu0 %v1967
    %2224 = vmatmul.mubr.f32.gmra.mxu0 %v1928
    %v2225 = vpop.f32.mrf.mxu0
    %v2226 = vadd.f32 %v2096, %v2225
    %v2227 = vpop.f32.mrf.mxu0
    %2228 = vdwg.mxu0
    %s2229 = scalar_lea.vmem %s4, 32
    %v2230 = vld [vmem:[%s2229] sm:$0xff]
    %v2231 = vld [vmem:[%s2229 + $0x8] sm:$0xff]
    %v2233 = vsel %vm1538, %v2166, 0
    %v2236 = vsel %vm1538, %v2171, 0
    %v2239 = vsel %vm1538, %v2176, 0
    %v2242 = vsel %vm1538, %v2181, 0
    %v2245 = vsel %vm1538, %v2186, 0
    %v2248 = vsel %vm1538, %v2191, 0
    %v2251 = vsel %vm1538, %v2196, 0
    %v2254 = vsel %vm1538, %v2201, 0
    %v2257 = vsel %vm1538, %v2206, 0
    %v2260 = vsel %vm1538, %v2211, 0
    %v2263 = vsel %vm1538, %v2216, 0
    %v2266 = vsel %vm1538, %v2221, 0
    %v2269 = vsel %vm1538, %v2226, 0
    %2271 = vmatprep.subr.mxu0 0.0
    %2272 = vmatpush1.msra.mxu0 0.0
    %2273 = vmatprep.subr.mxu0 0.0
    %2274 = vmatpush1.msra.mxu0 0.0
    %2275 = vmatprep.subr.mxu0 0.0
    %2276 = vmatpush1.msra.mxu0 0.0
    %2277 = vmatprep.subr.mxu0 0.0
    %2278 = vmatpush1.msra.mxu0 0.0
    %2279 = vmatprep.subr.mxu0 0.0
    %2280 = vmatpush1.msra.mxu0 0.0
    %2281 = vmatprep.subr.mxu0 0.0
    %2282 = vmatpush1.msra.mxu0 0.0
    %2283 = vmatprep.subr.mxu0 0.0
    %2284 = vmatpush1.msra.mxu0 0.0
    %2285 = vmatprep.subr.mxu0 0.0
    %2286 = vmatpush1.msra.mxu0 0.0
    %2287 = vmatprep.subr.mxu0 0.0
    %2288 = vmatpush1.msra.mxu0 0.0
    %2289 = vmatprep.subr.mxu0 0.0
    %2290 = vmatpush1.msra.mxu0 0.0
    %2291 = vmatprep.subr.mxu0 0.0
    %2292 = vmatpush1.msra.mxu0 0.0
    %2293 = vmatprep.subr.mxu0 0.0
    %2294 = vmatpush1.msra.mxu0 0.0
    %2295 = vmatprep.subr.mxu0 0.0
    %2296 = vmatpush1.msra.mxu0 0.0
    %2297 = vmatprep.subr.mxu0 0.0
    %2298 = vmatpush1.msra.mxu0 0.0
    %2299 = vmatprep.subr.mxu0 0.0
    %2300 = vmatpush1.msra.mxu0 %v2231
    %2301 = vmatprep.subr.mxu0 0.0
    %2302 = vmatpush1.msra.mxu0 %v2230
    %2303 = vmatprep.subr.mxu0 0.0
    %2304 = vmatpush2.msra.mxu0 0.0
    %2305 = vmatprep.subr.mxu0 0.0
    %2306 = vmatpush2.msra.mxu0 0.0
    %2307 = vmatprep.subr.mxu0 0.0
    %2308 = vmatpush2.msra.mxu0 0.0
    %2309 = vmatprep.subr.mxu0 0.0
    %2310 = vmatpush2.msra.mxu0 0.0
    %2311 = vmatprep.subr.mxu0 0.0
    %2312 = vmatpush2.msra.mxu0 0.0
    %2313 = vmatprep.subr.mxu0 0.0
    %2314 = vmatpush2.msra.mxu0 0.0
    %2315 = vmatprep.subr.mxu0 0.0
    %2316 = vmatpush2.msra.mxu0 0.0
    %2317 = vmatprep.subr.mxu0 0.0
    %2318 = vmatpush2.msra.mxu0 0.0
    %2319 = vmatprep.subr.mxu0 0.0
    %2320 = vmatpush2.msra.mxu0 0.0
    %2321 = vmatprep.subr.mxu0 0.0
    %2322 = vmatpush2.msra.mxu0 0.0
    %2323 = vmatprep.subr.mxu0 0.0
    %2324 = vmatpush2.msra.mxu0 0.0
    %2325 = vmatprep.subr.mxu0 0.0
    %2326 = vmatpush2.msra.mxu0 0.0
    %2327 = vmatprep.subr.mxu0 0.0
    %2328 = vmatpush2.msra.mxu0 0.0
    %2329 = vmatprep.subr.mxu0 0.0
    %2330 = vmatpush2.msra.mxu0 0.0
    %2331 = vmatprep.subr.mxu0 0.0
    %2332 = vmatpush2.msra.mxu0 0.0
    %2333 = vmatprep.subr.mxu0 0.0
    %2334 = vmatpush2.msra.mxu0 0.0
    %2335 = vmatprep.mubr.f32.mxu0 0.0
    %2336 = vmatmul.mubr.f32.gmra.mxu0 %v2233
    %v2337 = vpop.f32.mrf.mxu0
    %v2338 = vadd.f32 0.0, %v2337
    %v2339 = vpop.f32.mrf.mxu0
    %2340 = vmatprep.mubr.f32.mxu0 0.0
    %2341 = vmatmul.mubr.f32.gmra.mxu0 %v2236
    %v2342 = vpop.f32.mrf.mxu0
    %v2343 = vadd.f32 0.0, %v2342
    %v2344 = vpop.f32.mrf.mxu0
    %2345 = vmatprep.mubr.f32.mxu0 0.0
    %2346 = vmatmul.mubr.f32.gmra.mxu0 %v2239
    %v2347 = vpop.f32.mrf.mxu0
    %v2348 = vadd.f32 0.0, %v2347
    %v2349 = vpop.f32.mrf.mxu0
    %2350 = vmatprep.mubr.f32.mxu0 0.0
    %2351 = vmatmul.mubr.f32.gmra.mxu0 %v2242
    %v2352 = vpop.f32.mrf.mxu0
    %v2353 = vadd.f32 0.0, %v2352
    %v2354 = vpop.f32.mrf.mxu0
    %2355 = vmatprep.mubr.f32.mxu0 0.0
    %2356 = vmatmul.mubr.f32.gmra.mxu0 %v2245
    %v2357 = vpop.f32.mrf.mxu0
    %v2358 = vadd.f32 0.0, %v2357
    %v2359 = vpop.f32.mrf.mxu0
    %2360 = vmatprep.mubr.f32.mxu0 0.0
    %2361 = vmatmul.mubr.f32.gmra.mxu0 %v2248
    %v2362 = vpop.f32.mrf.mxu0
    %v2363 = vadd.f32 0.0, %v2362
    %v2364 = vpop.f32.mrf.mxu0
    %2365 = vmatprep.mubr.f32.mxu0 0.0
    %2366 = vmatmul.mubr.f32.gmra.mxu0 %v2251
    %v2367 = vpop.f32.mrf.mxu0
    %v2368 = vadd.f32 0.0, %v2367
    %v2369 = vpop.f32.mrf.mxu0
    %2370 = vmatprep.mubr.f32.mxu0 0.0
    %2371 = vmatmul.mubr.f32.gmra.mxu0 %v2254
    %v2372 = vpop.f32.mrf.mxu0
    %v2373 = vadd.f32 0.0, %v2372
    %v2374 = vpop.f32.mrf.mxu0
    %2375 = vmatprep.mubr.f32.mxu0 0.0
    %2376 = vmatmul.mubr.f32.gmra.mxu0 %v2257
    %v2377 = vpop.f32.mrf.mxu0
    %v2378 = vadd.f32 0.0, %v2377
    %v2379 = vpop.f32.mrf.mxu0
    %2380 = vmatprep.mubr.f32.mxu0 0.0
    %2381 = vmatmul.mubr.f32.gmra.mxu0 %v2260
    %v2382 = vpop.f32.mrf.mxu0
    %v2383 = vadd.f32 0.0, %v2382
    %v2384 = vpop.f32.mrf.mxu0
    %2385 = vmatprep.mubr.f32.mxu0 0.0
    %2386 = vmatmul.mubr.f32.gmra.mxu0 %v2263
    %v2387 = vpop.f32.mrf.mxu0
    %v2388 = vadd.f32 0.0, %v2387
    %v2389 = vpop.f32.mrf.mxu0
    %2390 = vmatprep.mubr.f32.mxu0 0.0
    %2391 = vmatmul.mubr.f32.gmra.mxu0 %v2266
    %v2392 = vpop.f32.mrf.mxu0
    %v2393 = vadd.f32 0.0, %v2392
    %v2394 = vpop.f32.mrf.mxu0
    %2395 = vmatprep.mubr.f32.mxu0 0.0
    %2396 = vmatmul.mubr.f32.gmra.mxu0 %v2269
    %v2397 = vpop.f32.mrf.mxu0
    %v2398 = vadd.f32 0.0, %v2397
    %v2399 = vpop.f32.mrf.mxu0
    %2400 = vdwg.mxu0
    %v2401 = vadd.f32 %v1814, %v2338
    %v2402 = vadd.f32 %v1819, %v2343
    %v2403 = vadd.f32 %v1824, %v2348
    %v2404 = vadd.f32 %v1829, %v2353
    %v2405 = vadd.f32 %v1834, %v2358
    %v2406 = vadd.f32 %v1839, %v2363
    %v2407 = vadd.f32 %v1844, %v2368
    %v2408 = vadd.f32 %v1849, %v2373
    %v2409 = vadd.f32 %v1854, %v2378
    %v2410 = vadd.f32 %v1859, %v2383
    %v2411 = vadd.f32 %v1864, %v2388
    %v2412 = vadd.f32 %v1869, %v2393
    %v2413 = vadd.f32 %v1874, %v2398
    %s2414 = scalar_lea.vmem %s3, 1248
    %v2415 = vld [vmem:[%s2414] sm:$0xff]
    %v2416 = vld [vmem:[%s2414 + $0x8] sm:$0xff]
    %v2417 = vld [vmem:[%s2414 + $0x10] sm:$0xff]
    %v2418 = vld [vmem:[%s2414 + $0x18] sm:$0xff]
    %v2419 = vld [vmem:[%s2414 + $0x20] sm:$0xff]
    %v2420 = vld [vmem:[%s2414 + $0x28] sm:$0xff]
    %v2421 = vld [vmem:[%s2414 + $0x30] sm:$0xff]
    %v2422 = vld [vmem:[%s2414 + $0x38] sm:$0xff]
    %v2423 = vld [vmem:[%s2414 + $0x40] sm:$0xff]
    %v2424 = vld [vmem:[%s2414 + $0x48] sm:$0xff]
    %v2425 = vld [vmem:[%s2414 + $0x50] sm:$0xff]
    %v2426 = vld [vmem:[%s2414 + $0x58] sm:$0xff]
    %v2427 = vld [vmem:[%s2414 + $0x60] sm:$0xff]
    %v2428 = vld [vmem:[%s2414 + $0x68] sm:$0xff]
    %v2429 = vld [vmem:[%s2414 + $0x70] sm:$0xff]
    %v2430 = vld [vmem:[%s2414 + $0x78] sm:$0xff]
    %v2431 = vld [vmem:[%s2414 + $0x80] sm:$0xff]
    %v2432 = vld [vmem:[%s2414 + $0x88] sm:$0xff]
    %v2433 = vld [vmem:[%s2414 + $0x90] sm:$0xff]
    %v2434 = vld [vmem:[%s2414 + $0x98] sm:$0xff]
    %v2435 = vld [vmem:[%s2414 + $0xa0] sm:$0xff]
    %v2436 = vld [vmem:[%s2414 + $0xa8] sm:$0xff]
    %v2437 = vld [vmem:[%s2414 + $0xb0] sm:$0xff]
    %v2438 = vld [vmem:[%s2414 + $0xb8] sm:$0xff]
    %v2439 = vld [vmem:[%s2414 + $0xc0] sm:$0xff]
    %v2440 = vld [vmem:[%s2414 + $0xc8] sm:$0xff]
    %v2441 = vld [vmem:[%s2414 + $0xd0] sm:$0xff]
    %v2442 = vld [vmem:[%s2414 + $0xd8] sm:$0xff]
    %v2443 = vld [vmem:[%s2414 + $0xe0] sm:$0xff]
    %v2444 = vld [vmem:[%s2414 + $0xe8] sm:$0xff]
    %v2445 = vld [vmem:[%s2414 + $0xf0] sm:$0xff]
    %v2446 = vld [vmem:[%s2414 + $0xf8] sm:$0xff]
    %v2447 = vld [vmem:[%s2414 + $0x100] sm:$0xff]
    %v2448 = vld [vmem:[%s2414 + $0x108] sm:$0xff]
    %v2449 = vld [vmem:[%s2414 + $0x110] sm:$0xff]
    %v2450 = vld [vmem:[%s2414 + $0x118] sm:$0xff]
    %v2451 = vld [vmem:[%s2414 + $0x120] sm:$0xff]
    %v2452 = vld [vmem:[%s2414 + $0x128] sm:$0xff]
    %v2453 = vld [vmem:[%s2414 + $0x130] sm:$0xff]
    %v2454 = vld [vmem:[%s2414 + $0x138] sm:$0xff]
    %v2455 = vld [vmem:[%s2414 + $0x140] sm:$0xff]
    %v2456 = vld [vmem:[%s2414 + $0x148] sm:$0xff]
    %v2457 = vld [vmem:[%s2414 + $0x150] sm:$0xff]
    %v2458 = vld [vmem:[%s2414 + $0x158] sm:$0xff]
    %v2459 = vld [vmem:[%s2414 + $0x160] sm:$0xff]
    %v2460 = vld [vmem:[%s2414 + $0x168] sm:$0xff]
    %v2461 = vld [vmem:[%s2414 + $0x170] sm:$0xff]
    %v2462 = vld [vmem:[%s2414 + $0x178] sm:$0xff]
    %v2463 = vld [vmem:[%s2414 + $0x180] sm:$0x3]
    %v2464 = vld [vmem:[%s2414 + $0x188] sm:$0x3]
    %v2465 = vld [vmem:[%s2414 + $0x190] sm:$0x3]
    %v2466 = vld [vmem:[%s2414 + $0x198] sm:$0x3]
    %v2468 = vsel %vm877, %v2418, 0
    %v2471 = vsel %vm877, %v2422, 0
    %v2474 = vsel %vm877, %v2426, 0
    %v2477 = vsel %vm877, %v2430, 0
    %v2480 = vsel %vm877, %v2434, 0
    %v2483 = vsel %vm877, %v2438, 0
    %v2486 = vsel %vm877, %v2442, 0
    %v2489 = vsel %vm877, %v2446, 0
    %v2492 = vsel %vm877, %v2450, 0
    %v2495 = vsel %vm877, %v2454, 0
    %v2498 = vsel %vm877, %v2458, 0
    %v2501 = vsel %vm877, %v2462, 0
    %v2504 = vsel %vm877, %v2466, 0
    %2506 = vmatprep.subr.mxu0 0.0
    %2507 = vmatpush1.msra.mxu0 %v783
    %2508 = vmatprep.subr.mxu0 0.0
    %2509 = vmatpush1.msra.mxu0 %v782
    %2510 = vmatprep.subr.mxu0 0.0
    %2511 = vmatpush1.msra.mxu0 %v781
    %2512 = vmatprep.subr.mxu0 0.0
    %2513 = vmatpush1.msra.mxu0 %v780
    %2514 = vmatprep.subr.mxu0 0.0
    %2515 = vmatpush1.msra.mxu0 %v779
    %2516 = vmatprep.subr.mxu0 0.0
    %2517 = vmatpush1.msra.mxu0 %v778
    %2518 = vmatprep.subr.mxu0 0.0
    %2519 = vmatpush1.msra.mxu0 %v777
    %2520 = vmatprep.subr.mxu0 0.0
    %2521 = vmatpush1.msra.mxu0 %v776
    %2522 = vmatprep.subr.mxu0 0.0
    %2523 = vmatpush1.msra.mxu0 %v775
    %2524 = vmatprep.subr.mxu0 0.0
    %2525 = vmatpush1.msra.mxu0 %v774
    %2526 = vmatprep.subr.mxu0 0.0
    %2527 = vmatpush1.msra.mxu0 %v773
    %2528 = vmatprep.subr.mxu0 0.0
    %2529 = vmatpush1.msra.mxu0 %v772
    %2530 = vmatprep.subr.mxu0 0.0
    %2531 = vmatpush1.msra.mxu0 %v771
    %2532 = vmatprep.subr.mxu0 0.0
    %2533 = vmatpush1.msra.mxu0 %v770
    %2534 = vmatprep.subr.mxu0 0.0
    %2535 = vmatpush1.msra.mxu0 %v769
    %2536 = vmatprep.subr.mxu0 0.0
    %2537 = vmatpush1.msra.mxu0 %v768
    %2538 = vmatprep.subr.mxu0 0.0
    %2539 = vmatpush2.msra.mxu0 %v799
    %2540 = vmatprep.subr.mxu0 0.0
    %2541 = vmatpush2.msra.mxu0 %v798
    %2542 = vmatprep.subr.mxu0 0.0
    %2543 = vmatpush2.msra.mxu0 %v797
    %2544 = vmatprep.subr.mxu0 0.0
    %2545 = vmatpush2.msra.mxu0 %v796
    %2546 = vmatprep.subr.mxu0 0.0
    %2547 = vmatpush2.msra.mxu0 %v795
    %2548 = vmatprep.subr.mxu0 0.0
    %2549 = vmatpush2.msra.mxu0 %v794
    %2550 = vmatprep.subr.mxu0 0.0
    %2551 = vmatpush2.msra.mxu0 %v793
    %2552 = vmatprep.subr.mxu0 0.0
    %2553 = vmatpush2.msra.mxu0 %v792
    %2554 = vmatprep.subr.mxu0 0.0
    %2555 = vmatpush2.msra.mxu0 %v791
    %2556 = vmatprep.subr.mxu0 0.0
    %2557 = vmatpush2.msra.mxu0 %v790
    %2558 = vmatprep.subr.mxu0 0.0
    %2559 = vmatpush2.msra.mxu0 %v789
    %2560 = vmatprep.subr.mxu0 0.0
    %2561 = vmatpush2.msra.mxu0 %v788
    %2562 = vmatprep.subr.mxu0 0.0
    %2563 = vmatpush2.msra.mxu0 %v787
    %2564 = vmatprep.subr.mxu0 0.0
    %2565 = vmatpush2.msra.mxu0 %v786
    %2566 = vmatprep.subr.mxu0 0.0
    %2567 = vmatpush2.msra.mxu0 %v785
    %2568 = vmatprep.subr.mxu0 0.0
    %2569 = vmatpush2.msra.mxu0 %v784
    %2570 = vmatprep.mubr.f32.mxu0 %v2416
    %2571 = vmatmul.mubr.f32.gmra.mxu0 %v2415
    %v2572 = vpop.f32.mrf.mxu0
    %v2573 = vadd.f32 0.0, %v2572
    %v2574 = vpop.f32.mrf.mxu0
    %2575 = vmatprep.mubr.f32.mxu0 %v2420
    %2576 = vmatmul.mubr.f32.gmra.mxu0 %v2419
    %v2577 = vpop.f32.mrf.mxu0
    %v2578 = vadd.f32 0.0, %v2577
    %v2579 = vpop.f32.mrf.mxu0
    %2580 = vmatprep.mubr.f32.mxu0 %v2424
    %2581 = vmatmul.mubr.f32.gmra.mxu0 %v2423
    %v2582 = vpop.f32.mrf.mxu0
    %v2583 = vadd.f32 0.0, %v2582
    %v2584 = vpop.f32.mrf.mxu0
    %2585 = vmatprep.mubr.f32.mxu0 %v2428
    %2586 = vmatmul.mubr.f32.gmra.mxu0 %v2427
    %v2587 = vpop.f32.mrf.mxu0
    %v2588 = vadd.f32 0.0, %v2587
    %v2589 = vpop.f32.mrf.mxu0
    %2590 = vmatprep.mubr.f32.mxu0 %v2432
    %2591 = vmatmul.mubr.f32.gmra.mxu0 %v2431
    %v2592 = vpop.f32.mrf.mxu0
    %v2593 = vadd.f32 0.0, %v2592
    %v2594 = vpop.f32.mrf.mxu0
    %2595 = vmatprep.mubr.f32.mxu0 %v2436
    %2596 = vmatmul.mubr.f32.gmra.mxu0 %v2435
    %v2597 = vpop.f32.mrf.mxu0
    %v2598 = vadd.f32 0.0, %v2597
    %v2599 = vpop.f32.mrf.mxu0
    %2600 = vmatprep.mubr.f32.mxu0 %v2440
    %2601 = vmatmul.mubr.f32.gmra.mxu0 %v2439
    %v2602 = vpop.f32.mrf.mxu0
    %v2603 = vadd.f32 0.0, %v2602
    %v2604 = vpop.f32.mrf.mxu0
    %2605 = vmatprep.mubr.f32.mxu0 %v2444
    %2606 = vmatmul.mubr.f32.gmra.mxu0 %v2443
    %v2607 = vpop.f32.mrf.mxu0
    %v2608 = vadd.f32 0.0, %v2607
    %v2609 = vpop.f32.mrf.mxu0
    %2610 = vmatprep.mubr.f32.mxu0 %v2448
    %2611 = vmatmul.mubr.f32.gmra.mxu0 %v2447
    %v2612 = vpop.f32.mrf.mxu0
    %v2613 = vadd.f32 0.0, %v2612
    %v2614 = vpop.f32.mrf.mxu0
    %2615 = vmatprep.mubr.f32.mxu0 %v2452
    %2616 = vmatmul.mubr.f32.gmra.mxu0 %v2451
    %v2617 = vpop.f32.mrf.mxu0
    %v2618 = vadd.f32 0.0, %v2617
    %v2619 = vpop.f32.mrf.mxu0
    %2620 = vmatprep.mubr.f32.mxu0 %v2456
    %2621 = vmatmul.mubr.f32.gmra.mxu0 %v2455
    %v2622 = vpop.f32.mrf.mxu0
    %v2623 = vadd.f32 0.0, %v2622
    %v2624 = vpop.f32.mrf.mxu0
    %2625 = vmatprep.mubr.f32.mxu0 %v2460
    %2626 = vmatmul.mubr.f32.gmra.mxu0 %v2459
    %v2627 = vpop.f32.mrf.mxu0
    %v2628 = vadd.f32 0.0, %v2627
    %v2629 = vpop.f32.mrf.mxu0
    %2630 = vmatprep.mubr.f32.mxu0 %v2464
    %2631 = vmatmul.mubr.f32.gmra.mxu0 %v2463
    %v2632 = vpop.f32.mrf.mxu0
    %v2633 = vadd.f32 0.0, %v2632
    %v2634 = vpop.f32.mrf.mxu0
    %2635 = vdwg.mxu0
    %2636 = vmatprep.subr.mxu0 0.0
    %2637 = vmatpush1.msra.mxu0 %v815
    %2638 = vmatprep.subr.mxu0 0.0
    %2639 = vmatpush1.msra.mxu0 %v814
    %2640 = vmatprep.subr.mxu0 0.0
    %2641 = vmatpush1.msra.mxu0 %v813
    %2642 = vmatprep.subr.mxu0 0.0
    %2643 = vmatpush1.msra.mxu0 %v812
    %2644 = vmatprep.subr.mxu0 0.0
    %2645 = vmatpush1.msra.mxu0 %v811
    %2646 = vmatprep.subr.mxu0 0.0
    %2647 = vmatpush1.msra.mxu0 %v810
    %2648 = vmatprep.subr.mxu0 0.0
    %2649 = vmatpush1.msra.mxu0 %v809
    %2650 = vmatprep.subr.mxu0 0.0
    %2651 = vmatpush1.msra.mxu0 %v808
    %2652 = vmatprep.subr.mxu0 0.0
    %2653 = vmatpush1.msra.mxu0 %v807
    %2654 = vmatprep.subr.mxu0 0.0
    %2655 = vmatpush1.msra.mxu0 %v806
    %2656 = vmatprep.subr.mxu0 0.0
    %2657 = vmatpush1.msra.mxu0 %v805
    %2658 = vmatprep.subr.mxu0 0.0
    %2659 = vmatpush1.msra.mxu0 %v804
    %2660 = vmatprep.subr.mxu0 0.0
    %2661 = vmatpush1.msra.mxu0 %v803
    %2662 = vmatprep.subr.mxu0 0.0
    %2663 = vmatpush1.msra.mxu0 %v802
    %2664 = vmatprep.subr.mxu0 0.0
    %2665 = vmatpush1.msra.mxu0 %v801
    %2666 = vmatprep.subr.mxu0 0.0
    %2667 = vmatpush1.msra.mxu0 %v800
    %2668 = vmatprep.subr.mxu0 0.0
    %2669 = vmatpush2.msra.mxu0 0.0
    %2670 = vmatprep.subr.mxu0 0.0
    %2671 = vmatpush2.msra.mxu0 0.0
    %2672 = vmatprep.subr.mxu0 0.0
    %2673 = vmatpush2.msra.mxu0 0.0
    %2674 = vmatprep.subr.mxu0 0.0
    %2675 = vmatpush2.msra.mxu0 0.0
    %2676 = vmatprep.subr.mxu0 0.0
    %2677 = vmatpush2.msra.mxu0 0.0
    %2678 = vmatprep.subr.mxu0 0.0
    %2679 = vmatpush2.msra.mxu0 0.0
    %2680 = vmatprep.subr.mxu0 0.0
    %2681 = vmatpush2.msra.mxu0 0.0
    %2682 = vmatprep.subr.mxu0 0.0
    %2683 = vmatpush2.msra.mxu0 %v919
    %2684 = vmatprep.subr.mxu0 0.0
    %2685 = vmatpush2.msra.mxu0 %v823
    %2686 = vmatprep.subr.mxu0 0.0
    %2687 = vmatpush2.msra.mxu0 %v822
    %2688 = vmatprep.subr.mxu0 0.0
    %2689 = vmatpush2.msra.mxu0 %v821
    %2690 = vmatprep.subr.mxu0 0.0
    %2691 = vmatpush2.msra.mxu0 %v820
    %2692 = vmatprep.subr.mxu0 0.0
    %2693 = vmatpush2.msra.mxu0 %v819
    %2694 = vmatprep.subr.mxu0 0.0
    %2695 = vmatpush2.msra.mxu0 %v818
    %2696 = vmatprep.subr.mxu0 0.0
    %2697 = vmatpush2.msra.mxu0 %v817
    %2698 = vmatprep.subr.mxu0 0.0
    %2699 = vmatpush2.msra.mxu0 %v816
    %2700 = vmatprep.mubr.f32.mxu0 %v2468
    %2701 = vmatmul.mubr.f32.gmra.mxu0 %v2417
    %v2702 = vpop.f32.mrf.mxu0
    %v2703 = vadd.f32 %v2573, %v2702
    %v2704 = vpop.f32.mrf.mxu0
    %2705 = vmatprep.mubr.f32.mxu0 %v2471
    %2706 = vmatmul.mubr.f32.gmra.mxu0 %v2421
    %v2707 = vpop.f32.mrf.mxu0
    %v2708 = vadd.f32 %v2578, %v2707
    %v2709 = vpop.f32.mrf.mxu0
    %2710 = vmatprep.mubr.f32.mxu0 %v2474
    %2711 = vmatmul.mubr.f32.gmra.mxu0 %v2425
    %v2712 = vpop.f32.mrf.mxu0
    %v2713 = vadd.f32 %v2583, %v2712
    %v2714 = vpop.f32.mrf.mxu0
    %2715 = vmatprep.mubr.f32.mxu0 %v2477
    %2716 = vmatmul.mubr.f32.gmra.mxu0 %v2429
    %v2717 = vpop.f32.mrf.mxu0
    %v2718 = vadd.f32 %v2588, %v2717
    %v2719 = vpop.f32.mrf.mxu0
    %2720 = vmatprep.mubr.f32.mxu0 %v2480
    %2721 = vmatmul.mubr.f32.gmra.mxu0 %v2433
    %v2722 = vpop.f32.mrf.mxu0
    %v2723 = vadd.f32 %v2593, %v2722
    %v2724 = vpop.f32.mrf.mxu0
    %2725 = vmatprep.mubr.f32.mxu0 %v2483
    %2726 = vmatmul.mubr.f32.gmra.mxu0 %v2437
    %v2727 = vpop.f32.mrf.mxu0
    %v2728 = vadd.f32 %v2598, %v2727
    %v2729 = vpop.f32.mrf.mxu0
    %2730 = vmatprep.mubr.f32.mxu0 %v2486
    %2731 = vmatmul.mubr.f32.gmra.mxu0 %v2441
    %v2732 = vpop.f32.mrf.mxu0
    %v2733 = vadd.f32 %v2603, %v2732
    %v2734 = vpop.f32.mrf.mxu0
    %2735 = vmatprep.mubr.f32.mxu0 %v2489
    %2736 = vmatmul.mubr.f32.gmra.mxu0 %v2445
    %v2737 = vpop.f32.mrf.mxu0
    %v2738 = vadd.f32 %v2608, %v2737
    %v2739 = vpop.f32.mrf.mxu0
    %2740 = vmatprep.mubr.f32.mxu0 %v2492
    %2741 = vmatmul.mubr.f32.gmra.mxu0 %v2449
    %v2742 = vpop.f32.mrf.mxu0
    %v2743 = vadd.f32 %v2613, %v2742
    %v2744 = vpop.f32.mrf.mxu0
    %2745 = vmatprep.mubr.f32.mxu0 %v2495
    %2746 = vmatmul.mubr.f32.gmra.mxu0 %v2453
    %v2747 = vpop.f32.mrf.mxu0
    %v2748 = vadd.f32 %v2618, %v2747
    %v2749 = vpop.f32.mrf.mxu0
    %2750 = vmatprep.mubr.f32.mxu0 %v2498
    %2751 = vmatmul.mubr.f32.gmra.mxu0 %v2457
    %v2752 = vpop.f32.mrf.mxu0
    %v2753 = vadd.f32 %v2623, %v2752
    %v2754 = vpop.f32.mrf.mxu0
    %2755 = vmatprep.mubr.f32.mxu0 %v2501
    %2756 = vmatmul.mubr.f32.gmra.mxu0 %v2461
    %v2757 = vpop.f32.mrf.mxu0
    %v2758 = vadd.f32 %v2628, %v2757
    %v2759 = vpop.f32.mrf.mxu0
    %2760 = vmatprep.mubr.f32.mxu0 %v2504
    %2761 = vmatmul.mubr.f32.gmra.mxu0 %v2465
    %v2762 = vpop.f32.mrf.mxu0
    %v2763 = vadd.f32 %v2633, %v2762
    %v2764 = vpop.f32.mrf.mxu0
    %2765 = vdwg.mxu0
    %s2766 = scalar_lea.vmem %s4, 48
    %v2767 = vld [vmem:[%s2766] sm:$0xff]
    %v2768 = vld [vmem:[%s2766 + $0x8] sm:$0xff]
    %v2770 = vsel %vm1538, %v2703, 0
    %v2773 = vsel %vm1538, %v2708, 0
    %v2776 = vsel %vm1538, %v2713, 0
    %v2779 = vsel %vm1538, %v2718, 0
    %v2782 = vsel %vm1538, %v2723, 0
    %v2785 = vsel %vm1538, %v2728, 0
    %v2788 = vsel %vm1538, %v2733, 0
    %v2791 = vsel %vm1538, %v2738, 0
    %v2794 = vsel %vm1538, %v2743, 0
    %v2797 = vsel %vm1538, %v2748, 0
    %v2800 = vsel %vm1538, %v2753, 0
    %v2803 = vsel %vm1538, %v2758, 0
    %v2806 = vsel %vm1538, %v2763, 0
    %2808 = vmatprep.subr.mxu0 0.0
    %2809 = vmatpush1.msra.mxu0 0.0
    %2810 = vmatprep.subr.mxu0 0.0
    %2811 = vmatpush1.msra.mxu0 0.0
    %2812 = vmatprep.subr.mxu0 0.0
    %2813 = vmatpush1.msra.mxu0 0.0
    %2814 = vmatprep.subr.mxu0 0.0
    %2815 = vmatpush1.msra.mxu0 0.0
    %2816 = vmatprep.subr.mxu0 0.0
    %2817 = vmatpush1.msra.mxu0 0.0
    %2818 = vmatprep.subr.mxu0 0.0
    %2819 = vmatpush1.msra.mxu0 0.0
    %2820 = vmatprep.subr.mxu0 0.0
    %2821 = vmatpush1.msra.mxu0 0.0
    %2822 = vmatprep.subr.mxu0 0.0
    %2823 = vmatpush1.msra.mxu0 0.0
    %2824 = vmatprep.subr.mxu0 0.0
    %2825 = vmatpush1.msra.mxu0 0.0
    %2826 = vmatprep.subr.mxu0 0.0
    %2827 = vmatpush1.msra.mxu0 0.0
    %2828 = vmatprep.subr.mxu0 0.0
    %2829 = vmatpush1.msra.mxu0 0.0
    %2830 = vmatprep.subr.mxu0 0.0
    %2831 = vmatpush1.msra.mxu0 0.0
    %2832 = vmatprep.subr.mxu0 0.0
    %2833 = vmatpush1.msra.mxu0 0.0
    %2834 = vmatprep.subr.mxu0 0.0
    %2835 = vmatpush1.msra.mxu0 0.0
    %2836 = vmatprep.subr.mxu0 0.0
    %2837 = vmatpush1.msra.mxu0 %v2768
    %2838 = vmatprep.subr.mxu0 0.0
    %2839 = vmatpush1.msra.mxu0 %v2767
    %2840 = vmatprep.subr.mxu0 0.0
    %2841 = vmatpush2.msra.mxu0 0.0
    %2842 = vmatprep.subr.mxu0 0.0
    %2843 = vmatpush2.msra.mxu0 0.0
    %2844 = vmatprep.subr.mxu0 0.0
    %2845 = vmatpush2.msra.mxu0 0.0
    %2846 = vmatprep.subr.mxu0 0.0
    %2847 = vmatpush2.msra.mxu0 0.0
    %2848 = vmatprep.subr.mxu0 0.0
    %2849 = vmatpush2.msra.mxu0 0.0
    %2850 = vmatprep.subr.mxu0 0.0
    %2851 = vmatpush2.msra.mxu0 0.0
    %2852 = vmatprep.subr.mxu0 0.0
    %2853 = vmatpush2.msra.mxu0 0.0
    %2854 = vmatprep.subr.mxu0 0.0
    %2855 = vmatpush2.msra.mxu0 0.0
    %2856 = vmatprep.subr.mxu0 0.0
    %2857 = vmatpush2.msra.mxu0 0.0
    %2858 = vmatprep.subr.mxu0 0.0
    %2859 = vmatpush2.msra.mxu0 0.0
    %2860 = vmatprep.subr.mxu0 0.0
    %2861 = vmatpush2.msra.mxu0 0.0
    %2862 = vmatprep.subr.mxu0 0.0
    %2863 = vmatpush2.msra.mxu0 0.0
    %2864 = vmatprep.subr.mxu0 0.0
    %2865 = vmatpush2.msra.mxu0 0.0
    %2866 = vmatprep.subr.mxu0 0.0
    %2867 = vmatpush2.msra.mxu0 0.0
    %2868 = vmatprep.subr.mxu0 0.0
    %2869 = vmatpush2.msra.mxu0 0.0
    %2870 = vmatprep.subr.mxu0 0.0
    %2871 = vmatpush2.msra.mxu0 0.0
    %2872 = vmatprep.mubr.f32.mxu0 0.0
    %2873 = vmatmul.mubr.f32.gmra.mxu0 %v2770
    %v2874 = vpop.f32.mrf.mxu0
    %v2875 = vadd.f32 0.0, %v2874
    %v2876 = vpop.f32.mrf.mxu0
    %2877 = vmatprep.mubr.f32.mxu0 0.0
    %2878 = vmatmul.mubr.f32.gmra.mxu0 %v2773
    %v2879 = vpop.f32.mrf.mxu0
    %v2880 = vadd.f32 0.0, %v2879
    %v2881 = vpop.f32.mrf.mxu0
    %2882 = vmatprep.mubr.f32.mxu0 0.0
    %2883 = vmatmul.mubr.f32.gmra.mxu0 %v2776
    %v2884 = vpop.f32.mrf.mxu0
    %v2885 = vadd.f32 0.0, %v2884
    %v2886 = vpop.f32.mrf.mxu0
    %2887 = vmatprep.mubr.f32.mxu0 0.0
    %2888 = vmatmul.mubr.f32.gmra.mxu0 %v2779
    %v2889 = vpop.f32.mrf.mxu0
    %v2890 = vadd.f32 0.0, %v2889
    %v2891 = vpop.f32.mrf.mxu0
    %2892 = vmatprep.mubr.f32.mxu0 0.0
    %2893 = vmatmul.mubr.f32.gmra.mxu0 %v2782
    %v2894 = vpop.f32.mrf.mxu0
    %v2895 = vadd.f32 0.0, %v2894
    %v2896 = vpop.f32.mrf.mxu0
    %2897 = vmatprep.mubr.f32.mxu0 0.0
    %2898 = vmatmul.mubr.f32.gmra.mxu0 %v2785
    %v2899 = vpop.f32.mrf.mxu0
    %v2900 = vadd.f32 0.0, %v2899
    %v2901 = vpop.f32.mrf.mxu0
    %2902 = vmatprep.mubr.f32.mxu0 0.0
    %2903 = vmatmul.mubr.f32.gmra.mxu0 %v2788
    %v2904 = vpop.f32.mrf.mxu0
    %v2905 = vadd.f32 0.0, %v2904
    %v2906 = vpop.f32.mrf.mxu0
    %2907 = vmatprep.mubr.f32.mxu0 0.0
    %2908 = vmatmul.mubr.f32.gmra.mxu0 %v2791
    %v2909 = vpop.f32.mrf.mxu0
    %v2910 = vadd.f32 0.0, %v2909
    %v2911 = vpop.f32.mrf.mxu0
    %2912 = vmatprep.mubr.f32.mxu0 0.0
    %2913 = vmatmul.mubr.f32.gmra.mxu0 %v2794
    %v2914 = vpop.f32.mrf.mxu0
    %v2915 = vadd.f32 0.0, %v2914
    %v2916 = vpop.f32.mrf.mxu0
    %2917 = vmatprep.mubr.f32.mxu0 0.0
    %2918 = vmatmul.mubr.f32.gmra.mxu0 %v2797
    %v2919 = vpop.f32.mrf.mxu0
    %v2920 = vadd.f32 0.0, %v2919
    %v2921 = vpop.f32.mrf.mxu0
    %2922 = vmatprep.mubr.f32.mxu0 0.0
    %2923 = vmatmul.mubr.f32.gmra.mxu0 %v2800
    %v2924 = vpop.f32.mrf.mxu0
    %v2925 = vadd.f32 0.0, %v2924
    %v2926 = vpop.f32.mrf.mxu0
    %2927 = vmatprep.mubr.f32.mxu0 0.0
    %2928 = vmatmul.mubr.f32.gmra.mxu0 %v2803
    %v2929 = vpop.f32.mrf.mxu0
    %v2930 = vadd.f32 0.0, %v2929
    %v2931 = vpop.f32.mrf.mxu0
    %2932 = vmatprep.mubr.f32.mxu0 0.0
    %2933 = vmatmul.mubr.f32.gmra.mxu0 %v2806
    %v2934 = vpop.f32.mrf.mxu0
    %v2935 = vadd.f32 0.0, %v2934
    %v2936 = vpop.f32.mrf.mxu0
    %2937 = vdwg.mxu0
    %v2938 = vadd.f32 %v2401, %v2875
    %v2939 = vadd.f32 %v2402, %v2880
    %v2940 = vadd.f32 %v2403, %v2885
    %v2941 = vadd.f32 %v2404, %v2890
    %v2942 = vadd.f32 %v2405, %v2895
    %v2943 = vadd.f32 %v2406, %v2900
    %v2944 = vadd.f32 %v2407, %v2905
    %v2945 = vadd.f32 %v2408, %v2910
    %v2946 = vadd.f32 %v2409, %v2915
    %v2947 = vadd.f32 %v2410, %v2920
    %v2948 = vadd.f32 %v2411, %v2925
    %v2949 = vadd.f32 %v2412, %v2930
    %v2950 = vadd.f32 %v2413, %v2935
    %s2951 = scalar_lea.vmem %s3, 1664
    %v2952 = vld [vmem:[%s2951] sm:$0xff]
    %v2953 = vld [vmem:[%s2951 + $0x8] sm:$0xff]
    %v2954 = vld [vmem:[%s2951 + $0x10] sm:$0xff]
    %v2955 = vld [vmem:[%s2951 + $0x18] sm:$0xff]
    %v2956 = vld [vmem:[%s2951 + $0x20] sm:$0xff]
    %v2957 = vld [vmem:[%s2951 + $0x28] sm:$0xff]
    %v2958 = vld [vmem:[%s2951 + $0x30] sm:$0xff]
    %v2959 = vld [vmem:[%s2951 + $0x38] sm:$0xff]
    %v2960 = vld [vmem:[%s2951 + $0x40] sm:$0xff]
    %v2961 = vld [vmem:[%s2951 + $0x48] sm:$0xff]
    %v2962 = vld [vmem:[%s2951 + $0x50] sm:$0xff]
    %v2963 = vld [vmem:[%s2951 + $0x58] sm:$0xff]
    %v2964 = vld [vmem:[%s2951 + $0x60] sm:$0xff]
    %v2965 = vld [vmem:[%s2951 + $0x68] sm:$0xff]
    %v2966 = vld [vmem:[%s2951 + $0x70] sm:$0xff]
    %v2967 = vld [vmem:[%s2951 + $0x78] sm:$0xff]
    %v2968 = vld [vmem:[%s2951 + $0x80] sm:$0xff]
    %v2969 = vld [vmem:[%s2951 + $0x88] sm:$0xff]
    %v2970 = vld [vmem:[%s2951 + $0x90] sm:$0xff]
    %v2971 = vld [vmem:[%s2951 + $0x98] sm:$0xff]
    %v2972 = vld [vmem:[%s2951 + $0xa0] sm:$0xff]
    %v2973 = vld [vmem:[%s2951 + $0xa8] sm:$0xff]
    %v2974 = vld [vmem:[%s2951 + $0xb0] sm:$0xff]
    %v2975 = vld [vmem:[%s2951 + $0xb8] sm:$0xff]
    %v2976 = vld [vmem:[%s2951 + $0xc0] sm:$0xff]
    %v2977 = vld [vmem:[%s2951 + $0xc8] sm:$0xff]
    %v2978 = vld [vmem:[%s2951 + $0xd0] sm:$0xff]
    %v2979 = vld [vmem:[%s2951 + $0xd8] sm:$0xff]
    %v2980 = vld [vmem:[%s2951 + $0xe0] sm:$0xff]
    %v2981 = vld [vmem:[%s2951 + $0xe8] sm:$0xff]
    %v2982 = vld [vmem:[%s2951 + $0xf0] sm:$0xff]
    %v2983 = vld [vmem:[%s2951 + $0xf8] sm:$0xff]
    %v2984 = vld [vmem:[%s2951 + $0x100] sm:$0xff]
    %v2985 = vld [vmem:[%s2951 + $0x108] sm:$0xff]
    %v2986 = vld [vmem:[%s2951 + $0x110] sm:$0xff]
    %v2987 = vld [vmem:[%s2951 + $0x118] sm:$0xff]
    %v2988 = vld [vmem:[%s2951 + $0x120] sm:$0xff]
    %v2989 = vld [vmem:[%s2951 + $0x128] sm:$0xff]
    %v2990 = vld [vmem:[%s2951 + $0x130] sm:$0xff]
    %v2991 = vld [vmem:[%s2951 + $0x138] sm:$0xff]
    %v2992 = vld [vmem:[%s2951 + $0x140] sm:$0xff]
    %v2993 = vld [vmem:[%s2951 + $0x148] sm:$0xff]
    %v2994 = vld [vmem:[%s2951 + $0x150] sm:$0xff]
    %v2995 = vld [vmem:[%s2951 + $0x158] sm:$0xff]
    %v2996 = vld [vmem:[%s2951 + $0x160] sm:$0xff]
    %v2997 = vld [vmem:[%s2951 + $0x168] sm:$0xff]
    %v2998 = vld [vmem:[%s2951 + $0x170] sm:$0xff]
    %v2999 = vld [vmem:[%s2951 + $0x178] sm:$0xff]
    %v3000 = vld [vmem:[%s2951 + $0x180] sm:$0x3]
    %v3001 = vld [vmem:[%s2951 + $0x188] sm:$0x3]
    %v3002 = vld [vmem:[%s2951 + $0x190] sm:$0x3]
    %v3003 = vld [vmem:[%s2951 + $0x198] sm:$0x3]
    %v3005 = vsel %vm877, %v2955, 0
    %v3008 = vsel %vm877, %v2959, 0
    %v3011 = vsel %vm877, %v2963, 0
    %v3014 = vsel %vm877, %v2967, 0
    %v3017 = vsel %vm877, %v2971, 0
    %v3020 = vsel %vm877, %v2975, 0
    %v3023 = vsel %vm877, %v2979, 0
    %v3026 = vsel %vm877, %v2983, 0
    %v3029 = vsel %vm877, %v2987, 0
    %v3032 = vsel %vm877, %v2991, 0
    %v3035 = vsel %vm877, %v2995, 0
    %v3038 = vsel %vm877, %v2999, 0
    %v3041 = vsel %vm877, %v3003, 0
    %3043 = vmatprep.subr.mxu0 0.0
    %3044 = vmatpush1.msra.mxu0 %v783
    %3045 = vmatprep.subr.mxu0 0.0
    %3046 = vmatpush1.msra.mxu0 %v782
    %3047 = vmatprep.subr.mxu0 0.0
    %3048 = vmatpush1.msra.mxu0 %v781
    %3049 = vmatprep.subr.mxu0 0.0
    %3050 = vmatpush1.msra.mxu0 %v780
    %3051 = vmatprep.subr.mxu0 0.0
    %3052 = vmatpush1.msra.mxu0 %v779
    %3053 = vmatprep.subr.mxu0 0.0
    %3054 = vmatpush1.msra.mxu0 %v778
    %3055 = vmatprep.subr.mxu0 0.0
    %3056 = vmatpush1.msra.mxu0 %v777
    %3057 = vmatprep.subr.mxu0 0.0
    %3058 = vmatpush1.msra.mxu0 %v776
    %3059 = vmatprep.subr.mxu0 0.0
    %3060 = vmatpush1.msra.mxu0 %v775
    %3061 = vmatprep.subr.mxu0 0.0
    %3062 = vmatpush1.msra.mxu0 %v774
    %3063 = vmatprep.subr.mxu0 0.0
    %3064 = vmatpush1.msra.mxu0 %v773
    %3065 = vmatprep.subr.mxu0 0.0
    %3066 = vmatpush1.msra.mxu0 %v772
    %3067 = vmatprep.subr.mxu0 0.0
    %3068 = vmatpush1.msra.mxu0 %v771
    %3069 = vmatprep.subr.mxu0 0.0
    %3070 = vmatpush1.msra.mxu0 %v770
    %3071 = vmatprep.subr.mxu0 0.0
    %3072 = vmatpush1.msra.mxu0 %v769
    %3073 = vmatprep.subr.mxu0 0.0
    %3074 = vmatpush1.msra.mxu0 %v768
    %3075 = vmatprep.subr.mxu0 0.0
    %3076 = vmatpush2.msra.mxu0 %v799
    %3077 = vmatprep.subr.mxu0 0.0
    %3078 = vmatpush2.msra.mxu0 %v798
    %3079 = vmatprep.subr.mxu0 0.0
    %3080 = vmatpush2.msra.mxu0 %v797
    %3081 = vmatprep.subr.mxu0 0.0
    %3082 = vmatpush2.msra.mxu0 %v796
    %3083 = vmatprep.subr.mxu0 0.0
    %3084 = vmatpush2.msra.mxu0 %v795
    %3085 = vmatprep.subr.mxu0 0.0
    %3086 = vmatpush2.msra.mxu0 %v794
    %3087 = vmatprep.subr.mxu0 0.0
    %3088 = vmatpush2.msra.mxu0 %v793
    %3089 = vmatprep.subr.mxu0 0.0
    %3090 = vmatpush2.msra.mxu0 %v792
    %3091 = vmatprep.subr.mxu0 0.0
    %3092 = vmatpush2.msra.mxu0 %v791
    %3093 = vmatprep.subr.mxu0 0.0
    %3094 = vmatpush2.msra.mxu0 %v790
    %3095 = vmatprep.subr.mxu0 0.0
    %3096 = vmatpush2.msra.mxu0 %v789
    %3097 = vmatprep.subr.mxu0 0.0
    %3098 = vmatpush2.msra.mxu0 %v788
    %3099 = vmatprep.subr.mxu0 0.0
    %3100 = vmatpush2.msra.mxu0 %v787
    %3101 = vmatprep.subr.mxu0 0.0
    %3102 = vmatpush2.msra.mxu0 %v786
    %3103 = vmatprep.subr.mxu0 0.0
    %3104 = vmatpush2.msra.mxu0 %v785
    %3105 = vmatprep.subr.mxu0 0.0
    %3106 = vmatpush2.msra.mxu0 %v784
    %3107 = vmatprep.mubr.f32.mxu0 %v2953
    %3108 = vmatmul.mubr.f32.gmra.mxu0 %v2952
    %v3109 = vpop.f32.mrf.mxu0
    %v3110 = vadd.f32 0.0, %v3109
    %v3111 = vpop.f32.mrf.mxu0
    %3112 = vmatprep.mubr.f32.mxu0 %v2957
    %3113 = vmatmul.mubr.f32.gmra.mxu0 %v2956
    %v3114 = vpop.f32.mrf.mxu0
    %v3115 = vadd.f32 0.0, %v3114
    %v3116 = vpop.f32.mrf.mxu0
    %3117 = vmatprep.mubr.f32.mxu0 %v2961
    %3118 = vmatmul.mubr.f32.gmra.mxu0 %v2960
    %v3119 = vpop.f32.mrf.mxu0
    %v3120 = vadd.f32 0.0, %v3119
    %v3121 = vpop.f32.mrf.mxu0
    %3122 = vmatprep.mubr.f32.mxu0 %v2965
    %3123 = vmatmul.mubr.f32.gmra.mxu0 %v2964
    %v3124 = vpop.f32.mrf.mxu0
    %v3125 = vadd.f32 0.0, %v3124
    %v3126 = vpop.f32.mrf.mxu0
    %3127 = vmatprep.mubr.f32.mxu0 %v2969
    %3128 = vmatmul.mubr.f32.gmra.mxu0 %v2968
    %v3129 = vpop.f32.mrf.mxu0
    %v3130 = vadd.f32 0.0, %v3129
    %v3131 = vpop.f32.mrf.mxu0
    %3132 = vmatprep.mubr.f32.mxu0 %v2973
    %3133 = vmatmul.mubr.f32.gmra.mxu0 %v2972
    %v3134 = vpop.f32.mrf.mxu0
    %v3135 = vadd.f32 0.0, %v3134
    %v3136 = vpop.f32.mrf.mxu0
    %3137 = vmatprep.mubr.f32.mxu0 %v2977
    %3138 = vmatmul.mubr.f32.gmra.mxu0 %v2976
    %v3139 = vpop.f32.mrf.mxu0
    %v3140 = vadd.f32 0.0, %v3139
    %v3141 = vpop.f32.mrf.mxu0
    %3142 = vmatprep.mubr.f32.mxu0 %v2981
    %3143 = vmatmul.mubr.f32.gmra.mxu0 %v2980
    %v3144 = vpop.f32.mrf.mxu0
    %v3145 = vadd.f32 0.0, %v3144
    %v3146 = vpop.f32.mrf.mxu0
    %3147 = vmatprep.mubr.f32.mxu0 %v2985
    %3148 = vmatmul.mubr.f32.gmra.mxu0 %v2984
    %v3149 = vpop.f32.mrf.mxu0
    %v3150 = vadd.f32 0.0, %v3149
    %v3151 = vpop.f32.mrf.mxu0
    %3152 = vmatprep.mubr.f32.mxu0 %v2989
    %3153 = vmatmul.mubr.f32.gmra.mxu0 %v2988
    %v3154 = vpop.f32.mrf.mxu0
    %v3155 = vadd.f32 0.0, %v3154
    %v3156 = vpop.f32.mrf.mxu0
    %3157 = vmatprep.mubr.f32.mxu0 %v2993
    %3158 = vmatmul.mubr.f32.gmra.mxu0 %v2992
    %v3159 = vpop.f32.mrf.mxu0
    %v3160 = vadd.f32 0.0, %v3159
    %v3161 = vpop.f32.mrf.mxu0
    %3162 = vmatprep.mubr.f32.mxu0 %v2997
    %3163 = vmatmul.mubr.f32.gmra.mxu0 %v2996
    %v3164 = vpop.f32.mrf.mxu0
    %v3165 = vadd.f32 0.0, %v3164
    %v3166 = vpop.f32.mrf.mxu0
    %3167 = vmatprep.mubr.f32.mxu0 %v3001
    %3168 = vmatmul.mubr.f32.gmra.mxu0 %v3000
    %v3169 = vpop.f32.mrf.mxu0
    %v3170 = vadd.f32 0.0, %v3169
    %v3171 = vpop.f32.mrf.mxu0
    %3172 = vdwg.mxu0
    %3173 = vmatprep.subr.mxu0 0.0
    %3174 = vmatpush1.msra.mxu0 %v815
    %3175 = vmatprep.subr.mxu0 0.0
    %3176 = vmatpush1.msra.mxu0 %v814
    %3177 = vmatprep.subr.mxu0 0.0
    %3178 = vmatpush1.msra.mxu0 %v813
    %3179 = vmatprep.subr.mxu0 0.0
    %3180 = vmatpush1.msra.mxu0 %v812
    %3181 = vmatprep.subr.mxu0 0.0
    %3182 = vmatpush1.msra.mxu0 %v811
    %3183 = vmatprep.subr.mxu0 0.0
    %3184 = vmatpush1.msra.mxu0 %v810
    %3185 = vmatprep.subr.mxu0 0.0
    %3186 = vmatpush1.msra.mxu0 %v809
    %3187 = vmatprep.subr.mxu0 0.0
    %3188 = vmatpush1.msra.mxu0 %v808
    %3189 = vmatprep.subr.mxu0 0.0
    %3190 = vmatpush1.msra.mxu0 %v807
    %3191 = vmatprep.subr.mxu0 0.0
    %3192 = vmatpush1.msra.mxu0 %v806
    %3193 = vmatprep.subr.mxu0 0.0
    %3194 = vmatpush1.msra.mxu0 %v805
    %3195 = vmatprep.subr.mxu0 0.0
    %3196 = vmatpush1.msra.mxu0 %v804
    %3197 = vmatprep.subr.mxu0 0.0
    %3198 = vmatpush1.msra.mxu0 %v803
    %3199 = vmatprep.subr.mxu0 0.0
    %3200 = vmatpush1.msra.mxu0 %v802
    %3201 = vmatprep.subr.mxu0 0.0
    %3202 = vmatpush1.msra.mxu0 %v801
    %3203 = vmatprep.subr.mxu0 0.0
    %3204 = vmatpush1.msra.mxu0 %v800
    %3205 = vmatprep.subr.mxu0 0.0
    %3206 = vmatpush2.msra.mxu0 0.0
    %3207 = vmatprep.subr.mxu0 0.0
    %3208 = vmatpush2.msra.mxu0 0.0
    %3209 = vmatprep.subr.mxu0 0.0
    %3210 = vmatpush2.msra.mxu0 0.0
    %3211 = vmatprep.subr.mxu0 0.0
    %3212 = vmatpush2.msra.mxu0 0.0
    %3213 = vmatprep.subr.mxu0 0.0
    %3214 = vmatpush2.msra.mxu0 0.0
    %3215 = vmatprep.subr.mxu0 0.0
    %3216 = vmatpush2.msra.mxu0 0.0
    %3217 = vmatprep.subr.mxu0 0.0
    %3218 = vmatpush2.msra.mxu0 0.0
    %3219 = vmatprep.subr.mxu0 0.0
    %3220 = vmatpush2.msra.mxu0 %v919
    %3221 = vmatprep.subr.mxu0 0.0
    %3222 = vmatpush2.msra.mxu0 %v823
    %3223 = vmatprep.subr.mxu0 0.0
    %3224 = vmatpush2.msra.mxu0 %v822
    %3225 = vmatprep.subr.mxu0 0.0
    %3226 = vmatpush2.msra.mxu0 %v821
    %3227 = vmatprep.subr.mxu0 0.0
    %3228 = vmatpush2.msra.mxu0 %v820
    %3229 = vmatprep.subr.mxu0 0.0
    %3230 = vmatpush2.msra.mxu0 %v819
    %3231 = vmatprep.subr.mxu0 0.0
    %3232 = vmatpush2.msra.mxu0 %v818
    %3233 = vmatprep.subr.mxu0 0.0
    %3234 = vmatpush2.msra.mxu0 %v817
    %3235 = vmatprep.subr.mxu0 0.0
    %3236 = vmatpush2.msra.mxu0 %v816
    %3237 = vmatprep.mubr.f32.mxu0 %v3005
    %3238 = vmatmul.mubr.f32.gmra.mxu0 %v2954
    %v3239 = vpop.f32.mrf.mxu0
    %v3240 = vadd.f32 %v3110, %v3239
    %v3241 = vpop.f32.mrf.mxu0
    %3242 = vmatprep.mubr.f32.mxu0 %v3008
    %3243 = vmatmul.mubr.f32.gmra.mxu0 %v2958
    %v3244 = vpop.f32.mrf.mxu0
    %v3245 = vadd.f32 %v3115, %v3244
    %v3246 = vpop.f32.mrf.mxu0
    %3247 = vmatprep.mubr.f32.mxu0 %v3011
    %3248 = vmatmul.mubr.f32.gmra.mxu0 %v2962
    %v3249 = vpop.f32.mrf.mxu0
    %v3250 = vadd.f32 %v3120, %v3249
    %v3251 = vpop.f32.mrf.mxu0
    %3252 = vmatprep.mubr.f32.mxu0 %v3014
    %3253 = vmatmul.mubr.f32.gmra.mxu0 %v2966
    %v3254 = vpop.f32.mrf.mxu0
    %v3255 = vadd.f32 %v3125, %v3254
    %v3256 = vpop.f32.mrf.mxu0
    %3257 = vmatprep.mubr.f32.mxu0 %v3017
    %3258 = vmatmul.mubr.f32.gmra.mxu0 %v2970
    %v3259 = vpop.f32.mrf.mxu0
    %v3260 = vadd.f32 %v3130, %v3259
    %v3261 = vpop.f32.mrf.mxu0
    %3262 = vmatprep.mubr.f32.mxu0 %v3020
    %3263 = vmatmul.mubr.f32.gmra.mxu0 %v2974
    %v3264 = vpop.f32.mrf.mxu0
    %v3265 = vadd.f32 %v3135, %v3264
    %v3266 = vpop.f32.mrf.mxu0
    %3267 = vmatprep.mubr.f32.mxu0 %v3023
    %3268 = vmatmul.mubr.f32.gmra.mxu0 %v2978
    %v3269 = vpop.f32.mrf.mxu0
    %v3270 = vadd.f32 %v3140, %v3269
    %v3271 = vpop.f32.mrf.mxu0
    %3272 = vmatprep.mubr.f32.mxu0 %v3026
    %3273 = vmatmul.mubr.f32.gmra.mxu0 %v2982
    %v3274 = vpop.f32.mrf.mxu0
    %v3275 = vadd.f32 %v3145, %v3274
    %v3276 = vpop.f32.mrf.mxu0
    %3277 = vmatprep.mubr.f32.mxu0 %v3029
    %3278 = vmatmul.mubr.f32.gmra.mxu0 %v2986
    %v3279 = vpop.f32.mrf.mxu0
    %v3280 = vadd.f32 %v3150, %v3279
    %v3281 = vpop.f32.mrf.mxu0
    %3282 = vmatprep.mubr.f32.mxu0 %v3032
    %3283 = vmatmul.mubr.f32.gmra.mxu0 %v2990
    %v3284 = vpop.f32.mrf.mxu0
    %v3285 = vadd.f32 %v3155, %v3284
    %v3286 = vpop.f32.mrf.mxu0
    %3287 = vmatprep.mubr.f32.mxu0 %v3035
    %3288 = vmatmul.mubr.f32.gmra.mxu0 %v2994
    %v3289 = vpop.f32.mrf.mxu0
    %v3290 = vadd.f32 %v3160, %v3289
    %v3291 = vpop.f32.mrf.mxu0
    %3292 = vmatprep.mubr.f32.mxu0 %v3038
    %3293 = vmatmul.mubr.f32.gmra.mxu0 %v2998
    %v3294 = vpop.f32.mrf.mxu0
    %v3295 = vadd.f32 %v3165, %v3294
    %v3296 = vpop.f32.mrf.mxu0
    %3297 = vmatprep.mubr.f32.mxu0 %v3041
    %3298 = vmatmul.mubr.f32.gmra.mxu0 %v3002
    %v3299 = vpop.f32.mrf.mxu0
    %v3300 = vadd.f32 %v3170, %v3299
    %v3301 = vpop.f32.mrf.mxu0
    %3302 = vdwg.mxu0
    %s3303 = scalar_lea.vmem %s4, 64
    %v3304 = vld [vmem:[%s3303] sm:$0xff]
    %v3305 = vld [vmem:[%s3303 + $0x8] sm:$0xff]
    %v3307 = vsel %vm1538, %v3240, 0
    %v3310 = vsel %vm1538, %v3245, 0
    %v3313 = vsel %vm1538, %v3250, 0
    %v3316 = vsel %vm1538, %v3255, 0
    %v3319 = vsel %vm1538, %v3260, 0
    %v3322 = vsel %vm1538, %v3265, 0
    %v3325 = vsel %vm1538, %v3270, 0
    %v3328 = vsel %vm1538, %v3275, 0
    %v3331 = vsel %vm1538, %v3280, 0
    %v3334 = vsel %vm1538, %v3285, 0
    %v3337 = vsel %vm1538, %v3290, 0
    %v3340 = vsel %vm1538, %v3295, 0
    %v3343 = vsel %vm1538, %v3300, 0
    %3345 = vmatprep.subr.mxu0 0.0
    %3346 = vmatpush1.msra.mxu0 0.0
    %3347 = vmatprep.subr.mxu0 0.0
    %3348 = vmatpush1.msra.mxu0 0.0
    %3349 = vmatprep.subr.mxu0 0.0
    %3350 = vmatpush1.msra.mxu0 0.0
    %3351 = vmatprep.subr.mxu0 0.0
    %3352 = vmatpush1.msra.mxu0 0.0
    %3353 = vmatprep.subr.mxu0 0.0
    %3354 = vmatpush1.msra.mxu0 0.0
    %3355 = vmatprep.subr.mxu0 0.0
    %3356 = vmatpush1.msra.mxu0 0.0
    %3357 = vmatprep.subr.mxu0 0.0
    %3358 = vmatpush1.msra.mxu0 0.0
    %3359 = vmatprep.subr.mxu0 0.0
    %3360 = vmatpush1.msra.mxu0 0.0
    %3361 = vmatprep.subr.mxu0 0.0
    %3362 = vmatpush1.msra.mxu0 0.0
    %3363 = vmatprep.subr.mxu0 0.0
    %3364 = vmatpush1.msra.mxu0 0.0
    %3365 = vmatprep.subr.mxu0 0.0
    %3366 = vmatpush1.msra.mxu0 0.0
    %3367 = vmatprep.subr.mxu0 0.0
    %3368 = vmatpush1.msra.mxu0 0.0
    %3369 = vmatprep.subr.mxu0 0.0
    %3370 = vmatpush1.msra.mxu0 0.0
    %3371 = vmatprep.subr.mxu0 0.0
    %3372 = vmatpush1.msra.mxu0 0.0
    %3373 = vmatprep.subr.mxu0 0.0
    %3374 = vmatpush1.msra.mxu0 %v3305
    %3375 = vmatprep.subr.mxu0 0.0
    %3376 = vmatpush1.msra.mxu0 %v3304
    %3377 = vmatprep.subr.mxu0 0.0
    %3378 = vmatpush2.msra.mxu0 0.0
    %3379 = vmatprep.subr.mxu0 0.0
    %3380 = vmatpush2.msra.mxu0 0.0
    %3381 = vmatprep.subr.mxu0 0.0
    %3382 = vmatpush2.msra.mxu0 0.0
    %3383 = vmatprep.subr.mxu0 0.0
    %3384 = vmatpush2.msra.mxu0 0.0
    %3385 = vmatprep.subr.mxu0 0.0
    %3386 = vmatpush2.msra.mxu0 0.0
    %3387 = vmatprep.subr.mxu0 0.0
    %3388 = vmatpush2.msra.mxu0 0.0
    %3389 = vmatprep.subr.mxu0 0.0
    %3390 = vmatpush2.msra.mxu0 0.0
    %3391 = vmatprep.subr.mxu0 0.0
    %3392 = vmatpush2.msra.mxu0 0.0
    %3393 = vmatprep.subr.mxu0 0.0
    %3394 = vmatpush2.msra.mxu0 0.0
    %3395 = vmatprep.subr.mxu0 0.0
    %3396 = vmatpush2.msra.mxu0 0.0
    %3397 = vmatprep.subr.mxu0 0.0
    %3398 = vmatpush2.msra.mxu0 0.0
    %3399 = vmatprep.subr.mxu0 0.0
    %3400 = vmatpush2.msra.mxu0 0.0
    %3401 = vmatprep.subr.mxu0 0.0
    %3402 = vmatpush2.msra.mxu0 0.0
    %3403 = vmatprep.subr.mxu0 0.0
    %3404 = vmatpush2.msra.mxu0 0.0
    %3405 = vmatprep.subr.mxu0 0.0
    %3406 = vmatpush2.msra.mxu0 0.0
    %3407 = vmatprep.subr.mxu0 0.0
    %3408 = vmatpush2.msra.mxu0 0.0
    %3409 = vmatprep.mubr.f32.mxu0 0.0
    %3410 = vmatmul.mubr.f32.gmra.mxu0 %v3307
    %v3411 = vpop.f32.mrf.mxu0
    %v3412 = vadd.f32 0.0, %v3411
    %v3413 = vpop.f32.mrf.mxu0
    %3414 = vmatprep.mubr.f32.mxu0 0.0
    %3415 = vmatmul.mubr.f32.gmra.mxu0 %v3310
    %v3416 = vpop.f32.mrf.mxu0
    %v3417 = vadd.f32 0.0, %v3416
    %v3418 = vpop.f32.mrf.mxu0
    %3419 = vmatprep.mubr.f32.mxu0 0.0
    %3420 = vmatmul.mubr.f32.gmra.mxu0 %v3313
    %v3421 = vpop.f32.mrf.mxu0
    %v3422 = vadd.f32 0.0, %v3421
    %v3423 = vpop.f32.mrf.mxu0
    %3424 = vmatprep.mubr.f32.mxu0 0.0
    %3425 = vmatmul.mubr.f32.gmra.mxu0 %v3316
    %v3426 = vpop.f32.mrf.mxu0
    %v3427 = vadd.f32 0.0, %v3426
    %v3428 = vpop.f32.mrf.mxu0
    %3429 = vmatprep.mubr.f32.mxu0 0.0
    %3430 = vmatmul.mubr.f32.gmra.mxu0 %v3319
    %v3431 = vpop.f32.mrf.mxu0
    %v3432 = vadd.f32 0.0, %v3431
    %v3433 = vpop.f32.mrf.mxu0
    %3434 = vmatprep.mubr.f32.mxu0 0.0
    %3435 = vmatmul.mubr.f32.gmra.mxu0 %v3322
    %v3436 = vpop.f32.mrf.mxu0
    %v3437 = vadd.f32 0.0, %v3436
    %v3438 = vpop.f32.mrf.mxu0
    %3439 = vmatprep.mubr.f32.mxu0 0.0
    %3440 = vmatmul.mubr.f32.gmra.mxu0 %v3325
    %v3441 = vpop.f32.mrf.mxu0
    %v3442 = vadd.f32 0.0, %v3441
    %v3443 = vpop.f32.mrf.mxu0
    %3444 = vmatprep.mubr.f32.mxu0 0.0
    %3445 = vmatmul.mubr.f32.gmra.mxu0 %v3328
    %v3446 = vpop.f32.mrf.mxu0
    %v3447 = vadd.f32 0.0, %v3446
    %v3448 = vpop.f32.mrf.mxu0
    %3449 = vmatprep.mubr.f32.mxu0 0.0
    %3450 = vmatmul.mubr.f32.gmra.mxu0 %v3331
    %v3451 = vpop.f32.mrf.mxu0
    %v3452 = vadd.f32 0.0, %v3451
    %v3453 = vpop.f32.mrf.mxu0
    %3454 = vmatprep.mubr.f32.mxu0 0.0
    %3455 = vmatmul.mubr.f32.gmra.mxu0 %v3334
    %v3456 = vpop.f32.mrf.mxu0
    %v3457 = vadd.f32 0.0, %v3456
    %v3458 = vpop.f32.mrf.mxu0
    %3459 = vmatprep.mubr.f32.mxu0 0.0
    %3460 = vmatmul.mubr.f32.gmra.mxu0 %v3337
    %v3461 = vpop.f32.mrf.mxu0
    %v3462 = vadd.f32 0.0, %v3461
    %v3463 = vpop.f32.mrf.mxu0
    %3464 = vmatprep.mubr.f32.mxu0 0.0
    %3465 = vmatmul.mubr.f32.gmra.mxu0 %v3340
    %v3466 = vpop.f32.mrf.mxu0
    %v3467 = vadd.f32 0.0, %v3466
    %v3468 = vpop.f32.mrf.mxu0
    %3469 = vmatprep.mubr.f32.mxu0 0.0
    %3470 = vmatmul.mubr.f32.gmra.mxu0 %v3343
    %v3471 = vpop.f32.mrf.mxu0
    %v3472 = vadd.f32 0.0, %v3471
    %v3473 = vpop.f32.mrf.mxu0
    %3474 = vdwg.mxu0
    %v3475 = vadd.f32 %v2938, %v3412
    %v3476 = vadd.f32 %v2939, %v3417
    %v3477 = vadd.f32 %v2940, %v3422
    %v3478 = vadd.f32 %v2941, %v3427
    %v3479 = vadd.f32 %v2942, %v3432
    %v3480 = vadd.f32 %v2943, %v3437
    %v3481 = vadd.f32 %v2944, %v3442
    %v3482 = vadd.f32 %v2945, %v3447
    %v3483 = vadd.f32 %v2946, %v3452
    %v3484 = vadd.f32 %v2947, %v3457
    %v3485 = vadd.f32 %v2948, %v3462
    %v3486 = vadd.f32 %v2949, %v3467
    %v3487 = vadd.f32 %v2950, %v3472
    %s3488 = scalar_lea.vmem %s3, 2080
    %v3489 = vld [vmem:[%s3488] sm:$0xff]
    %v3490 = vld [vmem:[%s3488 + $0x8] sm:$0xff]
    %v3491 = vld [vmem:[%s3488 + $0x10] sm:$0xff]
    %v3492 = vld [vmem:[%s3488 + $0x18] sm:$0xff]
    %v3493 = vld [vmem:[%s3488 + $0x20] sm:$0xff]
    %v3494 = vld [vmem:[%s3488 + $0x28] sm:$0xff]
    %v3495 = vld [vmem:[%s3488 + $0x30] sm:$0xff]
    %v3496 = vld [vmem:[%s3488 + $0x38] sm:$0xff]
    %v3497 = vld [vmem:[%s3488 + $0x40] sm:$0xff]
    %v3498 = vld [vmem:[%s3488 + $0x48] sm:$0xff]
    %v3499 = vld [vmem:[%s3488 + $0x50] sm:$0xff]
    %v3500 = vld [vmem:[%s3488 + $0x58] sm:$0xff]
    %v3501 = vld [vmem:[%s3488 + $0x60] sm:$0xff]
    %v3502 = vld [vmem:[%s3488 + $0x68] sm:$0xff]
    %v3503 = vld [vmem:[%s3488 + $0x70] sm:$0xff]
    %v3504 = vld [vmem:[%s3488 + $0x78] sm:$0xff]
    %v3505 = vld [vmem:[%s3488 + $0x80] sm:$0xff]
    %v3506 = vld [vmem:[%s3488 + $0x88] sm:$0xff]
    %v3507 = vld [vmem:[%s3488 + $0x90] sm:$0xff]
    %v3508 = vld [vmem:[%s3488 + $0x98] sm:$0xff]
    %v3509 = vld [vmem:[%s3488 + $0xa0] sm:$0xff]
    %v3510 = vld [vmem:[%s3488 + $0xa8] sm:$0xff]
    %v3511 = vld [vmem:[%s3488 + $0xb0] sm:$0xff]
    %v3512 = vld [vmem:[%s3488 + $0xb8] sm:$0xff]
    %v3513 = vld [vmem:[%s3488 + $0xc0] sm:$0xff]
    %v3514 = vld [vmem:[%s3488 + $0xc8] sm:$0xff]
    %v3515 = vld [vmem:[%s3488 + $0xd0] sm:$0xff]
    %v3516 = vld [vmem:[%s3488 + $0xd8] sm:$0xff]
    %v3517 = vld [vmem:[%s3488 + $0xe0] sm:$0xff]
    %v3518 = vld [vmem:[%s3488 + $0xe8] sm:$0xff]
    %v3519 = vld [vmem:[%s3488 + $0xf0] sm:$0xff]
    %v3520 = vld [vmem:[%s3488 + $0xf8] sm:$0xff]
    %v3521 = vld [vmem:[%s3488 + $0x100] sm:$0xff]
    %v3522 = vld [vmem:[%s3488 + $0x108] sm:$0xff]
    %v3523 = vld [vmem:[%s3488 + $0x110] sm:$0xff]
    %v3524 = vld [vmem:[%s3488 + $0x118] sm:$0xff]
    %v3525 = vld [vmem:[%s3488 + $0x120] sm:$0xff]
    %v3526 = vld [vmem:[%s3488 + $0x128] sm:$0xff]
    %v3527 = vld [vmem:[%s3488 + $0x130] sm:$0xff]
    %v3528 = vld [vmem:[%s3488 + $0x138] sm:$0xff]
    %v3529 = vld [vmem:[%s3488 + $0x140] sm:$0xff]
    %v3530 = vld [vmem:[%s3488 + $0x148] sm:$0xff]
    %v3531 = vld [vmem:[%s3488 + $0x150] sm:$0xff]
    %v3532 = vld [vmem:[%s3488 + $0x158] sm:$0xff]
    %v3533 = vld [vmem:[%s3488 + $0x160] sm:$0xff]
    %v3534 = vld [vmem:[%s3488 + $0x168] sm:$0xff]
    %v3535 = vld [vmem:[%s3488 + $0x170] sm:$0xff]
    %v3536 = vld [vmem:[%s3488 + $0x178] sm:$0xff]
    %v3537 = vld [vmem:[%s3488 + $0x180] sm:$0x3]
    %v3538 = vld [vmem:[%s3488 + $0x188] sm:$0x3]
    %v3539 = vld [vmem:[%s3488 + $0x190] sm:$0x3]
    %v3540 = vld [vmem:[%s3488 + $0x198] sm:$0x3]
    %v3542 = vsel %vm877, %v3492, 0
    %v3545 = vsel %vm877, %v3496, 0
    %v3548 = vsel %vm877, %v3500, 0
    %v3551 = vsel %vm877, %v3504, 0
    %v3554 = vsel %vm877, %v3508, 0
    %v3557 = vsel %vm877, %v3512, 0
    %v3560 = vsel %vm877, %v3516, 0
    %v3563 = vsel %vm877, %v3520, 0
    %v3566 = vsel %vm877, %v3524, 0
    %v3569 = vsel %vm877, %v3528, 0
    %v3572 = vsel %vm877, %v3532, 0
    %v3575 = vsel %vm877, %v3536, 0
    %v3578 = vsel %vm877, %v3540, 0
    %3580 = vmatprep.subr.mxu0 0.0
    %3581 = vmatpush1.msra.mxu0 %v783
    %3582 = vmatprep.subr.mxu0 0.0
    %3583 = vmatpush1.msra.mxu0 %v782
    %3584 = vmatprep.subr.mxu0 0.0
    %3585 = vmatpush1.msra.mxu0 %v781
    %3586 = vmatprep.subr.mxu0 0.0
    %3587 = vmatpush1.msra.mxu0 %v780
    %3588 = vmatprep.subr.mxu0 0.0
    %3589 = vmatpush1.msra.mxu0 %v779
    %3590 = vmatprep.subr.mxu0 0.0
    %3591 = vmatpush1.msra.mxu0 %v778
    %3592 = vmatprep.subr.mxu0 0.0
    %3593 = vmatpush1.msra.mxu0 %v777
    %3594 = vmatprep.subr.mxu0 0.0
    %3595 = vmatpush1.msra.mxu0 %v776
    %3596 = vmatprep.subr.mxu0 0.0
    %3597 = vmatpush1.msra.mxu0 %v775
    %3598 = vmatprep.subr.mxu0 0.0
    %3599 = vmatpush1.msra.mxu0 %v774
    %3600 = vmatprep.subr.mxu0 0.0
    %3601 = vmatpush1.msra.mxu0 %v773
    %3602 = vmatprep.subr.mxu0 0.0
    %3603 = vmatpush1.msra.mxu0 %v772
    %3604 = vmatprep.subr.mxu0 0.0
    %3605 = vmatpush1.msra.mxu0 %v771
    %3606 = vmatprep.subr.mxu0 0.0
    %3607 = vmatpush1.msra.mxu0 %v770
    %3608 = vmatprep.subr.mxu0 0.0
    %3609 = vmatpush1.msra.mxu0 %v769
    %3610 = vmatprep.subr.mxu0 0.0
    %3611 = vmatpush1.msra.mxu0 %v768
    %3612 = vmatprep.subr.mxu0 0.0
    %3613 = vmatpush2.msra.mxu0 %v799
    %3614 = vmatprep.subr.mxu0 0.0
    %3615 = vmatpush2.msra.mxu0 %v798
    %3616 = vmatprep.subr.mxu0 0.0
    %3617 = vmatpush2.msra.mxu0 %v797
    %3618 = vmatprep.subr.mxu0 0.0
    %3619 = vmatpush2.msra.mxu0 %v796
    %3620 = vmatprep.subr.mxu0 0.0
    %3621 = vmatpush2.msra.mxu0 %v795
    %3622 = vmatprep.subr.mxu0 0.0
    %3623 = vmatpush2.msra.mxu0 %v794
    %3624 = vmatprep.subr.mxu0 0.0
    %3625 = vmatpush2.msra.mxu0 %v793
    %3626 = vmatprep.subr.mxu0 0.0
    %3627 = vmatpush2.msra.mxu0 %v792
    %3628 = vmatprep.subr.mxu0 0.0
    %3629 = vmatpush2.msra.mxu0 %v791
    %3630 = vmatprep.subr.mxu0 0.0
    %3631 = vmatpush2.msra.mxu0 %v790
    %3632 = vmatprep.subr.mxu0 0.0
    %3633 = vmatpush2.msra.mxu0 %v789
    %3634 = vmatprep.subr.mxu0 0.0
    %3635 = vmatpush2.msra.mxu0 %v788
    %3636 = vmatprep.subr.mxu0 0.0
    %3637 = vmatpush2.msra.mxu0 %v787
    %3638 = vmatprep.subr.mxu0 0.0
    %3639 = vmatpush2.msra.mxu0 %v786
    %3640 = vmatprep.subr.mxu0 0.0
    %3641 = vmatpush2.msra.mxu0 %v785
    %3642 = vmatprep.subr.mxu0 0.0
    %3643 = vmatpush2.msra.mxu0 %v784
    %3644 = vmatprep.mubr.f32.mxu0 %v3490
    %3645 = vmatmul.mubr.f32.gmra.mxu0 %v3489
    %v3646 = vpop.f32.mrf.mxu0
    %v3647 = vadd.f32 0.0, %v3646
    %v3648 = vpop.f32.mrf.mxu0
    %3649 = vmatprep.mubr.f32.mxu0 %v3494
    %3650 = vmatmul.mubr.f32.gmra.mxu0 %v3493
    %v3651 = vpop.f32.mrf.mxu0
    %v3652 = vadd.f32 0.0, %v3651
    %v3653 = vpop.f32.mrf.mxu0
    %3654 = vmatprep.mubr.f32.mxu0 %v3498
    %3655 = vmatmul.mubr.f32.gmra.mxu0 %v3497
    %v3656 = vpop.f32.mrf.mxu0
    %v3657 = vadd.f32 0.0, %v3656
    %v3658 = vpop.f32.mrf.mxu0
    %3659 = vmatprep.mubr.f32.mxu0 %v3502
    %3660 = vmatmul.mubr.f32.gmra.mxu0 %v3501
    %v3661 = vpop.f32.mrf.mxu0
    %v3662 = vadd.f32 0.0, %v3661
    %v3663 = vpop.f32.mrf.mxu0
    %3664 = vmatprep.mubr.f32.mxu0 %v3506
    %3665 = vmatmul.mubr.f32.gmra.mxu0 %v3505
    %v3666 = vpop.f32.mrf.mxu0
    %v3667 = vadd.f32 0.0, %v3666
    %v3668 = vpop.f32.mrf.mxu0
    %3669 = vmatprep.mubr.f32.mxu0 %v3510
    %3670 = vmatmul.mubr.f32.gmra.mxu0 %v3509
    %v3671 = vpop.f32.mrf.mxu0
    %v3672 = vadd.f32 0.0, %v3671
    %v3673 = vpop.f32.mrf.mxu0
    %3674 = vmatprep.mubr.f32.mxu0 %v3514
    %3675 = vmatmul.mubr.f32.gmra.mxu0 %v3513
    %v3676 = vpop.f32.mrf.mxu0
    %v3677 = vadd.f32 0.0, %v3676
    %v3678 = vpop.f32.mrf.mxu0
    %3679 = vmatprep.mubr.f32.mxu0 %v3518
    %3680 = vmatmul.mubr.f32.gmra.mxu0 %v3517
    %v3681 = vpop.f32.mrf.mxu0
    %v3682 = vadd.f32 0.0, %v3681
    %v3683 = vpop.f32.mrf.mxu0
    %3684 = vmatprep.mubr.f32.mxu0 %v3522
    %3685 = vmatmul.mubr.f32.gmra.mxu0 %v3521
    %v3686 = vpop.f32.mrf.mxu0
    %v3687 = vadd.f32 0.0, %v3686
    %v3688 = vpop.f32.mrf.mxu0
    %3689 = vmatprep.mubr.f32.mxu0 %v3526
    %3690 = vmatmul.mubr.f32.gmra.mxu0 %v3525
    %v3691 = vpop.f32.mrf.mxu0
    %v3692 = vadd.f32 0.0, %v3691
    %v3693 = vpop.f32.mrf.mxu0
    %3694 = vmatprep.mubr.f32.mxu0 %v3530
    %3695 = vmatmul.mubr.f32.gmra.mxu0 %v3529
    %v3696 = vpop.f32.mrf.mxu0
    %v3697 = vadd.f32 0.0, %v3696
    %v3698 = vpop.f32.mrf.mxu0
    %3699 = vmatprep.mubr.f32.mxu0 %v3534
    %3700 = vmatmul.mubr.f32.gmra.mxu0 %v3533
    %v3701 = vpop.f32.mrf.mxu0
    %v3702 = vadd.f32 0.0, %v3701
    %v3703 = vpop.f32.mrf.mxu0
    %3704 = vmatprep.mubr.f32.mxu0 %v3538
    %3705 = vmatmul.mubr.f32.gmra.mxu0 %v3537
    %v3706 = vpop.f32.mrf.mxu0
    %v3707 = vadd.f32 0.0, %v3706
    %v3708 = vpop.f32.mrf.mxu0
    %3709 = vdwg.mxu0
    %3710 = vmatprep.subr.mxu0 0.0
    %3711 = vmatpush1.msra.mxu0 %v815
    %3712 = vmatprep.subr.mxu0 0.0
    %3713 = vmatpush1.msra.mxu0 %v814
    %3714 = vmatprep.subr.mxu0 0.0
    %3715 = vmatpush1.msra.mxu0 %v813
    %3716 = vmatprep.subr.mxu0 0.0
    %3717 = vmatpush1.msra.mxu0 %v812
    %3718 = vmatprep.subr.mxu0 0.0
    %3719 = vmatpush1.msra.mxu0 %v811
    %3720 = vmatprep.subr.mxu0 0.0
    %3721 = vmatpush1.msra.mxu0 %v810
    %3722 = vmatprep.subr.mxu0 0.0
    %3723 = vmatpush1.msra.mxu0 %v809
    %3724 = vmatprep.subr.mxu0 0.0
    %3725 = vmatpush1.msra.mxu0 %v808
    %3726 = vmatprep.subr.mxu0 0.0
    %3727 = vmatpush1.msra.mxu0 %v807
    %3728 = vmatprep.subr.mxu0 0.0
    %3729 = vmatpush1.msra.mxu0 %v806
    %3730 = vmatprep.subr.mxu0 0.0
    %3731 = vmatpush1.msra.mxu0 %v805
    %3732 = vmatprep.subr.mxu0 0.0
    %3733 = vmatpush1.msra.mxu0 %v804
    %3734 = vmatprep.subr.mxu0 0.0
    %3735 = vmatpush1.msra.mxu0 %v803
    %3736 = vmatprep.subr.mxu0 0.0
    %3737 = vmatpush1.msra.mxu0 %v802
    %3738 = vmatprep.subr.mxu0 0.0
    %3739 = vmatpush1.msra.mxu0 %v801
    %3740 = vmatprep.subr.mxu0 0.0
    %3741 = vmatpush1.msra.mxu0 %v800
    %3742 = vmatprep.subr.mxu0 0.0
    %3743 = vmatpush2.msra.mxu0 0.0
    %3744 = vmatprep.subr.mxu0 0.0
    %3745 = vmatpush2.msra.mxu0 0.0
    %3746 = vmatprep.subr.mxu0 0.0
    %3747 = vmatpush2.msra.mxu0 0.0
    %3748 = vmatprep.subr.mxu0 0.0
    %3749 = vmatpush2.msra.mxu0 0.0
    %3750 = vmatprep.subr.mxu0 0.0
    %3751 = vmatpush2.msra.mxu0 0.0
    %3752 = vmatprep.subr.mxu0 0.0
    %3753 = vmatpush2.msra.mxu0 0.0
    %3754 = vmatprep.subr.mxu0 0.0
    %3755 = vmatpush2.msra.mxu0 0.0
    %3756 = vmatprep.subr.mxu0 0.0
    %3757 = vmatpush2.msra.mxu0 %v919
    %3758 = vmatprep.subr.mxu0 0.0
    %3759 = vmatpush2.msra.mxu0 %v823
    %3760 = vmatprep.subr.mxu0 0.0
    %3761 = vmatpush2.msra.mxu0 %v822
    %3762 = vmatprep.subr.mxu0 0.0
    %3763 = vmatpush2.msra.mxu0 %v821
    %3764 = vmatprep.subr.mxu0 0.0
    %3765 = vmatpush2.msra.mxu0 %v820
    %3766 = vmatprep.subr.mxu0 0.0
    %3767 = vmatpush2.msra.mxu0 %v819
    %3768 = vmatprep.subr.mxu0 0.0
    %3769 = vmatpush2.msra.mxu0 %v818
    %3770 = vmatprep.subr.mxu0 0.0
    %3771 = vmatpush2.msra.mxu0 %v817
    %3772 = vmatprep.subr.mxu0 0.0
    %3773 = vmatpush2.msra.mxu0 %v816
    %3774 = vmatprep.mubr.f32.mxu0 %v3542
    %3775 = vmatmul.mubr.f32.gmra.mxu0 %v3491
    %v3776 = vpop.f32.mrf.mxu0
    %v3777 = vadd.f32 %v3647, %v3776
    %v3778 = vpop.f32.mrf.mxu0
    %3779 = vmatprep.mubr.f32.mxu0 %v3545
    %3780 = vmatmul.mubr.f32.gmra.mxu0 %v3495
    %v3781 = vpop.f32.mrf.mxu0
    %v3782 = vadd.f32 %v3652, %v3781
    %v3783 = vpop.f32.mrf.mxu0
    %3784 = vmatprep.mubr.f32.mxu0 %v3548
    %3785 = vmatmul.mubr.f32.gmra.mxu0 %v3499
    %v3786 = vpop.f32.mrf.mxu0
    %v3787 = vadd.f32 %v3657, %v3786
    %v3788 = vpop.f32.mrf.mxu0
    %3789 = vmatprep.mubr.f32.mxu0 %v3551
    %3790 = vmatmul.mubr.f32.gmra.mxu0 %v3503
    %v3791 = vpop.f32.mrf.mxu0
    %v3792 = vadd.f32 %v3662, %v3791
    %v3793 = vpop.f32.mrf.mxu0
    %3794 = vmatprep.mubr.f32.mxu0 %v3554
    %3795 = vmatmul.mubr.f32.gmra.mxu0 %v3507
    %v3796 = vpop.f32.mrf.mxu0
    %v3797 = vadd.f32 %v3667, %v3796
    %v3798 = vpop.f32.mrf.mxu0
    %3799 = vmatprep.mubr.f32.mxu0 %v3557
    %3800 = vmatmul.mubr.f32.gmra.mxu0 %v3511
    %v3801 = vpop.f32.mrf.mxu0
    %v3802 = vadd.f32 %v3672, %v3801
    %v3803 = vpop.f32.mrf.mxu0
    %3804 = vmatprep.mubr.f32.mxu0 %v3560
    %3805 = vmatmul.mubr.f32.gmra.mxu0 %v3515
    %v3806 = vpop.f32.mrf.mxu0
    %v3807 = vadd.f32 %v3677, %v3806
    %v3808 = vpop.f32.mrf.mxu0
    %3809 = vmatprep.mubr.f32.mxu0 %v3563
    %3810 = vmatmul.mubr.f32.gmra.mxu0 %v3519
    %v3811 = vpop.f32.mrf.mxu0
    %v3812 = vadd.f32 %v3682, %v3811
    %v3813 = vpop.f32.mrf.mxu0
    %3814 = vmatprep.mubr.f32.mxu0 %v3566
    %3815 = vmatmul.mubr.f32.gmra.mxu0 %v3523
    %v3816 = vpop.f32.mrf.mxu0
    %v3817 = vadd.f32 %v3687, %v3816
    %v3818 = vpop.f32.mrf.mxu0
    %3819 = vmatprep.mubr.f32.mxu0 %v3569
    %3820 = vmatmul.mubr.f32.gmra.mxu0 %v3527
    %v3821 = vpop.f32.mrf.mxu0
    %v3822 = vadd.f32 %v3692, %v3821
    %v3823 = vpop.f32.mrf.mxu0
    %3824 = vmatprep.mubr.f32.mxu0 %v3572
    %3825 = vmatmul.mubr.f32.gmra.mxu0 %v3531
    %v3826 = vpop.f32.mrf.mxu0
    %v3827 = vadd.f32 %v3697, %v3826
    %v3828 = vpop.f32.mrf.mxu0
    %3829 = vmatprep.mubr.f32.mxu0 %v3575
    %3830 = vmatmul.mubr.f32.gmra.mxu0 %v3535
    %v3831 = vpop.f32.mrf.mxu0
    %v3832 = vadd.f32 %v3702, %v3831
    %v3833 = vpop.f32.mrf.mxu0
    %3834 = vmatprep.mubr.f32.mxu0 %v3578
    %3835 = vmatmul.mubr.f32.gmra.mxu0 %v3539
    %v3836 = vpop.f32.mrf.mxu0
    %v3837 = vadd.f32 %v3707, %v3836
    %v3838 = vpop.f32.mrf.mxu0
    %3839 = vdwg.mxu0
    %s3840 = scalar_lea.vmem %s4, 80
    %v3841 = vld [vmem:[%s3840] sm:$0xff]
    %v3842 = vld [vmem:[%s3840 + $0x8] sm:$0xff]
    %v3844 = vsel %vm1538, %v3777, 0
    %v3847 = vsel %vm1538, %v3782, 0
    %v3850 = vsel %vm1538, %v3787, 0
    %v3853 = vsel %vm1538, %v3792, 0
    %v3856 = vsel %vm1538, %v3797, 0
    %v3859 = vsel %vm1538, %v3802, 0
    %v3862 = vsel %vm1538, %v3807, 0
    %v3865 = vsel %vm1538, %v3812, 0
    %v3868 = vsel %vm1538, %v3817, 0
    %v3871 = vsel %vm1538, %v3822, 0
    %v3874 = vsel %vm1538, %v3827, 0
    %v3877 = vsel %vm1538, %v3832, 0
    %v3880 = vsel %vm1538, %v3837, 0
    %3882 = vmatprep.subr.mxu0 0.0
    %3883 = vmatpush1.msra.mxu0 0.0
    %3884 = vmatprep.subr.mxu0 0.0
    %3885 = vmatpush1.msra.mxu0 0.0
    %3886 = vmatprep.subr.mxu0 0.0
    %3887 = vmatpush1.msra.mxu0 0.0
    %3888 = vmatprep.subr.mxu0 0.0
    %3889 = vmatpush1.msra.mxu0 0.0
    %3890 = vmatprep.subr.mxu0 0.0
    %3891 = vmatpush1.msra.mxu0 0.0
    %3892 = vmatprep.subr.mxu0 0.0
    %3893 = vmatpush1.msra.mxu0 0.0
    %3894 = vmatprep.subr.mxu0 0.0
    %3895 = vmatpush1.msra.mxu0 0.0
    %3896 = vmatprep.subr.mxu0 0.0
    %3897 = vmatpush1.msra.mxu0 0.0
    %3898 = vmatprep.subr.mxu0 0.0
    %3899 = vmatpush1.msra.mxu0 0.0
    %3900 = vmatprep.subr.mxu0 0.0
    %3901 = vmatpush1.msra.mxu0 0.0
    %3902 = vmatprep.subr.mxu0 0.0
    %3903 = vmatpush1.msra.mxu0 0.0
    %3904 = vmatprep.subr.mxu0 0.0
    %3905 = vmatpush1.msra.mxu0 0.0
    %3906 = vmatprep.subr.mxu0 0.0
    %3907 = vmatpush1.msra.mxu0 0.0
    %3908 = vmatprep.subr.mxu0 0.0
    %3909 = vmatpush1.msra.mxu0 0.0
    %3910 = vmatprep.subr.mxu0 0.0
    %3911 = vmatpush1.msra.mxu0 %v3842
    %3912 = vmatprep.subr.mxu0 0.0
    %3913 = vmatpush1.msra.mxu0 %v3841
    %3914 = vmatprep.subr.mxu0 0.0
    %3915 = vmatpush2.msra.mxu0 0.0
    %3916 = vmatprep.subr.mxu0 0.0
    %3917 = vmatpush2.msra.mxu0 0.0
    %3918 = vmatprep.subr.mxu0 0.0
    %3919 = vmatpush2.msra.mxu0 0.0
    %3920 = vmatprep.subr.mxu0 0.0
    %3921 = vmatpush2.msra.mxu0 0.0
    %3922 = vmatprep.subr.mxu0 0.0
    %3923 = vmatpush2.msra.mxu0 0.0
    %3924 = vmatprep.subr.mxu0 0.0
    %3925 = vmatpush2.msra.mxu0 0.0
    %3926 = vmatprep.subr.mxu0 0.0
    %3927 = vmatpush2.msra.mxu0 0.0
    %3928 = vmatprep.subr.mxu0 0.0
    %3929 = vmatpush2.msra.mxu0 0.0
    %3930 = vmatprep.subr.mxu0 0.0
    %3931 = vmatpush2.msra.mxu0 0.0
    %3932 = vmatprep.subr.mxu0 0.0
    %3933 = vmatpush2.msra.mxu0 0.0
    %3934 = vmatprep.subr.mxu0 0.0
    %3935 = vmatpush2.msra.mxu0 0.0
    %3936 = vmatprep.subr.mxu0 0.0
    %3937 = vmatpush2.msra.mxu0 0.0
    %3938 = vmatprep.subr.mxu0 0.0
    %3939 = vmatpush2.msra.mxu0 0.0
    %3940 = vmatprep.subr.mxu0 0.0
    %3941 = vmatpush2.msra.mxu0 0.0
    %3942 = vmatprep.subr.mxu0 0.0
    %3943 = vmatpush2.msra.mxu0 0.0
    %3944 = vmatprep.subr.mxu0 0.0
    %3945 = vmatpush2.msra.mxu0 0.0
    %3946 = vmatprep.mubr.f32.mxu0 0.0
    %3947 = vmatmul.mubr.f32.gmra.mxu0 %v3844
    %v3948 = vpop.f32.mrf.mxu0
    %v3949 = vadd.f32 0.0, %v3948
    %v3950 = vpop.f32.mrf.mxu0
    %3951 = vmatprep.mubr.f32.mxu0 0.0
    %3952 = vmatmul.mubr.f32.gmra.mxu0 %v3847
    %v3953 = vpop.f32.mrf.mxu0
    %v3954 = vadd.f32 0.0, %v3953
    %v3955 = vpop.f32.mrf.mxu0
    %3956 = vmatprep.mubr.f32.mxu0 0.0
    %3957 = vmatmul.mubr.f32.gmra.mxu0 %v3850
    %v3958 = vpop.f32.mrf.mxu0
    %v3959 = vadd.f32 0.0, %v3958
    %v3960 = vpop.f32.mrf.mxu0
    %3961 = vmatprep.mubr.f32.mxu0 0.0
    %3962 = vmatmul.mubr.f32.gmra.mxu0 %v3853
    %v3963 = vpop.f32.mrf.mxu0
    %v3964 = vadd.f32 0.0, %v3963
    %v3965 = vpop.f32.mrf.mxu0
    %3966 = vmatprep.mubr.f32.mxu0 0.0
    %3967 = vmatmul.mubr.f32.gmra.mxu0 %v3856
    %v3968 = vpop.f32.mrf.mxu0
    %v3969 = vadd.f32 0.0, %v3968
    %v3970 = vpop.f32.mrf.mxu0
    %3971 = vmatprep.mubr.f32.mxu0 0.0
    %3972 = vmatmul.mubr.f32.gmra.mxu0 %v3859
    %v3973 = vpop.f32.mrf.mxu0
    %v3974 = vadd.f32 0.0, %v3973
    %v3975 = vpop.f32.mrf.mxu0
    %3976 = vmatprep.mubr.f32.mxu0 0.0
    %3977 = vmatmul.mubr.f32.gmra.mxu0 %v3862
    %v3978 = vpop.f32.mrf.mxu0
    %v3979 = vadd.f32 0.0, %v3978
    %v3980 = vpop.f32.mrf.mxu0
    %3981 = vmatprep.mubr.f32.mxu0 0.0
    %3982 = vmatmul.mubr.f32.gmra.mxu0 %v3865
    %v3983 = vpop.f32.mrf.mxu0
    %v3984 = vadd.f32 0.0, %v3983
    %v3985 = vpop.f32.mrf.mxu0
    %3986 = vmatprep.mubr.f32.mxu0 0.0
    %3987 = vmatmul.mubr.f32.gmra.mxu0 %v3868
    %v3988 = vpop.f32.mrf.mxu0
    %v3989 = vadd.f32 0.0, %v3988
    %v3990 = vpop.f32.mrf.mxu0
    %3991 = vmatprep.mubr.f32.mxu0 0.0
    %3992 = vmatmul.mubr.f32.gmra.mxu0 %v3871
    %v3993 = vpop.f32.mrf.mxu0
    %v3994 = vadd.f32 0.0, %v3993
    %v3995 = vpop.f32.mrf.mxu0
    %3996 = vmatprep.mubr.f32.mxu0 0.0
    %3997 = vmatmul.mubr.f32.gmra.mxu0 %v3874
    %v3998 = vpop.f32.mrf.mxu0
    %v3999 = vadd.f32 0.0, %v3998
    %v4000 = vpop.f32.mrf.mxu0
    %4001 = vmatprep.mubr.f32.mxu0 0.0
    %4002 = vmatmul.mubr.f32.gmra.mxu0 %v3877
    %v4003 = vpop.f32.mrf.mxu0
    %v4004 = vadd.f32 0.0, %v4003
    %v4005 = vpop.f32.mrf.mxu0
    %4006 = vmatprep.mubr.f32.mxu0 0.0
    %4007 = vmatmul.mubr.f32.gmra.mxu0 %v3880
    %v4008 = vpop.f32.mrf.mxu0
    %v4009 = vadd.f32 0.0, %v4008
    %v4010 = vpop.f32.mrf.mxu0
    %4011 = vdwg.mxu0
    %v4012 = vadd.f32 %v3475, %v3949
    %v4013 = vadd.f32 %v3476, %v3954
    %v4014 = vadd.f32 %v3477, %v3959
    %v4015 = vadd.f32 %v3478, %v3964
    %v4016 = vadd.f32 %v3479, %v3969
    %v4017 = vadd.f32 %v3480, %v3974
    %v4018 = vadd.f32 %v3481, %v3979
    %v4019 = vadd.f32 %v3482, %v3984
    %v4020 = vadd.f32 %v3483, %v3989
    %v4021 = vadd.f32 %v3484, %v3994
    %v4022 = vadd.f32 %v3485, %v3999
    %v4023 = vadd.f32 %v3486, %v4004
    %v4024 = vadd.f32 %v3487, %v4009
    %s4025 = scalar_lea.vmem %s3, 2496
    %v4026 = vld [vmem:[%s4025] sm:$0xff]
    %v4027 = vld [vmem:[%s4025 + $0x8] sm:$0xff]
    %v4028 = vld [vmem:[%s4025 + $0x10] sm:$0xff]
    %v4029 = vld [vmem:[%s4025 + $0x18] sm:$0xff]
    %v4030 = vld [vmem:[%s4025 + $0x20] sm:$0xff]
    %v4031 = vld [vmem:[%s4025 + $0x28] sm:$0xff]
    %v4032 = vld [vmem:[%s4025 + $0x30] sm:$0xff]
    %v4033 = vld [vmem:[%s4025 + $0x38] sm:$0xff]
    %v4034 = vld [vmem:[%s4025 + $0x40] sm:$0xff]
    %v4035 = vld [vmem:[%s4025 + $0x48] sm:$0xff]
    %v4036 = vld [vmem:[%s4025 + $0x50] sm:$0xff]
    %v4037 = vld [vmem:[%s4025 + $0x58] sm:$0xff]
    %v4038 = vld [vmem:[%s4025 + $0x60] sm:$0xff]
    %v4039 = vld [vmem:[%s4025 + $0x68] sm:$0xff]
    %v4040 = vld [vmem:[%s4025 + $0x70] sm:$0xff]
    %v4041 = vld [vmem:[%s4025 + $0x78] sm:$0xff]
    %v4042 = vld [vmem:[%s4025 + $0x80] sm:$0xff]
    %v4043 = vld [vmem:[%s4025 + $0x88] sm:$0xff]
    %v4044 = vld [vmem:[%s4025 + $0x90] sm:$0xff]
    %v4045 = vld [vmem:[%s4025 + $0x98] sm:$0xff]
    %v4046 = vld [vmem:[%s4025 + $0xa0] sm:$0xff]
    %v4047 = vld [vmem:[%s4025 + $0xa8] sm:$0xff]
    %v4048 = vld [vmem:[%s4025 + $0xb0] sm:$0xff]
    %v4049 = vld [vmem:[%s4025 + $0xb8] sm:$0xff]
    %v4050 = vld [vmem:[%s4025 + $0xc0] sm:$0xff]
    %v4051 = vld [vmem:[%s4025 + $0xc8] sm:$0xff]
    %v4052 = vld [vmem:[%s4025 + $0xd0] sm:$0xff]
    %v4053 = vld [vmem:[%s4025 + $0xd8] sm:$0xff]
    %v4054 = vld [vmem:[%s4025 + $0xe0] sm:$0xff]
    %v4055 = vld [vmem:[%s4025 + $0xe8] sm:$0xff]
    %v4056 = vld [vmem:[%s4025 + $0xf0] sm:$0xff]
    %v4057 = vld [vmem:[%s4025 + $0xf8] sm:$0xff]
    %v4058 = vld [vmem:[%s4025 + $0x100] sm:$0xff]
    %v4059 = vld [vmem:[%s4025 + $0x108] sm:$0xff]
    %v4060 = vld [vmem:[%s4025 + $0x110] sm:$0xff]
    %v4061 = vld [vmem:[%s4025 + $0x118] sm:$0xff]
    %v4062 = vld [vmem:[%s4025 + $0x120] sm:$0xff]
    %v4063 = vld [vmem:[%s4025 + $0x128] sm:$0xff]
    %v4064 = vld [vmem:[%s4025 + $0x130] sm:$0xff]
    %v4065 = vld [vmem:[%s4025 + $0x138] sm:$0xff]
    %v4066 = vld [vmem:[%s4025 + $0x140] sm:$0xff]
    %v4067 = vld [vmem:[%s4025 + $0x148] sm:$0xff]
    %v4068 = vld [vmem:[%s4025 + $0x150] sm:$0xff]
    %v4069 = vld [vmem:[%s4025 + $0x158] sm:$0xff]
    %v4070 = vld [vmem:[%s4025 + $0x160] sm:$0xff]
    %v4071 = vld [vmem:[%s4025 + $0x168] sm:$0xff]
    %v4072 = vld [vmem:[%s4025 + $0x170] sm:$0xff]
    %v4073 = vld [vmem:[%s4025 + $0x178] sm:$0xff]
    %v4074 = vld [vmem:[%s4025 + $0x180] sm:$0x3]
    %v4075 = vld [vmem:[%s4025 + $0x188] sm:$0x3]
    %v4076 = vld [vmem:[%s4025 + $0x190] sm:$0x3]
    %v4077 = vld [vmem:[%s4025 + $0x198] sm:$0x3]
    %v4079 = vsel %vm877, %v4029, 0
    %v4082 = vsel %vm877, %v4033, 0
    %v4085 = vsel %vm877, %v4037, 0
    %v4088 = vsel %vm877, %v4041, 0
    %v4091 = vsel %vm877, %v4045, 0
    %v4094 = vsel %vm877, %v4049, 0
    %v4097 = vsel %vm877, %v4053, 0
    %v4100 = vsel %vm877, %v4057, 0
    %v4103 = vsel %vm877, %v4061, 0
    %v4106 = vsel %vm877, %v4065, 0
    %v4109 = vsel %vm877, %v4069, 0
    %v4112 = vsel %vm877, %v4073, 0
    %v4115 = vsel %vm877, %v4077, 0
    %4117 = vmatprep.subr.mxu0 0.0
    %4118 = vmatpush1.msra.mxu0 %v783
    %4119 = vmatprep.subr.mxu0 0.0
    %4120 = vmatpush1.msra.mxu0 %v782
    %4121 = vmatprep.subr.mxu0 0.0
    %4122 = vmatpush1.msra.mxu0 %v781
    %4123 = vmatprep.subr.mxu0 0.0
    %4124 = vmatpush1.msra.mxu0 %v780
    %4125 = vmatprep.subr.mxu0 0.0
    %4126 = vmatpush1.msra.mxu0 %v779
    %4127 = vmatprep.subr.mxu0 0.0
    %4128 = vmatpush1.msra.mxu0 %v778
    %4129 = vmatprep.subr.mxu0 0.0
    %4130 = vmatpush1.msra.mxu0 %v777
    %4131 = vmatprep.subr.mxu0 0.0
    %4132 = vmatpush1.msra.mxu0 %v776
    %4133 = vmatprep.subr.mxu0 0.0
    %4134 = vmatpush1.msra.mxu0 %v775
    %4135 = vmatprep.subr.mxu0 0.0
    %4136 = vmatpush1.msra.mxu0 %v774
    %4137 = vmatprep.subr.mxu0 0.0
    %4138 = vmatpush1.msra.mxu0 %v773
    %4139 = vmatprep.subr.mxu0 0.0
    %4140 = vmatpush1.msra.mxu0 %v772
    %4141 = vmatprep.subr.mxu0 0.0
    %4142 = vmatpush1.msra.mxu0 %v771
    %4143 = vmatprep.subr.mxu0 0.0
    %4144 = vmatpush1.msra.mxu0 %v770
    %4145 = vmatprep.subr.mxu0 0.0
    %4146 = vmatpush1.msra.mxu0 %v769
    %4147 = vmatprep.subr.mxu0 0.0
    %4148 = vmatpush1.msra.mxu0 %v768
    %4149 = vmatprep.subr.mxu0 0.0
    %4150 = vmatpush2.msra.mxu0 %v799
    %4151 = vmatprep.subr.mxu0 0.0
    %4152 = vmatpush2.msra.mxu0 %v798
    %4153 = vmatprep.subr.mxu0 0.0
    %4154 = vmatpush2.msra.mxu0 %v797
    %4155 = vmatprep.subr.mxu0 0.0
    %4156 = vmatpush2.msra.mxu0 %v796
    %4157 = vmatprep.subr.mxu0 0.0
    %4158 = vmatpush2.msra.mxu0 %v795
    %4159 = vmatprep.subr.mxu0 0.0
    %4160 = vmatpush2.msra.mxu0 %v794
    %4161 = vmatprep.subr.mxu0 0.0
    %4162 = vmatpush2.msra.mxu0 %v793
    %4163 = vmatprep.subr.mxu0 0.0
    %4164 = vmatpush2.msra.mxu0 %v792
    %4165 = vmatprep.subr.mxu0 0.0
    %4166 = vmatpush2.msra.mxu0 %v791
    %4167 = vmatprep.subr.mxu0 0.0
    %4168 = vmatpush2.msra.mxu0 %v790
    %4169 = vmatprep.subr.mxu0 0.0
    %4170 = vmatpush2.msra.mxu0 %v789
    %4171 = vmatprep.subr.mxu0 0.0
    %4172 = vmatpush2.msra.mxu0 %v788
    %4173 = vmatprep.subr.mxu0 0.0
    %4174 = vmatpush2.msra.mxu0 %v787
    %4175 = vmatprep.subr.mxu0 0.0
    %4176 = vmatpush2.msra.mxu0 %v786
    %4177 = vmatprep.subr.mxu0 0.0
    %4178 = vmatpush2.msra.mxu0 %v785
    %4179 = vmatprep.subr.mxu0 0.0
    %4180 = vmatpush2.msra.mxu0 %v784
    %4181 = vmatprep.mubr.f32.mxu0 %v4027
    %4182 = vmatmul.mubr.f32.gmra.mxu0 %v4026
    %v4183 = vpop.f32.mrf.mxu0
    %v4184 = vadd.f32 0.0, %v4183
    %v4185 = vpop.f32.mrf.mxu0
    %4186 = vmatprep.mubr.f32.mxu0 %v4031
    %4187 = vmatmul.mubr.f32.gmra.mxu0 %v4030
    %v4188 = vpop.f32.mrf.mxu0
    %v4189 = vadd.f32 0.0, %v4188
    %v4190 = vpop.f32.mrf.mxu0
    %4191 = vmatprep.mubr.f32.mxu0 %v4035
    %4192 = vmatmul.mubr.f32.gmra.mxu0 %v4034
    %v4193 = vpop.f32.mrf.mxu0
    %v4194 = vadd.f32 0.0, %v4193
    %v4195 = vpop.f32.mrf.mxu0
    %4196 = vmatprep.mubr.f32.mxu0 %v4039
    %4197 = vmatmul.mubr.f32.gmra.mxu0 %v4038
    %v4198 = vpop.f32.mrf.mxu0
    %v4199 = vadd.f32 0.0, %v4198
    %v4200 = vpop.f32.mrf.mxu0
    %4201 = vmatprep.mubr.f32.mxu0 %v4043
    %4202 = vmatmul.mubr.f32.gmra.mxu0 %v4042
    %v4203 = vpop.f32.mrf.mxu0
    %v4204 = vadd.f32 0.0, %v4203
    %v4205 = vpop.f32.mrf.mxu0
    %4206 = vmatprep.mubr.f32.mxu0 %v4047
    %4207 = vmatmul.mubr.f32.gmra.mxu0 %v4046
    %v4208 = vpop.f32.mrf.mxu0
    %v4209 = vadd.f32 0.0, %v4208
    %v4210 = vpop.f32.mrf.mxu0
    %4211 = vmatprep.mubr.f32.mxu0 %v4051
    %4212 = vmatmul.mubr.f32.gmra.mxu0 %v4050
    %v4213 = vpop.f32.mrf.mxu0
    %v4214 = vadd.f32 0.0, %v4213
    %v4215 = vpop.f32.mrf.mxu0
    %4216 = vmatprep.mubr.f32.mxu0 %v4055
    %4217 = vmatmul.mubr.f32.gmra.mxu0 %v4054
    %v4218 = vpop.f32.mrf.mxu0
    %v4219 = vadd.f32 0.0, %v4218
    %v4220 = vpop.f32.mrf.mxu0
    %4221 = vmatprep.mubr.f32.mxu0 %v4059
    %4222 = vmatmul.mubr.f32.gmra.mxu0 %v4058
    %v4223 = vpop.f32.mrf.mxu0
    %v4224 = vadd.f32 0.0, %v4223
    %v4225 = vpop.f32.mrf.mxu0
    %4226 = vmatprep.mubr.f32.mxu0 %v4063
    %4227 = vmatmul.mubr.f32.gmra.mxu0 %v4062
    %v4228 = vpop.f32.mrf.mxu0
    %v4229 = vadd.f32 0.0, %v4228
    %v4230 = vpop.f32.mrf.mxu0
    %4231 = vmatprep.mubr.f32.mxu0 %v4067
    %4232 = vmatmul.mubr.f32.gmra.mxu0 %v4066
    %v4233 = vpop.f32.mrf.mxu0
    %v4234 = vadd.f32 0.0, %v4233
    %v4235 = vpop.f32.mrf.mxu0
    %4236 = vmatprep.mubr.f32.mxu0 %v4071
    %4237 = vmatmul.mubr.f32.gmra.mxu0 %v4070
    %v4238 = vpop.f32.mrf.mxu0
    %v4239 = vadd.f32 0.0, %v4238
    %v4240 = vpop.f32.mrf.mxu0
    %4241 = vmatprep.mubr.f32.mxu0 %v4075
    %4242 = vmatmul.mubr.f32.gmra.mxu0 %v4074
    %v4243 = vpop.f32.mrf.mxu0
    %v4244 = vadd.f32 0.0, %v4243
    %v4245 = vpop.f32.mrf.mxu0
    %4246 = vdwg.mxu0
    %4247 = vmatprep.subr.mxu0 0.0
    %4248 = vmatpush1.msra.mxu0 %v815
    %4249 = vmatprep.subr.mxu0 0.0
    %4250 = vmatpush1.msra.mxu0 %v814
    %4251 = vmatprep.subr.mxu0 0.0
    %4252 = vmatpush1.msra.mxu0 %v813
    %4253 = vmatprep.subr.mxu0 0.0
    %4254 = vmatpush1.msra.mxu0 %v812
    %4255 = vmatprep.subr.mxu0 0.0
    %4256 = vmatpush1.msra.mxu0 %v811
    %4257 = vmatprep.subr.mxu0 0.0
    %4258 = vmatpush1.msra.mxu0 %v810
    %4259 = vmatprep.subr.mxu0 0.0
    %4260 = vmatpush1.msra.mxu0 %v809
    %4261 = vmatprep.subr.mxu0 0.0
    %4262 = vmatpush1.msra.mxu0 %v808
    %4263 = vmatprep.subr.mxu0 0.0
    %4264 = vmatpush1.msra.mxu0 %v807
    %4265 = vmatprep.subr.mxu0 0.0
    %4266 = vmatpush1.msra.mxu0 %v806
    %4267 = vmatprep.subr.mxu0 0.0
    %4268 = vmatpush1.msra.mxu0 %v805
    %4269 = vmatprep.subr.mxu0 0.0
    %4270 = vmatpush1.msra.mxu0 %v804
    %4271 = vmatprep.subr.mxu0 0.0
    %4272 = vmatpush1.msra.mxu0 %v803
    %4273 = vmatprep.subr.mxu0 0.0
    %4274 = vmatpush1.msra.mxu0 %v802
    %4275 = vmatprep.subr.mxu0 0.0
    %4276 = vmatpush1.msra.mxu0 %v801
    %4277 = vmatprep.subr.mxu0 0.0
    %4278 = vmatpush1.msra.mxu0 %v800
    %4279 = vmatprep.subr.mxu0 0.0
    %4280 = vmatpush2.msra.mxu0 0.0
    %4281 = vmatprep.subr.mxu0 0.0
    %4282 = vmatpush2.msra.mxu0 0.0
    %4283 = vmatprep.subr.mxu0 0.0
    %4284 = vmatpush2.msra.mxu0 0.0
    %4285 = vmatprep.subr.mxu0 0.0
    %4286 = vmatpush2.msra.mxu0 0.0
    %4287 = vmatprep.subr.mxu0 0.0
    %4288 = vmatpush2.msra.mxu0 0.0
    %4289 = vmatprep.subr.mxu0 0.0
    %4290 = vmatpush2.msra.mxu0 0.0
    %4291 = vmatprep.subr.mxu0 0.0
    %4292 = vmatpush2.msra.mxu0 0.0
    %4293 = vmatprep.subr.mxu0 0.0
    %4294 = vmatpush2.msra.mxu0 %v919
    %4295 = vmatprep.subr.mxu0 0.0
    %4296 = vmatpush2.msra.mxu0 %v823
    %4297 = vmatprep.subr.mxu0 0.0
    %4298 = vmatpush2.msra.mxu0 %v822
    %4299 = vmatprep.subr.mxu0 0.0
    %4300 = vmatpush2.msra.mxu0 %v821
    %4301 = vmatprep.subr.mxu0 0.0
    %4302 = vmatpush2.msra.mxu0 %v820
    %4303 = vmatprep.subr.mxu0 0.0
    %4304 = vmatpush2.msra.mxu0 %v819
    %4305 = vmatprep.subr.mxu0 0.0
    %4306 = vmatpush2.msra.mxu0 %v818
    %4307 = vmatprep.subr.mxu0 0.0
    %4308 = vmatpush2.msra.mxu0 %v817
    %4309 = vmatprep.subr.mxu0 0.0
    %4310 = vmatpush2.msra.mxu0 %v816
    %4311 = vmatprep.mubr.f32.mxu0 %v4079
    %4312 = vmatmul.mubr.f32.gmra.mxu0 %v4028
    %v4313 = vpop.f32.mrf.mxu0
    %v4314 = vadd.f32 %v4184, %v4313
    %v4315 = vpop.f32.mrf.mxu0
    %4316 = vmatprep.mubr.f32.mxu0 %v4082
    %4317 = vmatmul.mubr.f32.gmra.mxu0 %v4032
    %v4318 = vpop.f32.mrf.mxu0
    %v4319 = vadd.f32 %v4189, %v4318
    %v4320 = vpop.f32.mrf.mxu0
    %4321 = vmatprep.mubr.f32.mxu0 %v4085
    %4322 = vmatmul.mubr.f32.gmra.mxu0 %v4036
    %v4323 = vpop.f32.mrf.mxu0
    %v4324 = vadd.f32 %v4194, %v4323
    %v4325 = vpop.f32.mrf.mxu0
    %4326 = vmatprep.mubr.f32.mxu0 %v4088
    %4327 = vmatmul.mubr.f32.gmra.mxu0 %v4040
    %v4328 = vpop.f32.mrf.mxu0
    %v4329 = vadd.f32 %v4199, %v4328
    %v4330 = vpop.f32.mrf.mxu0
    %4331 = vmatprep.mubr.f32.mxu0 %v4091
    %4332 = vmatmul.mubr.f32.gmra.mxu0 %v4044
    %v4333 = vpop.f32.mrf.mxu0
    %v4334 = vadd.f32 %v4204, %v4333
    %v4335 = vpop.f32.mrf.mxu0
    %4336 = vmatprep.mubr.f32.mxu0 %v4094
    %4337 = vmatmul.mubr.f32.gmra.mxu0 %v4048
    %v4338 = vpop.f32.mrf.mxu0
    %v4339 = vadd.f32 %v4209, %v4338
    %v4340 = vpop.f32.mrf.mxu0
    %4341 = vmatprep.mubr.f32.mxu0 %v4097
    %4342 = vmatmul.mubr.f32.gmra.mxu0 %v4052
    %v4343 = vpop.f32.mrf.mxu0
    %v4344 = vadd.f32 %v4214, %v4343
    %v4345 = vpop.f32.mrf.mxu0
    %4346 = vmatprep.mubr.f32.mxu0 %v4100
    %4347 = vmatmul.mubr.f32.gmra.mxu0 %v4056
    %v4348 = vpop.f32.mrf.mxu0
    %v4349 = vadd.f32 %v4219, %v4348
    %v4350 = vpop.f32.mrf.mxu0
    %4351 = vmatprep.mubr.f32.mxu0 %v4103
    %4352 = vmatmul.mubr.f32.gmra.mxu0 %v4060
    %v4353 = vpop.f32.mrf.mxu0
    %v4354 = vadd.f32 %v4224, %v4353
    %v4355 = vpop.f32.mrf.mxu0
    %4356 = vmatprep.mubr.f32.mxu0 %v4106
    %4357 = vmatmul.mubr.f32.gmra.mxu0 %v4064
    %v4358 = vpop.f32.mrf.mxu0
    %v4359 = vadd.f32 %v4229, %v4358
    %v4360 = vpop.f32.mrf.mxu0
    %4361 = vmatprep.mubr.f32.mxu0 %v4109
    %4362 = vmatmul.mubr.f32.gmra.mxu0 %v4068
    %v4363 = vpop.f32.mrf.mxu0
    %v4364 = vadd.f32 %v4234, %v4363
    %v4365 = vpop.f32.mrf.mxu0
    %4366 = vmatprep.mubr.f32.mxu0 %v4112
    %4367 = vmatmul.mubr.f32.gmra.mxu0 %v4072
    %v4368 = vpop.f32.mrf.mxu0
    %v4369 = vadd.f32 %v4239, %v4368
    %v4370 = vpop.f32.mrf.mxu0
    %4371 = vmatprep.mubr.f32.mxu0 %v4115
    %4372 = vmatmul.mubr.f32.gmra.mxu0 %v4076
    %v4373 = vpop.f32.mrf.mxu0
    %v4374 = vadd.f32 %v4244, %v4373
    %v4375 = vpop.f32.mrf.mxu0
    %4376 = vdwg.mxu0
    %s4377 = scalar_lea.vmem %s4, 96
    %v4378 = vld [vmem:[%s4377] sm:$0xff]
    %v4379 = vld [vmem:[%s4377 + $0x8] sm:$0xff]
    %v4381 = vsel %vm1538, %v4314, 0
    %v4384 = vsel %vm1538, %v4319, 0
    %v4387 = vsel %vm1538, %v4324, 0
    %v4390 = vsel %vm1538, %v4329, 0
    %v4393 = vsel %vm1538, %v4334, 0
    %v4396 = vsel %vm1538, %v4339, 0
    %v4399 = vsel %vm1538, %v4344, 0
    %v4402 = vsel %vm1538, %v4349, 0
    %v4405 = vsel %vm1538, %v4354, 0
    %v4408 = vsel %vm1538, %v4359, 0
    %v4411 = vsel %vm1538, %v4364, 0
    %v4414 = vsel %vm1538, %v4369, 0
    %v4417 = vsel %vm1538, %v4374, 0
    %4419 = vmatprep.subr.mxu0 0.0
    %4420 = vmatpush1.msra.mxu0 0.0
    %4421 = vmatprep.subr.mxu0 0.0
    %4422 = vmatpush1.msra.mxu0 0.0
    %4423 = vmatprep.subr.mxu0 0.0
    %4424 = vmatpush1.msra.mxu0 0.0
    %4425 = vmatprep.subr.mxu0 0.0
    %4426 = vmatpush1.msra.mxu0 0.0
    %4427 = vmatprep.subr.mxu0 0.0
    %4428 = vmatpush1.msra.mxu0 0.0
    %4429 = vmatprep.subr.mxu0 0.0
    %4430 = vmatpush1.msra.mxu0 0.0
    %4431 = vmatprep.subr.mxu0 0.0
    %4432 = vmatpush1.msra.mxu0 0.0
    %4433 = vmatprep.subr.mxu0 0.0
    %4434 = vmatpush1.msra.mxu0 0.0
    %4435 = vmatprep.subr.mxu0 0.0
    %4436 = vmatpush1.msra.mxu0 0.0
    %4437 = vmatprep.subr.mxu0 0.0
    %4438 = vmatpush1.msra.mxu0 0.0
    %4439 = vmatprep.subr.mxu0 0.0
    %4440 = vmatpush1.msra.mxu0 0.0
    %4441 = vmatprep.subr.mxu0 0.0
    %4442 = vmatpush1.msra.mxu0 0.0
    %4443 = vmatprep.subr.mxu0 0.0
    %4444 = vmatpush1.msra.mxu0 0.0
    %4445 = vmatprep.subr.mxu0 0.0
    %4446 = vmatpush1.msra.mxu0 0.0
    %4447 = vmatprep.subr.mxu0 0.0
    %4448 = vmatpush1.msra.mxu0 %v4379
    %4449 = vmatprep.subr.mxu0 0.0
    %4450 = vmatpush1.msra.mxu0 %v4378
    %4451 = vmatprep.subr.mxu0 0.0
    %4452 = vmatpush2.msra.mxu0 0.0
    %4453 = vmatprep.subr.mxu0 0.0
    %4454 = vmatpush2.msra.mxu0 0.0
    %4455 = vmatprep.subr.mxu0 0.0
    %4456 = vmatpush2.msra.mxu0 0.0
    %4457 = vmatprep.subr.mxu0 0.0
    %4458 = vmatpush2.msra.mxu0 0.0
    %4459 = vmatprep.subr.mxu0 0.0
    %4460 = vmatpush2.msra.mxu0 0.0
    %4461 = vmatprep.subr.mxu0 0.0
    %4462 = vmatpush2.msra.mxu0 0.0
    %4463 = vmatprep.subr.mxu0 0.0
    %4464 = vmatpush2.msra.mxu0 0.0
    %4465 = vmatprep.subr.mxu0 0.0
    %4466 = vmatpush2.msra.mxu0 0.0
    %4467 = vmatprep.subr.mxu0 0.0
    %4468 = vmatpush2.msra.mxu0 0.0
    %4469 = vmatprep.subr.mxu0 0.0
    %4470 = vmatpush2.msra.mxu0 0.0
    %4471 = vmatprep.subr.mxu0 0.0
    %4472 = vmatpush2.msra.mxu0 0.0
    %4473 = vmatprep.subr.mxu0 0.0
    %4474 = vmatpush2.msra.mxu0 0.0
    %4475 = vmatprep.subr.mxu0 0.0
    %4476 = vmatpush2.msra.mxu0 0.0
    %4477 = vmatprep.subr.mxu0 0.0
    %4478 = vmatpush2.msra.mxu0 0.0
    %4479 = vmatprep.subr.mxu0 0.0
    %4480 = vmatpush2.msra.mxu0 0.0
    %4481 = vmatprep.subr.mxu0 0.0
    %4482 = vmatpush2.msra.mxu0 0.0
    %4483 = vmatprep.mubr.f32.mxu0 0.0
    %4484 = vmatmul.mubr.f32.gmra.mxu0 %v4381
    %v4485 = vpop.f32.mrf.mxu0
    %v4486 = vadd.f32 0.0, %v4485
    %v4487 = vpop.f32.mrf.mxu0
    %4488 = vmatprep.mubr.f32.mxu0 0.0
    %4489 = vmatmul.mubr.f32.gmra.mxu0 %v4384
    %v4490 = vpop.f32.mrf.mxu0
    %v4491 = vadd.f32 0.0, %v4490
    %v4492 = vpop.f32.mrf.mxu0
    %4493 = vmatprep.mubr.f32.mxu0 0.0
    %4494 = vmatmul.mubr.f32.gmra.mxu0 %v4387
    %v4495 = vpop.f32.mrf.mxu0
    %v4496 = vadd.f32 0.0, %v4495
    %v4497 = vpop.f32.mrf.mxu0
    %4498 = vmatprep.mubr.f32.mxu0 0.0
    %4499 = vmatmul.mubr.f32.gmra.mxu0 %v4390
    %v4500 = vpop.f32.mrf.mxu0
    %v4501 = vadd.f32 0.0, %v4500
    %v4502 = vpop.f32.mrf.mxu0
    %4503 = vmatprep.mubr.f32.mxu0 0.0
    %4504 = vmatmul.mubr.f32.gmra.mxu0 %v4393
    %v4505 = vpop.f32.mrf.mxu0
    %v4506 = vadd.f32 0.0, %v4505
    %v4507 = vpop.f32.mrf.mxu0
    %4508 = vmatprep.mubr.f32.mxu0 0.0
    %4509 = vmatmul.mubr.f32.gmra.mxu0 %v4396
    %v4510 = vpop.f32.mrf.mxu0
    %v4511 = vadd.f32 0.0, %v4510
    %v4512 = vpop.f32.mrf.mxu0
    %4513 = vmatprep.mubr.f32.mxu0 0.0
    %4514 = vmatmul.mubr.f32.gmra.mxu0 %v4399
    %v4515 = vpop.f32.mrf.mxu0
    %v4516 = vadd.f32 0.0, %v4515
    %v4517 = vpop.f32.mrf.mxu0
    %4518 = vmatprep.mubr.f32.mxu0 0.0
    %4519 = vmatmul.mubr.f32.gmra.mxu0 %v4402
    %v4520 = vpop.f32.mrf.mxu0
    %v4521 = vadd.f32 0.0, %v4520
    %v4522 = vpop.f32.mrf.mxu0
    %4523 = vmatprep.mubr.f32.mxu0 0.0
    %4524 = vmatmul.mubr.f32.gmra.mxu0 %v4405
    %v4525 = vpop.f32.mrf.mxu0
    %v4526 = vadd.f32 0.0, %v4525
    %v4527 = vpop.f32.mrf.mxu0
    %4528 = vmatprep.mubr.f32.mxu0 0.0
    %4529 = vmatmul.mubr.f32.gmra.mxu0 %v4408
    %v4530 = vpop.f32.mrf.mxu0
    %v4531 = vadd.f32 0.0, %v4530
    %v4532 = vpop.f32.mrf.mxu0
    %4533 = vmatprep.mubr.f32.mxu0 0.0
    %4534 = vmatmul.mubr.f32.gmra.mxu0 %v4411
    %v4535 = vpop.f32.mrf.mxu0
    %v4536 = vadd.f32 0.0, %v4535
    %v4537 = vpop.f32.mrf.mxu0
    %4538 = vmatprep.mubr.f32.mxu0 0.0
    %4539 = vmatmul.mubr.f32.gmra.mxu0 %v4414
    %v4540 = vpop.f32.mrf.mxu0
    %v4541 = vadd.f32 0.0, %v4540
    %v4542 = vpop.f32.mrf.mxu0
    %4543 = vmatprep.mubr.f32.mxu0 0.0
    %4544 = vmatmul.mubr.f32.gmra.mxu0 %v4417
    %v4545 = vpop.f32.mrf.mxu0
    %v4546 = vadd.f32 0.0, %v4545
    %v4547 = vpop.f32.mrf.mxu0
    %4548 = vdwg.mxu0
    %v4549 = vadd.f32 %v4012, %v4486
    %v4550 = vadd.f32 %v4013, %v4491
    %v4551 = vadd.f32 %v4014, %v4496
    %v4552 = vadd.f32 %v4015, %v4501
    %v4553 = vadd.f32 %v4016, %v4506
    %v4554 = vadd.f32 %v4017, %v4511
    %v4555 = vadd.f32 %v4018, %v4516
    %v4556 = vadd.f32 %v4019, %v4521
    %v4557 = vadd.f32 %v4020, %v4526
    %v4558 = vadd.f32 %v4021, %v4531
    %v4559 = vadd.f32 %v4022, %v4536
    %v4560 = vadd.f32 %v4023, %v4541
    %v4561 = vadd.f32 %v4024, %v4546
    %s4562 = scalar_lea.vmem %s3, 2912
    %v4563 = vld [vmem:[%s4562] sm:$0xff]
    %v4564 = vld [vmem:[%s4562 + $0x8] sm:$0xff]
    %v4565 = vld [vmem:[%s4562 + $0x10] sm:$0xff]
    %v4566 = vld [vmem:[%s4562 + $0x18] sm:$0xff]
    %v4567 = vld [vmem:[%s4562 + $0x20] sm:$0xff]
    %v4568 = vld [vmem:[%s4562 + $0x28] sm:$0xff]
    %v4569 = vld [vmem:[%s4562 + $0x30] sm:$0xff]
    %v4570 = vld [vmem:[%s4562 + $0x38] sm:$0xff]
    %v4571 = vld [vmem:[%s4562 + $0x40] sm:$0xff]
    %v4572 = vld [vmem:[%s4562 + $0x48] sm:$0xff]
    %v4573 = vld [vmem:[%s4562 + $0x50] sm:$0xff]
    %v4574 = vld [vmem:[%s4562 + $0x58] sm:$0xff]
    %v4575 = vld [vmem:[%s4562 + $0x60] sm:$0xff]
    %v4576 = vld [vmem:[%s4562 + $0x68] sm:$0xff]
    %v4577 = vld [vmem:[%s4562 + $0x70] sm:$0xff]
    %v4578 = vld [vmem:[%s4562 + $0x78] sm:$0xff]
    %v4579 = vld [vmem:[%s4562 + $0x80] sm:$0xff]
    %v4580 = vld [vmem:[%s4562 + $0x88] sm:$0xff]
    %v4581 = vld [vmem:[%s4562 + $0x90] sm:$0xff]
    %v4582 = vld [vmem:[%s4562 + $0x98] sm:$0xff]
    %v4583 = vld [vmem:[%s4562 + $0xa0] sm:$0xff]
    %v4584 = vld [vmem:[%s4562 + $0xa8] sm:$0xff]
    %v4585 = vld [vmem:[%s4562 + $0xb0] sm:$0xff]
    %v4586 = vld [vmem:[%s4562 + $0xb8] sm:$0xff]
    %v4587 = vld [vmem:[%s4562 + $0xc0] sm:$0xff]
    %v4588 = vld [vmem:[%s4562 + $0xc8] sm:$0xff]
    %v4589 = vld [vmem:[%s4562 + $0xd0] sm:$0xff]
    %v4590 = vld [vmem:[%s4562 + $0xd8] sm:$0xff]
    %v4591 = vld [vmem:[%s4562 + $0xe0] sm:$0xff]
    %v4592 = vld [vmem:[%s4562 + $0xe8] sm:$0xff]
    %v4593 = vld [vmem:[%s4562 + $0xf0] sm:$0xff]
    %v4594 = vld [vmem:[%s4562 + $0xf8] sm:$0xff]
    %v4595 = vld [vmem:[%s4562 + $0x100] sm:$0xff]
    %v4596 = vld [vmem:[%s4562 + $0x108] sm:$0xff]
    %v4597 = vld [vmem:[%s4562 + $0x110] sm:$0xff]
    %v4598 = vld [vmem:[%s4562 + $0x118] sm:$0xff]
    %v4599 = vld [vmem:[%s4562 + $0x120] sm:$0xff]
    %v4600 = vld [vmem:[%s4562 + $0x128] sm:$0xff]
    %v4601 = vld [vmem:[%s4562 + $0x130] sm:$0xff]
    %v4602 = vld [vmem:[%s4562 + $0x138] sm:$0xff]
    %v4603 = vld [vmem:[%s4562 + $0x140] sm:$0xff]
    %v4604 = vld [vmem:[%s4562 + $0x148] sm:$0xff]
    %v4605 = vld [vmem:[%s4562 + $0x150] sm:$0xff]
    %v4606 = vld [vmem:[%s4562 + $0x158] sm:$0xff]
    %v4607 = vld [vmem:[%s4562 + $0x160] sm:$0xff]
    %v4608 = vld [vmem:[%s4562 + $0x168] sm:$0xff]
    %v4609 = vld [vmem:[%s4562 + $0x170] sm:$0xff]
    %v4610 = vld [vmem:[%s4562 + $0x178] sm:$0xff]
    %v4611 = vld [vmem:[%s4562 + $0x180] sm:$0x3]
    %v4612 = vld [vmem:[%s4562 + $0x188] sm:$0x3]
    %v4613 = vld [vmem:[%s4562 + $0x190] sm:$0x3]
    %v4614 = vld [vmem:[%s4562 + $0x198] sm:$0x3]
    %v4616 = vsel %vm877, %v4566, 0
    %v4619 = vsel %vm877, %v4570, 0
    %v4622 = vsel %vm877, %v4574, 0
    %v4625 = vsel %vm877, %v4578, 0
    %v4628 = vsel %vm877, %v4582, 0
    %v4631 = vsel %vm877, %v4586, 0
    %v4634 = vsel %vm877, %v4590, 0
    %v4637 = vsel %vm877, %v4594, 0
    %v4640 = vsel %vm877, %v4598, 0
    %v4643 = vsel %vm877, %v4602, 0
    %v4646 = vsel %vm877, %v4606, 0
    %v4649 = vsel %vm877, %v4610, 0
    %v4652 = vsel %vm877, %v4614, 0
    %4654 = vmatprep.subr.mxu0 0.0
    %4655 = vmatpush1.msra.mxu0 %v783
    %4656 = vmatprep.subr.mxu0 0.0
    %4657 = vmatpush1.msra.mxu0 %v782
    %4658 = vmatprep.subr.mxu0 0.0
    %4659 = vmatpush1.msra.mxu0 %v781
    %4660 = vmatprep.subr.mxu0 0.0
    %4661 = vmatpush1.msra.mxu0 %v780
    %4662 = vmatprep.subr.mxu0 0.0
    %4663 = vmatpush1.msra.mxu0 %v779
    %4664 = vmatprep.subr.mxu0 0.0
    %4665 = vmatpush1.msra.mxu0 %v778
    %4666 = vmatprep.subr.mxu0 0.0
    %4667 = vmatpush1.msra.mxu0 %v777
    %4668 = vmatprep.subr.mxu0 0.0
    %4669 = vmatpush1.msra.mxu0 %v776
    %4670 = vmatprep.subr.mxu0 0.0
    %4671 = vmatpush1.msra.mxu0 %v775
    %4672 = vmatprep.subr.mxu0 0.0
    %4673 = vmatpush1.msra.mxu0 %v774
    %4674 = vmatprep.subr.mxu0 0.0
    %4675 = vmatpush1.msra.mxu0 %v773
    %4676 = vmatprep.subr.mxu0 0.0
    %4677 = vmatpush1.msra.mxu0 %v772
    %4678 = vmatprep.subr.mxu0 0.0
    %4679 = vmatpush1.msra.mxu0 %v771
    %4680 = vmatprep.subr.mxu0 0.0
    %4681 = vmatpush1.msra.mxu0 %v770
    %4682 = vmatprep.subr.mxu0 0.0
    %4683 = vmatpush1.msra.mxu0 %v769
    %4684 = vmatprep.subr.mxu0 0.0
    %4685 = vmatpush1.msra.mxu0 %v768
    %4686 = vmatprep.subr.mxu0 0.0
    %4687 = vmatpush2.msra.mxu0 %v799
    %4688 = vmatprep.subr.mxu0 0.0
    %4689 = vmatpush2.msra.mxu0 %v798
    %4690 = vmatprep.subr.mxu0 0.0
    %4691 = vmatpush2.msra.mxu0 %v797
    %4692 = vmatprep.subr.mxu0 0.0
    %4693 = vmatpush2.msra.mxu0 %v796
    %4694 = vmatprep.subr.mxu0 0.0
    %4695 = vmatpush2.msra.mxu0 %v795
    %4696 = vmatprep.subr.mxu0 0.0
    %4697 = vmatpush2.msra.mxu0 %v794
    %4698 = vmatprep.subr.mxu0 0.0
    %4699 = vmatpush2.msra.mxu0 %v793
    %4700 = vmatprep.subr.mxu0 0.0
    %4701 = vmatpush2.msra.mxu0 %v792
    %4702 = vmatprep.subr.mxu0 0.0
    %4703 = vmatpush2.msra.mxu0 %v791
    %4704 = vmatprep.subr.mxu0 0.0
    %4705 = vmatpush2.msra.mxu0 %v790
    %4706 = vmatprep.subr.mxu0 0.0
    %4707 = vmatpush2.msra.mxu0 %v789
    %4708 = vmatprep.subr.mxu0 0.0
    %4709 = vmatpush2.msra.mxu0 %v788
    %4710 = vmatprep.subr.mxu0 0.0
    %4711 = vmatpush2.msra.mxu0 %v787
    %4712 = vmatprep.subr.mxu0 0.0
    %4713 = vmatpush2.msra.mxu0 %v786
    %4714 = vmatprep.subr.mxu0 0.0
    %4715 = vmatpush2.msra.mxu0 %v785
    %4716 = vmatprep.subr.mxu0 0.0
    %4717 = vmatpush2.msra.mxu0 %v784
    %4718 = vmatprep.mubr.f32.mxu0 %v4564
    %4719 = vmatmul.mubr.f32.gmra.mxu0 %v4563
    %v4720 = vpop.f32.mrf.mxu0
    %v4721 = vadd.f32 0.0, %v4720
    %v4722 = vpop.f32.mrf.mxu0
    %4723 = vmatprep.mubr.f32.mxu0 %v4568
    %4724 = vmatmul.mubr.f32.gmra.mxu0 %v4567
    %v4725 = vpop.f32.mrf.mxu0
    %v4726 = vadd.f32 0.0, %v4725
    %v4727 = vpop.f32.mrf.mxu0
    %4728 = vmatprep.mubr.f32.mxu0 %v4572
    %4729 = vmatmul.mubr.f32.gmra.mxu0 %v4571
    %v4730 = vpop.f32.mrf.mxu0
    %v4731 = vadd.f32 0.0, %v4730
    %v4732 = vpop.f32.mrf.mxu0
    %4733 = vmatprep.mubr.f32.mxu0 %v4576
    %4734 = vmatmul.mubr.f32.gmra.mxu0 %v4575
    %v4735 = vpop.f32.mrf.mxu0
    %v4736 = vadd.f32 0.0, %v4735
    %v4737 = vpop.f32.mrf.mxu0
    %4738 = vmatprep.mubr.f32.mxu0 %v4580
    %4739 = vmatmul.mubr.f32.gmra.mxu0 %v4579
    %v4740 = vpop.f32.mrf.mxu0
    %v4741 = vadd.f32 0.0, %v4740
    %v4742 = vpop.f32.mrf.mxu0
    %4743 = vmatprep.mubr.f32.mxu0 %v4584
    %4744 = vmatmul.mubr.f32.gmra.mxu0 %v4583
    %v4745 = vpop.f32.mrf.mxu0
    %v4746 = vadd.f32 0.0, %v4745
    %v4747 = vpop.f32.mrf.mxu0
    %4748 = vmatprep.mubr.f32.mxu0 %v4588
    %4749 = vmatmul.mubr.f32.gmra.mxu0 %v4587
    %v4750 = vpop.f32.mrf.mxu0
    %v4751 = vadd.f32 0.0, %v4750
    %v4752 = vpop.f32.mrf.mxu0
    %4753 = vmatprep.mubr.f32.mxu0 %v4592
    %4754 = vmatmul.mubr.f32.gmra.mxu0 %v4591
    %v4755 = vpop.f32.mrf.mxu0
    %v4756 = vadd.f32 0.0, %v4755
    %v4757 = vpop.f32.mrf.mxu0
    %4758 = vmatprep.mubr.f32.mxu0 %v4596
    %4759 = vmatmul.mubr.f32.gmra.mxu0 %v4595
    %v4760 = vpop.f32.mrf.mxu0
    %v4761 = vadd.f32 0.0, %v4760
    %v4762 = vpop.f32.mrf.mxu0
    %4763 = vmatprep.mubr.f32.mxu0 %v4600
    %4764 = vmatmul.mubr.f32.gmra.mxu0 %v4599
    %v4765 = vpop.f32.mrf.mxu0
    %v4766 = vadd.f32 0.0, %v4765
    %v4767 = vpop.f32.mrf.mxu0
    %4768 = vmatprep.mubr.f32.mxu0 %v4604
    %4769 = vmatmul.mubr.f32.gmra.mxu0 %v4603
    %v4770 = vpop.f32.mrf.mxu0
    %v4771 = vadd.f32 0.0, %v4770
    %v4772 = vpop.f32.mrf.mxu0
    %4773 = vmatprep.mubr.f32.mxu0 %v4608
    %4774 = vmatmul.mubr.f32.gmra.mxu0 %v4607
    %v4775 = vpop.f32.mrf.mxu0
    %v4776 = vadd.f32 0.0, %v4775
    %v4777 = vpop.f32.mrf.mxu0
    %4778 = vmatprep.mubr.f32.mxu0 %v4612
    %4779 = vmatmul.mubr.f32.gmra.mxu0 %v4611
    %v4780 = vpop.f32.mrf.mxu0
    %v4781 = vadd.f32 0.0, %v4780
    %v4782 = vpop.f32.mrf.mxu0
    %4783 = vdwg.mxu0
    %4784 = vmatprep.subr.mxu0 0.0
    %4785 = vmatpush1.msra.mxu0 %v815
    %4786 = vmatprep.subr.mxu0 0.0
    %4787 = vmatpush1.msra.mxu0 %v814
    %4788 = vmatprep.subr.mxu0 0.0
    %4789 = vmatpush1.msra.mxu0 %v813
    %4790 = vmatprep.subr.mxu0 0.0
    %4791 = vmatpush1.msra.mxu0 %v812
    %4792 = vmatprep.subr.mxu0 0.0
    %4793 = vmatpush1.msra.mxu0 %v811
    %4794 = vmatprep.subr.mxu0 0.0
    %4795 = vmatpush1.msra.mxu0 %v810
    %4796 = vmatprep.subr.mxu0 0.0
    %4797 = vmatpush1.msra.mxu0 %v809
    %4798 = vmatprep.subr.mxu0 0.0
    %4799 = vmatpush1.msra.mxu0 %v808
    %4800 = vmatprep.subr.mxu0 0.0
    %4801 = vmatpush1.msra.mxu0 %v807
    %4802 = vmatprep.subr.mxu0 0.0
    %4803 = vmatpush1.msra.mxu0 %v806
    %4804 = vmatprep.subr.mxu0 0.0
    %4805 = vmatpush1.msra.mxu0 %v805
    %4806 = vmatprep.subr.mxu0 0.0
    %4807 = vmatpush1.msra.mxu0 %v804
    %4808 = vmatprep.subr.mxu0 0.0
    %4809 = vmatpush1.msra.mxu0 %v803
    %4810 = vmatprep.subr.mxu0 0.0
    %4811 = vmatpush1.msra.mxu0 %v802
    %4812 = vmatprep.subr.mxu0 0.0
    %4813 = vmatpush1.msra.mxu0 %v801
    %4814 = vmatprep.subr.mxu0 0.0
    %4815 = vmatpush1.msra.mxu0 %v800
    %4816 = vmatprep.subr.mxu0 0.0
    %4817 = vmatpush2.msra.mxu0 0.0
    %4818 = vmatprep.subr.mxu0 0.0
    %4819 = vmatpush2.msra.mxu0 0.0
    %4820 = vmatprep.subr.mxu0 0.0
    %4821 = vmatpush2.msra.mxu0 0.0
    %4822 = vmatprep.subr.mxu0 0.0
    %4823 = vmatpush2.msra.mxu0 0.0
    %4824 = vmatprep.subr.mxu0 0.0
    %4825 = vmatpush2.msra.mxu0 0.0
    %4826 = vmatprep.subr.mxu0 0.0
    %4827 = vmatpush2.msra.mxu0 0.0
    %4828 = vmatprep.subr.mxu0 0.0
    %4829 = vmatpush2.msra.mxu0 0.0
    %4830 = vmatprep.subr.mxu0 0.0
    %4831 = vmatpush2.msra.mxu0 %v919
    %4832 = vmatprep.subr.mxu0 0.0
    %4833 = vmatpush2.msra.mxu0 %v823
    %4834 = vmatprep.subr.mxu0 0.0
    %4835 = vmatpush2.msra.mxu0 %v822
    %4836 = vmatprep.subr.mxu0 0.0
    %4837 = vmatpush2.msra.mxu0 %v821
    %4838 = vmatprep.subr.mxu0 0.0
    %4839 = vmatpush2.msra.mxu0 %v820
    %4840 = vmatprep.subr.mxu0 0.0
    %4841 = vmatpush2.msra.mxu0 %v819
    %4842 = vmatprep.subr.mxu0 0.0
    %4843 = vmatpush2.msra.mxu0 %v818
    %4844 = vmatprep.subr.mxu0 0.0
    %4845 = vmatpush2.msra.mxu0 %v817
    %4846 = vmatprep.subr.mxu0 0.0
    %4847 = vmatpush2.msra.mxu0 %v816
    %4848 = vmatprep.mubr.f32.mxu0 %v4616
    %4849 = vmatmul.mubr.f32.gmra.mxu0 %v4565
    %v4850 = vpop.f32.mrf.mxu0
    %v4851 = vadd.f32 %v4721, %v4850
    %v4852 = vpop.f32.mrf.mxu0
    %4853 = vmatprep.mubr.f32.mxu0 %v4619
    %4854 = vmatmul.mubr.f32.gmra.mxu0 %v4569
    %v4855 = vpop.f32.mrf.mxu0
    %v4856 = vadd.f32 %v4726, %v4855
    %v4857 = vpop.f32.mrf.mxu0
    %4858 = vmatprep.mubr.f32.mxu0 %v4622
    %4859 = vmatmul.mubr.f32.gmra.mxu0 %v4573
    %v4860 = vpop.f32.mrf.mxu0
    %v4861 = vadd.f32 %v4731, %v4860
    %v4862 = vpop.f32.mrf.mxu0
    %4863 = vmatprep.mubr.f32.mxu0 %v4625
    %4864 = vmatmul.mubr.f32.gmra.mxu0 %v4577
    %v4865 = vpop.f32.mrf.mxu0
    %v4866 = vadd.f32 %v4736, %v4865
    %v4867 = vpop.f32.mrf.mxu0
    %4868 = vmatprep.mubr.f32.mxu0 %v4628
    %4869 = vmatmul.mubr.f32.gmra.mxu0 %v4581
    %v4870 = vpop.f32.mrf.mxu0
    %v4871 = vadd.f32 %v4741, %v4870
    %v4872 = vpop.f32.mrf.mxu0
    %4873 = vmatprep.mubr.f32.mxu0 %v4631
    %4874 = vmatmul.mubr.f32.gmra.mxu0 %v4585
    %v4875 = vpop.f32.mrf.mxu0
    %v4876 = vadd.f32 %v4746, %v4875
    %v4877 = vpop.f32.mrf.mxu0
    %4878 = vmatprep.mubr.f32.mxu0 %v4634
    %4879 = vmatmul.mubr.f32.gmra.mxu0 %v4589
    %v4880 = vpop.f32.mrf.mxu0
    %v4881 = vadd.f32 %v4751, %v4880
    %v4882 = vpop.f32.mrf.mxu0
    %4883 = vmatprep.mubr.f32.mxu0 %v4637
    %4884 = vmatmul.mubr.f32.gmra.mxu0 %v4593
    %v4885 = vpop.f32.mrf.mxu0
    %v4886 = vadd.f32 %v4756, %v4885
    %v4887 = vpop.f32.mrf.mxu0
    %4888 = vmatprep.mubr.f32.mxu0 %v4640
    %4889 = vmatmul.mubr.f32.gmra.mxu0 %v4597
    %v4890 = vpop.f32.mrf.mxu0
    %v4891 = vadd.f32 %v4761, %v4890
    %v4892 = vpop.f32.mrf.mxu0
    %4893 = vmatprep.mubr.f32.mxu0 %v4643
    %4894 = vmatmul.mubr.f32.gmra.mxu0 %v4601
    %v4895 = vpop.f32.mrf.mxu0
    %v4896 = vadd.f32 %v4766, %v4895
    %v4897 = vpop.f32.mrf.mxu0
    %4898 = vmatprep.mubr.f32.mxu0 %v4646
    %4899 = vmatmul.mubr.f32.gmra.mxu0 %v4605
    %v4900 = vpop.f32.mrf.mxu0
    %v4901 = vadd.f32 %v4771, %v4900
    %v4902 = vpop.f32.mrf.mxu0
    %4903 = vmatprep.mubr.f32.mxu0 %v4649
    %4904 = vmatmul.mubr.f32.gmra.mxu0 %v4609
    %v4905 = vpop.f32.mrf.mxu0
    %v4906 = vadd.f32 %v4776, %v4905
    %v4907 = vpop.f32.mrf.mxu0
    %4908 = vmatprep.mubr.f32.mxu0 %v4652
    %4909 = vmatmul.mubr.f32.gmra.mxu0 %v4613
    %v4910 = vpop.f32.mrf.mxu0
    %v4911 = vadd.f32 %v4781, %v4910
    %v4912 = vpop.f32.mrf.mxu0
    %4913 = vdwg.mxu0
    %s4914 = scalar_lea.vmem %s4, 112
    %v4915 = vld [vmem:[%s4914] sm:$0xff]
    %v4916 = vld [vmem:[%s4914 + $0x8] sm:$0xff]
    %v4918 = vsel %vm1538, %v4851, 0
    %v4921 = vsel %vm1538, %v4856, 0
    %v4924 = vsel %vm1538, %v4861, 0
    %v4927 = vsel %vm1538, %v4866, 0
    %v4930 = vsel %vm1538, %v4871, 0
    %v4933 = vsel %vm1538, %v4876, 0
    %v4936 = vsel %vm1538, %v4881, 0
    %v4939 = vsel %vm1538, %v4886, 0
    %v4942 = vsel %vm1538, %v4891, 0
    %v4945 = vsel %vm1538, %v4896, 0
    %v4948 = vsel %vm1538, %v4901, 0
    %v4951 = vsel %vm1538, %v4906, 0
    %v4954 = vsel %vm1538, %v4911, 0
    %4956 = vmatprep.subr.mxu0 0.0
    %4957 = vmatpush1.msra.mxu0 0.0
    %4958 = vmatprep.subr.mxu0 0.0
    %4959 = vmatpush1.msra.mxu0 0.0
    %4960 = vmatprep.subr.mxu0 0.0
    %4961 = vmatpush1.msra.mxu0 0.0
    %4962 = vmatprep.subr.mxu0 0.0
    %4963 = vmatpush1.msra.mxu0 0.0
    %4964 = vmatprep.subr.mxu0 0.0
    %4965 = vmatpush1.msra.mxu0 0.0
    %4966 = vmatprep.subr.mxu0 0.0
    %4967 = vmatpush1.msra.mxu0 0.0
    %4968 = vmatprep.subr.mxu0 0.0
    %4969 = vmatpush1.msra.mxu0 0.0
    %4970 = vmatprep.subr.mxu0 0.0
    %4971 = vmatpush1.msra.mxu0 0.0
    %4972 = vmatprep.subr.mxu0 0.0
    %4973 = vmatpush1.msra.mxu0 0.0
    %4974 = vmatprep.subr.mxu0 0.0
    %4975 = vmatpush1.msra.mxu0 0.0
    %4976 = vmatprep.subr.mxu0 0.0
    %4977 = vmatpush1.msra.mxu0 0.0
    %4978 = vmatprep.subr.mxu0 0.0
    %4979 = vmatpush1.msra.mxu0 0.0
    %4980 = vmatprep.subr.mxu0 0.0
    %4981 = vmatpush1.msra.mxu0 0.0
    %4982 = vmatprep.subr.mxu0 0.0
    %4983 = vmatpush1.msra.mxu0 0.0
    %4984 = vmatprep.subr.mxu0 0.0
    %4985 = vmatpush1.msra.mxu0 %v4916
    %4986 = vmatprep.subr.mxu0 0.0
    %4987 = vmatpush1.msra.mxu0 %v4915
    %4988 = vmatprep.subr.mxu0 0.0
    %4989 = vmatpush2.msra.mxu0 0.0
    %4990 = vmatprep.subr.mxu0 0.0
    %4991 = vmatpush2.msra.mxu0 0.0
    %4992 = vmatprep.subr.mxu0 0.0
    %4993 = vmatpush2.msra.mxu0 0.0
    %4994 = vmatprep.subr.mxu0 0.0
    %4995 = vmatpush2.msra.mxu0 0.0
    %4996 = vmatprep.subr.mxu0 0.0
    %4997 = vmatpush2.msra.mxu0 0.0
    %4998 = vmatprep.subr.mxu0 0.0
    %4999 = vmatpush2.msra.mxu0 0.0
    %5000 = vmatprep.subr.mxu0 0.0
    %5001 = vmatpush2.msra.mxu0 0.0
    %5002 = vmatprep.subr.mxu0 0.0
    %5003 = vmatpush2.msra.mxu0 0.0
    %5004 = vmatprep.subr.mxu0 0.0
    %5005 = vmatpush2.msra.mxu0 0.0
    %5006 = vmatprep.subr.mxu0 0.0
    %5007 = vmatpush2.msra.mxu0 0.0
    %5008 = vmatprep.subr.mxu0 0.0
    %5009 = vmatpush2.msra.mxu0 0.0
    %5010 = vmatprep.subr.mxu0 0.0
    %5011 = vmatpush2.msra.mxu0 0.0
    %5012 = vmatprep.subr.mxu0 0.0
    %5013 = vmatpush2.msra.mxu0 0.0
    %5014 = vmatprep.subr.mxu0 0.0
    %5015 = vmatpush2.msra.mxu0 0.0
    %5016 = vmatprep.subr.mxu0 0.0
    %5017 = vmatpush2.msra.mxu0 0.0
    %5018 = vmatprep.subr.mxu0 0.0
    %5019 = vmatpush2.msra.mxu0 0.0
    %5020 = vmatprep.mubr.f32.mxu0 0.0
    %5021 = vmatmul.mubr.f32.gmra.mxu0 %v4918
    %v5022 = vpop.f32.mrf.mxu0
    %v5023 = vadd.f32 0.0, %v5022
    %v5024 = vpop.f32.mrf.mxu0
    %5025 = vmatprep.mubr.f32.mxu0 0.0
    %5026 = vmatmul.mubr.f32.gmra.mxu0 %v4921
    %v5027 = vpop.f32.mrf.mxu0
    %v5028 = vadd.f32 0.0, %v5027
    %v5029 = vpop.f32.mrf.mxu0
    %5030 = vmatprep.mubr.f32.mxu0 0.0
    %5031 = vmatmul.mubr.f32.gmra.mxu0 %v4924
    %v5032 = vpop.f32.mrf.mxu0
    %v5033 = vadd.f32 0.0, %v5032
    %v5034 = vpop.f32.mrf.mxu0
    %5035 = vmatprep.mubr.f32.mxu0 0.0
    %5036 = vmatmul.mubr.f32.gmra.mxu0 %v4927
    %v5037 = vpop.f32.mrf.mxu0
    %v5038 = vadd.f32 0.0, %v5037
    %v5039 = vpop.f32.mrf.mxu0
    %5040 = vmatprep.mubr.f32.mxu0 0.0
    %5041 = vmatmul.mubr.f32.gmra.mxu0 %v4930
    %v5042 = vpop.f32.mrf.mxu0
    %v5043 = vadd.f32 0.0, %v5042
    %v5044 = vpop.f32.mrf.mxu0
    %5045 = vmatprep.mubr.f32.mxu0 0.0
    %5046 = vmatmul.mubr.f32.gmra.mxu0 %v4933
    %v5047 = vpop.f32.mrf.mxu0
    %v5048 = vadd.f32 0.0, %v5047
    %v5049 = vpop.f32.mrf.mxu0
    %5050 = vmatprep.mubr.f32.mxu0 0.0
    %5051 = vmatmul.mubr.f32.gmra.mxu0 %v4936
    %v5052 = vpop.f32.mrf.mxu0
    %v5053 = vadd.f32 0.0, %v5052
    %v5054 = vpop.f32.mrf.mxu0
    %5055 = vmatprep.mubr.f32.mxu0 0.0
    %5056 = vmatmul.mubr.f32.gmra.mxu0 %v4939
    %v5057 = vpop.f32.mrf.mxu0
    %v5058 = vadd.f32 0.0, %v5057
    %v5059 = vpop.f32.mrf.mxu0
    %5060 = vmatprep.mubr.f32.mxu0 0.0
    %5061 = vmatmul.mubr.f32.gmra.mxu0 %v4942
    %v5062 = vpop.f32.mrf.mxu0
    %v5063 = vadd.f32 0.0, %v5062
    %v5064 = vpop.f32.mrf.mxu0
    %5065 = vmatprep.mubr.f32.mxu0 0.0
    %5066 = vmatmul.mubr.f32.gmra.mxu0 %v4945
    %v5067 = vpop.f32.mrf.mxu0
    %v5068 = vadd.f32 0.0, %v5067
    %v5069 = vpop.f32.mrf.mxu0
    %5070 = vmatprep.mubr.f32.mxu0 0.0
    %5071 = vmatmul.mubr.f32.gmra.mxu0 %v4948
    %v5072 = vpop.f32.mrf.mxu0
    %v5073 = vadd.f32 0.0, %v5072
    %v5074 = vpop.f32.mrf.mxu0
    %5075 = vmatprep.mubr.f32.mxu0 0.0
    %5076 = vmatmul.mubr.f32.gmra.mxu0 %v4951
    %v5077 = vpop.f32.mrf.mxu0
    %v5078 = vadd.f32 0.0, %v5077
    %v5079 = vpop.f32.mrf.mxu0
    %5080 = vmatprep.mubr.f32.mxu0 0.0
    %5081 = vmatmul.mubr.f32.gmra.mxu0 %v4954
    %v5082 = vpop.f32.mrf.mxu0
    %v5083 = vadd.f32 0.0, %v5082
    %v5084 = vpop.f32.mrf.mxu0
    %5085 = vdwg.mxu0
    %v5086 = vadd.f32 %v4549, %v5023
    %v5087 = vadd.f32 %v4550, %v5028
    %v5088 = vadd.f32 %v4551, %v5033
    %v5089 = vadd.f32 %v4552, %v5038
    %v5090 = vadd.f32 %v4553, %v5043
    %v5091 = vadd.f32 %v4554, %v5048
    %v5092 = vadd.f32 %v4555, %v5053
    %v5093 = vadd.f32 %v4556, %v5058
    %v5094 = vadd.f32 %v4557, %v5063
    %v5095 = vadd.f32 %v4558, %v5068
    %v5096 = vadd.f32 %v4559, %v5073
    %v5097 = vadd.f32 %v4560, %v5078
    %v5098 = vadd.f32 %v4561, %v5083
    %s5099 = scalar_lea.vmem %s3, 3328
    %v5100 = vld [vmem:[%s5099] sm:$0xff]
    %v5101 = vld [vmem:[%s5099 + $0x8] sm:$0xff]
    %v5102 = vld [vmem:[%s5099 + $0x10] sm:$0xff]
    %v5103 = vld [vmem:[%s5099 + $0x18] sm:$0xff]
    %v5104 = vld [vmem:[%s5099 + $0x20] sm:$0xff]
    %v5105 = vld [vmem:[%s5099 + $0x28] sm:$0xff]
    %v5106 = vld [vmem:[%s5099 + $0x30] sm:$0xff]
    %v5107 = vld [vmem:[%s5099 + $0x38] sm:$0xff]
    %v5108 = vld [vmem:[%s5099 + $0x40] sm:$0xff]
    %v5109 = vld [vmem:[%s5099 + $0x48] sm:$0xff]
    %v5110 = vld [vmem:[%s5099 + $0x50] sm:$0xff]
    %v5111 = vld [vmem:[%s5099 + $0x58] sm:$0xff]
    %v5112 = vld [vmem:[%s5099 + $0x60] sm:$0xff]
    %v5113 = vld [vmem:[%s5099 + $0x68] sm:$0xff]
    %v5114 = vld [vmem:[%s5099 + $0x70] sm:$0xff]
    %v5115 = vld [vmem:[%s5099 + $0x78] sm:$0xff]
    %v5116 = vld [vmem:[%s5099 + $0x80] sm:$0xff]
    %v5117 = vld [vmem:[%s5099 + $0x88] sm:$0xff]
    %v5118 = vld [vmem:[%s5099 + $0x90] sm:$0xff]
    %v5119 = vld [vmem:[%s5099 + $0x98] sm:$0xff]
    %v5120 = vld [vmem:[%s5099 + $0xa0] sm:$0xff]
    %v5121 = vld [vmem:[%s5099 + $0xa8] sm:$0xff]
    %v5122 = vld [vmem:[%s5099 + $0xb0] sm:$0xff]
    %v5123 = vld [vmem:[%s5099 + $0xb8] sm:$0xff]
    %v5124 = vld [vmem:[%s5099 + $0xc0] sm:$0xff]
    %v5125 = vld [vmem:[%s5099 + $0xc8] sm:$0xff]
    %v5126 = vld [vmem:[%s5099 + $0xd0] sm:$0xff]
    %v5127 = vld [vmem:[%s5099 + $0xd8] sm:$0xff]
    %v5128 = vld [vmem:[%s5099 + $0xe0] sm:$0xff]
    %v5129 = vld [vmem:[%s5099 + $0xe8] sm:$0xff]
    %v5130 = vld [vmem:[%s5099 + $0xf0] sm:$0xff]
    %v5131 = vld [vmem:[%s5099 + $0xf8] sm:$0xff]
    %v5132 = vld [vmem:[%s5099 + $0x100] sm:$0xff]
    %v5133 = vld [vmem:[%s5099 + $0x108] sm:$0xff]
    %v5134 = vld [vmem:[%s5099 + $0x110] sm:$0xff]
    %v5135 = vld [vmem:[%s5099 + $0x118] sm:$0xff]
    %v5136 = vld [vmem:[%s5099 + $0x120] sm:$0xff]
    %v5137 = vld [vmem:[%s5099 + $0x128] sm:$0xff]
    %v5138 = vld [vmem:[%s5099 + $0x130] sm:$0xff]
    %v5139 = vld [vmem:[%s5099 + $0x138] sm:$0xff]
    %v5140 = vld [vmem:[%s5099 + $0x140] sm:$0xff]
    %v5141 = vld [vmem:[%s5099 + $0x148] sm:$0xff]
    %v5142 = vld [vmem:[%s5099 + $0x150] sm:$0xff]
    %v5143 = vld [vmem:[%s5099 + $0x158] sm:$0xff]
    %v5144 = vld [vmem:[%s5099 + $0x160] sm:$0xff]
    %v5145 = vld [vmem:[%s5099 + $0x168] sm:$0xff]
    %v5146 = vld [vmem:[%s5099 + $0x170] sm:$0xff]
    %v5147 = vld [vmem:[%s5099 + $0x178] sm:$0xff]
    %v5148 = vld [vmem:[%s5099 + $0x180] sm:$0x3]
    %v5149 = vld [vmem:[%s5099 + $0x188] sm:$0x3]
    %v5150 = vld [vmem:[%s5099 + $0x190] sm:$0x3]
    %v5151 = vld [vmem:[%s5099 + $0x198] sm:$0x3]
    %v5153 = vsel %vm877, %v5103, 0
    %v5156 = vsel %vm877, %v5107, 0
    %v5159 = vsel %vm877, %v5111, 0
    %v5162 = vsel %vm877, %v5115, 0
    %v5165 = vsel %vm877, %v5119, 0
    %v5168 = vsel %vm877, %v5123, 0
    %v5171 = vsel %vm877, %v5127, 0
    %v5174 = vsel %vm877, %v5131, 0
    %v5177 = vsel %vm877, %v5135, 0
    %v5180 = vsel %vm877, %v5139, 0
    %v5183 = vsel %vm877, %v5143, 0
    %v5186 = vsel %vm877, %v5147, 0
    %v5189 = vsel %vm877, %v5151, 0
    %5191 = vmatprep.subr.mxu0 0.0
    %5192 = vmatpush1.msra.mxu0 %v783
    %5193 = vmatprep.subr.mxu0 0.0
    %5194 = vmatpush1.msra.mxu0 %v782
    %5195 = vmatprep.subr.mxu0 0.0
    %5196 = vmatpush1.msra.mxu0 %v781
    %5197 = vmatprep.subr.mxu0 0.0
    %5198 = vmatpush1.msra.mxu0 %v780
    %5199 = vmatprep.subr.mxu0 0.0
    %5200 = vmatpush1.msra.mxu0 %v779
    %5201 = vmatprep.subr.mxu0 0.0
    %5202 = vmatpush1.msra.mxu0 %v778
    %5203 = vmatprep.subr.mxu0 0.0
    %5204 = vmatpush1.msra.mxu0 %v777
    %5205 = vmatprep.subr.mxu0 0.0
    %5206 = vmatpush1.msra.mxu0 %v776
    %5207 = vmatprep.subr.mxu0 0.0
    %5208 = vmatpush1.msra.mxu0 %v775
    %5209 = vmatprep.subr.mxu0 0.0
    %5210 = vmatpush1.msra.mxu0 %v774
    %5211 = vmatprep.subr.mxu0 0.0
    %5212 = vmatpush1.msra.mxu0 %v773
    %5213 = vmatprep.subr.mxu0 0.0
    %5214 = vmatpush1.msra.mxu0 %v772
    %5215 = vmatprep.subr.mxu0 0.0
    %5216 = vmatpush1.msra.mxu0 %v771
    %5217 = vmatprep.subr.mxu0 0.0
    %5218 = vmatpush1.msra.mxu0 %v770
    %5219 = vmatprep.subr.mxu0 0.0
    %5220 = vmatpush1.msra.mxu0 %v769
    %5221 = vmatprep.subr.mxu0 0.0
    %5222 = vmatpush1.msra.mxu0 %v768
    %5223 = vmatprep.subr.mxu0 0.0
    %5224 = vmatpush2.msra.mxu0 %v799
    %5225 = vmatprep.subr.mxu0 0.0
    %5226 = vmatpush2.msra.mxu0 %v798
    %5227 = vmatprep.subr.mxu0 0.0
    %5228 = vmatpush2.msra.mxu0 %v797
    %5229 = vmatprep.subr.mxu0 0.0
    %5230 = vmatpush2.msra.mxu0 %v796
    %5231 = vmatprep.subr.mxu0 0.0
    %5232 = vmatpush2.msra.mxu0 %v795
    %5233 = vmatprep.subr.mxu0 0.0
    %5234 = vmatpush2.msra.mxu0 %v794
    %5235 = vmatprep.subr.mxu0 0.0
    %5236 = vmatpush2.msra.mxu0 %v793
    %5237 = vmatprep.subr.mxu0 0.0
    %5238 = vmatpush2.msra.mxu0 %v792
    %5239 = vmatprep.subr.mxu0 0.0
    %5240 = vmatpush2.msra.mxu0 %v791
    %5241 = vmatprep.subr.mxu0 0.0
    %5242 = vmatpush2.msra.mxu0 %v790
    %5243 = vmatprep.subr.mxu0 0.0
    %5244 = vmatpush2.msra.mxu0 %v789
    %5245 = vmatprep.subr.mxu0 0.0
    %5246 = vmatpush2.msra.mxu0 %v788
    %5247 = vmatprep.subr.mxu0 0.0
    %5248 = vmatpush2.msra.mxu0 %v787
    %5249 = vmatprep.subr.mxu0 0.0
    %5250 = vmatpush2.msra.mxu0 %v786
    %5251 = vmatprep.subr.mxu0 0.0
    %5252 = vmatpush2.msra.mxu0 %v785
    %5253 = vmatprep.subr.mxu0 0.0
    %5254 = vmatpush2.msra.mxu0 %v784
    %5255 = vmatprep.mubr.f32.mxu0 %v5101
    %5256 = vmatmul.mubr.f32.gmra.mxu0 %v5100
    %v5257 = vpop.f32.mrf.mxu0
    %v5258 = vadd.f32 0.0, %v5257
    %v5259 = vpop.f32.mrf.mxu0
    %5260 = vmatprep.mubr.f32.mxu0 %v5105
    %5261 = vmatmul.mubr.f32.gmra.mxu0 %v5104
    %v5262 = vpop.f32.mrf.mxu0
    %v5263 = vadd.f32 0.0, %v5262
    %v5264 = vpop.f32.mrf.mxu0
    %5265 = vmatprep.mubr.f32.mxu0 %v5109
    %5266 = vmatmul.mubr.f32.gmra.mxu0 %v5108
    %v5267 = vpop.f32.mrf.mxu0
    %v5268 = vadd.f32 0.0, %v5267
    %v5269 = vpop.f32.mrf.mxu0
    %5270 = vmatprep.mubr.f32.mxu0 %v5113
    %5271 = vmatmul.mubr.f32.gmra.mxu0 %v5112
    %v5272 = vpop.f32.mrf.mxu0
    %v5273 = vadd.f32 0.0, %v5272
    %v5274 = vpop.f32.mrf.mxu0
    %5275 = vmatprep.mubr.f32.mxu0 %v5117
    %5276 = vmatmul.mubr.f32.gmra.mxu0 %v5116
    %v5277 = vpop.f32.mrf.mxu0
    %v5278 = vadd.f32 0.0, %v5277
    %v5279 = vpop.f32.mrf.mxu0
    %5280 = vmatprep.mubr.f32.mxu0 %v5121
    %5281 = vmatmul.mubr.f32.gmra.mxu0 %v5120
    %v5282 = vpop.f32.mrf.mxu0
    %v5283 = vadd.f32 0.0, %v5282
    %v5284 = vpop.f32.mrf.mxu0
    %5285 = vmatprep.mubr.f32.mxu0 %v5125
    %5286 = vmatmul.mubr.f32.gmra.mxu0 %v5124
    %v5287 = vpop.f32.mrf.mxu0
    %v5288 = vadd.f32 0.0, %v5287
    %v5289 = vpop.f32.mrf.mxu0
    %5290 = vmatprep.mubr.f32.mxu0 %v5129
    %5291 = vmatmul.mubr.f32.gmra.mxu0 %v5128
    %v5292 = vpop.f32.mrf.mxu0
    %v5293 = vadd.f32 0.0, %v5292
    %v5294 = vpop.f32.mrf.mxu0
    %5295 = vmatprep.mubr.f32.mxu0 %v5133
    %5296 = vmatmul.mubr.f32.gmra.mxu0 %v5132
    %v5297 = vpop.f32.mrf.mxu0
    %v5298 = vadd.f32 0.0, %v5297
    %v5299 = vpop.f32.mrf.mxu0
    %5300 = vmatprep.mubr.f32.mxu0 %v5137
    %5301 = vmatmul.mubr.f32.gmra.mxu0 %v5136
    %v5302 = vpop.f32.mrf.mxu0
    %v5303 = vadd.f32 0.0, %v5302
    %v5304 = vpop.f32.mrf.mxu0
    %5305 = vmatprep.mubr.f32.mxu0 %v5141
    %5306 = vmatmul.mubr.f32.gmra.mxu0 %v5140
    %v5307 = vpop.f32.mrf.mxu0
    %v5308 = vadd.f32 0.0, %v5307
    %v5309 = vpop.f32.mrf.mxu0
    %5310 = vmatprep.mubr.f32.mxu0 %v5145
    %5311 = vmatmul.mubr.f32.gmra.mxu0 %v5144
    %v5312 = vpop.f32.mrf.mxu0
    %v5313 = vadd.f32 0.0, %v5312
    %v5314 = vpop.f32.mrf.mxu0
    %5315 = vmatprep.mubr.f32.mxu0 %v5149
    %5316 = vmatmul.mubr.f32.gmra.mxu0 %v5148
    %v5317 = vpop.f32.mrf.mxu0
    %v5318 = vadd.f32 0.0, %v5317
    %v5319 = vpop.f32.mrf.mxu0
    %5320 = vdwg.mxu0
    %5321 = vmatprep.subr.mxu0 0.0
    %5322 = vmatpush1.msra.mxu0 %v815
    %5323 = vmatprep.subr.mxu0 0.0
    %5324 = vmatpush1.msra.mxu0 %v814
    %5325 = vmatprep.subr.mxu0 0.0
    %5326 = vmatpush1.msra.mxu0 %v813
    %5327 = vmatprep.subr.mxu0 0.0
    %5328 = vmatpush1.msra.mxu0 %v812
    %5329 = vmatprep.subr.mxu0 0.0
    %5330 = vmatpush1.msra.mxu0 %v811
    %5331 = vmatprep.subr.mxu0 0.0
    %5332 = vmatpush1.msra.mxu0 %v810
    %5333 = vmatprep.subr.mxu0 0.0
    %5334 = vmatpush1.msra.mxu0 %v809
    %5335 = vmatprep.subr.mxu0 0.0
    %5336 = vmatpush1.msra.mxu0 %v808
    %5337 = vmatprep.subr.mxu0 0.0
    %5338 = vmatpush1.msra.mxu0 %v807
    %5339 = vmatprep.subr.mxu0 0.0
    %5340 = vmatpush1.msra.mxu0 %v806
    %5341 = vmatprep.subr.mxu0 0.0
    %5342 = vmatpush1.msra.mxu0 %v805
    %5343 = vmatprep.subr.mxu0 0.0
    %5344 = vmatpush1.msra.mxu0 %v804
    %5345 = vmatprep.subr.mxu0 0.0
    %5346 = vmatpush1.msra.mxu0 %v803
    %5347 = vmatprep.subr.mxu0 0.0
    %5348 = vmatpush1.msra.mxu0 %v802
    %5349 = vmatprep.subr.mxu0 0.0
    %5350 = vmatpush1.msra.mxu0 %v801
    %5351 = vmatprep.subr.mxu0 0.0
    %5352 = vmatpush1.msra.mxu0 %v800
    %5353 = vmatprep.subr.mxu0 0.0
    %5354 = vmatpush2.msra.mxu0 0.0
    %5355 = vmatprep.subr.mxu0 0.0
    %5356 = vmatpush2.msra.mxu0 0.0
    %5357 = vmatprep.subr.mxu0 0.0
    %5358 = vmatpush2.msra.mxu0 0.0
    %5359 = vmatprep.subr.mxu0 0.0
    %5360 = vmatpush2.msra.mxu0 0.0
    %5361 = vmatprep.subr.mxu0 0.0
    %5362 = vmatpush2.msra.mxu0 0.0
    %5363 = vmatprep.subr.mxu0 0.0
    %5364 = vmatpush2.msra.mxu0 0.0
    %5365 = vmatprep.subr.mxu0 0.0
    %5366 = vmatpush2.msra.mxu0 0.0
    %5367 = vmatprep.subr.mxu0 0.0
    %5368 = vmatpush2.msra.mxu0 %v919
    %5369 = vmatprep.subr.mxu0 0.0
    %5370 = vmatpush2.msra.mxu0 %v823
    %5371 = vmatprep.subr.mxu0 0.0
    %5372 = vmatpush2.msra.mxu0 %v822
    %5373 = vmatprep.subr.mxu0 0.0
    %5374 = vmatpush2.msra.mxu0 %v821
    %5375 = vmatprep.subr.mxu0 0.0
    %5376 = vmatpush2.msra.mxu0 %v820
    %5377 = vmatprep.subr.mxu0 0.0
    %5378 = vmatpush2.msra.mxu0 %v819
    %5379 = vmatprep.subr.mxu0 0.0
    %5380 = vmatpush2.msra.mxu0 %v818
    %5381 = vmatprep.subr.mxu0 0.0
    %5382 = vmatpush2.msra.mxu0 %v817
    %5383 = vmatprep.subr.mxu0 0.0
    %5384 = vmatpush2.msra.mxu0 %v816
    %5385 = vmatprep.mubr.f32.mxu0 %v5153
    %5386 = vmatmul.mubr.f32.gmra.mxu0 %v5102
    %v5387 = vpop.f32.mrf.mxu0
    %v5388 = vadd.f32 %v5258, %v5387
    %v5389 = vpop.f32.mrf.mxu0
    %5390 = vmatprep.mubr.f32.mxu0 %v5156
    %5391 = vmatmul.mubr.f32.gmra.mxu0 %v5106
    %v5392 = vpop.f32.mrf.mxu0
    %v5393 = vadd.f32 %v5263, %v5392
    %v5394 = vpop.f32.mrf.mxu0
    %5395 = vmatprep.mubr.f32.mxu0 %v5159
    %5396 = vmatmul.mubr.f32.gmra.mxu0 %v5110
    %v5397 = vpop.f32.mrf.mxu0
    %v5398 = vadd.f32 %v5268, %v5397
    %v5399 = vpop.f32.mrf.mxu0
    %5400 = vmatprep.mubr.f32.mxu0 %v5162
    %5401 = vmatmul.mubr.f32.gmra.mxu0 %v5114
    %v5402 = vpop.f32.mrf.mxu0
    %v5403 = vadd.f32 %v5273, %v5402
    %v5404 = vpop.f32.mrf.mxu0
    %5405 = vmatprep.mubr.f32.mxu0 %v5165
    %5406 = vmatmul.mubr.f32.gmra.mxu0 %v5118
    %v5407 = vpop.f32.mrf.mxu0
    %v5408 = vadd.f32 %v5278, %v5407
    %v5409 = vpop.f32.mrf.mxu0
    %5410 = vmatprep.mubr.f32.mxu0 %v5168
    %5411 = vmatmul.mubr.f32.gmra.mxu0 %v5122
    %v5412 = vpop.f32.mrf.mxu0
    %v5413 = vadd.f32 %v5283, %v5412
    %v5414 = vpop.f32.mrf.mxu0
    %5415 = vmatprep.mubr.f32.mxu0 %v5171
    %5416 = vmatmul.mubr.f32.gmra.mxu0 %v5126
    %v5417 = vpop.f32.mrf.mxu0
    %v5418 = vadd.f32 %v5288, %v5417
    %v5419 = vpop.f32.mrf.mxu0
    %5420 = vmatprep.mubr.f32.mxu0 %v5174
    %5421 = vmatmul.mubr.f32.gmra.mxu0 %v5130
    %v5422 = vpop.f32.mrf.mxu0
    %v5423 = vadd.f32 %v5293, %v5422
    %v5424 = vpop.f32.mrf.mxu0
    %5425 = vmatprep.mubr.f32.mxu0 %v5177
    %5426 = vmatmul.mubr.f32.gmra.mxu0 %v5134
    %v5427 = vpop.f32.mrf.mxu0
    %v5428 = vadd.f32 %v5298, %v5427
    %v5429 = vpop.f32.mrf.mxu0
    %5430 = vmatprep.mubr.f32.mxu0 %v5180
    %5431 = vmatmul.mubr.f32.gmra.mxu0 %v5138
    %v5432 = vpop.f32.mrf.mxu0
    %v5433 = vadd.f32 %v5303, %v5432
    %v5434 = vpop.f32.mrf.mxu0
    %5435 = vmatprep.mubr.f32.mxu0 %v5183
    %5436 = vmatmul.mubr.f32.gmra.mxu0 %v5142
    %v5437 = vpop.f32.mrf.mxu0
    %v5438 = vadd.f32 %v5308, %v5437
    %v5439 = vpop.f32.mrf.mxu0
    %5440 = vmatprep.mubr.f32.mxu0 %v5186
    %5441 = vmatmul.mubr.f32.gmra.mxu0 %v5146
    %v5442 = vpop.f32.mrf.mxu0
    %v5443 = vadd.f32 %v5313, %v5442
    %v5444 = vpop.f32.mrf.mxu0
    %5445 = vmatprep.mubr.f32.mxu0 %v5189
    %5446 = vmatmul.mubr.f32.gmra.mxu0 %v5150
    %v5447 = vpop.f32.mrf.mxu0
    %v5448 = vadd.f32 %v5318, %v5447
    %v5449 = vpop.f32.mrf.mxu0
    %5450 = vdwg.mxu0
    %s5451 = scalar_lea.vmem %s4, 128
    %v5452 = vld [vmem:[%s5451] sm:$0xff]
    %v5453 = vld [vmem:[%s5451 + $0x8] sm:$0xff]
    %v5455 = vsel %vm1538, %v5388, 0
    %v5458 = vsel %vm1538, %v5393, 0
    %v5461 = vsel %vm1538, %v5398, 0
    %v5464 = vsel %vm1538, %v5403, 0
    %v5467 = vsel %vm1538, %v5408, 0
    %v5470 = vsel %vm1538, %v5413, 0
    %v5473 = vsel %vm1538, %v5418, 0
    %v5476 = vsel %vm1538, %v5423, 0
    %v5479 = vsel %vm1538, %v5428, 0
    %v5482 = vsel %vm1538, %v5433, 0
    %v5485 = vsel %vm1538, %v5438, 0
    %v5488 = vsel %vm1538, %v5443, 0
    %v5491 = vsel %vm1538, %v5448, 0
    %5493 = vmatprep.subr.mxu0 0.0
    %5494 = vmatpush1.msra.mxu0 0.0
    %5495 = vmatprep.subr.mxu0 0.0
    %5496 = vmatpush1.msra.mxu0 0.0
    %5497 = vmatprep.subr.mxu0 0.0
    %5498 = vmatpush1.msra.mxu0 0.0
    %5499 = vmatprep.subr.mxu0 0.0
    %5500 = vmatpush1.msra.mxu0 0.0
    %5501 = vmatprep.subr.mxu0 0.0
    %5502 = vmatpush1.msra.mxu0 0.0
    %5503 = vmatprep.subr.mxu0 0.0
    %5504 = vmatpush1.msra.mxu0 0.0
    %5505 = vmatprep.subr.mxu0 0.0
    %5506 = vmatpush1.msra.mxu0 0.0
    %5507 = vmatprep.subr.mxu0 0.0
    %5508 = vmatpush1.msra.mxu0 0.0
    %5509 = vmatprep.subr.mxu0 0.0
    %5510 = vmatpush1.msra.mxu0 0.0
    %5511 = vmatprep.subr.mxu0 0.0
    %5512 = vmatpush1.msra.mxu0 0.0
    %5513 = vmatprep.subr.mxu0 0.0
    %5514 = vmatpush1.msra.mxu0 0.0
    %5515 = vmatprep.subr.mxu0 0.0
    %5516 = vmatpush1.msra.mxu0 0.0
    %5517 = vmatprep.subr.mxu0 0.0
    %5518 = vmatpush1.msra.mxu0 0.0
    %5519 = vmatprep.subr.mxu0 0.0
    %5520 = vmatpush1.msra.mxu0 0.0
    %5521 = vmatprep.subr.mxu0 0.0
    %5522 = vmatpush1.msra.mxu0 %v5453
    %5523 = vmatprep.subr.mxu0 0.0
    %5524 = vmatpush1.msra.mxu0 %v5452
    %5525 = vmatprep.subr.mxu0 0.0
    %5526 = vmatpush2.msra.mxu0 0.0
    %5527 = vmatprep.subr.mxu0 0.0
    %5528 = vmatpush2.msra.mxu0 0.0
    %5529 = vmatprep.subr.mxu0 0.0
    %5530 = vmatpush2.msra.mxu0 0.0
    %5531 = vmatprep.subr.mxu0 0.0
    %5532 = vmatpush2.msra.mxu0 0.0
    %5533 = vmatprep.subr.mxu0 0.0
    %5534 = vmatpush2.msra.mxu0 0.0
    %5535 = vmatprep.subr.mxu0 0.0
    %5536 = vmatpush2.msra.mxu0 0.0
    %5537 = vmatprep.subr.mxu0 0.0
    %5538 = vmatpush2.msra.mxu0 0.0
    %5539 = vmatprep.subr.mxu0 0.0
    %5540 = vmatpush2.msra.mxu0 0.0
    %5541 = vmatprep.subr.mxu0 0.0
    %5542 = vmatpush2.msra.mxu0 0.0
    %5543 = vmatprep.subr.mxu0 0.0
    %5544 = vmatpush2.msra.mxu0 0.0
    %5545 = vmatprep.subr.mxu0 0.0
    %5546 = vmatpush2.msra.mxu0 0.0
    %5547 = vmatprep.subr.mxu0 0.0
    %5548 = vmatpush2.msra.mxu0 0.0
    %5549 = vmatprep.subr.mxu0 0.0
    %5550 = vmatpush2.msra.mxu0 0.0
    %5551 = vmatprep.subr.mxu0 0.0
    %5552 = vmatpush2.msra.mxu0 0.0
    %5553 = vmatprep.subr.mxu0 0.0
    %5554 = vmatpush2.msra.mxu0 0.0
    %5555 = vmatprep.subr.mxu0 0.0
    %5556 = vmatpush2.msra.mxu0 0.0
    %5557 = vmatprep.mubr.f32.mxu0 0.0
    %5558 = vmatmul.mubr.f32.gmra.mxu0 %v5455
    %v5559 = vpop.f32.mrf.mxu0
    %v5560 = vadd.f32 0.0, %v5559
    %v5561 = vpop.f32.mrf.mxu0
    %5562 = vmatprep.mubr.f32.mxu0 0.0
    %5563 = vmatmul.mubr.f32.gmra.mxu0 %v5458
    %v5564 = vpop.f32.mrf.mxu0
    %v5565 = vadd.f32 0.0, %v5564
    %v5566 = vpop.f32.mrf.mxu0
    %5567 = vmatprep.mubr.f32.mxu0 0.0
    %5568 = vmatmul.mubr.f32.gmra.mxu0 %v5461
    %v5569 = vpop.f32.mrf.mxu0
    %v5570 = vadd.f32 0.0, %v5569
    %v5571 = vpop.f32.mrf.mxu0
    %5572 = vmatprep.mubr.f32.mxu0 0.0
    %5573 = vmatmul.mubr.f32.gmra.mxu0 %v5464
    %v5574 = vpop.f32.mrf.mxu0
    %v5575 = vadd.f32 0.0, %v5574
    %v5576 = vpop.f32.mrf.mxu0
    %5577 = vmatprep.mubr.f32.mxu0 0.0
    %5578 = vmatmul.mubr.f32.gmra.mxu0 %v5467
    %v5579 = vpop.f32.mrf.mxu0
    %v5580 = vadd.f32 0.0, %v5579
    %v5581 = vpop.f32.mrf.mxu0
    %5582 = vmatprep.mubr.f32.mxu0 0.0
    %5583 = vmatmul.mubr.f32.gmra.mxu0 %v5470
    %v5584 = vpop.f32.mrf.mxu0
    %v5585 = vadd.f32 0.0, %v5584
    %v5586 = vpop.f32.mrf.mxu0
    %5587 = vmatprep.mubr.f32.mxu0 0.0
    %5588 = vmatmul.mubr.f32.gmra.mxu0 %v5473
    %v5589 = vpop.f32.mrf.mxu0
    %v5590 = vadd.f32 0.0, %v5589
    %v5591 = vpop.f32.mrf.mxu0
    %5592 = vmatprep.mubr.f32.mxu0 0.0
    %5593 = vmatmul.mubr.f32.gmra.mxu0 %v5476
    %v5594 = vpop.f32.mrf.mxu0
    %v5595 = vadd.f32 0.0, %v5594
    %v5596 = vpop.f32.mrf.mxu0
    %5597 = vmatprep.mubr.f32.mxu0 0.0
    %5598 = vmatmul.mubr.f32.gmra.mxu0 %v5479
    %v5599 = vpop.f32.mrf.mxu0
    %v5600 = vadd.f32 0.0, %v5599
    %v5601 = vpop.f32.mrf.mxu0
    %5602 = vmatprep.mubr.f32.mxu0 0.0
    %5603 = vmatmul.mubr.f32.gmra.mxu0 %v5482
    %v5604 = vpop.f32.mrf.mxu0
    %v5605 = vadd.f32 0.0, %v5604
    %v5606 = vpop.f32.mrf.mxu0
    %5607 = vmatprep.mubr.f32.mxu0 0.0
    %5608 = vmatmul.mubr.f32.gmra.mxu0 %v5485
    %v5609 = vpop.f32.mrf.mxu0
    %v5610 = vadd.f32 0.0, %v5609
    %v5611 = vpop.f32.mrf.mxu0
    %5612 = vmatprep.mubr.f32.mxu0 0.0
    %5613 = vmatmul.mubr.f32.gmra.mxu0 %v5488
    %v5614 = vpop.f32.mrf.mxu0
    %v5615 = vadd.f32 0.0, %v5614
    %v5616 = vpop.f32.mrf.mxu0
    %5617 = vmatprep.mubr.f32.mxu0 0.0
    %5618 = vmatmul.mubr.f32.gmra.mxu0 %v5491
    %v5619 = vpop.f32.mrf.mxu0
    %v5620 = vadd.f32 0.0, %v5619
    %v5621 = vpop.f32.mrf.mxu0
    %5622 = vdwg.mxu0
    %v5623 = vadd.f32 %v5086, %v5560
    %v5624 = vadd.f32 %v5087, %v5565
    %v5625 = vadd.f32 %v5088, %v5570
    %v5626 = vadd.f32 %v5089, %v5575
    %v5627 = vadd.f32 %v5090, %v5580
    %v5628 = vadd.f32 %v5091, %v5585
    %v5629 = vadd.f32 %v5092, %v5590
    %v5630 = vadd.f32 %v5093, %v5595
    %v5631 = vadd.f32 %v5094, %v5600
    %v5632 = vadd.f32 %v5095, %v5605
    %v5633 = vadd.f32 %v5096, %v5610
    %v5634 = vadd.f32 %v5097, %v5615
    %v5635 = vadd.f32 %v5098, %v5620
    %v5636 = vld [vmem:[%s5] sm:$0x1]
    %v5638 = vlaneseq
    %v5639 = vshrl.u32 %v5638, 7
    %v5640 = vsub.s32 0, %v5639
    %v5641 = vrot.slane %v5636, %v5640
    %v5643 = vadd.f32 %v5623, %v5641
    %v5644 = vadd.f32 %v5624, %v5641
    %v5645 = vadd.f32 %v5625, %v5641
    %v5646 = vadd.f32 %v5626, %v5641
    %v5647 = vadd.f32 %v5627, %v5641
    %v5648 = vadd.f32 %v5628, %v5641
    %v5649 = vadd.f32 %v5629, %v5641
    %v5650 = vadd.f32 %v5630, %v5641
    %v5651 = vadd.f32 %v5631, %v5641
    %v5652 = vadd.f32 %v5632, %v5641
    %v5653 = vadd.f32 %v5633, %v5641
    %v5654 = vadd.f32 %v5634, %v5641
    %v5655 = vadd.f32 %v5635, %v5641
    %v5656 = vsel %vm1538, %v5643, 0.0
    %v5657 = vsel %vm1538, %v5644, 0.0
    %v5658 = vadd.f32 %v5656, %v5657
    %v5659 = vsel %vm1538, %v5645, 0.0
    %v5660 = vadd.f32 %v5658, %v5659
    %v5661 = vsel %vm1538, %v5646, 0.0
    %v5662 = vadd.f32 %v5660, %v5661
    %v5663 = vsel %vm1538, %v5647, 0.0
    %v5664 = vadd.f32 %v5662, %v5663
    %v5665 = vsel %vm1538, %v5648, 0.0
    %v5666 = vadd.f32 %v5664, %v5665
    %v5667 = vsel %vm1538, %v5649, 0.0
    %v5668 = vadd.f32 %v5666, %v5667
    %v5669 = vsel %vm1538, %v5650, 0.0
    %v5670 = vadd.f32 %v5668, %v5669
    %v5671 = vsel %vm1538, %v5651, 0.0
    %v5672 = vadd.f32 %v5670, %v5671
    %v5673 = vsel %vm1538, %v5652, 0.0
    %v5674 = vadd.f32 %v5672, %v5673
    %v5675 = vsel %vm1538, %v5653, 0.0
    %v5676 = vadd.f32 %v5674, %v5675
    %v5677 = vsel %vm1538, %v5654, 0.0
    %v5678 = vadd.f32 %v5676, %v5677
    %vm5679 = vcmask 123904
    %v5680 = vsel %vm5679, %v5655, 0.0
    %v5681 = vadd.f32 %v5678, %v5680
    %v5682 = vrot.slane %v5681, 4
    %v5683 = vadd.f32 %v5681, %v5682
    %v5684 = vrot.slane %v5683, 2
    %v5685 = vadd.f32 %v5683, %v5684
    %v5686 = vrot.slane %v5685, 1
    %v5687 = vadd.f32 %v5685, %v5686
    %v5688 = vrcp.pop 98.0
    %v5689 = vmul.f32 %v5687, %v5688
    %v5690 = vsub.f32 %v5643, %v5689
    %v5691 = vsub.f32 %v5644, %v5689
    %v5692 = vsub.f32 %v5645, %v5689
    %v5693 = vsub.f32 %v5646, %v5689
    %v5694 = vsub.f32 %v5647, %v5689
    %v5695 = vsub.f32 %v5648, %v5689
    %v5696 = vsub.f32 %v5649, %v5689
    %v5697 = vsub.f32 %v5650, %v5689
    %v5698 = vsub.f32 %v5651, %v5689
    %v5699 = vsub.f32 %v5652, %v5689
    %v5700 = vsub.f32 %v5653, %v5689
    %v5701 = vsub.f32 %v5654, %v5689
    %v5702 = vsub.f32 %v5655, %v5689
    %v5703 = vmul.f32 %v5690, %v5690
    %v5704 = vmul.f32 %v5691, %v5691
    %v5705 = vmul.f32 %v5692, %v5692
    %v5706 = vmul.f32 %v5693, %v5693
    %v5707 = vmul.f32 %v5694, %v5694
    %v5708 = vmul.f32 %v5695, %v5695
    %v5709 = vmul.f32 %v5696, %v5696
    %v5710 = vmul.f32 %v5697, %v5697
    %v5711 = vmul.f32 %v5698, %v5698
    %v5712 = vmul.f32 %v5699, %v5699
    %v5713 = vmul.f32 %v5700, %v5700
    %v5714 = vmul.f32 %v5701, %v5701
    %v5715 = vmul.f32 %v5702, %v5702
    %v5716 = vsel %vm1538, %v5703, 0.0
    %v5717 = vsel %vm1538, %v5704, 0.0
    %v5718 = vadd.f32 %v5716, %v5717
    %v5719 = vsel %vm1538, %v5705, 0.0
    %v5720 = vadd.f32 %v5718, %v5719
    %v5721 = vsel %vm1538, %v5706, 0.0
    %v5722 = vadd.f32 %v5720, %v5721
    %v5723 = vsel %vm1538, %v5707, 0.0
    %v5724 = vadd.f32 %v5722, %v5723
    %v5725 = vsel %vm1538, %v5708, 0.0
    %v5726 = vadd.f32 %v5724, %v5725
    %v5727 = vsel %vm1538, %v5709, 0.0
    %v5728 = vadd.f32 %v5726, %v5727
    %v5729 = vsel %vm1538, %v5710, 0.0
    %v5730 = vadd.f32 %v5728, %v5729
    %v5731 = vsel %vm1538, %v5711, 0.0
    %v5732 = vadd.f32 %v5730, %v5731
    %v5733 = vsel %vm1538, %v5712, 0.0
    %v5734 = vadd.f32 %v5732, %v5733
    %v5735 = vsel %vm1538, %v5713, 0.0
    %v5736 = vadd.f32 %v5734, %v5735
    %v5737 = vsel %vm1538, %v5714, 0.0
    %v5738 = vadd.f32 %v5736, %v5737
    %v5739 = vsel %vm5679, %v5715, 0.0
    %v5740 = vadd.f32 %v5738, %v5739
    %v5741 = vrot.slane %v5740, 4
    %v5742 = vadd.f32 %v5740, %v5741
    %v5743 = vrot.slane %v5742, 2
    %v5744 = vadd.f32 %v5742, %v5743
    %v5745 = vrot.slane %v5744, 1
    %v5746 = vadd.f32 %v5744, %v5745
    %v5747 = vmul.f32 %v5746, %v5688
    %v5748 = vld [vmem:[%s6] sm:$0x1]
    %v5749 = vadd.f32 %v5747, 1e-05
    %v5750 = vrsqrt.pop %v5749
    %v5751 = vmul.f32 %v5690, %v5750
    %v5752 = vmul.f32 %v5691, %v5750
    %v5753 = vmul.f32 %v5692, %v5750
    %v5754 = vmul.f32 %v5693, %v5750
    %v5755 = vmul.f32 %v5694, %v5750
    %v5756 = vmul.f32 %v5695, %v5750
    %v5757 = vmul.f32 %v5696, %v5750
    %v5758 = vmul.f32 %v5697, %v5750
    %v5759 = vmul.f32 %v5698, %v5750
    %v5760 = vmul.f32 %v5699, %v5750
    %v5761 = vmul.f32 %v5700, %v5750
    %v5762 = vmul.f32 %v5701, %v5750
    %v5763 = vmul.f32 %v5702, %v5750
    %v5765 = vlaneseq
    %v5766 = vshrl.u32 %v5765, 7
    %v5767 = vsub.s32 0, %v5766
    %v5768 = vrot.slane %v5748, %v5767
    %v5770 = vmul.f32 %v5768, %v5751
    %v5771 = vmul.f32 %v5768, %v5752
    %v5772 = vmul.f32 %v5768, %v5753
    %v5773 = vmul.f32 %v5768, %v5754
    %v5774 = vmul.f32 %v5768, %v5755
    %v5775 = vmul.f32 %v5768, %v5756
    %v5776 = vmul.f32 %v5768, %v5757
    %v5777 = vmul.f32 %v5768, %v5758
    %v5778 = vmul.f32 %v5768, %v5759
    %v5779 = vmul.f32 %v5768, %v5760
    %v5780 = vmul.f32 %v5768, %v5761
    %v5781 = vmul.f32 %v5768, %v5762
    %v5782 = vmul.f32 %v5768, %v5763
    %v5783 = vld [vmem:[%s7] sm:$0x1]
    %v5785 = vlaneseq
    %v5786 = vshrl.u32 %v5785, 7
    %v5787 = vsub.s32 0, %v5786
    %v5788 = vrot.slane %v5783, %v5787
    %v5790 = vadd.f32 %v5770, %v5788
    %v5791 = vadd.f32 %v5771, %v5788
    %v5792 = vadd.f32 %v5772, %v5788
    %v5793 = vadd.f32 %v5773, %v5788
    %v5794 = vadd.f32 %v5774, %v5788
    %v5795 = vadd.f32 %v5775, %v5788
    %v5796 = vadd.f32 %v5776, %v5788
    %v5797 = vadd.f32 %v5777, %v5788
    %v5798 = vadd.f32 %v5778, %v5788
    %v5799 = vadd.f32 %v5779, %v5788
    %v5800 = vadd.f32 %v5780, %v5788
    %v5801 = vadd.f32 %v5781, %v5788
    %v5802 = vadd.f32 %v5782, %v5788
    %vm5803 = vcmp.ge.f32.partialorder %v5790, 0.0
    %vm5804 = vcmp.ge.f32.partialorder %v5791, 0.0
    %vm5805 = vcmp.ge.f32.partialorder %v5792, 0.0
    %vm5806 = vcmp.ge.f32.partialorder %v5793, 0.0
    %vm5807 = vcmp.ge.f32.partialorder %v5794, 0.0
    %vm5808 = vcmp.ge.f32.partialorder %v5795, 0.0
    %vm5809 = vcmp.ge.f32.partialorder %v5796, 0.0
    %vm5810 = vcmp.ge.f32.partialorder %v5797, 0.0
    %vm5811 = vcmp.ge.f32.partialorder %v5798, 0.0
    %vm5812 = vcmp.ge.f32.partialorder %v5799, 0.0
    %vm5813 = vcmp.ge.f32.partialorder %v5800, 0.0
    %vm5814 = vcmp.ge.f32.partialorder %v5801, 0.0
    %vm5815 = vcmp.ge.f32.partialorder %v5802, 0.0
    %v5816 = vmul.f32 %v5790, 0.2
    %v5817 = vmul.f32 %v5791, 0.2
    %v5818 = vmul.f32 %v5792, 0.2
    %v5819 = vmul.f32 %v5793, 0.2
    %v5820 = vmul.f32 %v5794, 0.2
    %v5821 = vmul.f32 %v5795, 0.2
    %v5822 = vmul.f32 %v5796, 0.2
    %v5823 = vmul.f32 %v5797, 0.2
    %v5824 = vmul.f32 %v5798, 0.2
    %v5825 = vmul.f32 %v5799, 0.2
    %v5826 = vmul.f32 %v5800, 0.2
    %v5827 = vmul.f32 %v5801, 0.2
    %v5828 = vmul.f32 %v5802, 0.2
    %v5829 = vsel %vm5803, %v5790, %v5816
    %v5830 = vsel %vm5804, %v5791, %v5817
    %v5831 = vsel %vm5805, %v5792, %v5818
    %v5832 = vsel %vm5806, %v5793, %v5819
    %v5833 = vsel %vm5807, %v5794, %v5820
    %v5834 = vsel %vm5808, %v5795, %v5821
    %v5835 = vsel %vm5809, %v5796, %v5822
    %v5836 = vsel %vm5810, %v5797, %v5823
    %v5837 = vsel %vm5811, %v5798, %v5824
    %v5838 = vsel %vm5812, %v5799, %v5825
    %v5839 = vsel %vm5813, %v5800, %v5826
    %v5840 = vsel %vm5814, %v5801, %v5827
    %v5841 = vsel %vm5815, %v5802, %v5828
    %5842 = vst.msk [vmem:[#allocation2] sm:$0xff] %vm1538, %v5829
    %5843 = vst.msk [vmem:[#allocation2 + $0x8] sm:$0xff] %vm1538, %v5830
    %5844 = vst.msk [vmem:[#allocation2 + $0x10] sm:$0xff] %vm1538, %v5831
    %5845 = vst.msk [vmem:[#allocation2 + $0x18] sm:$0xff] %vm1538, %v5832
    %5846 = vst.msk [vmem:[#allocation2 + $0x20] sm:$0xff] %vm1538, %v5833
    %5847 = vst.msk [vmem:[#allocation2 + $0x28] sm:$0xff] %vm1538, %v5834
    %5848 = vst.msk [vmem:[#allocation2 + $0x30] sm:$0xff] %vm1538, %v5835
    %5849 = vst.msk [vmem:[#allocation2 + $0x38] sm:$0xff] %vm1538, %v5836
    %5850 = vst.msk [vmem:[#allocation2 + $0x40] sm:$0xff] %vm1538, %v5837
    %5851 = vst.msk [vmem:[#allocation2 + $0x48] sm:$0xff] %vm1538, %v5838
    %5852 = vst.msk [vmem:[#allocation2 + $0x50] sm:$0xff] %vm1538, %v5839
    %5853 = vst.msk [vmem:[#allocation2 + $0x58] sm:$0xff] %vm1538, %v5840
    %5854 = vst.msk [vmem:[#allocation2 + $0x60] sm:$0x3] %vm5679, %v5841
    %v5855 = vld [vmem:[#allocation2] sm:$0x3]
    %v5856 = vld [vmem:[%s8] sm:$0xff]
    %v5857 = vld [vmem:[%s8 + $0x8] sm:$0xff]
    %v5858 = vld [vmem:[%s8 + $0x10] sm:$0xff]
    %v5859 = vld [vmem:[%s8 + $0x18] sm:$0xff]
    %v5860 = vld [vmem:[#allocation2 + $0x2] sm:$0x3]
    %s5861 = scalar_lea.vmem %s8, 32
    %v5862 = vld [vmem:[%s5861] sm:$0xff]
    %v5863 = vld [vmem:[%s5861 + $0x8] sm:$0xff]
    %v5864 = vld [vmem:[%s5861 + $0x10] sm:$0xff]
    %v5865 = vld [vmem:[%s5861 + $0x18] sm:$0xff]
    %v5867 = vsel %vm1538, %v5860, 0
    %5869 = vmatprep.subr.mxu0 0.0
    %5870 = vmatpush1.msra.mxu0 0.0
    %5871 = vmatprep.subr.mxu0 0.0
    %5872 = vmatpush1.msra.mxu0 0.0
    %5873 = vmatprep.subr.mxu0 0.0
    %5874 = vmatpush1.msra.mxu0 0.0
    %5875 = vmatprep.subr.mxu0 0.0
    %5876 = vmatpush1.msra.mxu0 0.0
    %5877 = vmatprep.subr.mxu0 0.0
    %5878 = vmatpush1.msra.mxu0 0.0
    %5879 = vmatprep.subr.mxu0 0.0
    %5880 = vmatpush1.msra.mxu0 0.0
    %5881 = vmatprep.subr.mxu0 0.0
    %5882 = vmatpush1.msra.mxu0 0.0
    %5883 = vmatprep.subr.mxu0 0.0
    %5884 = vmatpush1.msra.mxu0 0.0
    %5885 = vmatprep.subr.mxu0 0.0
    %5886 = vmatpush1.msra.mxu0 0.0
    %5887 = vmatprep.subr.mxu0 0.0
    %5888 = vmatpush1.msra.mxu0 0.0
    %5889 = vmatprep.subr.mxu0 0.0
    %5890 = vmatpush1.msra.mxu0 0.0
    %5891 = vmatprep.subr.mxu0 0.0
    %5892 = vmatpush1.msra.mxu0 0.0
    %5893 = vmatprep.subr.mxu0 0.0
    %5894 = vmatpush1.msra.mxu0 0.0
    %5895 = vmatprep.subr.mxu0 0.0
    %5896 = vmatpush1.msra.mxu0 0.0
    %5897 = vmatprep.subr.mxu0 %v5865
    %5898 = vmatpush1.msra.mxu0 %v5864
    %5899 = vmatprep.subr.mxu0 %v5863
    %5900 = vmatpush1.msra.mxu0 %v5862
    %5901 = vmatprep.subr.mxu0 0.0
    %5902 = vmatpush2.msra.mxu0 0.0
    %5903 = vmatprep.subr.mxu0 0.0
    %5904 = vmatpush2.msra.mxu0 0.0
    %5905 = vmatprep.subr.mxu0 0.0
    %5906 = vmatpush2.msra.mxu0 0.0
    %5907 = vmatprep.subr.mxu0 0.0
    %5908 = vmatpush2.msra.mxu0 0.0
    %5909 = vmatprep.subr.mxu0 0.0
    %5910 = vmatpush2.msra.mxu0 0.0
    %5911 = vmatprep.subr.mxu0 0.0
    %5912 = vmatpush2.msra.mxu0 0.0
    %5913 = vmatprep.subr.mxu0 0.0
    %5914 = vmatpush2.msra.mxu0 0.0
    %5915 = vmatprep.subr.mxu0 0.0
    %5916 = vmatpush2.msra.mxu0 0.0
    %5917 = vmatprep.subr.mxu0 0.0
    %5918 = vmatpush2.msra.mxu0 0.0
    %5919 = vmatprep.subr.mxu0 0.0
    %5920 = vmatpush2.msra.mxu0 0.0
    %5921 = vmatprep.subr.mxu0 0.0
    %5922 = vmatpush2.msra.mxu0 0.0
    %5923 = vmatprep.subr.mxu0 0.0
    %5924 = vmatpush2.msra.mxu0 0.0
    %5925 = vmatprep.subr.mxu0 0.0
    %5926 = vmatpush2.msra.mxu0 0.0
    %5927 = vmatprep.subr.mxu0 0.0
    %5928 = vmatpush2.msra.mxu0 0.0
    %5929 = vmatprep.subr.mxu0 0.0
    %5930 = vmatpush2.msra.mxu0 0.0
    %5931 = vmatprep.subr.mxu0 0.0
    %5932 = vmatpush2.msra.mxu0 0.0
    %5933 = vmatprep.mubr.f32.mxu0 0.0
    %5934 = vmatmul.mubr.f32.gmra.mxu0 %v5867
    %v5935 = vpop.f32.mrf.mxu0
    %v5936 = vadd.f32 0.0, %v5935
    %v5937 = vpop.f32.mrf.mxu0
    %v5938 = vadd.f32 0.0, %v5937
    %5939 = vdwg.mxu0
    %v5941 = vsel %vm1538, %v5855, 0
    %5943 = vmatprep.subr.mxu0 0.0
    %5944 = vmatpush1.msra.mxu0 0.0
    %5945 = vmatprep.subr.mxu0 0.0
    %5946 = vmatpush1.msra.mxu0 0.0
    %5947 = vmatprep.subr.mxu0 0.0
    %5948 = vmatpush1.msra.mxu0 0.0
    %5949 = vmatprep.subr.mxu0 0.0
    %5950 = vmatpush1.msra.mxu0 0.0
    %5951 = vmatprep.subr.mxu0 0.0
    %5952 = vmatpush1.msra.mxu0 0.0
    %5953 = vmatprep.subr.mxu0 0.0
    %5954 = vmatpush1.msra.mxu0 0.0
    %5955 = vmatprep.subr.mxu0 0.0
    %5956 = vmatpush1.msra.mxu0 0.0
    %5957 = vmatprep.subr.mxu0 0.0
    %5958 = vmatpush1.msra.mxu0 0.0
    %5959 = vmatprep.subr.mxu0 0.0
    %5960 = vmatpush1.msra.mxu0 0.0
    %5961 = vmatprep.subr.mxu0 0.0
    %5962 = vmatpush1.msra.mxu0 0.0
    %5963 = vmatprep.subr.mxu0 0.0
    %5964 = vmatpush1.msra.mxu0 0.0
    %5965 = vmatprep.subr.mxu0 0.0
    %5966 = vmatpush1.msra.mxu0 0.0
    %5967 = vmatprep.subr.mxu0 0.0
    %5968 = vmatpush1.msra.mxu0 0.0
    %5969 = vmatprep.subr.mxu0 0.0
    %5970 = vmatpush1.msra.mxu0 0.0
    %5971 = vmatprep.subr.mxu0 %v5859
    %5972 = vmatpush1.msra.mxu0 %v5858
    %5973 = vmatprep.subr.mxu0 %v5857
    %5974 = vmatpush1.msra.mxu0 %v5856
    %5975 = vmatprep.subr.mxu0 0.0
    %5976 = vmatpush2.msra.mxu0 0.0
    %5977 = vmatprep.subr.mxu0 0.0
    %5978 = vmatpush2.msra.mxu0 0.0
    %5979 = vmatprep.subr.mxu0 0.0
    %5980 = vmatpush2.msra.mxu0 0.0
    %5981 = vmatprep.subr.mxu0 0.0
    %5982 = vmatpush2.msra.mxu0 0.0
    %5983 = vmatprep.subr.mxu0 0.0
    %5984 = vmatpush2.msra.mxu0 0.0
    %5985 = vmatprep.subr.mxu0 0.0
    %5986 = vmatpush2.msra.mxu0 0.0
    %5987 = vmatprep.subr.mxu0 0.0
    %5988 = vmatpush2.msra.mxu0 0.0
    %5989 = vmatprep.subr.mxu0 0.0
    %5990 = vmatpush2.msra.mxu0 0.0
    %5991 = vmatprep.subr.mxu0 0.0
    %5992 = vmatpush2.msra.mxu0 0.0
    %5993 = vmatprep.subr.mxu0 0.0
    %5994 = vmatpush2.msra.mxu0 0.0
    %5995 = vmatprep.subr.mxu0 0.0
    %5996 = vmatpush2.msra.mxu0 0.0
    %5997 = vmatprep.subr.mxu0 0.0
    %5998 = vmatpush2.msra.mxu0 0.0
    %5999 = vmatprep.subr.mxu0 0.0
    %6000 = vmatpush2.msra.mxu0 0.0
    %6001 = vmatprep.subr.mxu0 0.0
    %6002 = vmatpush2.msra.mxu0 0.0
    %6003 = vmatprep.subr.mxu0 0.0
    %6004 = vmatpush2.msra.mxu0 0.0
    %6005 = vmatprep.subr.mxu0 0.0
    %6006 = vmatpush2.msra.mxu0 0.0
    %6007 = vmatprep.mubr.f32.mxu0 0.0
    %6008 = vmatmul.mubr.f32.gmra.mxu0 %v5941
    %v6009 = vpop.f32.mrf.mxu0
    %v6010 = vadd.f32 %v5936, %v6009
    %v6011 = vpop.f32.mrf.mxu0
    %v6012 = vadd.f32 %v5938, %v6011
    %6013 = vdwg.mxu0
    %v6014 = vld [vmem:[#allocation2 + $0x4] sm:$0x3]
    %s6015 = scalar_lea.vmem %s8, 64
    %v6016 = vld [vmem:[%s6015] sm:$0xff]
    %v6017 = vld [vmem:[%s6015 + $0x8] sm:$0xff]
    %v6018 = vld [vmem:[%s6015 + $0x10] sm:$0xff]
    %v6019 = vld [vmem:[%s6015 + $0x18] sm:$0xff]
    %v6021 = vsel %vm1538, %v6014, 0
    %6023 = vmatprep.subr.mxu0 0.0
    %6024 = vmatpush1.msra.mxu0 0.0
    %6025 = vmatprep.subr.mxu0 0.0
    %6026 = vmatpush1.msra.mxu0 0.0
    %6027 = vmatprep.subr.mxu0 0.0
    %6028 = vmatpush1.msra.mxu0 0.0
    %6029 = vmatprep.subr.mxu0 0.0
    %6030 = vmatpush1.msra.mxu0 0.0
    %6031 = vmatprep.subr.mxu0 0.0
    %6032 = vmatpush1.msra.mxu0 0.0
    %6033 = vmatprep.subr.mxu0 0.0
    %6034 = vmatpush1.msra.mxu0 0.0
    %6035 = vmatprep.subr.mxu0 0.0
    %6036 = vmatpush1.msra.mxu0 0.0
    %6037 = vmatprep.subr.mxu0 0.0
    %6038 = vmatpush1.msra.mxu0 0.0
    %6039 = vmatprep.subr.mxu0 0.0
    %6040 = vmatpush1.msra.mxu0 0.0
    %6041 = vmatprep.subr.mxu0 0.0
    %6042 = vmatpush1.msra.mxu0 0.0
    %6043 = vmatprep.subr.mxu0 0.0
    %6044 = vmatpush1.msra.mxu0 0.0
    %6045 = vmatprep.subr.mxu0 0.0
    %6046 = vmatpush1.msra.mxu0 0.0
    %6047 = vmatprep.subr.mxu0 0.0
    %6048 = vmatpush1.msra.mxu0 0.0
    %6049 = vmatprep.subr.mxu0 0.0
    %6050 = vmatpush1.msra.mxu0 0.0
    %6051 = vmatprep.subr.mxu0 %v6019
    %6052 = vmatpush1.msra.mxu0 %v6018
    %6053 = vmatprep.subr.mxu0 %v6017
    %6054 = vmatpush1.msra.mxu0 %v6016
    %6055 = vmatprep.subr.mxu0 0.0
    %6056 = vmatpush2.msra.mxu0 0.0
    %6057 = vmatprep.subr.mxu0 0.0
    %6058 = vmatpush2.msra.mxu0 0.0
    %6059 = vmatprep.subr.mxu0 0.0
    %6060 = vmatpush2.msra.mxu0 0.0
    %6061 = vmatprep.subr.mxu0 0.0
    %6062 = vmatpush2.msra.mxu0 0.0
    %6063 = vmatprep.subr.mxu0 0.0
    %6064 = vmatpush2.msra.mxu0 0.0
    %6065 = vmatprep.subr.mxu0 0.0
    %6066 = vmatpush2.msra.mxu0 0.0
    %6067 = vmatprep.subr.mxu0 0.0
    %6068 = vmatpush2.msra.mxu0 0.0
    %6069 = vmatprep.subr.mxu0 0.0
    %6070 = vmatpush2.msra.mxu0 0.0
    %6071 = vmatprep.subr.mxu0 0.0
    %6072 = vmatpush2.msra.mxu0 0.0
    %6073 = vmatprep.subr.mxu0 0.0
    %6074 = vmatpush2.msra.mxu0 0.0
    %6075 = vmatprep.subr.mxu0 0.0
    %6076 = vmatpush2.msra.mxu0 0.0
    %6077 = vmatprep.subr.mxu0 0.0
    %6078 = vmatpush2.msra.mxu0 0.0
    %6079 = vmatprep.subr.mxu0 0.0
    %6080 = vmatpush2.msra.mxu0 0.0
    %6081 = vmatprep.subr.mxu0 0.0
    %6082 = vmatpush2.msra.mxu0 0.0
    %6083 = vmatprep.subr.mxu0 0.0
    %6084 = vmatpush2.msra.mxu0 0.0
    %6085 = vmatprep.subr.mxu0 0.0
    %6086 = vmatpush2.msra.mxu0 0.0
    %6087 = vmatprep.mubr.f32.mxu0 0.0
    %6088 = vmatmul.mubr.f32.gmra.mxu0 %v6021
    %v6089 = vpop.f32.mrf.mxu0
    %v6090 = vadd.f32 0.0, %v6089
    %v6091 = vpop.f32.mrf.mxu0
    %v6092 = vadd.f32 0.0, %v6091
    %6093 = vdwg.mxu0
    %v6094 = vadd.f32 %v6010, %v6090
    %v6095 = vadd.f32 %v6012, %v6092
    %v6096 = vld [vmem:[#allocation2 + $0x6] sm:$0x3]
    %s6097 = scalar_lea.vmem %s8, 96
    %v6098 = vld [vmem:[%s6097] sm:$0xff]
    %v6099 = vld [vmem:[%s6097 + $0x8] sm:$0xff]
    %v6100 = vld [vmem:[%s6097 + $0x10] sm:$0xff]
    %v6101 = vld [vmem:[%s6097 + $0x18] sm:$0xff]
    %v6103 = vsel %vm1538, %v6096, 0
    %6105 = vmatprep.subr.mxu0 0.0
    %6106 = vmatpush1.msra.mxu0 0.0
    %6107 = vmatprep.subr.mxu0 0.0
    %6108 = vmatpush1.msra.mxu0 0.0
    %6109 = vmatprep.subr.mxu0 0.0
    %6110 = vmatpush1.msra.mxu0 0.0
    %6111 = vmatprep.subr.mxu0 0.0
    %6112 = vmatpush1.msra.mxu0 0.0
    %6113 = vmatprep.subr.mxu0 0.0
    %6114 = vmatpush1.msra.mxu0 0.0
    %6115 = vmatprep.subr.mxu0 0.0
    %6116 = vmatpush1.msra.mxu0 0.0
    %6117 = vmatprep.subr.mxu0 0.0
    %6118 = vmatpush1.msra.mxu0 0.0
    %6119 = vmatprep.subr.mxu0 0.0
    %6120 = vmatpush1.msra.mxu0 0.0
    %6121 = vmatprep.subr.mxu0 0.0
    %6122 = vmatpush1.msra.mxu0 0.0
    %6123 = vmatprep.subr.mxu0 0.0
    %6124 = vmatpush1.msra.mxu0 0.0
    %6125 = vmatprep.subr.mxu0 0.0
    %6126 = vmatpush1.msra.mxu0 0.0
    %6127 = vmatprep.subr.mxu0 0.0
    %6128 = vmatpush1.msra.mxu0 0.0
    %6129 = vmatprep.subr.mxu0 0.0
    %6130 = vmatpush1.msra.mxu0 0.0
    %6131 = vmatprep.subr.mxu0 0.0
    %6132 = vmatpush1.msra.mxu0 0.0
    %6133 = vmatprep.subr.mxu0 %v6101
    %6134 = vmatpush1.msra.mxu0 %v6100
    %6135 = vmatprep.subr.mxu0 %v6099
    %6136 = vmatpush1.msra.mxu0 %v6098
    %6137 = vmatprep.subr.mxu0 0.0
    %6138 = vmatpush2.msra.mxu0 0.0
    %6139 = vmatprep.subr.mxu0 0.0
    %6140 = vmatpush2.msra.mxu0 0.0
    %6141 = vmatprep.subr.mxu0 0.0
    %6142 = vmatpush2.msra.mxu0 0.0
    %6143 = vmatprep.subr.mxu0 0.0
    %6144 = vmatpush2.msra.mxu0 0.0
    %6145 = vmatprep.subr.mxu0 0.0
    %6146 = vmatpush2.msra.mxu0 0.0
    %6147 = vmatprep.subr.mxu0 0.0
    %6148 = vmatpush2.msra.mxu0 0.0
    %6149 = vmatprep.subr.mxu0 0.0
    %6150 = vmatpush2.msra.mxu0 0.0
    %6151 = vmatprep.subr.mxu0 0.0
    %6152 = vmatpush2.msra.mxu0 0.0
    %6153 = vmatprep.subr.mxu0 0.0
    %6154 = vmatpush2.msra.mxu0 0.0
    %6155 = vmatprep.subr.mxu0 0.0
    %6156 = vmatpush2.msra.mxu0 0.0
    %6157 = vmatprep.subr.mxu0 0.0
    %6158 = vmatpush2.msra.mxu0 0.0
    %6159 = vmatprep.subr.mxu0 0.0
    %6160 = vmatpush2.msra.mxu0 0.0
    %6161 = vmatprep.subr.mxu0 0.0
    %6162 = vmatpush2.msra.mxu0 0.0
    %6163 = vmatprep.subr.mxu0 0.0
    %6164 = vmatpush2.msra.mxu0 0.0
    %6165 = vmatprep.subr.mxu0 0.0
    %6166 = vmatpush2.msra.mxu0 0.0
    %6167 = vmatprep.subr.mxu0 0.0
    %6168 = vmatpush2.msra.mxu0 0.0
    %6169 = vmatprep.mubr.f32.mxu0 0.0
    %6170 = vmatmul.mubr.f32.gmra.mxu0 %v6103
    %v6171 = vpop.f32.mrf.mxu0
    %v6172 = vadd.f32 0.0, %v6171
    %v6173 = vpop.f32.mrf.mxu0
    %v6174 = vadd.f32 0.0, %v6173
    %6175 = vdwg.mxu0
    %v6176 = vadd.f32 %v6094, %v6172
    %v6177 = vadd.f32 %v6095, %v6174
    %v6178 = vld [vmem:[#allocation2 + $0x8] sm:$0x3]
    %s6179 = scalar_lea.vmem %s8, 128
    %v6180 = vld [vmem:[%s6179] sm:$0xff]
    %v6181 = vld [vmem:[%s6179 + $0x8] sm:$0xff]
    %v6182 = vld [vmem:[%s6179 + $0x10] sm:$0xff]
    %v6183 = vld [vmem:[%s6179 + $0x18] sm:$0xff]
    %v6185 = vsel %vm1538, %v6178, 0
    %6187 = vmatprep.subr.mxu0 0.0
    %6188 = vmatpush1.msra.mxu0 0.0
    %6189 = vmatprep.subr.mxu0 0.0
    %6190 = vmatpush1.msra.mxu0 0.0
    %6191 = vmatprep.subr.mxu0 0.0
    %6192 = vmatpush1.msra.mxu0 0.0
    %6193 = vmatprep.subr.mxu0 0.0
    %6194 = vmatpush1.msra.mxu0 0.0
    %6195 = vmatprep.subr.mxu0 0.0
    %6196 = vmatpush1.msra.mxu0 0.0
    %6197 = vmatprep.subr.mxu0 0.0
    %6198 = vmatpush1.msra.mxu0 0.0
    %6199 = vmatprep.subr.mxu0 0.0
    %6200 = vmatpush1.msra.mxu0 0.0
    %6201 = vmatprep.subr.mxu0 0.0
    %6202 = vmatpush1.msra.mxu0 0.0
    %6203 = vmatprep.subr.mxu0 0.0
    %6204 = vmatpush1.msra.mxu0 0.0
    %6205 = vmatprep.subr.mxu0 0.0
    %6206 = vmatpush1.msra.mxu0 0.0
    %6207 = vmatprep.subr.mxu0 0.0
    %6208 = vmatpush1.msra.mxu0 0.0
    %6209 = vmatprep.subr.mxu0 0.0
    %6210 = vmatpush1.msra.mxu0 0.0
    %6211 = vmatprep.subr.mxu0 0.0
    %6212 = vmatpush1.msra.mxu0 0.0
    %6213 = vmatprep.subr.mxu0 0.0
    %6214 = vmatpush1.msra.mxu0 0.0
    %6215 = vmatprep.subr.mxu0 %v6183
    %6216 = vmatpush1.msra.mxu0 %v6182
    %6217 = vmatprep.subr.mxu0 %v6181
    %6218 = vmatpush1.msra.mxu0 %v6180
    %6219 = vmatprep.subr.mxu0 0.0
    %6220 = vmatpush2.msra.mxu0 0.0
    %6221 = vmatprep.subr.mxu0 0.0
    %6222 = vmatpush2.msra.mxu0 0.0
    %6223 = vmatprep.subr.mxu0 0.0
    %6224 = vmatpush2.msra.mxu0 0.0
    %6225 = vmatprep.subr.mxu0 0.0
    %6226 = vmatpush2.msra.mxu0 0.0
    %6227 = vmatprep.subr.mxu0 0.0
    %6228 = vmatpush2.msra.mxu0 0.0
    %6229 = vmatprep.subr.mxu0 0.0
    %6230 = vmatpush2.msra.mxu0 0.0
    %6231 = vmatprep.subr.mxu0 0.0
    %6232 = vmatpush2.msra.mxu0 0.0
    %6233 = vmatprep.subr.mxu0 0.0
    %6234 = vmatpush2.msra.mxu0 0.0
    %6235 = vmatprep.subr.mxu0 0.0
    %6236 = vmatpush2.msra.mxu0 0.0
    %6237 = vmatprep.subr.mxu0 0.0
    %6238 = vmatpush2.msra.mxu0 0.0
    %6239 = vmatprep.subr.mxu0 0.0
    %6240 = vmatpush2.msra.mxu0 0.0
    %6241 = vmatprep.subr.mxu0 0.0
    %6242 = vmatpush2.msra.mxu0 0.0
    %6243 = vmatprep.subr.mxu0 0.0
    %6244 = vmatpush2.msra.mxu0 0.0
    %6245 = vmatprep.subr.mxu0 0.0
    %6246 = vmatpush2.msra.mxu0 0.0
    %6247 = vmatprep.subr.mxu0 0.0
    %6248 = vmatpush2.msra.mxu0 0.0
    %6249 = vmatprep.subr.mxu0 0.0
    %6250 = vmatpush2.msra.mxu0 0.0
    %6251 = vmatprep.mubr.f32.mxu0 0.0
    %6252 = vmatmul.mubr.f32.gmra.mxu0 %v6185
    %v6253 = vpop.f32.mrf.mxu0
    %v6254 = vadd.f32 0.0, %v6253
    %v6255 = vpop.f32.mrf.mxu0
    %v6256 = vadd.f32 0.0, %v6255
    %6257 = vdwg.mxu0
    %v6258 = vadd.f32 %v6176, %v6254
    %v6259 = vadd.f32 %v6177, %v6256
    %v6260 = vld [vmem:[#allocation2 + $0xa] sm:$0x3]
    %s6261 = scalar_lea.vmem %s8, 160
    %v6262 = vld [vmem:[%s6261] sm:$0xff]
    %v6263 = vld [vmem:[%s6261 + $0x8] sm:$0xff]
    %v6264 = vld [vmem:[%s6261 + $0x10] sm:$0xff]
    %v6265 = vld [vmem:[%s6261 + $0x18] sm:$0xff]
    %v6267 = vsel %vm1538, %v6260, 0
    %6269 = vmatprep.subr.mxu0 0.0
    %6270 = vmatpush1.msra.mxu0 0.0
    %6271 = vmatprep.subr.mxu0 0.0
    %6272 = vmatpush1.msra.mxu0 0.0
    %6273 = vmatprep.subr.mxu0 0.0
    %6274 = vmatpush1.msra.mxu0 0.0
    %6275 = vmatprep.subr.mxu0 0.0
    %6276 = vmatpush1.msra.mxu0 0.0
    %6277 = vmatprep.subr.mxu0 0.0
    %6278 = vmatpush1.msra.mxu0 0.0
    %6279 = vmatprep.subr.mxu0 0.0
    %6280 = vmatpush1.msra.mxu0 0.0
    %6281 = vmatprep.subr.mxu0 0.0
    %6282 = vmatpush1.msra.mxu0 0.0
    %6283 = vmatprep.subr.mxu0 0.0
    %6284 = vmatpush1.msra.mxu0 0.0
    %6285 = vmatprep.subr.mxu0 0.0
    %6286 = vmatpush1.msra.mxu0 0.0
    %6287 = vmatprep.subr.mxu0 0.0
    %6288 = vmatpush1.msra.mxu0 0.0
    %6289 = vmatprep.subr.mxu0 0.0
    %6290 = vmatpush1.msra.mxu0 0.0
    %6291 = vmatprep.subr.mxu0 0.0
    %6292 = vmatpush1.msra.mxu0 0.0
    %6293 = vmatprep.subr.mxu0 0.0
    %6294 = vmatpush1.msra.mxu0 0.0
    %6295 = vmatprep.subr.mxu0 0.0
    %6296 = vmatpush1.msra.mxu0 0.0
    %6297 = vmatprep.subr.mxu0 %v6265
    %6298 = vmatpush1.msra.mxu0 %v6264
    %6299 = vmatprep.subr.mxu0 %v6263
    %6300 = vmatpush1.msra.mxu0 %v6262
    %6301 = vmatprep.subr.mxu0 0.0
    %6302 = vmatpush2.msra.mxu0 0.0
    %6303 = vmatprep.subr.mxu0 0.0
    %6304 = vmatpush2.msra.mxu0 0.0
    %6305 = vmatprep.subr.mxu0 0.0
    %6306 = vmatpush2.msra.mxu0 0.0
    %6307 = vmatprep.subr.mxu0 0.0
    %6308 = vmatpush2.msra.mxu0 0.0
    %6309 = vmatprep.subr.mxu0 0.0
    %6310 = vmatpush2.msra.mxu0 0.0
    %6311 = vmatprep.subr.mxu0 0.0
    %6312 = vmatpush2.msra.mxu0 0.0
    %6313 = vmatprep.subr.mxu0 0.0
    %6314 = vmatpush2.msra.mxu0 0.0
    %6315 = vmatprep.subr.mxu0 0.0
    %6316 = vmatpush2.msra.mxu0 0.0
    %6317 = vmatprep.subr.mxu0 0.0
    %6318 = vmatpush2.msra.mxu0 0.0
    %6319 = vmatprep.subr.mxu0 0.0
    %6320 = vmatpush2.msra.mxu0 0.0
    %6321 = vmatprep.subr.mxu0 0.0
    %6322 = vmatpush2.msra.mxu0 0.0
    %6323 = vmatprep.subr.mxu0 0.0
    %6324 = vmatpush2.msra.mxu0 0.0
    %6325 = vmatprep.subr.mxu0 0.0
    %6326 = vmatpush2.msra.mxu0 0.0
    %6327 = vmatprep.subr.mxu0 0.0
    %6328 = vmatpush2.msra.mxu0 0.0
    %6329 = vmatprep.subr.mxu0 0.0
    %6330 = vmatpush2.msra.mxu0 0.0
    %6331 = vmatprep.subr.mxu0 0.0
    %6332 = vmatpush2.msra.mxu0 0.0
    %6333 = vmatprep.mubr.f32.mxu0 0.0
    %6334 = vmatmul.mubr.f32.gmra.mxu0 %v6267
    %v6335 = vpop.f32.mrf.mxu0
    %v6336 = vadd.f32 0.0, %v6335
    %v6337 = vpop.f32.mrf.mxu0
    %v6338 = vadd.f32 0.0, %v6337
    %6339 = vdwg.mxu0
    %v6340 = vadd.f32 %v6258, %v6336
    %v6341 = vadd.f32 %v6259, %v6338
    %v6342 = vld [vmem:[#allocation2 + $0xc] sm:$0x3]
    %s6343 = scalar_lea.vmem %s8, 192
    %v6344 = vld [vmem:[%s6343] sm:$0xff]
    %v6345 = vld [vmem:[%s6343 + $0x8] sm:$0xff]
    %v6346 = vld [vmem:[%s6343 + $0x10] sm:$0xff]
    %v6347 = vld [vmem:[%s6343 + $0x18] sm:$0xff]
    %v6349 = vsel %vm1538, %v6342, 0
    %6351 = vmatprep.subr.mxu0 0.0
    %6352 = vmatpush1.msra.mxu0 0.0
    %6353 = vmatprep.subr.mxu0 0.0
    %6354 = vmatpush1.msra.mxu0 0.0
    %6355 = vmatprep.subr.mxu0 0.0
    %6356 = vmatpush1.msra.mxu0 0.0
    %6357 = vmatprep.subr.mxu0 0.0
    %6358 = vmatpush1.msra.mxu0 0.0
    %6359 = vmatprep.subr.mxu0 0.0
    %6360 = vmatpush1.msra.mxu0 0.0
    %6361 = vmatprep.subr.mxu0 0.0
    %6362 = vmatpush1.msra.mxu0 0.0
    %6363 = vmatprep.subr.mxu0 0.0
    %6364 = vmatpush1.msra.mxu0 0.0
    %6365 = vmatprep.subr.mxu0 0.0
    %6366 = vmatpush1.msra.mxu0 0.0
    %6367 = vmatprep.subr.mxu0 0.0
    %6368 = vmatpush1.msra.mxu0 0.0
    %6369 = vmatprep.subr.mxu0 0.0
    %6370 = vmatpush1.msra.mxu0 0.0
    %6371 = vmatprep.subr.mxu0 0.0
    %6372 = vmatpush1.msra.mxu0 0.0
    %6373 = vmatprep.subr.mxu0 0.0
    %6374 = vmatpush1.msra.mxu0 0.0
    %6375 = vmatprep.subr.mxu0 0.0
    %6376 = vmatpush1.msra.mxu0 0.0
    %6377 = vmatprep.subr.mxu0 0.0
    %6378 = vmatpush1.msra.mxu0 0.0
    %6379 = vmatprep.subr.mxu0 %v6347
    %6380 = vmatpush1.msra.mxu0 %v6346
    %6381 = vmatprep.subr.mxu0 %v6345
    %6382 = vmatpush1.msra.mxu0 %v6344
    %6383 = vmatprep.subr.mxu0 0.0
    %6384 = vmatpush2.msra.mxu0 0.0
    %6385 = vmatprep.subr.mxu0 0.0
    %6386 = vmatpush2.msra.mxu0 0.0
    %6387 = vmatprep.subr.mxu0 0.0
    %6388 = vmatpush2.msra.mxu0 0.0
    %6389 = vmatprep.subr.mxu0 0.0
    %6390 = vmatpush2.msra.mxu0 0.0
    %6391 = vmatprep.subr.mxu0 0.0
    %6392 = vmatpush2.msra.mxu0 0.0
    %6393 = vmatprep.subr.mxu0 0.0
    %6394 = vmatpush2.msra.mxu0 0.0
    %6395 = vmatprep.subr.mxu0 0.0
    %6396 = vmatpush2.msra.mxu0 0.0
    %6397 = vmatprep.subr.mxu0 0.0
    %6398 = vmatpush2.msra.mxu0 0.0
    %6399 = vmatprep.subr.mxu0 0.0
    %6400 = vmatpush2.msra.mxu0 0.0
    %6401 = vmatprep.subr.mxu0 0.0
    %6402 = vmatpush2.msra.mxu0 0.0
    %6403 = vmatprep.subr.mxu0 0.0
    %6404 = vmatpush2.msra.mxu0 0.0
    %6405 = vmatprep.subr.mxu0 0.0
    %6406 = vmatpush2.msra.mxu0 0.0
    %6407 = vmatprep.subr.mxu0 0.0
    %6408 = vmatpush2.msra.mxu0 0.0
    %6409 = vmatprep.subr.mxu0 0.0
    %6410 = vmatpush2.msra.mxu0 0.0
    %6411 = vmatprep.subr.mxu0 0.0
    %6412 = vmatpush2.msra.mxu0 0.0
    %6413 = vmatprep.subr.mxu0 0.0
    %6414 = vmatpush2.msra.mxu0 0.0
    %6415 = vmatprep.mubr.f32.mxu0 0.0
    %6416 = vmatmul.mubr.f32.gmra.mxu0 %v6349
    %v6417 = vpop.f32.mrf.mxu0
    %v6418 = vadd.f32 0.0, %v6417
    %v6419 = vpop.f32.mrf.mxu0
    %v6420 = vadd.f32 0.0, %v6419
    %6421 = vdwg.mxu0
    %v6422 = vadd.f32 %v6340, %v6418
    %v6423 = vadd.f32 %v6341, %v6420
    %v6424 = vld [vmem:[#allocation2 + $0xe] sm:$0x3]
    %s6425 = scalar_lea.vmem %s8, 224
    %v6426 = vld [vmem:[%s6425] sm:$0xff]
    %v6427 = vld [vmem:[%s6425 + $0x8] sm:$0xff]
    %v6428 = vld [vmem:[%s6425 + $0x10] sm:$0xff]
    %v6429 = vld [vmem:[%s6425 + $0x18] sm:$0xff]
    %v6431 = vsel %vm1538, %v6424, 0
    %6433 = vmatprep.subr.mxu0 0.0
    %6434 = vmatpush1.msra.mxu0 0.0
    %6435 = vmatprep.subr.mxu0 0.0
    %6436 = vmatpush1.msra.mxu0 0.0
    %6437 = vmatprep.subr.mxu0 0.0
    %6438 = vmatpush1.msra.mxu0 0.0
    %6439 = vmatprep.subr.mxu0 0.0
    %6440 = vmatpush1.msra.mxu0 0.0
    %6441 = vmatprep.subr.mxu0 0.0
    %6442 = vmatpush1.msra.mxu0 0.0
    %6443 = vmatprep.subr.mxu0 0.0
    %6444 = vmatpush1.msra.mxu0 0.0
    %6445 = vmatprep.subr.mxu0 0.0
    %6446 = vmatpush1.msra.mxu0 0.0
    %6447 = vmatprep.subr.mxu0 0.0
    %6448 = vmatpush1.msra.mxu0 0.0
    %6449 = vmatprep.subr.mxu0 0.0
    %6450 = vmatpush1.msra.mxu0 0.0
    %6451 = vmatprep.subr.mxu0 0.0
    %6452 = vmatpush1.msra.mxu0 0.0
    %6453 = vmatprep.subr.mxu0 0.0
    %6454 = vmatpush1.msra.mxu0 0.0
    %6455 = vmatprep.subr.mxu0 0.0
    %6456 = vmatpush1.msra.mxu0 0.0
    %6457 = vmatprep.subr.mxu0 0.0
    %6458 = vmatpush1.msra.mxu0 0.0
    %6459 = vmatprep.subr.mxu0 0.0
    %6460 = vmatpush1.msra.mxu0 0.0
    %6461 = vmatprep.subr.mxu0 %v6429
    %6462 = vmatpush1.msra.mxu0 %v6428
    %6463 = vmatprep.subr.mxu0 %v6427
    %6464 = vmatpush1.msra.mxu0 %v6426
    %6465 = vmatprep.subr.mxu0 0.0
    %6466 = vmatpush2.msra.mxu0 0.0
    %6467 = vmatprep.subr.mxu0 0.0
    %6468 = vmatpush2.msra.mxu0 0.0
    %6469 = vmatprep.subr.mxu0 0.0
    %6470 = vmatpush2.msra.mxu0 0.0
    %6471 = vmatprep.subr.mxu0 0.0
    %6472 = vmatpush2.msra.mxu0 0.0
    %6473 = vmatprep.subr.mxu0 0.0
    %6474 = vmatpush2.msra.mxu0 0.0
    %6475 = vmatprep.subr.mxu0 0.0
    %6476 = vmatpush2.msra.mxu0 0.0
    %6477 = vmatprep.subr.mxu0 0.0
    %6478 = vmatpush2.msra.mxu0 0.0
    %6479 = vmatprep.subr.mxu0 0.0
    %6480 = vmatpush2.msra.mxu0 0.0
    %6481 = vmatprep.subr.mxu0 0.0
    %6482 = vmatpush2.msra.mxu0 0.0
    %6483 = vmatprep.subr.mxu0 0.0
    %6484 = vmatpush2.msra.mxu0 0.0
    %6485 = vmatprep.subr.mxu0 0.0
    %6486 = vmatpush2.msra.mxu0 0.0
    %6487 = vmatprep.subr.mxu0 0.0
    %6488 = vmatpush2.msra.mxu0 0.0
    %6489 = vmatprep.subr.mxu0 0.0
    %6490 = vmatpush2.msra.mxu0 0.0
    %6491 = vmatprep.subr.mxu0 0.0
    %6492 = vmatpush2.msra.mxu0 0.0
    %6493 = vmatprep.subr.mxu0 0.0
    %6494 = vmatpush2.msra.mxu0 0.0
    %6495 = vmatprep.subr.mxu0 0.0
    %6496 = vmatpush2.msra.mxu0 0.0
    %6497 = vmatprep.mubr.f32.mxu0 0.0
    %6498 = vmatmul.mubr.f32.gmra.mxu0 %v6431
    %v6499 = vpop.f32.mrf.mxu0
    %v6500 = vadd.f32 0.0, %v6499
    %v6501 = vpop.f32.mrf.mxu0
    %v6502 = vadd.f32 0.0, %v6501
    %6503 = vdwg.mxu0
    %v6504 = vadd.f32 %v6422, %v6500
    %v6505 = vadd.f32 %v6423, %v6502
    %v6506 = vld [vmem:[#allocation2 + $0x10] sm:$0x3]
    %s6507 = scalar_lea.vmem %s8, 256
    %v6508 = vld [vmem:[%s6507] sm:$0xff]
    %v6509 = vld [vmem:[%s6507 + $0x8] sm:$0xff]
    %v6510 = vld [vmem:[%s6507 + $0x10] sm:$0xff]
    %v6511 = vld [vmem:[%s6507 + $0x18] sm:$0xff]
    %v6513 = vsel %vm1538, %v6506, 0
    %6515 = vmatprep.subr.mxu0 0.0
    %6516 = vmatpush1.msra.mxu0 0.0
    %6517 = vmatprep.subr.mxu0 0.0
    %6518 = vmatpush1.msra.mxu0 0.0
    %6519 = vmatprep.subr.mxu0 0.0
    %6520 = vmatpush1.msra.mxu0 0.0
    %6521 = vmatprep.subr.mxu0 0.0
    %6522 = vmatpush1.msra.mxu0 0.0
    %6523 = vmatprep.subr.mxu0 0.0
    %6524 = vmatpush1.msra.mxu0 0.0
    %6525 = vmatprep.subr.mxu0 0.0
    %6526 = vmatpush1.msra.mxu0 0.0
    %6527 = vmatprep.subr.mxu0 0.0
    %6528 = vmatpush1.msra.mxu0 0.0
    %6529 = vmatprep.subr.mxu0 0.0
    %6530 = vmatpush1.msra.mxu0 0.0
    %6531 = vmatprep.subr.mxu0 0.0
    %6532 = vmatpush1.msra.mxu0 0.0
    %6533 = vmatprep.subr.mxu0 0.0
    %6534 = vmatpush1.msra.mxu0 0.0
    %6535 = vmatprep.subr.mxu0 0.0
    %6536 = vmatpush1.msra.mxu0 0.0
    %6537 = vmatprep.subr.mxu0 0.0
    %6538 = vmatpush1.msra.mxu0 0.0
    %6539 = vmatprep.subr.mxu0 0.0
    %6540 = vmatpush1.msra.mxu0 0.0
    %6541 = vmatprep.subr.mxu0 0.0
    %6542 = vmatpush1.msra.mxu0 0.0
    %6543 = vmatprep.subr.mxu0 %v6511
    %6544 = vmatpush1.msra.mxu0 %v6510
    %6545 = vmatprep.subr.mxu0 %v6509
    %6546 = vmatpush1.msra.mxu0 %v6508
    %6547 = vmatprep.subr.mxu0 0.0
    %6548 = vmatpush2.msra.mxu0 0.0
    %6549 = vmatprep.subr.mxu0 0.0
    %6550 = vmatpush2.msra.mxu0 0.0
    %6551 = vmatprep.subr.mxu0 0.0
    %6552 = vmatpush2.msra.mxu0 0.0
    %6553 = vmatprep.subr.mxu0 0.0
    %6554 = vmatpush2.msra.mxu0 0.0
    %6555 = vmatprep.subr.mxu0 0.0
    %6556 = vmatpush2.msra.mxu0 0.0
    %6557 = vmatprep.subr.mxu0 0.0
    %6558 = vmatpush2.msra.mxu0 0.0
    %6559 = vmatprep.subr.mxu0 0.0
    %6560 = vmatpush2.msra.mxu0 0.0
    %6561 = vmatprep.subr.mxu0 0.0
    %6562 = vmatpush2.msra.mxu0 0.0
    %6563 = vmatprep.subr.mxu0 0.0
    %6564 = vmatpush2.msra.mxu0 0.0
    %6565 = vmatprep.subr.mxu0 0.0
    %6566 = vmatpush2.msra.mxu0 0.0
    %6567 = vmatprep.subr.mxu0 0.0
    %6568 = vmatpush2.msra.mxu0 0.0
    %6569 = vmatprep.subr.mxu0 0.0
    %6570 = vmatpush2.msra.mxu0 0.0
    %6571 = vmatprep.subr.mxu0 0.0
    %6572 = vmatpush2.msra.mxu0 0.0
    %6573 = vmatprep.subr.mxu0 0.0
    %6574 = vmatpush2.msra.mxu0 0.0
    %6575 = vmatprep.subr.mxu0 0.0
    %6576 = vmatpush2.msra.mxu0 0.0
    %6577 = vmatprep.subr.mxu0 0.0
    %6578 = vmatpush2.msra.mxu0 0.0
    %6579 = vmatprep.mubr.f32.mxu0 0.0
    %6580 = vmatmul.mubr.f32.gmra.mxu0 %v6513
    %v6581 = vpop.f32.mrf.mxu0
    %v6582 = vadd.f32 0.0, %v6581
    %v6583 = vpop.f32.mrf.mxu0
    %v6584 = vadd.f32 0.0, %v6583
    %6585 = vdwg.mxu0
    %v6586 = vadd.f32 %v6504, %v6582
    %v6587 = vadd.f32 %v6505, %v6584
    %v6588 = vld [vmem:[#allocation2 + $0x12] sm:$0x3]
    %s6589 = scalar_lea.vmem %s8, 288
    %v6590 = vld [vmem:[%s6589] sm:$0xff]
    %v6591 = vld [vmem:[%s6589 + $0x8] sm:$0xff]
    %v6592 = vld [vmem:[%s6589 + $0x10] sm:$0xff]
    %v6593 = vld [vmem:[%s6589 + $0x18] sm:$0xff]
    %v6595 = vsel %vm1538, %v6588, 0
    %6597 = vmatprep.subr.mxu0 0.0
    %6598 = vmatpush1.msra.mxu0 0.0
    %6599 = vmatprep.subr.mxu0 0.0
    %6600 = vmatpush1.msra.mxu0 0.0
    %6601 = vmatprep.subr.mxu0 0.0
    %6602 = vmatpush1.msra.mxu0 0.0
    %6603 = vmatprep.subr.mxu0 0.0
    %6604 = vmatpush1.msra.mxu0 0.0
    %6605 = vmatprep.subr.mxu0 0.0
    %6606 = vmatpush1.msra.mxu0 0.0
    %6607 = vmatprep.subr.mxu0 0.0
    %6608 = vmatpush1.msra.mxu0 0.0
    %6609 = vmatprep.subr.mxu0 0.0
    %6610 = vmatpush1.msra.mxu0 0.0
    %6611 = vmatprep.subr.mxu0 0.0
    %6612 = vmatpush1.msra.mxu0 0.0
    %6613 = vmatprep.subr.mxu0 0.0
    %6614 = vmatpush1.msra.mxu0 0.0
    %6615 = vmatprep.subr.mxu0 0.0
    %6616 = vmatpush1.msra.mxu0 0.0
    %6617 = vmatprep.subr.mxu0 0.0
    %6618 = vmatpush1.msra.mxu0 0.0
    %6619 = vmatprep.subr.mxu0 0.0
    %6620 = vmatpush1.msra.mxu0 0.0
    %6621 = vmatprep.subr.mxu0 0.0
    %6622 = vmatpush1.msra.mxu0 0.0
    %6623 = vmatprep.subr.mxu0 0.0
    %6624 = vmatpush1.msra.mxu0 0.0
    %6625 = vmatprep.subr.mxu0 %v6593
    %6626 = vmatpush1.msra.mxu0 %v6592
    %6627 = vmatprep.subr.mxu0 %v6591
    %6628 = vmatpush1.msra.mxu0 %v6590
    %6629 = vmatprep.subr.mxu0 0.0
    %6630 = vmatpush2.msra.mxu0 0.0
    %6631 = vmatprep.subr.mxu0 0.0
    %6632 = vmatpush2.msra.mxu0 0.0
    %6633 = vmatprep.subr.mxu0 0.0
    %6634 = vmatpush2.msra.mxu0 0.0
    %6635 = vmatprep.subr.mxu0 0.0
    %6636 = vmatpush2.msra.mxu0 0.0
    %6637 = vmatprep.subr.mxu0 0.0
    %6638 = vmatpush2.msra.mxu0 0.0
    %6639 = vmatprep.subr.mxu0 0.0
    %6640 = vmatpush2.msra.mxu0 0.0
    %6641 = vmatprep.subr.mxu0 0.0
    %6642 = vmatpush2.msra.mxu0 0.0
    %6643 = vmatprep.subr.mxu0 0.0
    %6644 = vmatpush2.msra.mxu0 0.0
    %6645 = vmatprep.subr.mxu0 0.0
    %6646 = vmatpush2.msra.mxu0 0.0
    %6647 = vmatprep.subr.mxu0 0.0
    %6648 = vmatpush2.msra.mxu0 0.0
    %6649 = vmatprep.subr.mxu0 0.0
    %6650 = vmatpush2.msra.mxu0 0.0
    %6651 = vmatprep.subr.mxu0 0.0
    %6652 = vmatpush2.msra.mxu0 0.0
    %6653 = vmatprep.subr.mxu0 0.0
    %6654 = vmatpush2.msra.mxu0 0.0
    %6655 = vmatprep.subr.mxu0 0.0
    %6656 = vmatpush2.msra.mxu0 0.0
    %6657 = vmatprep.subr.mxu0 0.0
    %6658 = vmatpush2.msra.mxu0 0.0
    %6659 = vmatprep.subr.mxu0 0.0
    %6660 = vmatpush2.msra.mxu0 0.0
    %6661 = vmatprep.mubr.f32.mxu0 0.0
    %6662 = vmatmul.mubr.f32.gmra.mxu0 %v6595
    %v6663 = vpop.f32.mrf.mxu0
    %v6664 = vadd.f32 0.0, %v6663
    %v6665 = vpop.f32.mrf.mxu0
    %v6666 = vadd.f32 0.0, %v6665
    %6667 = vdwg.mxu0
    %v6668 = vadd.f32 %v6586, %v6664
    %v6669 = vadd.f32 %v6587, %v6666
    %v6670 = vld [vmem:[#allocation2 + $0x14] sm:$0x3]
    %s6671 = scalar_lea.vmem %s8, 320
    %v6672 = vld [vmem:[%s6671] sm:$0xff]
    %v6673 = vld [vmem:[%s6671 + $0x8] sm:$0xff]
    %v6674 = vld [vmem:[%s6671 + $0x10] sm:$0xff]
    %v6675 = vld [vmem:[%s6671 + $0x18] sm:$0xff]
    %v6677 = vsel %vm1538, %v6670, 0
    %6679 = vmatprep.subr.mxu0 0.0
    %6680 = vmatpush1.msra.mxu0 0.0
    %6681 = vmatprep.subr.mxu0 0.0
    %6682 = vmatpush1.msra.mxu0 0.0
    %6683 = vmatprep.subr.mxu0 0.0
    %6684 = vmatpush1.msra.mxu0 0.0
    %6685 = vmatprep.subr.mxu0 0.0
    %6686 = vmatpush1.msra.mxu0 0.0
    %6687 = vmatprep.subr.mxu0 0.0
    %6688 = vmatpush1.msra.mxu0 0.0
    %6689 = vmatprep.subr.mxu0 0.0
    %6690 = vmatpush1.msra.mxu0 0.0
    %6691 = vmatprep.subr.mxu0 0.0
    %6692 = vmatpush1.msra.mxu0 0.0
    %6693 = vmatprep.subr.mxu0 0.0
    %6694 = vmatpush1.msra.mxu0 0.0
    %6695 = vmatprep.subr.mxu0 0.0
    %6696 = vmatpush1.msra.mxu0 0.0
    %6697 = vmatprep.subr.mxu0 0.0
    %6698 = vmatpush1.msra.mxu0 0.0
    %6699 = vmatprep.subr.mxu0 0.0
    %6700 = vmatpush1.msra.mxu0 0.0
    %6701 = vmatprep.subr.mxu0 0.0
    %6702 = vmatpush1.msra.mxu0 0.0
    %6703 = vmatprep.subr.mxu0 0.0
    %6704 = vmatpush1.msra.mxu0 0.0
    %6705 = vmatprep.subr.mxu0 0.0
    %6706 = vmatpush1.msra.mxu0 0.0
    %6707 = vmatprep.subr.mxu0 %v6675
    %6708 = vmatpush1.msra.mxu0 %v6674
    %6709 = vmatprep.subr.mxu0 %v6673
    %6710 = vmatpush1.msra.mxu0 %v6672
    %6711 = vmatprep.subr.mxu0 0.0
    %6712 = vmatpush2.msra.mxu0 0.0
    %6713 = vmatprep.subr.mxu0 0.0
    %6714 = vmatpush2.msra.mxu0 0.0
    %6715 = vmatprep.subr.mxu0 0.0
    %6716 = vmatpush2.msra.mxu0 0.0
    %6717 = vmatprep.subr.mxu0 0.0
    %6718 = vmatpush2.msra.mxu0 0.0
    %6719 = vmatprep.subr.mxu0 0.0
    %6720 = vmatpush2.msra.mxu0 0.0
    %6721 = vmatprep.subr.mxu0 0.0
    %6722 = vmatpush2.msra.mxu0 0.0
    %6723 = vmatprep.subr.mxu0 0.0
    %6724 = vmatpush2.msra.mxu0 0.0
    %6725 = vmatprep.subr.mxu0 0.0
    %6726 = vmatpush2.msra.mxu0 0.0
    %6727 = vmatprep.subr.mxu0 0.0
    %6728 = vmatpush2.msra.mxu0 0.0
    %6729 = vmatprep.subr.mxu0 0.0
    %6730 = vmatpush2.msra.mxu0 0.0
    %6731 = vmatprep.subr.mxu0 0.0
    %6732 = vmatpush2.msra.mxu0 0.0
    %6733 = vmatprep.subr.mxu0 0.0
    %6734 = vmatpush2.msra.mxu0 0.0
    %6735 = vmatprep.subr.mxu0 0.0
    %6736 = vmatpush2.msra.mxu0 0.0
    %6737 = vmatprep.subr.mxu0 0.0
    %6738 = vmatpush2.msra.mxu0 0.0
    %6739 = vmatprep.subr.mxu0 0.0
    %6740 = vmatpush2.msra.mxu0 0.0
    %6741 = vmatprep.subr.mxu0 0.0
    %6742 = vmatpush2.msra.mxu0 0.0
    %6743 = vmatprep.mubr.f32.mxu0 0.0
    %6744 = vmatmul.mubr.f32.gmra.mxu0 %v6677
    %v6745 = vpop.f32.mrf.mxu0
    %v6746 = vadd.f32 0.0, %v6745
    %v6747 = vpop.f32.mrf.mxu0
    %v6748 = vadd.f32 0.0, %v6747
    %6749 = vdwg.mxu0
    %v6750 = vadd.f32 %v6668, %v6746
    %v6751 = vadd.f32 %v6669, %v6748
    %v6752 = vld [vmem:[#allocation2 + $0x16] sm:$0x3]
    %s6753 = scalar_lea.vmem %s8, 352
    %v6754 = vld [vmem:[%s6753] sm:$0xff]
    %v6755 = vld [vmem:[%s6753 + $0x8] sm:$0xff]
    %v6756 = vld [vmem:[%s6753 + $0x10] sm:$0xff]
    %v6757 = vld [vmem:[%s6753 + $0x18] sm:$0xff]
    %v6759 = vsel %vm1538, %v6752, 0
    %6761 = vmatprep.subr.mxu0 0.0
    %6762 = vmatpush1.msra.mxu0 0.0
    %6763 = vmatprep.subr.mxu0 0.0
    %6764 = vmatpush1.msra.mxu0 0.0
    %6765 = vmatprep.subr.mxu0 0.0
    %6766 = vmatpush1.msra.mxu0 0.0
    %6767 = vmatprep.subr.mxu0 0.0
    %6768 = vmatpush1.msra.mxu0 0.0
    %6769 = vmatprep.subr.mxu0 0.0
    %6770 = vmatpush1.msra.mxu0 0.0
    %6771 = vmatprep.subr.mxu0 0.0
    %6772 = vmatpush1.msra.mxu0 0.0
    %6773 = vmatprep.subr.mxu0 0.0
    %6774 = vmatpush1.msra.mxu0 0.0
    %6775 = vmatprep.subr.mxu0 0.0
    %6776 = vmatpush1.msra.mxu0 0.0
    %6777 = vmatprep.subr.mxu0 0.0
    %6778 = vmatpush1.msra.mxu0 0.0
    %6779 = vmatprep.subr.mxu0 0.0
    %6780 = vmatpush1.msra.mxu0 0.0
    %6781 = vmatprep.subr.mxu0 0.0
    %6782 = vmatpush1.msra.mxu0 0.0
    %6783 = vmatprep.subr.mxu0 0.0
    %6784 = vmatpush1.msra.mxu0 0.0
    %6785 = vmatprep.subr.mxu0 0.0
    %6786 = vmatpush1.msra.mxu0 0.0
    %6787 = vmatprep.subr.mxu0 0.0
    %6788 = vmatpush1.msra.mxu0 0.0
    %6789 = vmatprep.subr.mxu0 %v6757
    %6790 = vmatpush1.msra.mxu0 %v6756
    %6791 = vmatprep.subr.mxu0 %v6755
    %6792 = vmatpush1.msra.mxu0 %v6754
    %6793 = vmatprep.subr.mxu0 0.0
    %6794 = vmatpush2.msra.mxu0 0.0
    %6795 = vmatprep.subr.mxu0 0.0
    %6796 = vmatpush2.msra.mxu0 0.0
    %6797 = vmatprep.subr.mxu0 0.0
    %6798 = vmatpush2.msra.mxu0 0.0
    %6799 = vmatprep.subr.mxu0 0.0
    %6800 = vmatpush2.msra.mxu0 0.0
    %6801 = vmatprep.subr.mxu0 0.0
    %6802 = vmatpush2.msra.mxu0 0.0
    %6803 = vmatprep.subr.mxu0 0.0
    %6804 = vmatpush2.msra.mxu0 0.0
    %6805 = vmatprep.subr.mxu0 0.0
    %6806 = vmatpush2.msra.mxu0 0.0
    %6807 = vmatprep.subr.mxu0 0.0
    %6808 = vmatpush2.msra.mxu0 0.0
    %6809 = vmatprep.subr.mxu0 0.0
    %6810 = vmatpush2.msra.mxu0 0.0
    %6811 = vmatprep.subr.mxu0 0.0
    %6812 = vmatpush2.msra.mxu0 0.0
    %6813 = vmatprep.subr.mxu0 0.0
    %6814 = vmatpush2.msra.mxu0 0.0
    %6815 = vmatprep.subr.mxu0 0.0
    %6816 = vmatpush2.msra.mxu0 0.0
    %6817 = vmatprep.subr.mxu0 0.0
    %6818 = vmatpush2.msra.mxu0 0.0
    %6819 = vmatprep.subr.mxu0 0.0
    %6820 = vmatpush2.msra.mxu0 0.0
    %6821 = vmatprep.subr.mxu0 0.0
    %6822 = vmatpush2.msra.mxu0 0.0
    %6823 = vmatprep.subr.mxu0 0.0
    %6824 = vmatpush2.msra.mxu0 0.0
    %6825 = vmatprep.mubr.f32.mxu0 0.0
    %6826 = vmatmul.mubr.f32.gmra.mxu0 %v6759
    %v6827 = vpop.f32.mrf.mxu0
    %v6828 = vadd.f32 0.0, %v6827
    %v6829 = vpop.f32.mrf.mxu0
    %v6830 = vadd.f32 0.0, %v6829
    %6831 = vdwg.mxu0
    %v6832 = vadd.f32 %v6750, %v6828
    %v6833 = vadd.f32 %v6751, %v6830
    %v6834 = vld [vmem:[#allocation2 + $0x18] sm:$0x3]
    %s6835 = scalar_lea.vmem %s8, 384
    %v6836 = vld [vmem:[%s6835] sm:$0xff]
    %v6837 = vld [vmem:[%s6835 + $0x8] sm:$0xff]
    %v6838 = vld [vmem:[%s6835 + $0x10] sm:$0xff]
    %v6839 = vld [vmem:[%s6835 + $0x18] sm:$0xff]
    %v6841 = vsel %vm1538, %v6834, 0
    %6843 = vmatprep.subr.mxu0 0.0
    %6844 = vmatpush1.msra.mxu0 0.0
    %6845 = vmatprep.subr.mxu0 0.0
    %6846 = vmatpush1.msra.mxu0 0.0
    %6847 = vmatprep.subr.mxu0 0.0
    %6848 = vmatpush1.msra.mxu0 0.0
    %6849 = vmatprep.subr.mxu0 0.0
    %6850 = vmatpush1.msra.mxu0 0.0
    %6851 = vmatprep.subr.mxu0 0.0
    %6852 = vmatpush1.msra.mxu0 0.0
    %6853 = vmatprep.subr.mxu0 0.0
    %6854 = vmatpush1.msra.mxu0 0.0
    %6855 = vmatprep.subr.mxu0 0.0
    %6856 = vmatpush1.msra.mxu0 0.0
    %6857 = vmatprep.subr.mxu0 0.0
    %6858 = vmatpush1.msra.mxu0 0.0
    %6859 = vmatprep.subr.mxu0 0.0
    %6860 = vmatpush1.msra.mxu0 0.0
    %6861 = vmatprep.subr.mxu0 0.0
    %6862 = vmatpush1.msra.mxu0 0.0
    %6863 = vmatprep.subr.mxu0 0.0
    %6864 = vmatpush1.msra.mxu0 0.0
    %6865 = vmatprep.subr.mxu0 0.0
    %6866 = vmatpush1.msra.mxu0 0.0
    %6867 = vmatprep.subr.mxu0 0.0
    %6868 = vmatpush1.msra.mxu0 0.0
    %6869 = vmatprep.subr.mxu0 0.0
    %6870 = vmatpush1.msra.mxu0 0.0
    %6871 = vmatprep.subr.mxu0 %v6839
    %6872 = vmatpush1.msra.mxu0 %v6838
    %6873 = vmatprep.subr.mxu0 %v6837
    %6874 = vmatpush1.msra.mxu0 %v6836
    %6875 = vmatprep.subr.mxu0 0.0
    %6876 = vmatpush2.msra.mxu0 0.0
    %6877 = vmatprep.subr.mxu0 0.0
    %6878 = vmatpush2.msra.mxu0 0.0
    %6879 = vmatprep.subr.mxu0 0.0
    %6880 = vmatpush2.msra.mxu0 0.0
    %6881 = vmatprep.subr.mxu0 0.0
    %6882 = vmatpush2.msra.mxu0 0.0
    %6883 = vmatprep.subr.mxu0 0.0
    %6884 = vmatpush2.msra.mxu0 0.0
    %6885 = vmatprep.subr.mxu0 0.0
    %6886 = vmatpush2.msra.mxu0 0.0
    %6887 = vmatprep.subr.mxu0 0.0
    %6888 = vmatpush2.msra.mxu0 0.0
    %6889 = vmatprep.subr.mxu0 0.0
    %6890 = vmatpush2.msra.mxu0 0.0
    %6891 = vmatprep.subr.mxu0 0.0
    %6892 = vmatpush2.msra.mxu0 0.0
    %6893 = vmatprep.subr.mxu0 0.0
    %6894 = vmatpush2.msra.mxu0 0.0
    %6895 = vmatprep.subr.mxu0 0.0
    %6896 = vmatpush2.msra.mxu0 0.0
    %6897 = vmatprep.subr.mxu0 0.0
    %6898 = vmatpush2.msra.mxu0 0.0
    %6899 = vmatprep.subr.mxu0 0.0
    %6900 = vmatpush2.msra.mxu0 0.0
    %6901 = vmatprep.subr.mxu0 0.0
    %6902 = vmatpush2.msra.mxu0 0.0
    %6903 = vmatprep.subr.mxu0 0.0
    %6904 = vmatpush2.msra.mxu0 0.0
    %6905 = vmatprep.subr.mxu0 0.0
    %6906 = vmatpush2.msra.mxu0 0.0
    %6907 = vmatprep.mubr.f32.mxu0 0.0
    %6908 = vmatmul.mubr.f32.gmra.mxu0 %v6841
    %v6909 = vpop.f32.mrf.mxu0
    %v6910 = vadd.f32 0.0, %v6909
    %v6911 = vpop.f32.mrf.mxu0
    %v6912 = vadd.f32 0.0, %v6911
    %6913 = vdwg.mxu0
    %v6914 = vadd.f32 %v6832, %v6910
    %v6915 = vadd.f32 %v6833, %v6912
    %v6916 = vld [vmem:[#allocation2 + $0x1a] sm:$0x3]
    %s6917 = scalar_lea.vmem %s8, 416
    %v6918 = vld [vmem:[%s6917] sm:$0xff]
    %v6919 = vld [vmem:[%s6917 + $0x8] sm:$0xff]
    %v6920 = vld [vmem:[%s6917 + $0x10] sm:$0xff]
    %v6921 = vld [vmem:[%s6917 + $0x18] sm:$0xff]
    %v6923 = vsel %vm1538, %v6916, 0
    %6925 = vmatprep.subr.mxu0 0.0
    %6926 = vmatpush1.msra.mxu0 0.0
    %6927 = vmatprep.subr.mxu0 0.0
    %6928 = vmatpush1.msra.mxu0 0.0
    %6929 = vmatprep.subr.mxu0 0.0
    %6930 = vmatpush1.msra.mxu0 0.0
    %6931 = vmatprep.subr.mxu0 0.0
    %6932 = vmatpush1.msra.mxu0 0.0
    %6933 = vmatprep.subr.mxu0 0.0
    %6934 = vmatpush1.msra.mxu0 0.0
    %6935 = vmatprep.subr.mxu0 0.0
    %6936 = vmatpush1.msra.mxu0 0.0
    %6937 = vmatprep.subr.mxu0 0.0
    %6938 = vmatpush1.msra.mxu0 0.0
    %6939 = vmatprep.subr.mxu0 0.0
    %6940 = vmatpush1.msra.mxu0 0.0
    %6941 = vmatprep.subr.mxu0 0.0
    %6942 = vmatpush1.msra.mxu0 0.0
    %6943 = vmatprep.subr.mxu0 0.0
    %6944 = vmatpush1.msra.mxu0 0.0
    %6945 = vmatprep.subr.mxu0 0.0
    %6946 = vmatpush1.msra.mxu0 0.0
    %6947 = vmatprep.subr.mxu0 0.0
    %6948 = vmatpush1.msra.mxu0 0.0
    %6949 = vmatprep.subr.mxu0 0.0
    %6950 = vmatpush1.msra.mxu0 0.0
    %6951 = vmatprep.subr.mxu0 0.0
    %6952 = vmatpush1.msra.mxu0 0.0
    %6953 = vmatprep.subr.mxu0 %v6921
    %6954 = vmatpush1.msra.mxu0 %v6920
    %6955 = vmatprep.subr.mxu0 %v6919
    %6956 = vmatpush1.msra.mxu0 %v6918
    %6957 = vmatprep.subr.mxu0 0.0
    %6958 = vmatpush2.msra.mxu0 0.0
    %6959 = vmatprep.subr.mxu0 0.0
    %6960 = vmatpush2.msra.mxu0 0.0
    %6961 = vmatprep.subr.mxu0 0.0
    %6962 = vmatpush2.msra.mxu0 0.0
    %6963 = vmatprep.subr.mxu0 0.0
    %6964 = vmatpush2.msra.mxu0 0.0
    %6965 = vmatprep.subr.mxu0 0.0
    %6966 = vmatpush2.msra.mxu0 0.0
    %6967 = vmatprep.subr.mxu0 0.0
    %6968 = vmatpush2.msra.mxu0 0.0
    %6969 = vmatprep.subr.mxu0 0.0
    %6970 = vmatpush2.msra.mxu0 0.0
    %6971 = vmatprep.subr.mxu0 0.0
    %6972 = vmatpush2.msra.mxu0 0.0
    %6973 = vmatprep.subr.mxu0 0.0
    %6974 = vmatpush2.msra.mxu0 0.0
    %6975 = vmatprep.subr.mxu0 0.0
    %6976 = vmatpush2.msra.mxu0 0.0
    %6977 = vmatprep.subr.mxu0 0.0
    %6978 = vmatpush2.msra.mxu0 0.0
    %6979 = vmatprep.subr.mxu0 0.0
    %6980 = vmatpush2.msra.mxu0 0.0
    %6981 = vmatprep.subr.mxu0 0.0
    %6982 = vmatpush2.msra.mxu0 0.0
    %6983 = vmatprep.subr.mxu0 0.0
    %6984 = vmatpush2.msra.mxu0 0.0
    %6985 = vmatprep.subr.mxu0 0.0
    %6986 = vmatpush2.msra.mxu0 0.0
    %6987 = vmatprep.subr.mxu0 0.0
    %6988 = vmatpush2.msra.mxu0 0.0
    %6989 = vmatprep.mubr.f32.mxu0 0.0
    %6990 = vmatmul.mubr.f32.gmra.mxu0 %v6923
    %v6991 = vpop.f32.mrf.mxu0
    %v6992 = vadd.f32 0.0, %v6991
    %v6993 = vpop.f32.mrf.mxu0
    %v6994 = vadd.f32 0.0, %v6993
    %6995 = vdwg.mxu0
    %v6996 = vadd.f32 %v6914, %v6992
    %v6997 = vadd.f32 %v6915, %v6994
    %v6998 = vld [vmem:[#allocation2 + $0x1c] sm:$0x3]
    %s6999 = scalar_lea.vmem %s8, 448
    %v7000 = vld [vmem:[%s6999] sm:$0xff]
    %v7001 = vld [vmem:[%s6999 + $0x8] sm:$0xff]
    %v7002 = vld [vmem:[%s6999 + $0x10] sm:$0xff]
    %v7003 = vld [vmem:[%s6999 + $0x18] sm:$0xff]
    %v7005 = vsel %vm1538, %v6998, 0
    %7007 = vmatprep.subr.mxu0 0.0
    %7008 = vmatpush1.msra.mxu0 0.0
    %7009 = vmatprep.subr.mxu0 0.0
    %7010 = vmatpush1.msra.mxu0 0.0
    %7011 = vmatprep.subr.mxu0 0.0
    %7012 = vmatpush1.msra.mxu0 0.0
    %7013 = vmatprep.subr.mxu0 0.0
    %7014 = vmatpush1.msra.mxu0 0.0
    %7015 = vmatprep.subr.mxu0 0.0
    %7016 = vmatpush1.msra.mxu0 0.0
    %7017 = vmatprep.subr.mxu0 0.0
    %7018 = vmatpush1.msra.mxu0 0.0
    %7019 = vmatprep.subr.mxu0 0.0
    %7020 = vmatpush1.msra.mxu0 0.0
    %7021 = vmatprep.subr.mxu0 0.0
    %7022 = vmatpush1.msra.mxu0 0.0
    %7023 = vmatprep.subr.mxu0 0.0
    %7024 = vmatpush1.msra.mxu0 0.0
    %7025 = vmatprep.subr.mxu0 0.0
    %7026 = vmatpush1.msra.mxu0 0.0
    %7027 = vmatprep.subr.mxu0 0.0
    %7028 = vmatpush1.msra.mxu0 0.0
    %7029 = vmatprep.subr.mxu0 0.0
    %7030 = vmatpush1.msra.mxu0 0.0
    %7031 = vmatprep.subr.mxu0 0.0
    %7032 = vmatpush1.msra.mxu0 0.0
    %7033 = vmatprep.subr.mxu0 0.0
    %7034 = vmatpush1.msra.mxu0 0.0
    %7035 = vmatprep.subr.mxu0 %v7003
    %7036 = vmatpush1.msra.mxu0 %v7002
    %7037 = vmatprep.subr.mxu0 %v7001
    %7038 = vmatpush1.msra.mxu0 %v7000
    %7039 = vmatprep.subr.mxu0 0.0
    %7040 = vmatpush2.msra.mxu0 0.0
    %7041 = vmatprep.subr.mxu0 0.0
    %7042 = vmatpush2.msra.mxu0 0.0
    %7043 = vmatprep.subr.mxu0 0.0
    %7044 = vmatpush2.msra.mxu0 0.0
    %7045 = vmatprep.subr.mxu0 0.0
    %7046 = vmatpush2.msra.mxu0 0.0
    %7047 = vmatprep.subr.mxu0 0.0
    %7048 = vmatpush2.msra.mxu0 0.0
    %7049 = vmatprep.subr.mxu0 0.0
    %7050 = vmatpush2.msra.mxu0 0.0
    %7051 = vmatprep.subr.mxu0 0.0
    %7052 = vmatpush2.msra.mxu0 0.0
    %7053 = vmatprep.subr.mxu0 0.0
    %7054 = vmatpush2.msra.mxu0 0.0
    %7055 = vmatprep.subr.mxu0 0.0
    %7056 = vmatpush2.msra.mxu0 0.0
    %7057 = vmatprep.subr.mxu0 0.0
    %7058 = vmatpush2.msra.mxu0 0.0
    %7059 = vmatprep.subr.mxu0 0.0
    %7060 = vmatpush2.msra.mxu0 0.0
    %7061 = vmatprep.subr.mxu0 0.0
    %7062 = vmatpush2.msra.mxu0 0.0
    %7063 = vmatprep.subr.mxu0 0.0
    %7064 = vmatpush2.msra.mxu0 0.0
    %7065 = vmatprep.subr.mxu0 0.0
    %7066 = vmatpush2.msra.mxu0 0.0
    %7067 = vmatprep.subr.mxu0 0.0
    %7068 = vmatpush2.msra.mxu0 0.0
    %7069 = vmatprep.subr.mxu0 0.0
    %7070 = vmatpush2.msra.mxu0 0.0
    %7071 = vmatprep.mubr.f32.mxu0 0.0
    %7072 = vmatmul.mubr.f32.gmra.mxu0 %v7005
    %v7073 = vpop.f32.mrf.mxu0
    %v7074 = vadd.f32 0.0, %v7073
    %v7075 = vpop.f32.mrf.mxu0
    %v7076 = vadd.f32 0.0, %v7075
    %7077 = vdwg.mxu0
    %v7078 = vadd.f32 %v6996, %v7074
    %v7079 = vadd.f32 %v6997, %v7076
    %v7080 = vld [vmem:[#allocation2 + $0x1e] sm:$0x3]
    %s7081 = scalar_lea.vmem %s8, 480
    %v7082 = vld [vmem:[%s7081] sm:$0xff]
    %v7083 = vld [vmem:[%s7081 + $0x8] sm:$0xff]
    %v7084 = vld [vmem:[%s7081 + $0x10] sm:$0xff]
    %v7085 = vld [vmem:[%s7081 + $0x18] sm:$0xff]
    %v7087 = vsel %vm1538, %v7080, 0
    %7089 = vmatprep.subr.mxu0 0.0
    %7090 = vmatpush1.msra.mxu0 0.0
    %7091 = vmatprep.subr.mxu0 0.0
    %7092 = vmatpush1.msra.mxu0 0.0
    %7093 = vmatprep.subr.mxu0 0.0
    %7094 = vmatpush1.msra.mxu0 0.0
    %7095 = vmatprep.subr.mxu0 0.0
    %7096 = vmatpush1.msra.mxu0 0.0
    %7097 = vmatprep.subr.mxu0 0.0
    %7098 = vmatpush1.msra.mxu0 0.0
    %7099 = vmatprep.subr.mxu0 0.0
    %7100 = vmatpush1.msra.mxu0 0.0
    %7101 = vmatprep.subr.mxu0 0.0
    %7102 = vmatpush1.msra.mxu0 0.0
    %7103 = vmatprep.subr.mxu0 0.0
    %7104 = vmatpush1.msra.mxu0 0.0
    %7105 = vmatprep.subr.mxu0 0.0
    %7106 = vmatpush1.msra.mxu0 0.0
    %7107 = vmatprep.subr.mxu0 0.0
    %7108 = vmatpush1.msra.mxu0 0.0
    %7109 = vmatprep.subr.mxu0 0.0
    %7110 = vmatpush1.msra.mxu0 0.0
    %7111 = vmatprep.subr.mxu0 0.0
    %7112 = vmatpush1.msra.mxu0 0.0
    %7113 = vmatprep.subr.mxu0 0.0
    %7114 = vmatpush1.msra.mxu0 0.0
    %7115 = vmatprep.subr.mxu0 0.0
    %7116 = vmatpush1.msra.mxu0 0.0
    %7117 = vmatprep.subr.mxu0 %v7085
    %7118 = vmatpush1.msra.mxu0 %v7084
    %7119 = vmatprep.subr.mxu0 %v7083
    %7120 = vmatpush1.msra.mxu0 %v7082
    %7121 = vmatprep.subr.mxu0 0.0
    %7122 = vmatpush2.msra.mxu0 0.0
    %7123 = vmatprep.subr.mxu0 0.0
    %7124 = vmatpush2.msra.mxu0 0.0
    %7125 = vmatprep.subr.mxu0 0.0
    %7126 = vmatpush2.msra.mxu0 0.0
    %7127 = vmatprep.subr.mxu0 0.0
    %7128 = vmatpush2.msra.mxu0 0.0
    %7129 = vmatprep.subr.mxu0 0.0
    %7130 = vmatpush2.msra.mxu0 0.0
    %7131 = vmatprep.subr.mxu0 0.0
    %7132 = vmatpush2.msra.mxu0 0.0
    %7133 = vmatprep.subr.mxu0 0.0
    %7134 = vmatpush2.msra.mxu0 0.0
    %7135 = vmatprep.subr.mxu0 0.0
    %7136 = vmatpush2.msra.mxu0 0.0
    %7137 = vmatprep.subr.mxu0 0.0
    %7138 = vmatpush2.msra.mxu0 0.0
    %7139 = vmatprep.subr.mxu0 0.0
    %7140 = vmatpush2.msra.mxu0 0.0
    %7141 = vmatprep.subr.mxu0 0.0
    %7142 = vmatpush2.msra.mxu0 0.0
    %7143 = vmatprep.subr.mxu0 0.0
    %7144 = vmatpush2.msra.mxu0 0.0
    %7145 = vmatprep.subr.mxu0 0.0
    %7146 = vmatpush2.msra.mxu0 0.0
    %7147 = vmatprep.subr.mxu0 0.0
    %7148 = vmatpush2.msra.mxu0 0.0
    %7149 = vmatprep.subr.mxu0 0.0
    %7150 = vmatpush2.msra.mxu0 0.0
    %7151 = vmatprep.subr.mxu0 0.0
    %7152 = vmatpush2.msra.mxu0 0.0
    %7153 = vmatprep.mubr.f32.mxu0 0.0
    %7154 = vmatmul.mubr.f32.gmra.mxu0 %v7087
    %v7155 = vpop.f32.mrf.mxu0
    %v7156 = vadd.f32 0.0, %v7155
    %v7157 = vpop.f32.mrf.mxu0
    %v7158 = vadd.f32 0.0, %v7157
    %7159 = vdwg.mxu0
    %v7160 = vadd.f32 %v7078, %v7156
    %v7161 = vadd.f32 %v7079, %v7158
    %v7162 = vld [vmem:[#allocation2 + $0x20] sm:$0x3]
    %s7163 = scalar_lea.vmem %s8, 512
    %v7164 = vld [vmem:[%s7163] sm:$0xff]
    %v7165 = vld [vmem:[%s7163 + $0x8] sm:$0xff]
    %v7166 = vld [vmem:[%s7163 + $0x10] sm:$0xff]
    %v7167 = vld [vmem:[%s7163 + $0x18] sm:$0xff]
    %v7169 = vsel %vm1538, %v7162, 0
    %7171 = vmatprep.subr.mxu0 0.0
    %7172 = vmatpush1.msra.mxu0 0.0
    %7173 = vmatprep.subr.mxu0 0.0
    %7174 = vmatpush1.msra.mxu0 0.0
    %7175 = vmatprep.subr.mxu0 0.0
    %7176 = vmatpush1.msra.mxu0 0.0
    %7177 = vmatprep.subr.mxu0 0.0
    %7178 = vmatpush1.msra.mxu0 0.0
    %7179 = vmatprep.subr.mxu0 0.0
    %7180 = vmatpush1.msra.mxu0 0.0
    %7181 = vmatprep.subr.mxu0 0.0
    %7182 = vmatpush1.msra.mxu0 0.0
    %7183 = vmatprep.subr.mxu0 0.0
    %7184 = vmatpush1.msra.mxu0 0.0
    %7185 = vmatprep.subr.mxu0 0.0
    %7186 = vmatpush1.msra.mxu0 0.0
    %7187 = vmatprep.subr.mxu0 0.0
    %7188 = vmatpush1.msra.mxu0 0.0
    %7189 = vmatprep.subr.mxu0 0.0
    %7190 = vmatpush1.msra.mxu0 0.0
    %7191 = vmatprep.subr.mxu0 0.0
    %7192 = vmatpush1.msra.mxu0 0.0
    %7193 = vmatprep.subr.mxu0 0.0
    %7194 = vmatpush1.msra.mxu0 0.0
    %7195 = vmatprep.subr.mxu0 0.0
    %7196 = vmatpush1.msra.mxu0 0.0
    %7197 = vmatprep.subr.mxu0 0.0
    %7198 = vmatpush1.msra.mxu0 0.0
    %7199 = vmatprep.subr.mxu0 %v7167
    %7200 = vmatpush1.msra.mxu0 %v7166
    %7201 = vmatprep.subr.mxu0 %v7165
    %7202 = vmatpush1.msra.mxu0 %v7164
    %7203 = vmatprep.subr.mxu0 0.0
    %7204 = vmatpush2.msra.mxu0 0.0
    %7205 = vmatprep.subr.mxu0 0.0
    %7206 = vmatpush2.msra.mxu0 0.0
    %7207 = vmatprep.subr.mxu0 0.0
    %7208 = vmatpush2.msra.mxu0 0.0
    %7209 = vmatprep.subr.mxu0 0.0
    %7210 = vmatpush2.msra.mxu0 0.0
    %7211 = vmatprep.subr.mxu0 0.0
    %7212 = vmatpush2.msra.mxu0 0.0
    %7213 = vmatprep.subr.mxu0 0.0
    %7214 = vmatpush2.msra.mxu0 0.0
    %7215 = vmatprep.subr.mxu0 0.0
    %7216 = vmatpush2.msra.mxu0 0.0
    %7217 = vmatprep.subr.mxu0 0.0
    %7218 = vmatpush2.msra.mxu0 0.0
    %7219 = vmatprep.subr.mxu0 0.0
    %7220 = vmatpush2.msra.mxu0 0.0
    %7221 = vmatprep.subr.mxu0 0.0
    %7222 = vmatpush2.msra.mxu0 0.0
    %7223 = vmatprep.subr.mxu0 0.0
    %7224 = vmatpush2.msra.mxu0 0.0
    %7225 = vmatprep.subr.mxu0 0.0
    %7226 = vmatpush2.msra.mxu0 0.0
    %7227 = vmatprep.subr.mxu0 0.0
    %7228 = vmatpush2.msra.mxu0 0.0
    %7229 = vmatprep.subr.mxu0 0.0
    %7230 = vmatpush2.msra.mxu0 0.0
    %7231 = vmatprep.subr.mxu0 0.0
    %7232 = vmatpush2.msra.mxu0 0.0
    %7233 = vmatprep.subr.mxu0 0.0
    %7234 = vmatpush2.msra.mxu0 0.0
    %7235 = vmatprep.mubr.f32.mxu0 0.0
    %7236 = vmatmul.mubr.f32.gmra.mxu0 %v7169
    %v7237 = vpop.f32.mrf.mxu0
    %v7238 = vadd.f32 0.0, %v7237
    %v7239 = vpop.f32.mrf.mxu0
    %v7240 = vadd.f32 0.0, %v7239
    %7241 = vdwg.mxu0
    %v7242 = vadd.f32 %v7160, %v7238
    %v7243 = vadd.f32 %v7161, %v7240
    %v7244 = vld [vmem:[#allocation2 + $0x22] sm:$0x3]
    %s7245 = scalar_lea.vmem %s8, 544
    %v7246 = vld [vmem:[%s7245] sm:$0xff]
    %v7247 = vld [vmem:[%s7245 + $0x8] sm:$0xff]
    %v7248 = vld [vmem:[%s7245 + $0x10] sm:$0xff]
    %v7249 = vld [vmem:[%s7245 + $0x18] sm:$0xff]
    %v7251 = vsel %vm1538, %v7244, 0
    %7253 = vmatprep.subr.mxu0 0.0
    %7254 = vmatpush1.msra.mxu0 0.0
    %7255 = vmatprep.subr.mxu0 0.0
    %7256 = vmatpush1.msra.mxu0 0.0
    %7257 = vmatprep.subr.mxu0 0.0
    %7258 = vmatpush1.msra.mxu0 0.0
    %7259 = vmatprep.subr.mxu0 0.0
    %7260 = vmatpush1.msra.mxu0 0.0
    %7261 = vmatprep.subr.mxu0 0.0
    %7262 = vmatpush1.msra.mxu0 0.0
    %7263 = vmatprep.subr.mxu0 0.0
    %7264 = vmatpush1.msra.mxu0 0.0
    %7265 = vmatprep.subr.mxu0 0.0
    %7266 = vmatpush1.msra.mxu0 0.0
    %7267 = vmatprep.subr.mxu0 0.0
    %7268 = vmatpush1.msra.mxu0 0.0
    %7269 = vmatprep.subr.mxu0 0.0
    %7270 = vmatpush1.msra.mxu0 0.0
    %7271 = vmatprep.subr.mxu0 0.0
    %7272 = vmatpush1.msra.mxu0 0.0
    %7273 = vmatprep.subr.mxu0 0.0
    %7274 = vmatpush1.msra.mxu0 0.0
    %7275 = vmatprep.subr.mxu0 0.0
    %7276 = vmatpush1.msra.mxu0 0.0
    %7277 = vmatprep.subr.mxu0 0.0
    %7278 = vmatpush1.msra.mxu0 0.0
    %7279 = vmatprep.subr.mxu0 0.0
    %7280 = vmatpush1.msra.mxu0 0.0
    %7281 = vmatprep.subr.mxu0 %v7249
    %7282 = vmatpush1.msra.mxu0 %v7248
    %7283 = vmatprep.subr.mxu0 %v7247
    %7284 = vmatpush1.msra.mxu0 %v7246
    %7285 = vmatprep.subr.mxu0 0.0
    %7286 = vmatpush2.msra.mxu0 0.0
    %7287 = vmatprep.subr.mxu0 0.0
    %7288 = vmatpush2.msra.mxu0 0.0
    %7289 = vmatprep.subr.mxu0 0.0
    %7290 = vmatpush2.msra.mxu0 0.0
    %7291 = vmatprep.subr.mxu0 0.0
    %7292 = vmatpush2.msra.mxu0 0.0
    %7293 = vmatprep.subr.mxu0 0.0
    %7294 = vmatpush2.msra.mxu0 0.0
    %7295 = vmatprep.subr.mxu0 0.0
    %7296 = vmatpush2.msra.mxu0 0.0
    %7297 = vmatprep.subr.mxu0 0.0
    %7298 = vmatpush2.msra.mxu0 0.0
    %7299 = vmatprep.subr.mxu0 0.0
    %7300 = vmatpush2.msra.mxu0 0.0
    %7301 = vmatprep.subr.mxu0 0.0
    %7302 = vmatpush2.msra.mxu0 0.0
    %7303 = vmatprep.subr.mxu0 0.0
    %7304 = vmatpush2.msra.mxu0 0.0
    %7305 = vmatprep.subr.mxu0 0.0
    %7306 = vmatpush2.msra.mxu0 0.0
    %7307 = vmatprep.subr.mxu0 0.0
    %7308 = vmatpush2.msra.mxu0 0.0
    %7309 = vmatprep.subr.mxu0 0.0
    %7310 = vmatpush2.msra.mxu0 0.0
    %7311 = vmatprep.subr.mxu0 0.0
    %7312 = vmatpush2.msra.mxu0 0.0
    %7313 = vmatprep.subr.mxu0 0.0
    %7314 = vmatpush2.msra.mxu0 0.0
    %7315 = vmatprep.subr.mxu0 0.0
    %7316 = vmatpush2.msra.mxu0 0.0
    %7317 = vmatprep.mubr.f32.mxu0 0.0
    %7318 = vmatmul.mubr.f32.gmra.mxu0 %v7251
    %v7319 = vpop.f32.mrf.mxu0
    %v7320 = vadd.f32 0.0, %v7319
    %v7321 = vpop.f32.mrf.mxu0
    %v7322 = vadd.f32 0.0, %v7321
    %7323 = vdwg.mxu0
    %v7324 = vadd.f32 %v7242, %v7320
    %v7325 = vadd.f32 %v7243, %v7322
    %v7326 = vld [vmem:[#allocation2 + $0x24] sm:$0x3]
    %s7327 = scalar_lea.vmem %s8, 576
    %v7328 = vld [vmem:[%s7327] sm:$0xff]
    %v7329 = vld [vmem:[%s7327 + $0x8] sm:$0xff]
    %v7330 = vld [vmem:[%s7327 + $0x10] sm:$0xff]
    %v7331 = vld [vmem:[%s7327 + $0x18] sm:$0xff]
    %v7333 = vsel %vm1538, %v7326, 0
    %7335 = vmatprep.subr.mxu0 0.0
    %7336 = vmatpush1.msra.mxu0 0.0
    %7337 = vmatprep.subr.mxu0 0.0
    %7338 = vmatpush1.msra.mxu0 0.0
    %7339 = vmatprep.subr.mxu0 0.0
    %7340 = vmatpush1.msra.mxu0 0.0
    %7341 = vmatprep.subr.mxu0 0.0
    %7342 = vmatpush1.msra.mxu0 0.0
    %7343 = vmatprep.subr.mxu0 0.0
    %7344 = vmatpush1.msra.mxu0 0.0
    %7345 = vmatprep.subr.mxu0 0.0
    %7346 = vmatpush1.msra.mxu0 0.0
    %7347 = vmatprep.subr.mxu0 0.0
    %7348 = vmatpush1.msra.mxu0 0.0
    %7349 = vmatprep.subr.mxu0 0.0
    %7350 = vmatpush1.msra.mxu0 0.0
    %7351 = vmatprep.subr.mxu0 0.0
    %7352 = vmatpush1.msra.mxu0 0.0
    %7353 = vmatprep.subr.mxu0 0.0
    %7354 = vmatpush1.msra.mxu0 0.0
    %7355 = vmatprep.subr.mxu0 0.0
    %7356 = vmatpush1.msra.mxu0 0.0
    %7357 = vmatprep.subr.mxu0 0.0
    %7358 = vmatpush1.msra.mxu0 0.0
    %7359 = vmatprep.subr.mxu0 0.0
    %7360 = vmatpush1.msra.mxu0 0.0
    %7361 = vmatprep.subr.mxu0 0.0
    %7362 = vmatpush1.msra.mxu0 0.0
    %7363 = vmatprep.subr.mxu0 %v7331
    %7364 = vmatpush1.msra.mxu0 %v7330
    %7365 = vmatprep.subr.mxu0 %v7329
    %7366 = vmatpush1.msra.mxu0 %v7328
    %7367 = vmatprep.subr.mxu0 0.0
    %7368 = vmatpush2.msra.mxu0 0.0
    %7369 = vmatprep.subr.mxu0 0.0
    %7370 = vmatpush2.msra.mxu0 0.0
    %7371 = vmatprep.subr.mxu0 0.0
    %7372 = vmatpush2.msra.mxu0 0.0
    %7373 = vmatprep.subr.mxu0 0.0
    %7374 = vmatpush2.msra.mxu0 0.0
    %7375 = vmatprep.subr.mxu0 0.0
    %7376 = vmatpush2.msra.mxu0 0.0
    %7377 = vmatprep.subr.mxu0 0.0
    %7378 = vmatpush2.msra.mxu0 0.0
    %7379 = vmatprep.subr.mxu0 0.0
    %7380 = vmatpush2.msra.mxu0 0.0
    %7381 = vmatprep.subr.mxu0 0.0
    %7382 = vmatpush2.msra.mxu0 0.0
    %7383 = vmatprep.subr.mxu0 0.0
    %7384 = vmatpush2.msra.mxu0 0.0
    %7385 = vmatprep.subr.mxu0 0.0
    %7386 = vmatpush2.msra.mxu0 0.0
    %7387 = vmatprep.subr.mxu0 0.0
    %7388 = vmatpush2.msra.mxu0 0.0
    %7389 = vmatprep.subr.mxu0 0.0
    %7390 = vmatpush2.msra.mxu0 0.0
    %7391 = vmatprep.subr.mxu0 0.0
    %7392 = vmatpush2.msra.mxu0 0.0
    %7393 = vmatprep.subr.mxu0 0.0
    %7394 = vmatpush2.msra.mxu0 0.0
    %7395 = vmatprep.subr.mxu0 0.0
    %7396 = vmatpush2.msra.mxu0 0.0
    %7397 = vmatprep.subr.mxu0 0.0
    %7398 = vmatpush2.msra.mxu0 0.0
    %7399 = vmatprep.mubr.f32.mxu0 0.0
    %7400 = vmatmul.mubr.f32.gmra.mxu0 %v7333
    %v7401 = vpop.f32.mrf.mxu0
    %v7402 = vadd.f32 0.0, %v7401
    %v7403 = vpop.f32.mrf.mxu0
    %v7404 = vadd.f32 0.0, %v7403
    %7405 = vdwg.mxu0
    %v7406 = vadd.f32 %v7324, %v7402
    %v7407 = vadd.f32 %v7325, %v7404
    %v7408 = vld [vmem:[#allocation2 + $0x26] sm:$0x3]
    %s7409 = scalar_lea.vmem %s8, 608
    %v7410 = vld [vmem:[%s7409] sm:$0xff]
    %v7411 = vld [vmem:[%s7409 + $0x8] sm:$0xff]
    %v7412 = vld [vmem:[%s7409 + $0x10] sm:$0xff]
    %v7413 = vld [vmem:[%s7409 + $0x18] sm:$0xff]
    %v7415 = vsel %vm1538, %v7408, 0
    %7417 = vmatprep.subr.mxu0 0.0
    %7418 = vmatpush1.msra.mxu0 0.0
    %7419 = vmatprep.subr.mxu0 0.0
    %7420 = vmatpush1.msra.mxu0 0.0
    %7421 = vmatprep.subr.mxu0 0.0
    %7422 = vmatpush1.msra.mxu0 0.0
    %7423 = vmatprep.subr.mxu0 0.0
    %7424 = vmatpush1.msra.mxu0 0.0
    %7425 = vmatprep.subr.mxu0 0.0
    %7426 = vmatpush1.msra.mxu0 0.0
    %7427 = vmatprep.subr.mxu0 0.0
    %7428 = vmatpush1.msra.mxu0 0.0
    %7429 = vmatprep.subr.mxu0 0.0
    %7430 = vmatpush1.msra.mxu0 0.0
    %7431 = vmatprep.subr.mxu0 0.0
    %7432 = vmatpush1.msra.mxu0 0.0
    %7433 = vmatprep.subr.mxu0 0.0
    %7434 = vmatpush1.msra.mxu0 0.0
    %7435 = vmatprep.subr.mxu0 0.0
    %7436 = vmatpush1.msra.mxu0 0.0
    %7437 = vmatprep.subr.mxu0 0.0
    %7438 = vmatpush1.msra.mxu0 0.0
    %7439 = vmatprep.subr.mxu0 0.0
    %7440 = vmatpush1.msra.mxu0 0.0
    %7441 = vmatprep.subr.mxu0 0.0
    %7442 = vmatpush1.msra.mxu0 0.0
    %7443 = vmatprep.subr.mxu0 0.0
    %7444 = vmatpush1.msra.mxu0 0.0
    %7445 = vmatprep.subr.mxu0 %v7413
    %7446 = vmatpush1.msra.mxu0 %v7412
    %7447 = vmatprep.subr.mxu0 %v7411
    %7448 = vmatpush1.msra.mxu0 %v7410
    %7449 = vmatprep.subr.mxu0 0.0
    %7450 = vmatpush2.msra.mxu0 0.0
    %7451 = vmatprep.subr.mxu0 0.0
    %7452 = vmatpush2.msra.mxu0 0.0
    %7453 = vmatprep.subr.mxu0 0.0
    %7454 = vmatpush2.msra.mxu0 0.0
    %7455 = vmatprep.subr.mxu0 0.0
    %7456 = vmatpush2.msra.mxu0 0.0
    %7457 = vmatprep.subr.mxu0 0.0
    %7458 = vmatpush2.msra.mxu0 0.0
    %7459 = vmatprep.subr.mxu0 0.0
    %7460 = vmatpush2.msra.mxu0 0.0
    %7461 = vmatprep.subr.mxu0 0.0
    %7462 = vmatpush2.msra.mxu0 0.0
    %7463 = vmatprep.subr.mxu0 0.0
    %7464 = vmatpush2.msra.mxu0 0.0
    %7465 = vmatprep.subr.mxu0 0.0
    %7466 = vmatpush2.msra.mxu0 0.0
    %7467 = vmatprep.subr.mxu0 0.0
    %7468 = vmatpush2.msra.mxu0 0.0
    %7469 = vmatprep.subr.mxu0 0.0
    %7470 = vmatpush2.msra.mxu0 0.0
    %7471 = vmatprep.subr.mxu0 0.0
    %7472 = vmatpush2.msra.mxu0 0.0
    %7473 = vmatprep.subr.mxu0 0.0
    %7474 = vmatpush2.msra.mxu0 0.0
    %7475 = vmatprep.subr.mxu0 0.0
    %7476 = vmatpush2.msra.mxu0 0.0
    %7477 = vmatprep.subr.mxu0 0.0
    %7478 = vmatpush2.msra.mxu0 0.0
    %7479 = vmatprep.subr.mxu0 0.0
    %7480 = vmatpush2.msra.mxu0 0.0
    %7481 = vmatprep.mubr.f32.mxu0 0.0
    %7482 = vmatmul.mubr.f32.gmra.mxu0 %v7415
    %v7483 = vpop.f32.mrf.mxu0
    %v7484 = vadd.f32 0.0, %v7483
    %v7485 = vpop.f32.mrf.mxu0
    %v7486 = vadd.f32 0.0, %v7485
    %7487 = vdwg.mxu0
    %v7488 = vadd.f32 %v7406, %v7484
    %v7489 = vadd.f32 %v7407, %v7486
    %v7490 = vld [vmem:[#allocation2 + $0x28] sm:$0x3]
    %s7491 = scalar_lea.vmem %s8, 640
    %v7492 = vld [vmem:[%s7491] sm:$0xff]
    %v7493 = vld [vmem:[%s7491 + $0x8] sm:$0xff]
    %v7494 = vld [vmem:[%s7491 + $0x10] sm:$0xff]
    %v7495 = vld [vmem:[%s7491 + $0x18] sm:$0xff]
    %v7497 = vsel %vm1538, %v7490, 0
    %7499 = vmatprep.subr.mxu0 0.0
    %7500 = vmatpush1.msra.mxu0 0.0
    %7501 = vmatprep.subr.mxu0 0.0
    %7502 = vmatpush1.msra.mxu0 0.0
    %7503 = vmatprep.subr.mxu0 0.0
    %7504 = vmatpush1.msra.mxu0 0.0
    %7505 = vmatprep.subr.mxu0 0.0
    %7506 = vmatpush1.msra.mxu0 0.0
    %7507 = vmatprep.subr.mxu0 0.0
    %7508 = vmatpush1.msra.mxu0 0.0
    %7509 = vmatprep.subr.mxu0 0.0
    %7510 = vmatpush1.msra.mxu0 0.0
    %7511 = vmatprep.subr.mxu0 0.0
    %7512 = vmatpush1.msra.mxu0 0.0
    %7513 = vmatprep.subr.mxu0 0.0
    %7514 = vmatpush1.msra.mxu0 0.0
    %7515 = vmatprep.subr.mxu0 0.0
    %7516 = vmatpush1.msra.mxu0 0.0
    %7517 = vmatprep.subr.mxu0 0.0
    %7518 = vmatpush1.msra.mxu0 0.0
    %7519 = vmatprep.subr.mxu0 0.0
    %7520 = vmatpush1.msra.mxu0 0.0
    %7521 = vmatprep.subr.mxu0 0.0
    %7522 = vmatpush1.msra.mxu0 0.0
    %7523 = vmatprep.subr.mxu0 0.0
    %7524 = vmatpush1.msra.mxu0 0.0
    %7525 = vmatprep.subr.mxu0 0.0
    %7526 = vmatpush1.msra.mxu0 0.0
    %7527 = vmatprep.subr.mxu0 %v7495
    %7528 = vmatpush1.msra.mxu0 %v7494
    %7529 = vmatprep.subr.mxu0 %v7493
    %7530 = vmatpush1.msra.mxu0 %v7492
    %7531 = vmatprep.subr.mxu0 0.0
    %7532 = vmatpush2.msra.mxu0 0.0
    %7533 = vmatprep.subr.mxu0 0.0
    %7534 = vmatpush2.msra.mxu0 0.0
    %7535 = vmatprep.subr.mxu0 0.0
    %7536 = vmatpush2.msra.mxu0 0.0
    %7537 = vmatprep.subr.mxu0 0.0
    %7538 = vmatpush2.msra.mxu0 0.0
    %7539 = vmatprep.subr.mxu0 0.0
    %7540 = vmatpush2.msra.mxu0 0.0
    %7541 = vmatprep.subr.mxu0 0.0
    %7542 = vmatpush2.msra.mxu0 0.0
    %7543 = vmatprep.subr.mxu0 0.0
    %7544 = vmatpush2.msra.mxu0 0.0
    %7545 = vmatprep.subr.mxu0 0.0
    %7546 = vmatpush2.msra.mxu0 0.0
    %7547 = vmatprep.subr.mxu0 0.0
    %7548 = vmatpush2.msra.mxu0 0.0
    %7549 = vmatprep.subr.mxu0 0.0
    %7550 = vmatpush2.msra.mxu0 0.0
    %7551 = vmatprep.subr.mxu0 0.0
    %7552 = vmatpush2.msra.mxu0 0.0
    %7553 = vmatprep.subr.mxu0 0.0
    %7554 = vmatpush2.msra.mxu0 0.0
    %7555 = vmatprep.subr.mxu0 0.0
    %7556 = vmatpush2.msra.mxu0 0.0
    %7557 = vmatprep.subr.mxu0 0.0
    %7558 = vmatpush2.msra.mxu0 0.0
    %7559 = vmatprep.subr.mxu0 0.0
    %7560 = vmatpush2.msra.mxu0 0.0
    %7561 = vmatprep.subr.mxu0 0.0
    %7562 = vmatpush2.msra.mxu0 0.0
    %7563 = vmatprep.mubr.f32.mxu0 0.0
    %7564 = vmatmul.mubr.f32.gmra.mxu0 %v7497
    %v7565 = vpop.f32.mrf.mxu0
    %v7566 = vadd.f32 0.0, %v7565
    %v7567 = vpop.f32.mrf.mxu0
    %v7568 = vadd.f32 0.0, %v7567
    %7569 = vdwg.mxu0
    %v7570 = vadd.f32 %v7488, %v7566
    %v7571 = vadd.f32 %v7489, %v7568
    %v7572 = vld [vmem:[#allocation2 + $0x2a] sm:$0x3]
    %s7573 = scalar_lea.vmem %s8, 672
    %v7574 = vld [vmem:[%s7573] sm:$0xff]
    %v7575 = vld [vmem:[%s7573 + $0x8] sm:$0xff]
    %v7576 = vld [vmem:[%s7573 + $0x10] sm:$0xff]
    %v7577 = vld [vmem:[%s7573 + $0x18] sm:$0xff]
    %v7579 = vsel %vm1538, %v7572, 0
    %7581 = vmatprep.subr.mxu0 0.0
    %7582 = vmatpush1.msra.mxu0 0.0
    %7583 = vmatprep.subr.mxu0 0.0
    %7584 = vmatpush1.msra.mxu0 0.0
    %7585 = vmatprep.subr.mxu0 0.0
    %7586 = vmatpush1.msra.mxu0 0.0
    %7587 = vmatprep.subr.mxu0 0.0
    %7588 = vmatpush1.msra.mxu0 0.0
    %7589 = vmatprep.subr.mxu0 0.0
    %7590 = vmatpush1.msra.mxu0 0.0
    %7591 = vmatprep.subr.mxu0 0.0
    %7592 = vmatpush1.msra.mxu0 0.0
    %7593 = vmatprep.subr.mxu0 0.0
    %7594 = vmatpush1.msra.mxu0 0.0
    %7595 = vmatprep.subr.mxu0 0.0
    %7596 = vmatpush1.msra.mxu0 0.0
    %7597 = vmatprep.subr.mxu0 0.0
    %7598 = vmatpush1.msra.mxu0 0.0
    %7599 = vmatprep.subr.mxu0 0.0
    %7600 = vmatpush1.msra.mxu0 0.0
    %7601 = vmatprep.subr.mxu0 0.0
    %7602 = vmatpush1.msra.mxu0 0.0
    %7603 = vmatprep.subr.mxu0 0.0
    %7604 = vmatpush1.msra.mxu0 0.0
    %7605 = vmatprep.subr.mxu0 0.0
    %7606 = vmatpush1.msra.mxu0 0.0
    %7607 = vmatprep.subr.mxu0 0.0
    %7608 = vmatpush1.msra.mxu0 0.0
    %7609 = vmatprep.subr.mxu0 %v7577
    %7610 = vmatpush1.msra.mxu0 %v7576
    %7611 = vmatprep.subr.mxu0 %v7575
    %7612 = vmatpush1.msra.mxu0 %v7574
    %7613 = vmatprep.subr.mxu0 0.0
    %7614 = vmatpush2.msra.mxu0 0.0
    %7615 = vmatprep.subr.mxu0 0.0
    %7616 = vmatpush2.msra.mxu0 0.0
    %7617 = vmatprep.subr.mxu0 0.0
    %7618 = vmatpush2.msra.mxu0 0.0
    %7619 = vmatprep.subr.mxu0 0.0
    %7620 = vmatpush2.msra.mxu0 0.0
    %7621 = vmatprep.subr.mxu0 0.0
    %7622 = vmatpush2.msra.mxu0 0.0
    %7623 = vmatprep.subr.mxu0 0.0
    %7624 = vmatpush2.msra.mxu0 0.0
    %7625 = vmatprep.subr.mxu0 0.0
    %7626 = vmatpush2.msra.mxu0 0.0
    %7627 = vmatprep.subr.mxu0 0.0
    %7628 = vmatpush2.msra.mxu0 0.0
    %7629 = vmatprep.subr.mxu0 0.0
    %7630 = vmatpush2.msra.mxu0 0.0
    %7631 = vmatprep.subr.mxu0 0.0
    %7632 = vmatpush2.msra.mxu0 0.0
    %7633 = vmatprep.subr.mxu0 0.0
    %7634 = vmatpush2.msra.mxu0 0.0
    %7635 = vmatprep.subr.mxu0 0.0
    %7636 = vmatpush2.msra.mxu0 0.0
    %7637 = vmatprep.subr.mxu0 0.0
    %7638 = vmatpush2.msra.mxu0 0.0
    %7639 = vmatprep.subr.mxu0 0.0
    %7640 = vmatpush2.msra.mxu0 0.0
    %7641 = vmatprep.subr.mxu0 0.0
    %7642 = vmatpush2.msra.mxu0 0.0
    %7643 = vmatprep.subr.mxu0 0.0
    %7644 = vmatpush2.msra.mxu0 0.0
    %7645 = vmatprep.mubr.f32.mxu0 0.0
    %7646 = vmatmul.mubr.f32.gmra.mxu0 %v7579
    %v7647 = vpop.f32.mrf.mxu0
    %v7648 = vadd.f32 0.0, %v7647
    %v7649 = vpop.f32.mrf.mxu0
    %v7650 = vadd.f32 0.0, %v7649
    %7651 = vdwg.mxu0
    %v7652 = vadd.f32 %v7570, %v7648
    %v7653 = vadd.f32 %v7571, %v7650
    %v7654 = vld [vmem:[#allocation2 + $0x2c] sm:$0x3]
    %s7655 = scalar_lea.vmem %s8, 704
    %v7656 = vld [vmem:[%s7655] sm:$0xff]
    %v7657 = vld [vmem:[%s7655 + $0x8] sm:$0xff]
    %v7658 = vld [vmem:[%s7655 + $0x10] sm:$0xff]
    %v7659 = vld [vmem:[%s7655 + $0x18] sm:$0xff]
    %v7661 = vsel %vm1538, %v7654, 0
    %7663 = vmatprep.subr.mxu0 0.0
    %7664 = vmatpush1.msra.mxu0 0.0
    %7665 = vmatprep.subr.mxu0 0.0
    %7666 = vmatpush1.msra.mxu0 0.0
    %7667 = vmatprep.subr.mxu0 0.0
    %7668 = vmatpush1.msra.mxu0 0.0
    %7669 = vmatprep.subr.mxu0 0.0
    %7670 = vmatpush1.msra.mxu0 0.0
    %7671 = vmatprep.subr.mxu0 0.0
    %7672 = vmatpush1.msra.mxu0 0.0
    %7673 = vmatprep.subr.mxu0 0.0
    %7674 = vmatpush1.msra.mxu0 0.0
    %7675 = vmatprep.subr.mxu0 0.0
    %7676 = vmatpush1.msra.mxu0 0.0
    %7677 = vmatprep.subr.mxu0 0.0
    %7678 = vmatpush1.msra.mxu0 0.0
    %7679 = vmatprep.subr.mxu0 0.0
    %7680 = vmatpush1.msra.mxu0 0.0
    %7681 = vmatprep.subr.mxu0 0.0
    %7682 = vmatpush1.msra.mxu0 0.0
    %7683 = vmatprep.subr.mxu0 0.0
    %7684 = vmatpush1.msra.mxu0 0.0
    %7685 = vmatprep.subr.mxu0 0.0
    %7686 = vmatpush1.msra.mxu0 0.0
    %7687 = vmatprep.subr.mxu0 0.0
    %7688 = vmatpush1.msra.mxu0 0.0
    %7689 = vmatprep.subr.mxu0 0.0
    %7690 = vmatpush1.msra.mxu0 0.0
    %7691 = vmatprep.subr.mxu0 %v7659
    %7692 = vmatpush1.msra.mxu0 %v7658
    %7693 = vmatprep.subr.mxu0 %v7657
    %7694 = vmatpush1.msra.mxu0 %v7656
    %7695 = vmatprep.subr.mxu0 0.0
    %7696 = vmatpush2.msra.mxu0 0.0
    %7697 = vmatprep.subr.mxu0 0.0
    %7698 = vmatpush2.msra.mxu0 0.0
    %7699 = vmatprep.subr.mxu0 0.0
    %7700 = vmatpush2.msra.mxu0 0.0
    %7701 = vmatprep.subr.mxu0 0.0
    %7702 = vmatpush2.msra.mxu0 0.0
    %7703 = vmatprep.subr.mxu0 0.0
    %7704 = vmatpush2.msra.mxu0 0.0
    %7705 = vmatprep.subr.mxu0 0.0
    %7706 = vmatpush2.msra.mxu0 0.0
    %7707 = vmatprep.subr.mxu0 0.0
    %7708 = vmatpush2.msra.mxu0 0.0
    %7709 = vmatprep.subr.mxu0 0.0
    %7710 = vmatpush2.msra.mxu0 0.0
    %7711 = vmatprep.subr.mxu0 0.0
    %7712 = vmatpush2.msra.mxu0 0.0
    %7713 = vmatprep.subr.mxu0 0.0
    %7714 = vmatpush2.msra.mxu0 0.0
    %7715 = vmatprep.subr.mxu0 0.0
    %7716 = vmatpush2.msra.mxu0 0.0
    %7717 = vmatprep.subr.mxu0 0.0
    %7718 = vmatpush2.msra.mxu0 0.0
    %7719 = vmatprep.subr.mxu0 0.0
    %7720 = vmatpush2.msra.mxu0 0.0
    %7721 = vmatprep.subr.mxu0 0.0
    %7722 = vmatpush2.msra.mxu0 0.0
    %7723 = vmatprep.subr.mxu0 0.0
    %7724 = vmatpush2.msra.mxu0 0.0
    %7725 = vmatprep.subr.mxu0 0.0
    %7726 = vmatpush2.msra.mxu0 0.0
    %7727 = vmatprep.mubr.f32.mxu0 0.0
    %7728 = vmatmul.mubr.f32.gmra.mxu0 %v7661
    %v7729 = vpop.f32.mrf.mxu0
    %v7730 = vadd.f32 0.0, %v7729
    %v7731 = vpop.f32.mrf.mxu0
    %v7732 = vadd.f32 0.0, %v7731
    %7733 = vdwg.mxu0
    %v7734 = vadd.f32 %v7652, %v7730
    %v7735 = vadd.f32 %v7653, %v7732
    %v7736 = vld [vmem:[#allocation2 + $0x2e] sm:$0x3]
    %s7737 = scalar_lea.vmem %s8, 736
    %v7738 = vld [vmem:[%s7737] sm:$0xff]
    %v7739 = vld [vmem:[%s7737 + $0x8] sm:$0xff]
    %v7740 = vld [vmem:[%s7737 + $0x10] sm:$0xff]
    %v7741 = vld [vmem:[%s7737 + $0x18] sm:$0xff]
    %v7743 = vsel %vm1538, %v7736, 0
    %7745 = vmatprep.subr.mxu0 0.0
    %7746 = vmatpush1.msra.mxu0 0.0
    %7747 = vmatprep.subr.mxu0 0.0
    %7748 = vmatpush1.msra.mxu0 0.0
    %7749 = vmatprep.subr.mxu0 0.0
    %7750 = vmatpush1.msra.mxu0 0.0
    %7751 = vmatprep.subr.mxu0 0.0
    %7752 = vmatpush1.msra.mxu0 0.0
    %7753 = vmatprep.subr.mxu0 0.0
    %7754 = vmatpush1.msra.mxu0 0.0
    %7755 = vmatprep.subr.mxu0 0.0
    %7756 = vmatpush1.msra.mxu0 0.0
    %7757 = vmatprep.subr.mxu0 0.0
    %7758 = vmatpush1.msra.mxu0 0.0
    %7759 = vmatprep.subr.mxu0 0.0
    %7760 = vmatpush1.msra.mxu0 0.0
    %7761 = vmatprep.subr.mxu0 0.0
    %7762 = vmatpush1.msra.mxu0 0.0
    %7763 = vmatprep.subr.mxu0 0.0
    %7764 = vmatpush1.msra.mxu0 0.0
    %7765 = vmatprep.subr.mxu0 0.0
    %7766 = vmatpush1.msra.mxu0 0.0
    %7767 = vmatprep.subr.mxu0 0.0
    %7768 = vmatpush1.msra.mxu0 0.0
    %7769 = vmatprep.subr.mxu0 0.0
    %7770 = vmatpush1.msra.mxu0 0.0
    %7771 = vmatprep.subr.mxu0 0.0
    %7772 = vmatpush1.msra.mxu0 0.0
    %7773 = vmatprep.subr.mxu0 %v7741
    %7774 = vmatpush1.msra.mxu0 %v7740
    %7775 = vmatprep.subr.mxu0 %v7739
    %7776 = vmatpush1.msra.mxu0 %v7738
    %7777 = vmatprep.subr.mxu0 0.0
    %7778 = vmatpush2.msra.mxu0 0.0
    %7779 = vmatprep.subr.mxu0 0.0
    %7780 = vmatpush2.msra.mxu0 0.0
    %7781 = vmatprep.subr.mxu0 0.0
    %7782 = vmatpush2.msra.mxu0 0.0
    %7783 = vmatprep.subr.mxu0 0.0
    %7784 = vmatpush2.msra.mxu0 0.0
    %7785 = vmatprep.subr.mxu0 0.0
    %7786 = vmatpush2.msra.mxu0 0.0
    %7787 = vmatprep.subr.mxu0 0.0
    %7788 = vmatpush2.msra.mxu0 0.0
    %7789 = vmatprep.subr.mxu0 0.0
    %7790 = vmatpush2.msra.mxu0 0.0
    %7791 = vmatprep.subr.mxu0 0.0
    %7792 = vmatpush2.msra.mxu0 0.0
    %7793 = vmatprep.subr.mxu0 0.0
    %7794 = vmatpush2.msra.mxu0 0.0
    %7795 = vmatprep.subr.mxu0 0.0
    %7796 = vmatpush2.msra.mxu0 0.0
    %7797 = vmatprep.subr.mxu0 0.0
    %7798 = vmatpush2.msra.mxu0 0.0
    %7799 = vmatprep.subr.mxu0 0.0
    %7800 = vmatpush2.msra.mxu0 0.0
    %7801 = vmatprep.subr.mxu0 0.0
    %7802 = vmatpush2.msra.mxu0 0.0
    %7803 = vmatprep.subr.mxu0 0.0
    %7804 = vmatpush2.msra.mxu0 0.0
    %7805 = vmatprep.subr.mxu0 0.0
    %7806 = vmatpush2.msra.mxu0 0.0
    %7807 = vmatprep.subr.mxu0 0.0
    %7808 = vmatpush2.msra.mxu0 0.0
    %7809 = vmatprep.mubr.f32.mxu0 0.0
    %7810 = vmatmul.mubr.f32.gmra.mxu0 %v7743
    %v7811 = vpop.f32.mrf.mxu0
    %v7812 = vadd.f32 0.0, %v7811
    %v7813 = vpop.f32.mrf.mxu0
    %v7814 = vadd.f32 0.0, %v7813
    %7815 = vdwg.mxu0
    %v7816 = vadd.f32 %v7734, %v7812
    %v7817 = vadd.f32 %v7735, %v7814
    %v7818 = vld [vmem:[#allocation2 + $0x30] sm:$0x3]
    %s7819 = scalar_lea.vmem %s8, 768
    %v7820 = vld [vmem:[%s7819] sm:$0xff]
    %v7821 = vld [vmem:[%s7819 + $0x8] sm:$0xff]
    %v7822 = vld [vmem:[%s7819 + $0x10] sm:$0xff]
    %v7823 = vld [vmem:[%s7819 + $0x18] sm:$0xff]
    %v7825 = vsel %vm1538, %v7818, 0
    %7827 = vmatprep.subr.mxu0 0.0
    %7828 = vmatpush1.msra.mxu0 0.0
    %7829 = vmatprep.subr.mxu0 0.0
    %7830 = vmatpush1.msra.mxu0 0.0
    %7831 = vmatprep.subr.mxu0 0.0
    %7832 = vmatpush1.msra.mxu0 0.0
    %7833 = vmatprep.subr.mxu0 0.0
    %7834 = vmatpush1.msra.mxu0 0.0
    %7835 = vmatprep.subr.mxu0 0.0
    %7836 = vmatpush1.msra.mxu0 0.0
    %7837 = vmatprep.subr.mxu0 0.0
    %7838 = vmatpush1.msra.mxu0 0.0
    %7839 = vmatprep.subr.mxu0 0.0
    %7840 = vmatpush1.msra.mxu0 0.0
    %7841 = vmatprep.subr.mxu0 0.0
    %7842 = vmatpush1.msra.mxu0 0.0
    %7843 = vmatprep.subr.mxu0 0.0
    %7844 = vmatpush1.msra.mxu0 0.0
    %7845 = vmatprep.subr.mxu0 0.0
    %7846 = vmatpush1.msra.mxu0 0.0
    %7847 = vmatprep.subr.mxu0 0.0
    %7848 = vmatpush1.msra.mxu0 0.0
    %7849 = vmatprep.subr.mxu0 0.0
    %7850 = vmatpush1.msra.mxu0 0.0
    %7851 = vmatprep.subr.mxu0 0.0
    %7852 = vmatpush1.msra.mxu0 0.0
    %7853 = vmatprep.subr.mxu0 0.0
    %7854 = vmatpush1.msra.mxu0 0.0
    %7855 = vmatprep.subr.mxu0 %v7823
    %7856 = vmatpush1.msra.mxu0 %v7822
    %7857 = vmatprep.subr.mxu0 %v7821
    %7858 = vmatpush1.msra.mxu0 %v7820
    %7859 = vmatprep.subr.mxu0 0.0
    %7860 = vmatpush2.msra.mxu0 0.0
    %7861 = vmatprep.subr.mxu0 0.0
    %7862 = vmatpush2.msra.mxu0 0.0
    %7863 = vmatprep.subr.mxu0 0.0
    %7864 = vmatpush2.msra.mxu0 0.0
    %7865 = vmatprep.subr.mxu0 0.0
    %7866 = vmatpush2.msra.mxu0 0.0
    %7867 = vmatprep.subr.mxu0 0.0
    %7868 = vmatpush2.msra.mxu0 0.0
    %7869 = vmatprep.subr.mxu0 0.0
    %7870 = vmatpush2.msra.mxu0 0.0
    %7871 = vmatprep.subr.mxu0 0.0
    %7872 = vmatpush2.msra.mxu0 0.0
    %7873 = vmatprep.subr.mxu0 0.0
    %7874 = vmatpush2.msra.mxu0 0.0
    %7875 = vmatprep.subr.mxu0 0.0
    %7876 = vmatpush2.msra.mxu0 0.0
    %7877 = vmatprep.subr.mxu0 0.0
    %7878 = vmatpush2.msra.mxu0 0.0
    %7879 = vmatprep.subr.mxu0 0.0
    %7880 = vmatpush2.msra.mxu0 0.0
    %7881 = vmatprep.subr.mxu0 0.0
    %7882 = vmatpush2.msra.mxu0 0.0
    %7883 = vmatprep.subr.mxu0 0.0
    %7884 = vmatpush2.msra.mxu0 0.0
    %7885 = vmatprep.subr.mxu0 0.0
    %7886 = vmatpush2.msra.mxu0 0.0
    %7887 = vmatprep.subr.mxu0 0.0
    %7888 = vmatpush2.msra.mxu0 0.0
    %7889 = vmatprep.subr.mxu0 0.0
    %7890 = vmatpush2.msra.mxu0 0.0
    %7891 = vmatprep.mubr.f32.mxu0 0.0
    %7892 = vmatmul.mubr.f32.gmra.mxu0 %v7825
    %v7893 = vpop.f32.mrf.mxu0
    %v7894 = vadd.f32 0.0, %v7893
    %v7895 = vpop.f32.mrf.mxu0
    %v7896 = vadd.f32 0.0, %v7895
    %7897 = vdwg.mxu0
    %v7898 = vadd.f32 %v7816, %v7894
    %v7899 = vadd.f32 %v7817, %v7896
    %v7900 = vld [vmem:[#allocation2 + $0x32] sm:$0x3]
    %s7901 = scalar_lea.vmem %s8, 800
    %v7902 = vld [vmem:[%s7901] sm:$0xff]
    %v7903 = vld [vmem:[%s7901 + $0x8] sm:$0xff]
    %v7904 = vld [vmem:[%s7901 + $0x10] sm:$0xff]
    %v7905 = vld [vmem:[%s7901 + $0x18] sm:$0xff]
    %v7907 = vsel %vm1538, %v7900, 0
    %7909 = vmatprep.subr.mxu0 0.0
    %7910 = vmatpush1.msra.mxu0 0.0
    %7911 = vmatprep.subr.mxu0 0.0
    %7912 = vmatpush1.msra.mxu0 0.0
    %7913 = vmatprep.subr.mxu0 0.0
    %7914 = vmatpush1.msra.mxu0 0.0
    %7915 = vmatprep.subr.mxu0 0.0
    %7916 = vmatpush1.msra.mxu0 0.0
    %7917 = vmatprep.subr.mxu0 0.0
    %7918 = vmatpush1.msra.mxu0 0.0
    %7919 = vmatprep.subr.mxu0 0.0
    %7920 = vmatpush1.msra.mxu0 0.0
    %7921 = vmatprep.subr.mxu0 0.0
    %7922 = vmatpush1.msra.mxu0 0.0
    %7923 = vmatprep.subr.mxu0 0.0
    %7924 = vmatpush1.msra.mxu0 0.0
    %7925 = vmatprep.subr.mxu0 0.0
    %7926 = vmatpush1.msra.mxu0 0.0
    %7927 = vmatprep.subr.mxu0 0.0
    %7928 = vmatpush1.msra.mxu0 0.0
    %7929 = vmatprep.subr.mxu0 0.0
    %7930 = vmatpush1.msra.mxu0 0.0
    %7931 = vmatprep.subr.mxu0 0.0
    %7932 = vmatpush1.msra.mxu0 0.0
    %7933 = vmatprep.subr.mxu0 0.0
    %7934 = vmatpush1.msra.mxu0 0.0
    %7935 = vmatprep.subr.mxu0 0.0
    %7936 = vmatpush1.msra.mxu0 0.0
    %7937 = vmatprep.subr.mxu0 %v7905
    %7938 = vmatpush1.msra.mxu0 %v7904
    %7939 = vmatprep.subr.mxu0 %v7903
    %7940 = vmatpush1.msra.mxu0 %v7902
    %7941 = vmatprep.subr.mxu0 0.0
    %7942 = vmatpush2.msra.mxu0 0.0
    %7943 = vmatprep.subr.mxu0 0.0
    %7944 = vmatpush2.msra.mxu0 0.0
    %7945 = vmatprep.subr.mxu0 0.0
    %7946 = vmatpush2.msra.mxu0 0.0
    %7947 = vmatprep.subr.mxu0 0.0
    %7948 = vmatpush2.msra.mxu0 0.0
    %7949 = vmatprep.subr.mxu0 0.0
    %7950 = vmatpush2.msra.mxu0 0.0
    %7951 = vmatprep.subr.mxu0 0.0
    %7952 = vmatpush2.msra.mxu0 0.0
    %7953 = vmatprep.subr.mxu0 0.0
    %7954 = vmatpush2.msra.mxu0 0.0
    %7955 = vmatprep.subr.mxu0 0.0
    %7956 = vmatpush2.msra.mxu0 0.0
    %7957 = vmatprep.subr.mxu0 0.0
    %7958 = vmatpush2.msra.mxu0 0.0
    %7959 = vmatprep.subr.mxu0 0.0
    %7960 = vmatpush2.msra.mxu0 0.0
    %7961 = vmatprep.subr.mxu0 0.0
    %7962 = vmatpush2.msra.mxu0 0.0
    %7963 = vmatprep.subr.mxu0 0.0
    %7964 = vmatpush2.msra.mxu0 0.0
    %7965 = vmatprep.subr.mxu0 0.0
    %7966 = vmatpush2.msra.mxu0 0.0
    %7967 = vmatprep.subr.mxu0 0.0
    %7968 = vmatpush2.msra.mxu0 0.0
    %7969 = vmatprep.subr.mxu0 0.0
    %7970 = vmatpush2.msra.mxu0 0.0
    %7971 = vmatprep.subr.mxu0 0.0
    %7972 = vmatpush2.msra.mxu0 0.0
    %7973 = vmatprep.mubr.f32.mxu0 0.0
    %7974 = vmatmul.mubr.f32.gmra.mxu0 %v7907
    %v7975 = vpop.f32.mrf.mxu0
    %v7976 = vadd.f32 0.0, %v7975
    %v7977 = vpop.f32.mrf.mxu0
    %v7978 = vadd.f32 0.0, %v7977
    %7979 = vdwg.mxu0
    %v7980 = vadd.f32 %v7898, %v7976
    %v7981 = vadd.f32 %v7899, %v7978
    %v7982 = vld [vmem:[#allocation2 + $0x34] sm:$0x3]
    %s7983 = scalar_lea.vmem %s8, 832
    %v7984 = vld [vmem:[%s7983] sm:$0xff]
    %v7985 = vld [vmem:[%s7983 + $0x8] sm:$0xff]
    %v7986 = vld [vmem:[%s7983 + $0x10] sm:$0xff]
    %v7987 = vld [vmem:[%s7983 + $0x18] sm:$0xff]
    %v7989 = vsel %vm1538, %v7982, 0
    %7991 = vmatprep.subr.mxu0 0.0
    %7992 = vmatpush1.msra.mxu0 0.0
    %7993 = vmatprep.subr.mxu0 0.0
    %7994 = vmatpush1.msra.mxu0 0.0
    %7995 = vmatprep.subr.mxu0 0.0
    %7996 = vmatpush1.msra.mxu0 0.0
    %7997 = vmatprep.subr.mxu0 0.0
    %7998 = vmatpush1.msra.mxu0 0.0
    %7999 = vmatprep.subr.mxu0 0.0
    %8000 = vmatpush1.msra.mxu0 0.0
    %8001 = vmatprep.subr.mxu0 0.0
    %8002 = vmatpush1.msra.mxu0 0.0
    %8003 = vmatprep.subr.mxu0 0.0
    %8004 = vmatpush1.msra.mxu0 0.0
    %8005 = vmatprep.subr.mxu0 0.0
    %8006 = vmatpush1.msra.mxu0 0.0
    %8007 = vmatprep.subr.mxu0 0.0
    %8008 = vmatpush1.msra.mxu0 0.0
    %8009 = vmatprep.subr.mxu0 0.0
    %8010 = vmatpush1.msra.mxu0 0.0
    %8011 = vmatprep.subr.mxu0 0.0
    %8012 = vmatpush1.msra.mxu0 0.0
    %8013 = vmatprep.subr.mxu0 0.0
    %8014 = vmatpush1.msra.mxu0 0.0
    %8015 = vmatprep.subr.mxu0 0.0
    %8016 = vmatpush1.msra.mxu0 0.0
    %8017 = vmatprep.subr.mxu0 0.0
    %8018 = vmatpush1.msra.mxu0 0.0
    %8019 = vmatprep.subr.mxu0 %v7987
    %8020 = vmatpush1.msra.mxu0 %v7986
    %8021 = vmatprep.subr.mxu0 %v7985
    %8022 = vmatpush1.msra.mxu0 %v7984
    %8023 = vmatprep.subr.mxu0 0.0
    %8024 = vmatpush2.msra.mxu0 0.0
    %8025 = vmatprep.subr.mxu0 0.0
    %8026 = vmatpush2.msra.mxu0 0.0
    %8027 = vmatprep.subr.mxu0 0.0
    %8028 = vmatpush2.msra.mxu0 0.0
    %8029 = vmatprep.subr.mxu0 0.0
    %8030 = vmatpush2.msra.mxu0 0.0
    %8031 = vmatprep.subr.mxu0 0.0
    %8032 = vmatpush2.msra.mxu0 0.0
    %8033 = vmatprep.subr.mxu0 0.0
    %8034 = vmatpush2.msra.mxu0 0.0
    %8035 = vmatprep.subr.mxu0 0.0
    %8036 = vmatpush2.msra.mxu0 0.0
    %8037 = vmatprep.subr.mxu0 0.0
    %8038 = vmatpush2.msra.mxu0 0.0
    %8039 = vmatprep.subr.mxu0 0.0
    %8040 = vmatpush2.msra.mxu0 0.0
    %8041 = vmatprep.subr.mxu0 0.0
    %8042 = vmatpush2.msra.mxu0 0.0
    %8043 = vmatprep.subr.mxu0 0.0
    %8044 = vmatpush2.msra.mxu0 0.0
    %8045 = vmatprep.subr.mxu0 0.0
    %8046 = vmatpush2.msra.mxu0 0.0
    %8047 = vmatprep.subr.mxu0 0.0
    %8048 = vmatpush2.msra.mxu0 0.0
    %8049 = vmatprep.subr.mxu0 0.0
    %8050 = vmatpush2.msra.mxu0 0.0
    %8051 = vmatprep.subr.mxu0 0.0
    %8052 = vmatpush2.msra.mxu0 0.0
    %8053 = vmatprep.subr.mxu0 0.0
    %8054 = vmatpush2.msra.mxu0 0.0
    %8055 = vmatprep.mubr.f32.mxu0 0.0
    %8056 = vmatmul.mubr.f32.gmra.mxu0 %v7989
    %v8057 = vpop.f32.mrf.mxu0
    %v8058 = vadd.f32 0.0, %v8057
    %v8059 = vpop.f32.mrf.mxu0
    %v8060 = vadd.f32 0.0, %v8059
    %8061 = vdwg.mxu0
    %v8062 = vadd.f32 %v7980, %v8058
    %v8063 = vadd.f32 %v7981, %v8060
    %v8064 = vld [vmem:[#allocation2 + $0x36] sm:$0x3]
    %s8065 = scalar_lea.vmem %s8, 864
    %v8066 = vld [vmem:[%s8065] sm:$0xff]
    %v8067 = vld [vmem:[%s8065 + $0x8] sm:$0xff]
    %v8068 = vld [vmem:[%s8065 + $0x10] sm:$0xff]
    %v8069 = vld [vmem:[%s8065 + $0x18] sm:$0xff]
    %v8071 = vsel %vm1538, %v8064, 0
    %8073 = vmatprep.subr.mxu0 0.0
    %8074 = vmatpush1.msra.mxu0 0.0
    %8075 = vmatprep.subr.mxu0 0.0
    %8076 = vmatpush1.msra.mxu0 0.0
    %8077 = vmatprep.subr.mxu0 0.0
    %8078 = vmatpush1.msra.mxu0 0.0
    %8079 = vmatprep.subr.mxu0 0.0
    %8080 = vmatpush1.msra.mxu0 0.0
    %8081 = vmatprep.subr.mxu0 0.0
    %8082 = vmatpush1.msra.mxu0 0.0
    %8083 = vmatprep.subr.mxu0 0.0
    %8084 = vmatpush1.msra.mxu0 0.0
    %8085 = vmatprep.subr.mxu0 0.0
    %8086 = vmatpush1.msra.mxu0 0.0
    %8087 = vmatprep.subr.mxu0 0.0
    %8088 = vmatpush1.msra.mxu0 0.0
    %8089 = vmatprep.subr.mxu0 0.0
    %8090 = vmatpush1.msra.mxu0 0.0
    %8091 = vmatprep.subr.mxu0 0.0
    %8092 = vmatpush1.msra.mxu0 0.0
    %8093 = vmatprep.subr.mxu0 0.0
    %8094 = vmatpush1.msra.mxu0 0.0
    %8095 = vmatprep.subr.mxu0 0.0
    %8096 = vmatpush1.msra.mxu0 0.0
    %8097 = vmatprep.subr.mxu0 0.0
    %8098 = vmatpush1.msra.mxu0 0.0
    %8099 = vmatprep.subr.mxu0 0.0
    %8100 = vmatpush1.msra.mxu0 0.0
    %8101 = vmatprep.subr.mxu0 %v8069
    %8102 = vmatpush1.msra.mxu0 %v8068
    %8103 = vmatprep.subr.mxu0 %v8067
    %8104 = vmatpush1.msra.mxu0 %v8066
    %8105 = vmatprep.subr.mxu0 0.0
    %8106 = vmatpush2.msra.mxu0 0.0
    %8107 = vmatprep.subr.mxu0 0.0
    %8108 = vmatpush2.msra.mxu0 0.0
    %8109 = vmatprep.subr.mxu0 0.0
    %8110 = vmatpush2.msra.mxu0 0.0
    %8111 = vmatprep.subr.mxu0 0.0
    %8112 = vmatpush2.msra.mxu0 0.0
    %8113 = vmatprep.subr.mxu0 0.0
    %8114 = vmatpush2.msra.mxu0 0.0
    %8115 = vmatprep.subr.mxu0 0.0
    %8116 = vmatpush2.msra.mxu0 0.0
    %8117 = vmatprep.subr.mxu0 0.0
    %8118 = vmatpush2.msra.mxu0 0.0
    %8119 = vmatprep.subr.mxu0 0.0
    %8120 = vmatpush2.msra.mxu0 0.0
    %8121 = vmatprep.subr.mxu0 0.0
    %8122 = vmatpush2.msra.mxu0 0.0
    %8123 = vmatprep.subr.mxu0 0.0
    %8124 = vmatpush2.msra.mxu0 0.0
    %8125 = vmatprep.subr.mxu0 0.0
    %8126 = vmatpush2.msra.mxu0 0.0
    %8127 = vmatprep.subr.mxu0 0.0
    %8128 = vmatpush2.msra.mxu0 0.0
    %8129 = vmatprep.subr.mxu0 0.0
    %8130 = vmatpush2.msra.mxu0 0.0
    %8131 = vmatprep.subr.mxu0 0.0
    %8132 = vmatpush2.msra.mxu0 0.0
    %8133 = vmatprep.subr.mxu0 0.0
    %8134 = vmatpush2.msra.mxu0 0.0
    %8135 = vmatprep.subr.mxu0 0.0
    %8136 = vmatpush2.msra.mxu0 0.0
    %8137 = vmatprep.mubr.f32.mxu0 0.0
    %8138 = vmatmul.mubr.f32.gmra.mxu0 %v8071
    %v8139 = vpop.f32.mrf.mxu0
    %v8140 = vadd.f32 0.0, %v8139
    %v8141 = vpop.f32.mrf.mxu0
    %v8142 = vadd.f32 0.0, %v8141
    %8143 = vdwg.mxu0
    %v8144 = vadd.f32 %v8062, %v8140
    %v8145 = vadd.f32 %v8063, %v8142
    %v8146 = vld [vmem:[#allocation2 + $0x38] sm:$0x3]
    %s8147 = scalar_lea.vmem %s8, 896
    %v8148 = vld [vmem:[%s8147] sm:$0xff]
    %v8149 = vld [vmem:[%s8147 + $0x8] sm:$0xff]
    %v8150 = vld [vmem:[%s8147 + $0x10] sm:$0xff]
    %v8151 = vld [vmem:[%s8147 + $0x18] sm:$0xff]
    %v8153 = vsel %vm1538, %v8146, 0
    %8155 = vmatprep.subr.mxu0 0.0
    %8156 = vmatpush1.msra.mxu0 0.0
    %8157 = vmatprep.subr.mxu0 0.0
    %8158 = vmatpush1.msra.mxu0 0.0
    %8159 = vmatprep.subr.mxu0 0.0
    %8160 = vmatpush1.msra.mxu0 0.0
    %8161 = vmatprep.subr.mxu0 0.0
    %8162 = vmatpush1.msra.mxu0 0.0
    %8163 = vmatprep.subr.mxu0 0.0
    %8164 = vmatpush1.msra.mxu0 0.0
    %8165 = vmatprep.subr.mxu0 0.0
    %8166 = vmatpush1.msra.mxu0 0.0
    %8167 = vmatprep.subr.mxu0 0.0
    %8168 = vmatpush1.msra.mxu0 0.0
    %8169 = vmatprep.subr.mxu0 0.0
    %8170 = vmatpush1.msra.mxu0 0.0
    %8171 = vmatprep.subr.mxu0 0.0
    %8172 = vmatpush1.msra.mxu0 0.0
    %8173 = vmatprep.subr.mxu0 0.0
    %8174 = vmatpush1.msra.mxu0 0.0
    %8175 = vmatprep.subr.mxu0 0.0
    %8176 = vmatpush1.msra.mxu0 0.0
    %8177 = vmatprep.subr.mxu0 0.0
    %8178 = vmatpush1.msra.mxu0 0.0
    %8179 = vmatprep.subr.mxu0 0.0
    %8180 = vmatpush1.msra.mxu0 0.0
    %8181 = vmatprep.subr.mxu0 0.0
    %8182 = vmatpush1.msra.mxu0 0.0
    %8183 = vmatprep.subr.mxu0 %v8151
    %8184 = vmatpush1.msra.mxu0 %v8150
    %8185 = vmatprep.subr.mxu0 %v8149
    %8186 = vmatpush1.msra.mxu0 %v8148
    %8187 = vmatprep.subr.mxu0 0.0
    %8188 = vmatpush2.msra.mxu0 0.0
    %8189 = vmatprep.subr.mxu0 0.0
    %8190 = vmatpush2.msra.mxu0 0.0
    %8191 = vmatprep.subr.mxu0 0.0
    %8192 = vmatpush2.msra.mxu0 0.0
    %8193 = vmatprep.subr.mxu0 0.0
    %8194 = vmatpush2.msra.mxu0 0.0
    %8195 = vmatprep.subr.mxu0 0.0
    %8196 = vmatpush2.msra.mxu0 0.0
    %8197 = vmatprep.subr.mxu0 0.0
    %8198 = vmatpush2.msra.mxu0 0.0
    %8199 = vmatprep.subr.mxu0 0.0
    %8200 = vmatpush2.msra.mxu0 0.0
    %8201 = vmatprep.subr.mxu0 0.0
    %8202 = vmatpush2.msra.mxu0 0.0
    %8203 = vmatprep.subr.mxu0 0.0
    %8204 = vmatpush2.msra.mxu0 0.0
    %8205 = vmatprep.subr.mxu0 0.0
    %8206 = vmatpush2.msra.mxu0 0.0
    %8207 = vmatprep.subr.mxu0 0.0
    %8208 = vmatpush2.msra.mxu0 0.0
    %8209 = vmatprep.subr.mxu0 0.0
    %8210 = vmatpush2.msra.mxu0 0.0
    %8211 = vmatprep.subr.mxu0 0.0
    %8212 = vmatpush2.msra.mxu0 0.0
    %8213 = vmatprep.subr.mxu0 0.0
    %8214 = vmatpush2.msra.mxu0 0.0
    %8215 = vmatprep.subr.mxu0 0.0
    %8216 = vmatpush2.msra.mxu0 0.0
    %8217 = vmatprep.subr.mxu0 0.0
    %8218 = vmatpush2.msra.mxu0 0.0
    %8219 = vmatprep.mubr.f32.mxu0 0.0
    %8220 = vmatmul.mubr.f32.gmra.mxu0 %v8153
    %v8221 = vpop.f32.mrf.mxu0
    %v8222 = vadd.f32 0.0, %v8221
    %v8223 = vpop.f32.mrf.mxu0
    %v8224 = vadd.f32 0.0, %v8223
    %8225 = vdwg.mxu0
    %v8226 = vadd.f32 %v8144, %v8222
    %v8227 = vadd.f32 %v8145, %v8224
    %v8228 = vld [vmem:[#allocation2 + $0x3a] sm:$0x3]
    %s8229 = scalar_lea.vmem %s8, 928
    %v8230 = vld [vmem:[%s8229] sm:$0xff]
    %v8231 = vld [vmem:[%s8229 + $0x8] sm:$0xff]
    %v8232 = vld [vmem:[%s8229 + $0x10] sm:$0xff]
    %v8233 = vld [vmem:[%s8229 + $0x18] sm:$0xff]
    %v8235 = vsel %vm1538, %v8228, 0
    %8237 = vmatprep.subr.mxu0 0.0
    %8238 = vmatpush1.msra.mxu0 0.0
    %8239 = vmatprep.subr.mxu0 0.0
    %8240 = vmatpush1.msra.mxu0 0.0
    %8241 = vmatprep.subr.mxu0 0.0
    %8242 = vmatpush1.msra.mxu0 0.0
    %8243 = vmatprep.subr.mxu0 0.0
    %8244 = vmatpush1.msra.mxu0 0.0
    %8245 = vmatprep.subr.mxu0 0.0
    %8246 = vmatpush1.msra.mxu0 0.0
    %8247 = vmatprep.subr.mxu0 0.0
    %8248 = vmatpush1.msra.mxu0 0.0
    %8249 = vmatprep.subr.mxu0 0.0
    %8250 = vmatpush1.msra.mxu0 0.0
    %8251 = vmatprep.subr.mxu0 0.0
    %8252 = vmatpush1.msra.mxu0 0.0
    %8253 = vmatprep.subr.mxu0 0.0
    %8254 = vmatpush1.msra.mxu0 0.0
    %8255 = vmatprep.subr.mxu0 0.0
    %8256 = vmatpush1.msra.mxu0 0.0
    %8257 = vmatprep.subr.mxu0 0.0
    %8258 = vmatpush1.msra.mxu0 0.0
    %8259 = vmatprep.subr.mxu0 0.0
    %8260 = vmatpush1.msra.mxu0 0.0
    %8261 = vmatprep.subr.mxu0 0.0
    %8262 = vmatpush1.msra.mxu0 0.0
    %8263 = vmatprep.subr.mxu0 0.0
    %8264 = vmatpush1.msra.mxu0 0.0
    %8265 = vmatprep.subr.mxu0 %v8233
    %8266 = vmatpush1.msra.mxu0 %v8232
    %8267 = vmatprep.subr.mxu0 %v8231
    %8268 = vmatpush1.msra.mxu0 %v8230
    %8269 = vmatprep.subr.mxu0 0.0
    %8270 = vmatpush2.msra.mxu0 0.0
    %8271 = vmatprep.subr.mxu0 0.0
    %8272 = vmatpush2.msra.mxu0 0.0
    %8273 = vmatprep.subr.mxu0 0.0
    %8274 = vmatpush2.msra.mxu0 0.0
    %8275 = vmatprep.subr.mxu0 0.0
    %8276 = vmatpush2.msra.mxu0 0.0
    %8277 = vmatprep.subr.mxu0 0.0
    %8278 = vmatpush2.msra.mxu0 0.0
    %8279 = vmatprep.subr.mxu0 0.0
    %8280 = vmatpush2.msra.mxu0 0.0
    %8281 = vmatprep.subr.mxu0 0.0
    %8282 = vmatpush2.msra.mxu0 0.0
    %8283 = vmatprep.subr.mxu0 0.0
    %8284 = vmatpush2.msra.mxu0 0.0
    %8285 = vmatprep.subr.mxu0 0.0
    %8286 = vmatpush2.msra.mxu0 0.0
    %8287 = vmatprep.subr.mxu0 0.0
    %8288 = vmatpush2.msra.mxu0 0.0
    %8289 = vmatprep.subr.mxu0 0.0
    %8290 = vmatpush2.msra.mxu0 0.0
    %8291 = vmatprep.subr.mxu0 0.0
    %8292 = vmatpush2.msra.mxu0 0.0
    %8293 = vmatprep.subr.mxu0 0.0
    %8294 = vmatpush2.msra.mxu0 0.0
    %8295 = vmatprep.subr.mxu0 0.0
    %8296 = vmatpush2.msra.mxu0 0.0
    %8297 = vmatprep.subr.mxu0 0.0
    %8298 = vmatpush2.msra.mxu0 0.0
    %8299 = vmatprep.subr.mxu0 0.0
    %8300 = vmatpush2.msra.mxu0 0.0
    %8301 = vmatprep.mubr.f32.mxu0 0.0
    %8302 = vmatmul.mubr.f32.gmra.mxu0 %v8235
    %v8303 = vpop.f32.mrf.mxu0
    %v8304 = vadd.f32 0.0, %v8303
    %v8305 = vpop.f32.mrf.mxu0
    %v8306 = vadd.f32 0.0, %v8305
    %8307 = vdwg.mxu0
    %v8308 = vadd.f32 %v8226, %v8304
    %v8309 = vadd.f32 %v8227, %v8306
    %v8310 = vld [vmem:[#allocation2 + $0x3c] sm:$0x3]
    %s8311 = scalar_lea.vmem %s8, 960
    %v8312 = vld [vmem:[%s8311] sm:$0xff]
    %v8313 = vld [vmem:[%s8311 + $0x8] sm:$0xff]
    %v8314 = vld [vmem:[%s8311 + $0x10] sm:$0xff]
    %v8315 = vld [vmem:[%s8311 + $0x18] sm:$0xff]
    %v8317 = vsel %vm1538, %v8310, 0
    %8319 = vmatprep.subr.mxu0 0.0
    %8320 = vmatpush1.msra.mxu0 0.0
    %8321 = vmatprep.subr.mxu0 0.0
    %8322 = vmatpush1.msra.mxu0 0.0
    %8323 = vmatprep.subr.mxu0 0.0
    %8324 = vmatpush1.msra.mxu0 0.0
    %8325 = vmatprep.subr.mxu0 0.0
    %8326 = vmatpush1.msra.mxu0 0.0
    %8327 = vmatprep.subr.mxu0 0.0
    %8328 = vmatpush1.msra.mxu0 0.0
    %8329 = vmatprep.subr.mxu0 0.0
    %8330 = vmatpush1.msra.mxu0 0.0
    %8331 = vmatprep.subr.mxu0 0.0
    %8332 = vmatpush1.msra.mxu0 0.0
    %8333 = vmatprep.subr.mxu0 0.0
    %8334 = vmatpush1.msra.mxu0 0.0
    %8335 = vmatprep.subr.mxu0 0.0
    %8336 = vmatpush1.msra.mxu0 0.0
    %8337 = vmatprep.subr.mxu0 0.0
    %8338 = vmatpush1.msra.mxu0 0.0
    %8339 = vmatprep.subr.mxu0 0.0
    %8340 = vmatpush1.msra.mxu0 0.0
    %8341 = vmatprep.subr.mxu0 0.0
    %8342 = vmatpush1.msra.mxu0 0.0
    %8343 = vmatprep.subr.mxu0 0.0
    %8344 = vmatpush1.msra.mxu0 0.0
    %8345 = vmatprep.subr.mxu0 0.0
    %8346 = vmatpush1.msra.mxu0 0.0
    %8347 = vmatprep.subr.mxu0 %v8315
    %8348 = vmatpush1.msra.mxu0 %v8314
    %8349 = vmatprep.subr.mxu0 %v8313
    %8350 = vmatpush1.msra.mxu0 %v8312
    %8351 = vmatprep.subr.mxu0 0.0
    %8352 = vmatpush2.msra.mxu0 0.0
    %8353 = vmatprep.subr.mxu0 0.0
    %8354 = vmatpush2.msra.mxu0 0.0
    %8355 = vmatprep.subr.mxu0 0.0
    %8356 = vmatpush2.msra.mxu0 0.0
    %8357 = vmatprep.subr.mxu0 0.0
    %8358 = vmatpush2.msra.mxu0 0.0
    %8359 = vmatprep.subr.mxu0 0.0
    %8360 = vmatpush2.msra.mxu0 0.0
    %8361 = vmatprep.subr.mxu0 0.0
    %8362 = vmatpush2.msra.mxu0 0.0
    %8363 = vmatprep.subr.mxu0 0.0
    %8364 = vmatpush2.msra.mxu0 0.0
    %8365 = vmatprep.subr.mxu0 0.0
    %8366 = vmatpush2.msra.mxu0 0.0
    %8367 = vmatprep.subr.mxu0 0.0
    %8368 = vmatpush2.msra.mxu0 0.0
    %8369 = vmatprep.subr.mxu0 0.0
    %8370 = vmatpush2.msra.mxu0 0.0
    %8371 = vmatprep.subr.mxu0 0.0
    %8372 = vmatpush2.msra.mxu0 0.0
    %8373 = vmatprep.subr.mxu0 0.0
    %8374 = vmatpush2.msra.mxu0 0.0
    %8375 = vmatprep.subr.mxu0 0.0
    %8376 = vmatpush2.msra.mxu0 0.0
    %8377 = vmatprep.subr.mxu0 0.0
    %8378 = vmatpush2.msra.mxu0 0.0
    %8379 = vmatprep.subr.mxu0 0.0
    %8380 = vmatpush2.msra.mxu0 0.0
    %8381 = vmatprep.subr.mxu0 0.0
    %8382 = vmatpush2.msra.mxu0 0.0
    %8383 = vmatprep.mubr.f32.mxu0 0.0
    %8384 = vmatmul.mubr.f32.gmra.mxu0 %v8317
    %v8385 = vpop.f32.mrf.mxu0
    %v8386 = vadd.f32 0.0, %v8385
    %v8387 = vpop.f32.mrf.mxu0
    %v8388 = vadd.f32 0.0, %v8387
    %8389 = vdwg.mxu0
    %v8390 = vadd.f32 %v8308, %v8386
    %v8391 = vadd.f32 %v8309, %v8388
    %v8392 = vld [vmem:[#allocation2 + $0x3e] sm:$0x3]
    %s8393 = scalar_lea.vmem %s8, 992
    %v8394 = vld [vmem:[%s8393] sm:$0xff]
    %v8395 = vld [vmem:[%s8393 + $0x8] sm:$0xff]
    %v8396 = vld [vmem:[%s8393 + $0x10] sm:$0xff]
    %v8397 = vld [vmem:[%s8393 + $0x18] sm:$0xff]
    %v8399 = vsel %vm1538, %v8392, 0
    %8401 = vmatprep.subr.mxu0 0.0
    %8402 = vmatpush1.msra.mxu0 0.0
    %8403 = vmatprep.subr.mxu0 0.0
    %8404 = vmatpush1.msra.mxu0 0.0
    %8405 = vmatprep.subr.mxu0 0.0
    %8406 = vmatpush1.msra.mxu0 0.0
    %8407 = vmatprep.subr.mxu0 0.0
    %8408 = vmatpush1.msra.mxu0 0.0
    %8409 = vmatprep.subr.mxu0 0.0
    %8410 = vmatpush1.msra.mxu0 0.0
    %8411 = vmatprep.subr.mxu0 0.0
    %8412 = vmatpush1.msra.mxu0 0.0
    %8413 = vmatprep.subr.mxu0 0.0
    %8414 = vmatpush1.msra.mxu0 0.0
    %8415 = vmatprep.subr.mxu0 0.0
    %8416 = vmatpush1.msra.mxu0 0.0
    %8417 = vmatprep.subr.mxu0 0.0
    %8418 = vmatpush1.msra.mxu0 0.0
    %8419 = vmatprep.subr.mxu0 0.0
    %8420 = vmatpush1.msra.mxu0 0.0
    %8421 = vmatprep.subr.mxu0 0.0
    %8422 = vmatpush1.msra.mxu0 0.0
    %8423 = vmatprep.subr.mxu0 0.0
    %8424 = vmatpush1.msra.mxu0 0.0
    %8425 = vmatprep.subr.mxu0 0.0
    %8426 = vmatpush1.msra.mxu0 0.0
    %8427 = vmatprep.subr.mxu0 0.0
    %8428 = vmatpush1.msra.mxu0 0.0
    %8429 = vmatprep.subr.mxu0 %v8397
    %8430 = vmatpush1.msra.mxu0 %v8396
    %8431 = vmatprep.subr.mxu0 %v8395
    %8432 = vmatpush1.msra.mxu0 %v8394
    %8433 = vmatprep.subr.mxu0 0.0
    %8434 = vmatpush2.msra.mxu0 0.0
    %8435 = vmatprep.subr.mxu0 0.0
    %8436 = vmatpush2.msra.mxu0 0.0
    %8437 = vmatprep.subr.mxu0 0.0
    %8438 = vmatpush2.msra.mxu0 0.0
    %8439 = vmatprep.subr.mxu0 0.0
    %8440 = vmatpush2.msra.mxu0 0.0
    %8441 = vmatprep.subr.mxu0 0.0
    %8442 = vmatpush2.msra.mxu0 0.0
    %8443 = vmatprep.subr.mxu0 0.0
    %8444 = vmatpush2.msra.mxu0 0.0
    %8445 = vmatprep.subr.mxu0 0.0
    %8446 = vmatpush2.msra.mxu0 0.0
    %8447 = vmatprep.subr.mxu0 0.0
    %8448 = vmatpush2.msra.mxu0 0.0
    %8449 = vmatprep.subr.mxu0 0.0
    %8450 = vmatpush2.msra.mxu0 0.0
    %8451 = vmatprep.subr.mxu0 0.0
    %8452 = vmatpush2.msra.mxu0 0.0
    %8453 = vmatprep.subr.mxu0 0.0
    %8454 = vmatpush2.msra.mxu0 0.0
    %8455 = vmatprep.subr.mxu0 0.0
    %8456 = vmatpush2.msra.mxu0 0.0
    %8457 = vmatprep.subr.mxu0 0.0
    %8458 = vmatpush2.msra.mxu0 0.0
    %8459 = vmatprep.subr.mxu0 0.0
    %8460 = vmatpush2.msra.mxu0 0.0
    %8461 = vmatprep.subr.mxu0 0.0
    %8462 = vmatpush2.msra.mxu0 0.0
    %8463 = vmatprep.subr.mxu0 0.0
    %8464 = vmatpush2.msra.mxu0 0.0
    %8465 = vmatprep.mubr.f32.mxu0 0.0
    %8466 = vmatmul.mubr.f32.gmra.mxu0 %v8399
    %v8467 = vpop.f32.mrf.mxu0
    %v8468 = vadd.f32 0.0, %v8467
    %v8469 = vpop.f32.mrf.mxu0
    %v8470 = vadd.f32 0.0, %v8469
    %8471 = vdwg.mxu0
    %v8472 = vadd.f32 %v8390, %v8468
    %v8473 = vadd.f32 %v8391, %v8470
    %v8474 = vld [vmem:[#allocation2 + $0x40] sm:$0x3]
    %s8475 = scalar_lea.vmem %s8, 1024
    %v8476 = vld [vmem:[%s8475] sm:$0xff]
    %v8477 = vld [vmem:[%s8475 + $0x8] sm:$0xff]
    %v8478 = vld [vmem:[%s8475 + $0x10] sm:$0xff]
    %v8479 = vld [vmem:[%s8475 + $0x18] sm:$0xff]
    %v8481 = vsel %vm1538, %v8474, 0
    %8483 = vmatprep.subr.mxu0 0.0
    %8484 = vmatpush1.msra.mxu0 0.0
    %8485 = vmatprep.subr.mxu0 0.0
    %8486 = vmatpush1.msra.mxu0 0.0
    %8487 = vmatprep.subr.mxu0 0.0
    %8488 = vmatpush1.msra.mxu0 0.0
    %8489 = vmatprep.subr.mxu0 0.0
    %8490 = vmatpush1.msra.mxu0 0.0
    %8491 = vmatprep.subr.mxu0 0.0
    %8492 = vmatpush1.msra.mxu0 0.0
    %8493 = vmatprep.subr.mxu0 0.0
    %8494 = vmatpush1.msra.mxu0 0.0
    %8495 = vmatprep.subr.mxu0 0.0
    %8496 = vmatpush1.msra.mxu0 0.0
    %8497 = vmatprep.subr.mxu0 0.0
    %8498 = vmatpush1.msra.mxu0 0.0
    %8499 = vmatprep.subr.mxu0 0.0
    %8500 = vmatpush1.msra.mxu0 0.0
    %8501 = vmatprep.subr.mxu0 0.0
    %8502 = vmatpush1.msra.mxu0 0.0
    %8503 = vmatprep.subr.mxu0 0.0
    %8504 = vmatpush1.msra.mxu0 0.0
    %8505 = vmatprep.subr.mxu0 0.0
    %8506 = vmatpush1.msra.mxu0 0.0
    %8507 = vmatprep.subr.mxu0 0.0
    %8508 = vmatpush1.msra.mxu0 0.0
    %8509 = vmatprep.subr.mxu0 0.0
    %8510 = vmatpush1.msra.mxu0 0.0
    %8511 = vmatprep.subr.mxu0 %v8479
    %8512 = vmatpush1.msra.mxu0 %v8478
    %8513 = vmatprep.subr.mxu0 %v8477
    %8514 = vmatpush1.msra.mxu0 %v8476
    %8515 = vmatprep.subr.mxu0 0.0
    %8516 = vmatpush2.msra.mxu0 0.0
    %8517 = vmatprep.subr.mxu0 0.0
    %8518 = vmatpush2.msra.mxu0 0.0
    %8519 = vmatprep.subr.mxu0 0.0
    %8520 = vmatpush2.msra.mxu0 0.0
    %8521 = vmatprep.subr.mxu0 0.0
    %8522 = vmatpush2.msra.mxu0 0.0
    %8523 = vmatprep.subr.mxu0 0.0
    %8524 = vmatpush2.msra.mxu0 0.0
    %8525 = vmatprep.subr.mxu0 0.0
    %8526 = vmatpush2.msra.mxu0 0.0
    %8527 = vmatprep.subr.mxu0 0.0
    %8528 = vmatpush2.msra.mxu0 0.0
    %8529 = vmatprep.subr.mxu0 0.0
    %8530 = vmatpush2.msra.mxu0 0.0
    %8531 = vmatprep.subr.mxu0 0.0
    %8532 = vmatpush2.msra.mxu0 0.0
    %8533 = vmatprep.subr.mxu0 0.0
    %8534 = vmatpush2.msra.mxu0 0.0
    %8535 = vmatprep.subr.mxu0 0.0
    %8536 = vmatpush2.msra.mxu0 0.0
    %8537 = vmatprep.subr.mxu0 0.0
    %8538 = vmatpush2.msra.mxu0 0.0
    %8539 = vmatprep.subr.mxu0 0.0
    %8540 = vmatpush2.msra.mxu0 0.0
    %8541 = vmatprep.subr.mxu0 0.0
    %8542 = vmatpush2.msra.mxu0 0.0
    %8543 = vmatprep.subr.mxu0 0.0
    %8544 = vmatpush2.msra.mxu0 0.0
    %8545 = vmatprep.subr.mxu0 0.0
    %8546 = vmatpush2.msra.mxu0 0.0
    %8547 = vmatprep.mubr.f32.mxu0 0.0
    %8548 = vmatmul.mubr.f32.gmra.mxu0 %v8481
    %v8549 = vpop.f32.mrf.mxu0
    %v8550 = vadd.f32 0.0, %v8549
    %v8551 = vpop.f32.mrf.mxu0
    %v8552 = vadd.f32 0.0, %v8551
    %8553 = vdwg.mxu0
    %v8554 = vadd.f32 %v8472, %v8550
    %v8555 = vadd.f32 %v8473, %v8552
    %v8556 = vld [vmem:[#allocation2 + $0x42] sm:$0x3]
    %s8557 = scalar_lea.vmem %s8, 1056
    %v8558 = vld [vmem:[%s8557] sm:$0xff]
    %v8559 = vld [vmem:[%s8557 + $0x8] sm:$0xff]
    %v8560 = vld [vmem:[%s8557 + $0x10] sm:$0xff]
    %v8561 = vld [vmem:[%s8557 + $0x18] sm:$0xff]
    %v8563 = vsel %vm1538, %v8556, 0
    %8565 = vmatprep.subr.mxu0 0.0
    %8566 = vmatpush1.msra.mxu0 0.0
    %8567 = vmatprep.subr.mxu0 0.0
    %8568 = vmatpush1.msra.mxu0 0.0
    %8569 = vmatprep.subr.mxu0 0.0
    %8570 = vmatpush1.msra.mxu0 0.0
    %8571 = vmatprep.subr.mxu0 0.0
    %8572 = vmatpush1.msra.mxu0 0.0
    %8573 = vmatprep.subr.mxu0 0.0
    %8574 = vmatpush1.msra.mxu0 0.0
    %8575 = vmatprep.subr.mxu0 0.0
    %8576 = vmatpush1.msra.mxu0 0.0
    %8577 = vmatprep.subr.mxu0 0.0
    %8578 = vmatpush1.msra.mxu0 0.0
    %8579 = vmatprep.subr.mxu0 0.0
    %8580 = vmatpush1.msra.mxu0 0.0
    %8581 = vmatprep.subr.mxu0 0.0
    %8582 = vmatpush1.msra.mxu0 0.0
    %8583 = vmatprep.subr.mxu0 0.0
    %8584 = vmatpush1.msra.mxu0 0.0
    %8585 = vmatprep.subr.mxu0 0.0
    %8586 = vmatpush1.msra.mxu0 0.0
    %8587 = vmatprep.subr.mxu0 0.0
    %8588 = vmatpush1.msra.mxu0 0.0
    %8589 = vmatprep.subr.mxu0 0.0
    %8590 = vmatpush1.msra.mxu0 0.0
    %8591 = vmatprep.subr.mxu0 0.0
    %8592 = vmatpush1.msra.mxu0 0.0
    %8593 = vmatprep.subr.mxu0 %v8561
    %8594 = vmatpush1.msra.mxu0 %v8560
    %8595 = vmatprep.subr.mxu0 %v8559
    %8596 = vmatpush1.msra.mxu0 %v8558
    %8597 = vmatprep.subr.mxu0 0.0
    %8598 = vmatpush2.msra.mxu0 0.0
    %8599 = vmatprep.subr.mxu0 0.0
    %8600 = vmatpush2.msra.mxu0 0.0
    %8601 = vmatprep.subr.mxu0 0.0
    %8602 = vmatpush2.msra.mxu0 0.0
    %8603 = vmatprep.subr.mxu0 0.0
    %8604 = vmatpush2.msra.mxu0 0.0
    %8605 = vmatprep.subr.mxu0 0.0
    %8606 = vmatpush2.msra.mxu0 0.0
    %8607 = vmatprep.subr.mxu0 0.0
    %8608 = vmatpush2.msra.mxu0 0.0
    %8609 = vmatprep.subr.mxu0 0.0
    %8610 = vmatpush2.msra.mxu0 0.0
    %8611 = vmatprep.subr.mxu0 0.0
    %8612 = vmatpush2.msra.mxu0 0.0
    %8613 = vmatprep.subr.mxu0 0.0
    %8614 = vmatpush2.msra.mxu0 0.0
    %8615 = vmatprep.subr.mxu0 0.0
    %8616 = vmatpush2.msra.mxu0 0.0
    %8617 = vmatprep.subr.mxu0 0.0
    %8618 = vmatpush2.msra.mxu0 0.0
    %8619 = vmatprep.subr.mxu0 0.0
    %8620 = vmatpush2.msra.mxu0 0.0
    %8621 = vmatprep.subr.mxu0 0.0
    %8622 = vmatpush2.msra.mxu0 0.0
    %8623 = vmatprep.subr.mxu0 0.0
    %8624 = vmatpush2.msra.mxu0 0.0
    %8625 = vmatprep.subr.mxu0 0.0
    %8626 = vmatpush2.msra.mxu0 0.0
    %8627 = vmatprep.subr.mxu0 0.0
    %8628 = vmatpush2.msra.mxu0 0.0
    %8629 = vmatprep.mubr.f32.mxu0 0.0
    %8630 = vmatmul.mubr.f32.gmra.mxu0 %v8563
    %v8631 = vpop.f32.mrf.mxu0
    %v8632 = vadd.f32 0.0, %v8631
    %v8633 = vpop.f32.mrf.mxu0
    %v8634 = vadd.f32 0.0, %v8633
    %8635 = vdwg.mxu0
    %v8636 = vadd.f32 %v8554, %v8632
    %v8637 = vadd.f32 %v8555, %v8634
    %v8638 = vld [vmem:[#allocation2 + $0x44] sm:$0x3]
    %s8639 = scalar_lea.vmem %s8, 1088
    %v8640 = vld [vmem:[%s8639] sm:$0xff]
    %v8641 = vld [vmem:[%s8639 + $0x8] sm:$0xff]
    %v8642 = vld [vmem:[%s8639 + $0x10] sm:$0xff]
    %v8643 = vld [vmem:[%s8639 + $0x18] sm:$0xff]
    %v8645 = vsel %vm1538, %v8638, 0
    %8647 = vmatprep.subr.mxu0 0.0
    %8648 = vmatpush1.msra.mxu0 0.0
    %8649 = vmatprep.subr.mxu0 0.0
    %8650 = vmatpush1.msra.mxu0 0.0
    %8651 = vmatprep.subr.mxu0 0.0
    %8652 = vmatpush1.msra.mxu0 0.0
    %8653 = vmatprep.subr.mxu0 0.0
    %8654 = vmatpush1.msra.mxu0 0.0
    %8655 = vmatprep.subr.mxu0 0.0
    %8656 = vmatpush1.msra.mxu0 0.0
    %8657 = vmatprep.subr.mxu0 0.0
    %8658 = vmatpush1.msra.mxu0 0.0
    %8659 = vmatprep.subr.mxu0 0.0
    %8660 = vmatpush1.msra.mxu0 0.0
    %8661 = vmatprep.subr.mxu0 0.0
    %8662 = vmatpush1.msra.mxu0 0.0
    %8663 = vmatprep.subr.mxu0 0.0
    %8664 = vmatpush1.msra.mxu0 0.0
    %8665 = vmatprep.subr.mxu0 0.0
    %8666 = vmatpush1.msra.mxu0 0.0
    %8667 = vmatprep.subr.mxu0 0.0
    %8668 = vmatpush1.msra.mxu0 0.0
    %8669 = vmatprep.subr.mxu0 0.0
    %8670 = vmatpush1.msra.mxu0 0.0
    %8671 = vmatprep.subr.mxu0 0.0
    %8672 = vmatpush1.msra.mxu0 0.0
    %8673 = vmatprep.subr.mxu0 0.0
    %8674 = vmatpush1.msra.mxu0 0.0
    %8675 = vmatprep.subr.mxu0 %v8643
    %8676 = vmatpush1.msra.mxu0 %v8642
    %8677 = vmatprep.subr.mxu0 %v8641
    %8678 = vmatpush1.msra.mxu0 %v8640
    %8679 = vmatprep.subr.mxu0 0.0
    %8680 = vmatpush2.msra.mxu0 0.0
    %8681 = vmatprep.subr.mxu0 0.0
    %8682 = vmatpush2.msra.mxu0 0.0
    %8683 = vmatprep.subr.mxu0 0.0
    %8684 = vmatpush2.msra.mxu0 0.0
    %8685 = vmatprep.subr.mxu0 0.0
    %8686 = vmatpush2.msra.mxu0 0.0
    %8687 = vmatprep.subr.mxu0 0.0
    %8688 = vmatpush2.msra.mxu0 0.0
    %8689 = vmatprep.subr.mxu0 0.0
    %8690 = vmatpush2.msra.mxu0 0.0
    %8691 = vmatprep.subr.mxu0 0.0
    %8692 = vmatpush2.msra.mxu0 0.0
    %8693 = vmatprep.subr.mxu0 0.0
    %8694 = vmatpush2.msra.mxu0 0.0
    %8695 = vmatprep.subr.mxu0 0.0
    %8696 = vmatpush2.msra.mxu0 0.0
    %8697 = vmatprep.subr.mxu0 0.0
    %8698 = vmatpush2.msra.mxu0 0.0
    %8699 = vmatprep.subr.mxu0 0.0
    %8700 = vmatpush2.msra.mxu0 0.0
    %8701 = vmatprep.subr.mxu0 0.0
    %8702 = vmatpush2.msra.mxu0 0.0
    %8703 = vmatprep.subr.mxu0 0.0
    %8704 = vmatpush2.msra.mxu0 0.0
    %8705 = vmatprep.subr.mxu0 0.0
    %8706 = vmatpush2.msra.mxu0 0.0
    %8707 = vmatprep.subr.mxu0 0.0
    %8708 = vmatpush2.msra.mxu0 0.0
    %8709 = vmatprep.subr.mxu0 0.0
    %8710 = vmatpush2.msra.mxu0 0.0
    %8711 = vmatprep.mubr.f32.mxu0 0.0
    %8712 = vmatmul.mubr.f32.gmra.mxu0 %v8645
    %v8713 = vpop.f32.mrf.mxu0
    %v8714 = vadd.f32 0.0, %v8713
    %v8715 = vpop.f32.mrf.mxu0
    %v8716 = vadd.f32 0.0, %v8715
    %8717 = vdwg.mxu0
    %v8718 = vadd.f32 %v8636, %v8714
    %v8719 = vadd.f32 %v8637, %v8716
    %v8720 = vld [vmem:[#allocation2 + $0x46] sm:$0x3]
    %s8721 = scalar_lea.vmem %s8, 1120
    %v8722 = vld [vmem:[%s8721] sm:$0xff]
    %v8723 = vld [vmem:[%s8721 + $0x8] sm:$0xff]
    %v8724 = vld [vmem:[%s8721 + $0x10] sm:$0xff]
    %v8725 = vld [vmem:[%s8721 + $0x18] sm:$0xff]
    %v8727 = vsel %vm1538, %v8720, 0
    %8729 = vmatprep.subr.mxu0 0.0
    %8730 = vmatpush1.msra.mxu0 0.0
    %8731 = vmatprep.subr.mxu0 0.0
    %8732 = vmatpush1.msra.mxu0 0.0
    %8733 = vmatprep.subr.mxu0 0.0
    %8734 = vmatpush1.msra.mxu0 0.0
    %8735 = vmatprep.subr.mxu0 0.0
    %8736 = vmatpush1.msra.mxu0 0.0
    %8737 = vmatprep.subr.mxu0 0.0
    %8738 = vmatpush1.msra.mxu0 0.0
    %8739 = vmatprep.subr.mxu0 0.0
    %8740 = vmatpush1.msra.mxu0 0.0
    %8741 = vmatprep.subr.mxu0 0.0
    %8742 = vmatpush1.msra.mxu0 0.0
    %8743 = vmatprep.subr.mxu0 0.0
    %8744 = vmatpush1.msra.mxu0 0.0
    %8745 = vmatprep.subr.mxu0 0.0
    %8746 = vmatpush1.msra.mxu0 0.0
    %8747 = vmatprep.subr.mxu0 0.0
    %8748 = vmatpush1.msra.mxu0 0.0
    %8749 = vmatprep.subr.mxu0 0.0
    %8750 = vmatpush1.msra.mxu0 0.0
    %8751 = vmatprep.subr.mxu0 0.0
    %8752 = vmatpush1.msra.mxu0 0.0
    %8753 = vmatprep.subr.mxu0 0.0
    %8754 = vmatpush1.msra.mxu0 0.0
    %8755 = vmatprep.subr.mxu0 0.0
    %8756 = vmatpush1.msra.mxu0 0.0
    %8757 = vmatprep.subr.mxu0 %v8725
    %8758 = vmatpush1.msra.mxu0 %v8724
    %8759 = vmatprep.subr.mxu0 %v8723
    %8760 = vmatpush1.msra.mxu0 %v8722
    %8761 = vmatprep.subr.mxu0 0.0
    %8762 = vmatpush2.msra.mxu0 0.0
    %8763 = vmatprep.subr.mxu0 0.0
    %8764 = vmatpush2.msra.mxu0 0.0
    %8765 = vmatprep.subr.mxu0 0.0
    %8766 = vmatpush2.msra.mxu0 0.0
    %8767 = vmatprep.subr.mxu0 0.0
    %8768 = vmatpush2.msra.mxu0 0.0
    %8769 = vmatprep.subr.mxu0 0.0
    %8770 = vmatpush2.msra.mxu0 0.0
    %8771 = vmatprep.subr.mxu0 0.0
    %8772 = vmatpush2.msra.mxu0 0.0
    %8773 = vmatprep.subr.mxu0 0.0
    %8774 = vmatpush2.msra.mxu0 0.0
    %8775 = vmatprep.subr.mxu0 0.0
    %8776 = vmatpush2.msra.mxu0 0.0
    %8777 = vmatprep.subr.mxu0 0.0
    %8778 = vmatpush2.msra.mxu0 0.0
    %8779 = vmatprep.subr.mxu0 0.0
    %8780 = vmatpush2.msra.mxu0 0.0
    %8781 = vmatprep.subr.mxu0 0.0
    %8782 = vmatpush2.msra.mxu0 0.0
    %8783 = vmatprep.subr.mxu0 0.0
    %8784 = vmatpush2.msra.mxu0 0.0
    %8785 = vmatprep.subr.mxu0 0.0
    %8786 = vmatpush2.msra.mxu0 0.0
    %8787 = vmatprep.subr.mxu0 0.0
    %8788 = vmatpush2.msra.mxu0 0.0
    %8789 = vmatprep.subr.mxu0 0.0
    %8790 = vmatpush2.msra.mxu0 0.0
    %8791 = vmatprep.subr.mxu0 0.0
    %8792 = vmatpush2.msra.mxu0 0.0
    %8793 = vmatprep.mubr.f32.mxu0 0.0
    %8794 = vmatmul.mubr.f32.gmra.mxu0 %v8727
    %v8795 = vpop.f32.mrf.mxu0
    %v8796 = vadd.f32 0.0, %v8795
    %v8797 = vpop.f32.mrf.mxu0
    %v8798 = vadd.f32 0.0, %v8797
    %8799 = vdwg.mxu0
    %v8800 = vadd.f32 %v8718, %v8796
    %v8801 = vadd.f32 %v8719, %v8798
    %v8802 = vld [vmem:[#allocation2 + $0x48] sm:$0x3]
    %s8803 = scalar_lea.vmem %s8, 1152
    %v8804 = vld [vmem:[%s8803] sm:$0xff]
    %v8805 = vld [vmem:[%s8803 + $0x8] sm:$0xff]
    %v8806 = vld [vmem:[%s8803 + $0x10] sm:$0xff]
    %v8807 = vld [vmem:[%s8803 + $0x18] sm:$0xff]
    %v8809 = vsel %vm1538, %v8802, 0
    %8811 = vmatprep.subr.mxu0 0.0
    %8812 = vmatpush1.msra.mxu0 0.0
    %8813 = vmatprep.subr.mxu0 0.0
    %8814 = vmatpush1.msra.mxu0 0.0
    %8815 = vmatprep.subr.mxu0 0.0
    %8816 = vmatpush1.msra.mxu0 0.0
    %8817 = vmatprep.subr.mxu0 0.0
    %8818 = vmatpush1.msra.mxu0 0.0
    %8819 = vmatprep.subr.mxu0 0.0
    %8820 = vmatpush1.msra.mxu0 0.0
    %8821 = vmatprep.subr.mxu0 0.0
    %8822 = vmatpush1.msra.mxu0 0.0
    %8823 = vmatprep.subr.mxu0 0.0
    %8824 = vmatpush1.msra.mxu0 0.0
    %8825 = vmatprep.subr.mxu0 0.0
    %8826 = vmatpush1.msra.mxu0 0.0
    %8827 = vmatprep.subr.mxu0 0.0
    %8828 = vmatpush1.msra.mxu0 0.0
    %8829 = vmatprep.subr.mxu0 0.0
    %8830 = vmatpush1.msra.mxu0 0.0
    %8831 = vmatprep.subr.mxu0 0.0
    %8832 = vmatpush1.msra.mxu0 0.0
    %8833 = vmatprep.subr.mxu0 0.0
    %8834 = vmatpush1.msra.mxu0 0.0
    %8835 = vmatprep.subr.mxu0 0.0
    %8836 = vmatpush1.msra.mxu0 0.0
    %8837 = vmatprep.subr.mxu0 0.0
    %8838 = vmatpush1.msra.mxu0 0.0
    %8839 = vmatprep.subr.mxu0 %v8807
    %8840 = vmatpush1.msra.mxu0 %v8806
    %8841 = vmatprep.subr.mxu0 %v8805
    %8842 = vmatpush1.msra.mxu0 %v8804
    %8843 = vmatprep.subr.mxu0 0.0
    %8844 = vmatpush2.msra.mxu0 0.0
    %8845 = vmatprep.subr.mxu0 0.0
    %8846 = vmatpush2.msra.mxu0 0.0
    %8847 = vmatprep.subr.mxu0 0.0
    %8848 = vmatpush2.msra.mxu0 0.0
    %8849 = vmatprep.subr.mxu0 0.0
    %8850 = vmatpush2.msra.mxu0 0.0
    %8851 = vmatprep.subr.mxu0 0.0
    %8852 = vmatpush2.msra.mxu0 0.0
    %8853 = vmatprep.subr.mxu0 0.0
    %8854 = vmatpush2.msra.mxu0 0.0
    %8855 = vmatprep.subr.mxu0 0.0
    %8856 = vmatpush2.msra.mxu0 0.0
    %8857 = vmatprep.subr.mxu0 0.0
    %8858 = vmatpush2.msra.mxu0 0.0
    %8859 = vmatprep.subr.mxu0 0.0
    %8860 = vmatpush2.msra.mxu0 0.0
    %8861 = vmatprep.subr.mxu0 0.0
    %8862 = vmatpush2.msra.mxu0 0.0
    %8863 = vmatprep.subr.mxu0 0.0
    %8864 = vmatpush2.msra.mxu0 0.0
    %8865 = vmatprep.subr.mxu0 0.0
    %8866 = vmatpush2.msra.mxu0 0.0
    %8867 = vmatprep.subr.mxu0 0.0
    %8868 = vmatpush2.msra.mxu0 0.0
    %8869 = vmatprep.subr.mxu0 0.0
    %8870 = vmatpush2.msra.mxu0 0.0
    %8871 = vmatprep.subr.mxu0 0.0
    %8872 = vmatpush2.msra.mxu0 0.0
    %8873 = vmatprep.subr.mxu0 0.0
    %8874 = vmatpush2.msra.mxu0 0.0
    %8875 = vmatprep.mubr.f32.mxu0 0.0
    %8876 = vmatmul.mubr.f32.gmra.mxu0 %v8809
    %v8877 = vpop.f32.mrf.mxu0
    %v8878 = vadd.f32 0.0, %v8877
    %v8879 = vpop.f32.mrf.mxu0
    %v8880 = vadd.f32 0.0, %v8879
    %8881 = vdwg.mxu0
    %v8882 = vadd.f32 %v8800, %v8878
    %v8883 = vadd.f32 %v8801, %v8880
    %v8884 = vld [vmem:[#allocation2 + $0x4a] sm:$0x3]
    %s8885 = scalar_lea.vmem %s8, 1184
    %v8886 = vld [vmem:[%s8885] sm:$0xff]
    %v8887 = vld [vmem:[%s8885 + $0x8] sm:$0xff]
    %v8888 = vld [vmem:[%s8885 + $0x10] sm:$0xff]
    %v8889 = vld [vmem:[%s8885 + $0x18] sm:$0xff]
    %v8891 = vsel %vm1538, %v8884, 0
    %8893 = vmatprep.subr.mxu0 0.0
    %8894 = vmatpush1.msra.mxu0 0.0
    %8895 = vmatprep.subr.mxu0 0.0
    %8896 = vmatpush1.msra.mxu0 0.0
    %8897 = vmatprep.subr.mxu0 0.0
    %8898 = vmatpush1.msra.mxu0 0.0
    %8899 = vmatprep.subr.mxu0 0.0
    %8900 = vmatpush1.msra.mxu0 0.0
    %8901 = vmatprep.subr.mxu0 0.0
    %8902 = vmatpush1.msra.mxu0 0.0
    %8903 = vmatprep.subr.mxu0 0.0
    %8904 = vmatpush1.msra.mxu0 0.0
    %8905 = vmatprep.subr.mxu0 0.0
    %8906 = vmatpush1.msra.mxu0 0.0
    %8907 = vmatprep.subr.mxu0 0.0
    %8908 = vmatpush1.msra.mxu0 0.0
    %8909 = vmatprep.subr.mxu0 0.0
    %8910 = vmatpush1.msra.mxu0 0.0
    %8911 = vmatprep.subr.mxu0 0.0
    %8912 = vmatpush1.msra.mxu0 0.0
    %8913 = vmatprep.subr.mxu0 0.0
    %8914 = vmatpush1.msra.mxu0 0.0
    %8915 = vmatprep.subr.mxu0 0.0
    %8916 = vmatpush1.msra.mxu0 0.0
    %8917 = vmatprep.subr.mxu0 0.0
    %8918 = vmatpush1.msra.mxu0 0.0
    %8919 = vmatprep.subr.mxu0 0.0
    %8920 = vmatpush1.msra.mxu0 0.0
    %8921 = vmatprep.subr.mxu0 %v8889
    %8922 = vmatpush1.msra.mxu0 %v8888
    %8923 = vmatprep.subr.mxu0 %v8887
    %8924 = vmatpush1.msra.mxu0 %v8886
    %8925 = vmatprep.subr.mxu0 0.0
    %8926 = vmatpush2.msra.mxu0 0.0
    %8927 = vmatprep.subr.mxu0 0.0
    %8928 = vmatpush2.msra.mxu0 0.0
    %8929 = vmatprep.subr.mxu0 0.0
    %8930 = vmatpush2.msra.mxu0 0.0
    %8931 = vmatprep.subr.mxu0 0.0
    %8932 = vmatpush2.msra.mxu0 0.0
    %8933 = vmatprep.subr.mxu0 0.0
    %8934 = vmatpush2.msra.mxu0 0.0
    %8935 = vmatprep.subr.mxu0 0.0
    %8936 = vmatpush2.msra.mxu0 0.0
    %8937 = vmatprep.subr.mxu0 0.0
    %8938 = vmatpush2.msra.mxu0 0.0
    %8939 = vmatprep.subr.mxu0 0.0
    %8940 = vmatpush2.msra.mxu0 0.0
    %8941 = vmatprep.subr.mxu0 0.0
    %8942 = vmatpush2.msra.mxu0 0.0
    %8943 = vmatprep.subr.mxu0 0.0
    %8944 = vmatpush2.msra.mxu0 0.0
    %8945 = vmatprep.subr.mxu0 0.0
    %8946 = vmatpush2.msra.mxu0 0.0
    %8947 = vmatprep.subr.mxu0 0.0
    %8948 = vmatpush2.msra.mxu0 0.0
    %8949 = vmatprep.subr.mxu0 0.0
    %8950 = vmatpush2.msra.mxu0 0.0
    %8951 = vmatprep.subr.mxu0 0.0
    %8952 = vmatpush2.msra.mxu0 0.0
    %8953 = vmatprep.subr.mxu0 0.0
    %8954 = vmatpush2.msra.mxu0 0.0
    %8955 = vmatprep.subr.mxu0 0.0
    %8956 = vmatpush2.msra.mxu0 0.0
    %8957 = vmatprep.mubr.f32.mxu0 0.0
    %8958 = vmatmul.mubr.f32.gmra.mxu0 %v8891
    %v8959 = vpop.f32.mrf.mxu0
    %v8960 = vadd.f32 0.0, %v8959
    %v8961 = vpop.f32.mrf.mxu0
    %v8962 = vadd.f32 0.0, %v8961
    %8963 = vdwg.mxu0
    %v8964 = vadd.f32 %v8882, %v8960
    %v8965 = vadd.f32 %v8883, %v8962
    %v8966 = vld [vmem:[#allocation2 + $0x4c] sm:$0x3]
    %s8967 = scalar_lea.vmem %s8, 1216
    %v8968 = vld [vmem:[%s8967] sm:$0xff]
    %v8969 = vld [vmem:[%s8967 + $0x8] sm:$0xff]
    %v8970 = vld [vmem:[%s8967 + $0x10] sm:$0xff]
    %v8971 = vld [vmem:[%s8967 + $0x18] sm:$0xff]
    %v8973 = vsel %vm1538, %v8966, 0
    %8975 = vmatprep.subr.mxu0 0.0
    %8976 = vmatpush1.msra.mxu0 0.0
    %8977 = vmatprep.subr.mxu0 0.0
    %8978 = vmatpush1.msra.mxu0 0.0
    %8979 = vmatprep.subr.mxu0 0.0
    %8980 = vmatpush1.msra.mxu0 0.0
    %8981 = vmatprep.subr.mxu0 0.0
    %8982 = vmatpush1.msra.mxu0 0.0
    %8983 = vmatprep.subr.mxu0 0.0
    %8984 = vmatpush1.msra.mxu0 0.0
    %8985 = vmatprep.subr.mxu0 0.0
    %8986 = vmatpush1.msra.mxu0 0.0
    %8987 = vmatprep.subr.mxu0 0.0
    %8988 = vmatpush1.msra.mxu0 0.0
    %8989 = vmatprep.subr.mxu0 0.0
    %8990 = vmatpush1.msra.mxu0 0.0
    %8991 = vmatprep.subr.mxu0 0.0
    %8992 = vmatpush1.msra.mxu0 0.0
    %8993 = vmatprep.subr.mxu0 0.0
    %8994 = vmatpush1.msra.mxu0 0.0
    %8995 = vmatprep.subr.mxu0 0.0
    %8996 = vmatpush1.msra.mxu0 0.0
    %8997 = vmatprep.subr.mxu0 0.0
    %8998 = vmatpush1.msra.mxu0 0.0
    %8999 = vmatprep.subr.mxu0 0.0
    %9000 = vmatpush1.msra.mxu0 0.0
    %9001 = vmatprep.subr.mxu0 0.0
    %9002 = vmatpush1.msra.mxu0 0.0
    %9003 = vmatprep.subr.mxu0 %v8971
    %9004 = vmatpush1.msra.mxu0 %v8970
    %9005 = vmatprep.subr.mxu0 %v8969
    %9006 = vmatpush1.msra.mxu0 %v8968
    %9007 = vmatprep.subr.mxu0 0.0
    %9008 = vmatpush2.msra.mxu0 0.0
    %9009 = vmatprep.subr.mxu0 0.0
    %9010 = vmatpush2.msra.mxu0 0.0
    %9011 = vmatprep.subr.mxu0 0.0
    %9012 = vmatpush2.msra.mxu0 0.0
    %9013 = vmatprep.subr.mxu0 0.0
    %9014 = vmatpush2.msra.mxu0 0.0
    %9015 = vmatprep.subr.mxu0 0.0
    %9016 = vmatpush2.msra.mxu0 0.0
    %9017 = vmatprep.subr.mxu0 0.0
    %9018 = vmatpush2.msra.mxu0 0.0
    %9019 = vmatprep.subr.mxu0 0.0
    %9020 = vmatpush2.msra.mxu0 0.0
    %9021 = vmatprep.subr.mxu0 0.0
    %9022 = vmatpush2.msra.mxu0 0.0
    %9023 = vmatprep.subr.mxu0 0.0
    %9024 = vmatpush2.msra.mxu0 0.0
    %9025 = vmatprep.subr.mxu0 0.0
    %9026 = vmatpush2.msra.mxu0 0.0
    %9027 = vmatprep.subr.mxu0 0.0
    %9028 = vmatpush2.msra.mxu0 0.0
    %9029 = vmatprep.subr.mxu0 0.0
    %9030 = vmatpush2.msra.mxu0 0.0
    %9031 = vmatprep.subr.mxu0 0.0
    %9032 = vmatpush2.msra.mxu0 0.0
    %9033 = vmatprep.subr.mxu0 0.0
    %9034 = vmatpush2.msra.mxu0 0.0
    %9035 = vmatprep.subr.mxu0 0.0
    %9036 = vmatpush2.msra.mxu0 0.0
    %9037 = vmatprep.subr.mxu0 0.0
    %9038 = vmatpush2.msra.mxu0 0.0
    %9039 = vmatprep.mubr.f32.mxu0 0.0
    %9040 = vmatmul.mubr.f32.gmra.mxu0 %v8973
    %v9041 = vpop.f32.mrf.mxu0
    %v9042 = vadd.f32 0.0, %v9041
    %v9043 = vpop.f32.mrf.mxu0
    %v9044 = vadd.f32 0.0, %v9043
    %9045 = vdwg.mxu0
    %v9046 = vadd.f32 %v8964, %v9042
    %v9047 = vadd.f32 %v8965, %v9044
    %v9048 = vld [vmem:[#allocation2 + $0x4e] sm:$0x3]
    %s9049 = scalar_lea.vmem %s8, 1248
    %v9050 = vld [vmem:[%s9049] sm:$0xff]
    %v9051 = vld [vmem:[%s9049 + $0x8] sm:$0xff]
    %v9052 = vld [vmem:[%s9049 + $0x10] sm:$0xff]
    %v9053 = vld [vmem:[%s9049 + $0x18] sm:$0xff]
    %v9055 = vsel %vm1538, %v9048, 0
    %9057 = vmatprep.subr.mxu0 0.0
    %9058 = vmatpush1.msra.mxu0 0.0
    %9059 = vmatprep.subr.mxu0 0.0
    %9060 = vmatpush1.msra.mxu0 0.0
    %9061 = vmatprep.subr.mxu0 0.0
    %9062 = vmatpush1.msra.mxu0 0.0
    %9063 = vmatprep.subr.mxu0 0.0
    %9064 = vmatpush1.msra.mxu0 0.0
    %9065 = vmatprep.subr.mxu0 0.0
    %9066 = vmatpush1.msra.mxu0 0.0
    %9067 = vmatprep.subr.mxu0 0.0
    %9068 = vmatpush1.msra.mxu0 0.0
    %9069 = vmatprep.subr.mxu0 0.0
    %9070 = vmatpush1.msra.mxu0 0.0
    %9071 = vmatprep.subr.mxu0 0.0
    %9072 = vmatpush1.msra.mxu0 0.0
    %9073 = vmatprep.subr.mxu0 0.0
    %9074 = vmatpush1.msra.mxu0 0.0
    %9075 = vmatprep.subr.mxu0 0.0
    %9076 = vmatpush1.msra.mxu0 0.0
    %9077 = vmatprep.subr.mxu0 0.0
    %9078 = vmatpush1.msra.mxu0 0.0
    %9079 = vmatprep.subr.mxu0 0.0
    %9080 = vmatpush1.msra.mxu0 0.0
    %9081 = vmatprep.subr.mxu0 0.0
    %9082 = vmatpush1.msra.mxu0 0.0
    %9083 = vmatprep.subr.mxu0 0.0
    %9084 = vmatpush1.msra.mxu0 0.0
    %9085 = vmatprep.subr.mxu0 %v9053
    %9086 = vmatpush1.msra.mxu0 %v9052
    %9087 = vmatprep.subr.mxu0 %v9051
    %9088 = vmatpush1.msra.mxu0 %v9050
    %9089 = vmatprep.subr.mxu0 0.0
    %9090 = vmatpush2.msra.mxu0 0.0
    %9091 = vmatprep.subr.mxu0 0.0
    %9092 = vmatpush2.msra.mxu0 0.0
    %9093 = vmatprep.subr.mxu0 0.0
    %9094 = vmatpush2.msra.mxu0 0.0
    %9095 = vmatprep.subr.mxu0 0.0
    %9096 = vmatpush2.msra.mxu0 0.0
    %9097 = vmatprep.subr.mxu0 0.0
    %9098 = vmatpush2.msra.mxu0 0.0
    %9099 = vmatprep.subr.mxu0 0.0
    %9100 = vmatpush2.msra.mxu0 0.0
    %9101 = vmatprep.subr.mxu0 0.0
    %9102 = vmatpush2.msra.mxu0 0.0
    %9103 = vmatprep.subr.mxu0 0.0
    %9104 = vmatpush2.msra.mxu0 0.0
    %9105 = vmatprep.subr.mxu0 0.0
    %9106 = vmatpush2.msra.mxu0 0.0
    %9107 = vmatprep.subr.mxu0 0.0
    %9108 = vmatpush2.msra.mxu0 0.0
    %9109 = vmatprep.subr.mxu0 0.0
    %9110 = vmatpush2.msra.mxu0 0.0
    %9111 = vmatprep.subr.mxu0 0.0
    %9112 = vmatpush2.msra.mxu0 0.0
    %9113 = vmatprep.subr.mxu0 0.0
    %9114 = vmatpush2.msra.mxu0 0.0
    %9115 = vmatprep.subr.mxu0 0.0
    %9116 = vmatpush2.msra.mxu0 0.0
    %9117 = vmatprep.subr.mxu0 0.0
    %9118 = vmatpush2.msra.mxu0 0.0
    %9119 = vmatprep.subr.mxu0 0.0
    %9120 = vmatpush2.msra.mxu0 0.0
    %9121 = vmatprep.mubr.f32.mxu0 0.0
    %9122 = vmatmul.mubr.f32.gmra.mxu0 %v9055
    %v9123 = vpop.f32.mrf.mxu0
    %v9124 = vadd.f32 0.0, %v9123
    %v9125 = vpop.f32.mrf.mxu0
    %v9126 = vadd.f32 0.0, %v9125
    %9127 = vdwg.mxu0
    %v9128 = vadd.f32 %v9046, %v9124
    %v9129 = vadd.f32 %v9047, %v9126
    %v9130 = vld [vmem:[#allocation2 + $0x50] sm:$0x3]
    %s9131 = scalar_lea.vmem %s8, 1280
    %v9132 = vld [vmem:[%s9131] sm:$0xff]
    %v9133 = vld [vmem:[%s9131 + $0x8] sm:$0xff]
    %v9134 = vld [vmem:[%s9131 + $0x10] sm:$0xff]
    %v9135 = vld [vmem:[%s9131 + $0x18] sm:$0xff]
    %v9137 = vsel %vm1538, %v9130, 0
    %9139 = vmatprep.subr.mxu0 0.0
    %9140 = vmatpush1.msra.mxu0 0.0
    %9141 = vmatprep.subr.mxu0 0.0
    %9142 = vmatpush1.msra.mxu0 0.0
    %9143 = vmatprep.subr.mxu0 0.0
    %9144 = vmatpush1.msra.mxu0 0.0
    %9145 = vmatprep.subr.mxu0 0.0
    %9146 = vmatpush1.msra.mxu0 0.0
    %9147 = vmatprep.subr.mxu0 0.0
    %9148 = vmatpush1.msra.mxu0 0.0
    %9149 = vmatprep.subr.mxu0 0.0
    %9150 = vmatpush1.msra.mxu0 0.0
    %9151 = vmatprep.subr.mxu0 0.0
    %9152 = vmatpush1.msra.mxu0 0.0
    %9153 = vmatprep.subr.mxu0 0.0
    %9154 = vmatpush1.msra.mxu0 0.0
    %9155 = vmatprep.subr.mxu0 0.0
    %9156 = vmatpush1.msra.mxu0 0.0
    %9157 = vmatprep.subr.mxu0 0.0
    %9158 = vmatpush1.msra.mxu0 0.0
    %9159 = vmatprep.subr.mxu0 0.0
    %9160 = vmatpush1.msra.mxu0 0.0
    %9161 = vmatprep.subr.mxu0 0.0
    %9162 = vmatpush1.msra.mxu0 0.0
    %9163 = vmatprep.subr.mxu0 0.0
    %9164 = vmatpush1.msra.mxu0 0.0
    %9165 = vmatprep.subr.mxu0 0.0
    %9166 = vmatpush1.msra.mxu0 0.0
    %9167 = vmatprep.subr.mxu0 %v9135
    %9168 = vmatpush1.msra.mxu0 %v9134
    %9169 = vmatprep.subr.mxu0 %v9133
    %9170 = vmatpush1.msra.mxu0 %v9132
    %9171 = vmatprep.subr.mxu0 0.0
    %9172 = vmatpush2.msra.mxu0 0.0
    %9173 = vmatprep.subr.mxu0 0.0
    %9174 = vmatpush2.msra.mxu0 0.0
    %9175 = vmatprep.subr.mxu0 0.0
    %9176 = vmatpush2.msra.mxu0 0.0
    %9177 = vmatprep.subr.mxu0 0.0
    %9178 = vmatpush2.msra.mxu0 0.0
    %9179 = vmatprep.subr.mxu0 0.0
    %9180 = vmatpush2.msra.mxu0 0.0
    %9181 = vmatprep.subr.mxu0 0.0
    %9182 = vmatpush2.msra.mxu0 0.0
    %9183 = vmatprep.subr.mxu0 0.0
    %9184 = vmatpush2.msra.mxu0 0.0
    %9185 = vmatprep.subr.mxu0 0.0
    %9186 = vmatpush2.msra.mxu0 0.0
    %9187 = vmatprep.subr.mxu0 0.0
    %9188 = vmatpush2.msra.mxu0 0.0
    %9189 = vmatprep.subr.mxu0 0.0
    %9190 = vmatpush2.msra.mxu0 0.0
    %9191 = vmatprep.subr.mxu0 0.0
    %9192 = vmatpush2.msra.mxu0 0.0
    %9193 = vmatprep.subr.mxu0 0.0
    %9194 = vmatpush2.msra.mxu0 0.0
    %9195 = vmatprep.subr.mxu0 0.0
    %9196 = vmatpush2.msra.mxu0 0.0
    %9197 = vmatprep.subr.mxu0 0.0
    %9198 = vmatpush2.msra.mxu0 0.0
    %9199 = vmatprep.subr.mxu0 0.0
    %9200 = vmatpush2.msra.mxu0 0.0
    %9201 = vmatprep.subr.mxu0 0.0
    %9202 = vmatpush2.msra.mxu0 0.0
    %9203 = vmatprep.mubr.f32.mxu0 0.0
    %9204 = vmatmul.mubr.f32.gmra.mxu0 %v9137
    %v9205 = vpop.f32.mrf.mxu0
    %v9206 = vadd.f32 0.0, %v9205
    %v9207 = vpop.f32.mrf.mxu0
    %v9208 = vadd.f32 0.0, %v9207
    %9209 = vdwg.mxu0
    %v9210 = vadd.f32 %v9128, %v9206
    %v9211 = vadd.f32 %v9129, %v9208
    %v9212 = vld [vmem:[#allocation2 + $0x52] sm:$0x3]
    %s9213 = scalar_lea.vmem %s8, 1312
    %v9214 = vld [vmem:[%s9213] sm:$0xff]
    %v9215 = vld [vmem:[%s9213 + $0x8] sm:$0xff]
    %v9216 = vld [vmem:[%s9213 + $0x10] sm:$0xff]
    %v9217 = vld [vmem:[%s9213 + $0x18] sm:$0xff]
    %v9219 = vsel %vm1538, %v9212, 0
    %9221 = vmatprep.subr.mxu0 0.0
    %9222 = vmatpush1.msra.mxu0 0.0
    %9223 = vmatprep.subr.mxu0 0.0
    %9224 = vmatpush1.msra.mxu0 0.0
    %9225 = vmatprep.subr.mxu0 0.0
    %9226 = vmatpush1.msra.mxu0 0.0
    %9227 = vmatprep.subr.mxu0 0.0
    %9228 = vmatpush1.msra.mxu0 0.0
    %9229 = vmatprep.subr.mxu0 0.0
    %9230 = vmatpush1.msra.mxu0 0.0
    %9231 = vmatprep.subr.mxu0 0.0
    %9232 = vmatpush1.msra.mxu0 0.0
    %9233 = vmatprep.subr.mxu0 0.0
    %9234 = vmatpush1.msra.mxu0 0.0
    %9235 = vmatprep.subr.mxu0 0.0
    %9236 = vmatpush1.msra.mxu0 0.0
    %9237 = vmatprep.subr.mxu0 0.0
    %9238 = vmatpush1.msra.mxu0 0.0
    %9239 = vmatprep.subr.mxu0 0.0
    %9240 = vmatpush1.msra.mxu0 0.0
    %9241 = vmatprep.subr.mxu0 0.0
    %9242 = vmatpush1.msra.mxu0 0.0
    %9243 = vmatprep.subr.mxu0 0.0
    %9244 = vmatpush1.msra.mxu0 0.0
    %9245 = vmatprep.subr.mxu0 0.0
    %9246 = vmatpush1.msra.mxu0 0.0
    %9247 = vmatprep.subr.mxu0 0.0
    %9248 = vmatpush1.msra.mxu0 0.0
    %9249 = vmatprep.subr.mxu0 %v9217
    %9250 = vmatpush1.msra.mxu0 %v9216
    %9251 = vmatprep.subr.mxu0 %v9215
    %9252 = vmatpush1.msra.mxu0 %v9214
    %9253 = vmatprep.subr.mxu0 0.0
    %9254 = vmatpush2.msra.mxu0 0.0
    %9255 = vmatprep.subr.mxu0 0.0
    %9256 = vmatpush2.msra.mxu0 0.0
    %9257 = vmatprep.subr.mxu0 0.0
    %9258 = vmatpush2.msra.mxu0 0.0
    %9259 = vmatprep.subr.mxu0 0.0
    %9260 = vmatpush2.msra.mxu0 0.0
    %9261 = vmatprep.subr.mxu0 0.0
    %9262 = vmatpush2.msra.mxu0 0.0
    %9263 = vmatprep.subr.mxu0 0.0
    %9264 = vmatpush2.msra.mxu0 0.0
    %9265 = vmatprep.subr.mxu0 0.0
    %9266 = vmatpush2.msra.mxu0 0.0
    %9267 = vmatprep.subr.mxu0 0.0
    %9268 = vmatpush2.msra.mxu0 0.0
    %9269 = vmatprep.subr.mxu0 0.0
    %9270 = vmatpush2.msra.mxu0 0.0
    %9271 = vmatprep.subr.mxu0 0.0
    %9272 = vmatpush2.msra.mxu0 0.0
    %9273 = vmatprep.subr.mxu0 0.0
    %9274 = vmatpush2.msra.mxu0 0.0
    %9275 = vmatprep.subr.mxu0 0.0
    %9276 = vmatpush2.msra.mxu0 0.0
    %9277 = vmatprep.subr.mxu0 0.0
    %9278 = vmatpush2.msra.mxu0 0.0
    %9279 = vmatprep.subr.mxu0 0.0
    %9280 = vmatpush2.msra.mxu0 0.0
    %9281 = vmatprep.subr.mxu0 0.0
    %9282 = vmatpush2.msra.mxu0 0.0
    %9283 = vmatprep.subr.mxu0 0.0
    %9284 = vmatpush2.msra.mxu0 0.0
    %9285 = vmatprep.mubr.f32.mxu0 0.0
    %9286 = vmatmul.mubr.f32.gmra.mxu0 %v9219
    %v9287 = vpop.f32.mrf.mxu0
    %v9288 = vadd.f32 0.0, %v9287
    %v9289 = vpop.f32.mrf.mxu0
    %v9290 = vadd.f32 0.0, %v9289
    %9291 = vdwg.mxu0
    %v9292 = vadd.f32 %v9210, %v9288
    %v9293 = vadd.f32 %v9211, %v9290
    %v9294 = vld [vmem:[#allocation2 + $0x54] sm:$0x3]
    %s9295 = scalar_lea.vmem %s8, 1344
    %v9296 = vld [vmem:[%s9295] sm:$0xff]
    %v9297 = vld [vmem:[%s9295 + $0x8] sm:$0xff]
    %v9298 = vld [vmem:[%s9295 + $0x10] sm:$0xff]
    %v9299 = vld [vmem:[%s9295 + $0x18] sm:$0xff]
    %v9301 = vsel %vm1538, %v9294, 0
    %9303 = vmatprep.subr.mxu0 0.0
    %9304 = vmatpush1.msra.mxu0 0.0
    %9305 = vmatprep.subr.mxu0 0.0
    %9306 = vmatpush1.msra.mxu0 0.0
    %9307 = vmatprep.subr.mxu0 0.0
    %9308 = vmatpush1.msra.mxu0 0.0
    %9309 = vmatprep.subr.mxu0 0.0
    %9310 = vmatpush1.msra.mxu0 0.0
    %9311 = vmatprep.subr.mxu0 0.0
    %9312 = vmatpush1.msra.mxu0 0.0
    %9313 = vmatprep.subr.mxu0 0.0
    %9314 = vmatpush1.msra.mxu0 0.0
    %9315 = vmatprep.subr.mxu0 0.0
    %9316 = vmatpush1.msra.mxu0 0.0
    %9317 = vmatprep.subr.mxu0 0.0
    %9318 = vmatpush1.msra.mxu0 0.0
    %9319 = vmatprep.subr.mxu0 0.0
    %9320 = vmatpush1.msra.mxu0 0.0
    %9321 = vmatprep.subr.mxu0 0.0
    %9322 = vmatpush1.msra.mxu0 0.0
    %9323 = vmatprep.subr.mxu0 0.0
    %9324 = vmatpush1.msra.mxu0 0.0
    %9325 = vmatprep.subr.mxu0 0.0
    %9326 = vmatpush1.msra.mxu0 0.0
    %9327 = vmatprep.subr.mxu0 0.0
    %9328 = vmatpush1.msra.mxu0 0.0
    %9329 = vmatprep.subr.mxu0 0.0
    %9330 = vmatpush1.msra.mxu0 0.0
    %9331 = vmatprep.subr.mxu0 %v9299
    %9332 = vmatpush1.msra.mxu0 %v9298
    %9333 = vmatprep.subr.mxu0 %v9297
    %9334 = vmatpush1.msra.mxu0 %v9296
    %9335 = vmatprep.subr.mxu0 0.0
    %9336 = vmatpush2.msra.mxu0 0.0
    %9337 = vmatprep.subr.mxu0 0.0
    %9338 = vmatpush2.msra.mxu0 0.0
    %9339 = vmatprep.subr.mxu0 0.0
    %9340 = vmatpush2.msra.mxu0 0.0
    %9341 = vmatprep.subr.mxu0 0.0
    %9342 = vmatpush2.msra.mxu0 0.0
    %9343 = vmatprep.subr.mxu0 0.0
    %9344 = vmatpush2.msra.mxu0 0.0
    %9345 = vmatprep.subr.mxu0 0.0
    %9346 = vmatpush2.msra.mxu0 0.0
    %9347 = vmatprep.subr.mxu0 0.0
    %9348 = vmatpush2.msra.mxu0 0.0
    %9349 = vmatprep.subr.mxu0 0.0
    %9350 = vmatpush2.msra.mxu0 0.0
    %9351 = vmatprep.subr.mxu0 0.0
    %9352 = vmatpush2.msra.mxu0 0.0
    %9353 = vmatprep.subr.mxu0 0.0
    %9354 = vmatpush2.msra.mxu0 0.0
    %9355 = vmatprep.subr.mxu0 0.0
    %9356 = vmatpush2.msra.mxu0 0.0
    %9357 = vmatprep.subr.mxu0 0.0
    %9358 = vmatpush2.msra.mxu0 0.0
    %9359 = vmatprep.subr.mxu0 0.0
    %9360 = vmatpush2.msra.mxu0 0.0
    %9361 = vmatprep.subr.mxu0 0.0
    %9362 = vmatpush2.msra.mxu0 0.0
    %9363 = vmatprep.subr.mxu0 0.0
    %9364 = vmatpush2.msra.mxu0 0.0
    %9365 = vmatprep.subr.mxu0 0.0
    %9366 = vmatpush2.msra.mxu0 0.0
    %9367 = vmatprep.mubr.f32.mxu0 0.0
    %9368 = vmatmul.mubr.f32.gmra.mxu0 %v9301
    %v9369 = vpop.f32.mrf.mxu0
    %v9370 = vadd.f32 0.0, %v9369
    %v9371 = vpop.f32.mrf.mxu0
    %v9372 = vadd.f32 0.0, %v9371
    %9373 = vdwg.mxu0
    %v9374 = vadd.f32 %v9292, %v9370
    %v9375 = vadd.f32 %v9293, %v9372
    %v9376 = vld [vmem:[#allocation2 + $0x56] sm:$0x3]
    %s9377 = scalar_lea.vmem %s8, 1376
    %v9378 = vld [vmem:[%s9377] sm:$0xff]
    %v9379 = vld [vmem:[%s9377 + $0x8] sm:$0xff]
    %v9380 = vld [vmem:[%s9377 + $0x10] sm:$0xff]
    %v9381 = vld [vmem:[%s9377 + $0x18] sm:$0xff]
    %v9383 = vsel %vm1538, %v9376, 0
    %9385 = vmatprep.subr.mxu0 0.0
    %9386 = vmatpush1.msra.mxu0 0.0
    %9387 = vmatprep.subr.mxu0 0.0
    %9388 = vmatpush1.msra.mxu0 0.0
    %9389 = vmatprep.subr.mxu0 0.0
    %9390 = vmatpush1.msra.mxu0 0.0
    %9391 = vmatprep.subr.mxu0 0.0
    %9392 = vmatpush1.msra.mxu0 0.0
    %9393 = vmatprep.subr.mxu0 0.0
    %9394 = vmatpush1.msra.mxu0 0.0
    %9395 = vmatprep.subr.mxu0 0.0
    %9396 = vmatpush1.msra.mxu0 0.0
    %9397 = vmatprep.subr.mxu0 0.0
    %9398 = vmatpush1.msra.mxu0 0.0
    %9399 = vmatprep.subr.mxu0 0.0
    %9400 = vmatpush1.msra.mxu0 0.0
    %9401 = vmatprep.subr.mxu0 0.0
    %9402 = vmatpush1.msra.mxu0 0.0
    %9403 = vmatprep.subr.mxu0 0.0
    %9404 = vmatpush1.msra.mxu0 0.0
    %9405 = vmatprep.subr.mxu0 0.0
    %9406 = vmatpush1.msra.mxu0 0.0
    %9407 = vmatprep.subr.mxu0 0.0
    %9408 = vmatpush1.msra.mxu0 0.0
    %9409 = vmatprep.subr.mxu0 0.0
    %9410 = vmatpush1.msra.mxu0 0.0
    %9411 = vmatprep.subr.mxu0 0.0
    %9412 = vmatpush1.msra.mxu0 0.0
    %9413 = vmatprep.subr.mxu0 %v9381
    %9414 = vmatpush1.msra.mxu0 %v9380
    %9415 = vmatprep.subr.mxu0 %v9379
    %9416 = vmatpush1.msra.mxu0 %v9378
    %9417 = vmatprep.subr.mxu0 0.0
    %9418 = vmatpush2.msra.mxu0 0.0
    %9419 = vmatprep.subr.mxu0 0.0
    %9420 = vmatpush2.msra.mxu0 0.0
    %9421 = vmatprep.subr.mxu0 0.0
    %9422 = vmatpush2.msra.mxu0 0.0
    %9423 = vmatprep.subr.mxu0 0.0
    %9424 = vmatpush2.msra.mxu0 0.0
    %9425 = vmatprep.subr.mxu0 0.0
    %9426 = vmatpush2.msra.mxu0 0.0
    %9427 = vmatprep.subr.mxu0 0.0
    %9428 = vmatpush2.msra.mxu0 0.0
    %9429 = vmatprep.subr.mxu0 0.0
    %9430 = vmatpush2.msra.mxu0 0.0
    %9431 = vmatprep.subr.mxu0 0.0
    %9432 = vmatpush2.msra.mxu0 0.0
    %9433 = vmatprep.subr.mxu0 0.0
    %9434 = vmatpush2.msra.mxu0 0.0
    %9435 = vmatprep.subr.mxu0 0.0
    %9436 = vmatpush2.msra.mxu0 0.0
    %9437 = vmatprep.subr.mxu0 0.0
    %9438 = vmatpush2.msra.mxu0 0.0
    %9439 = vmatprep.subr.mxu0 0.0
    %9440 = vmatpush2.msra.mxu0 0.0
    %9441 = vmatprep.subr.mxu0 0.0
    %9442 = vmatpush2.msra.mxu0 0.0
    %9443 = vmatprep.subr.mxu0 0.0
    %9444 = vmatpush2.msra.mxu0 0.0
    %9445 = vmatprep.subr.mxu0 0.0
    %9446 = vmatpush2.msra.mxu0 0.0
    %9447 = vmatprep.subr.mxu0 0.0
    %9448 = vmatpush2.msra.mxu0 0.0
    %9449 = vmatprep.mubr.f32.mxu0 0.0
    %9450 = vmatmul.mubr.f32.gmra.mxu0 %v9383
    %v9451 = vpop.f32.mrf.mxu0
    %v9452 = vadd.f32 0.0, %v9451
    %v9453 = vpop.f32.mrf.mxu0
    %v9454 = vadd.f32 0.0, %v9453
    %9455 = vdwg.mxu0
    %v9456 = vadd.f32 %v9374, %v9452
    %v9457 = vadd.f32 %v9375, %v9454
    %v9458 = vld [vmem:[#allocation2 + $0x58] sm:$0x3]
    %s9459 = scalar_lea.vmem %s8, 1408
    %v9460 = vld [vmem:[%s9459] sm:$0xff]
    %v9461 = vld [vmem:[%s9459 + $0x8] sm:$0xff]
    %v9462 = vld [vmem:[%s9459 + $0x10] sm:$0xff]
    %v9463 = vld [vmem:[%s9459 + $0x18] sm:$0xff]
    %v9465 = vsel %vm1538, %v9458, 0
    %9467 = vmatprep.subr.mxu0 0.0
    %9468 = vmatpush1.msra.mxu0 0.0
    %9469 = vmatprep.subr.mxu0 0.0
    %9470 = vmatpush1.msra.mxu0 0.0
    %9471 = vmatprep.subr.mxu0 0.0
    %9472 = vmatpush1.msra.mxu0 0.0
    %9473 = vmatprep.subr.mxu0 0.0
    %9474 = vmatpush1.msra.mxu0 0.0
    %9475 = vmatprep.subr.mxu0 0.0
    %9476 = vmatpush1.msra.mxu0 0.0
    %9477 = vmatprep.subr.mxu0 0.0
    %9478 = vmatpush1.msra.mxu0 0.0
    %9479 = vmatprep.subr.mxu0 0.0
    %9480 = vmatpush1.msra.mxu0 0.0
    %9481 = vmatprep.subr.mxu0 0.0
    %9482 = vmatpush1.msra.mxu0 0.0
    %9483 = vmatprep.subr.mxu0 0.0
    %9484 = vmatpush1.msra.mxu0 0.0
    %9485 = vmatprep.subr.mxu0 0.0
    %9486 = vmatpush1.msra.mxu0 0.0
    %9487 = vmatprep.subr.mxu0 0.0
    %9488 = vmatpush1.msra.mxu0 0.0
    %9489 = vmatprep.subr.mxu0 0.0
    %9490 = vmatpush1.msra.mxu0 0.0
    %9491 = vmatprep.subr.mxu0 0.0
    %9492 = vmatpush1.msra.mxu0 0.0
    %9493 = vmatprep.subr.mxu0 0.0
    %9494 = vmatpush1.msra.mxu0 0.0
    %9495 = vmatprep.subr.mxu0 %v9463
    %9496 = vmatpush1.msra.mxu0 %v9462
    %9497 = vmatprep.subr.mxu0 %v9461
    %9498 = vmatpush1.msra.mxu0 %v9460
    %9499 = vmatprep.subr.mxu0 0.0
    %9500 = vmatpush2.msra.mxu0 0.0
    %9501 = vmatprep.subr.mxu0 0.0
    %9502 = vmatpush2.msra.mxu0 0.0
    %9503 = vmatprep.subr.mxu0 0.0
    %9504 = vmatpush2.msra.mxu0 0.0
    %9505 = vmatprep.subr.mxu0 0.0
    %9506 = vmatpush2.msra.mxu0 0.0
    %9507 = vmatprep.subr.mxu0 0.0
    %9508 = vmatpush2.msra.mxu0 0.0
    %9509 = vmatprep.subr.mxu0 0.0
    %9510 = vmatpush2.msra.mxu0 0.0
    %9511 = vmatprep.subr.mxu0 0.0
    %9512 = vmatpush2.msra.mxu0 0.0
    %9513 = vmatprep.subr.mxu0 0.0
    %9514 = vmatpush2.msra.mxu0 0.0
    %9515 = vmatprep.subr.mxu0 0.0
    %9516 = vmatpush2.msra.mxu0 0.0
    %9517 = vmatprep.subr.mxu0 0.0
    %9518 = vmatpush2.msra.mxu0 0.0
    %9519 = vmatprep.subr.mxu0 0.0
    %9520 = vmatpush2.msra.mxu0 0.0
    %9521 = vmatprep.subr.mxu0 0.0
    %9522 = vmatpush2.msra.mxu0 0.0
    %9523 = vmatprep.subr.mxu0 0.0
    %9524 = vmatpush2.msra.mxu0 0.0
    %9525 = vmatprep.subr.mxu0 0.0
    %9526 = vmatpush2.msra.mxu0 0.0
    %9527 = vmatprep.subr.mxu0 0.0
    %9528 = vmatpush2.msra.mxu0 0.0
    %9529 = vmatprep.subr.mxu0 0.0
    %9530 = vmatpush2.msra.mxu0 0.0
    %9531 = vmatprep.mubr.f32.mxu0 0.0
    %9532 = vmatmul.mubr.f32.gmra.mxu0 %v9465
    %v9533 = vpop.f32.mrf.mxu0
    %v9534 = vadd.f32 0.0, %v9533
    %v9535 = vpop.f32.mrf.mxu0
    %v9536 = vadd.f32 0.0, %v9535
    %9537 = vdwg.mxu0
    %v9538 = vadd.f32 %v9456, %v9534
    %v9539 = vadd.f32 %v9457, %v9536
    %v9540 = vld [vmem:[#allocation2 + $0x5a] sm:$0x3]
    %s9541 = scalar_lea.vmem %s8, 1440
    %v9542 = vld [vmem:[%s9541] sm:$0xff]
    %v9543 = vld [vmem:[%s9541 + $0x8] sm:$0xff]
    %v9544 = vld [vmem:[%s9541 + $0x10] sm:$0xff]
    %v9545 = vld [vmem:[%s9541 + $0x18] sm:$0xff]
    %v9547 = vsel %vm1538, %v9540, 0
    %9549 = vmatprep.subr.mxu0 0.0
    %9550 = vmatpush1.msra.mxu0 0.0
    %9551 = vmatprep.subr.mxu0 0.0
    %9552 = vmatpush1.msra.mxu0 0.0
    %9553 = vmatprep.subr.mxu0 0.0
    %9554 = vmatpush1.msra.mxu0 0.0
    %9555 = vmatprep.subr.mxu0 0.0
    %9556 = vmatpush1.msra.mxu0 0.0
    %9557 = vmatprep.subr.mxu0 0.0
    %9558 = vmatpush1.msra.mxu0 0.0
    %9559 = vmatprep.subr.mxu0 0.0
    %9560 = vmatpush1.msra.mxu0 0.0
    %9561 = vmatprep.subr.mxu0 0.0
    %9562 = vmatpush1.msra.mxu0 0.0
    %9563 = vmatprep.subr.mxu0 0.0
    %9564 = vmatpush1.msra.mxu0 0.0
    %9565 = vmatprep.subr.mxu0 0.0
    %9566 = vmatpush1.msra.mxu0 0.0
    %9567 = vmatprep.subr.mxu0 0.0
    %9568 = vmatpush1.msra.mxu0 0.0
    %9569 = vmatprep.subr.mxu0 0.0
    %9570 = vmatpush1.msra.mxu0 0.0
    %9571 = vmatprep.subr.mxu0 0.0
    %9572 = vmatpush1.msra.mxu0 0.0
    %9573 = vmatprep.subr.mxu0 0.0
    %9574 = vmatpush1.msra.mxu0 0.0
    %9575 = vmatprep.subr.mxu0 0.0
    %9576 = vmatpush1.msra.mxu0 0.0
    %9577 = vmatprep.subr.mxu0 %v9545
    %9578 = vmatpush1.msra.mxu0 %v9544
    %9579 = vmatprep.subr.mxu0 %v9543
    %9580 = vmatpush1.msra.mxu0 %v9542
    %9581 = vmatprep.subr.mxu0 0.0
    %9582 = vmatpush2.msra.mxu0 0.0
    %9583 = vmatprep.subr.mxu0 0.0
    %9584 = vmatpush2.msra.mxu0 0.0
    %9585 = vmatprep.subr.mxu0 0.0
    %9586 = vmatpush2.msra.mxu0 0.0
    %9587 = vmatprep.subr.mxu0 0.0
    %9588 = vmatpush2.msra.mxu0 0.0
    %9589 = vmatprep.subr.mxu0 0.0
    %9590 = vmatpush2.msra.mxu0 0.0
    %9591 = vmatprep.subr.mxu0 0.0
    %9592 = vmatpush2.msra.mxu0 0.0
    %9593 = vmatprep.subr.mxu0 0.0
    %9594 = vmatpush2.msra.mxu0 0.0
    %9595 = vmatprep.subr.mxu0 0.0
    %9596 = vmatpush2.msra.mxu0 0.0
    %9597 = vmatprep.subr.mxu0 0.0
    %9598 = vmatpush2.msra.mxu0 0.0
    %9599 = vmatprep.subr.mxu0 0.0
    %9600 = vmatpush2.msra.mxu0 0.0
    %9601 = vmatprep.subr.mxu0 0.0
    %9602 = vmatpush2.msra.mxu0 0.0
    %9603 = vmatprep.subr.mxu0 0.0
    %9604 = vmatpush2.msra.mxu0 0.0
    %9605 = vmatprep.subr.mxu0 0.0
    %9606 = vmatpush2.msra.mxu0 0.0
    %9607 = vmatprep.subr.mxu0 0.0
    %9608 = vmatpush2.msra.mxu0 0.0
    %9609 = vmatprep.subr.mxu0 0.0
    %9610 = vmatpush2.msra.mxu0 0.0
    %9611 = vmatprep.subr.mxu0 0.0
    %9612 = vmatpush2.msra.mxu0 0.0
    %9613 = vmatprep.mubr.f32.mxu0 0.0
    %9614 = vmatmul.mubr.f32.gmra.mxu0 %v9547
    %v9615 = vpop.f32.mrf.mxu0
    %v9616 = vadd.f32 0.0, %v9615
    %v9617 = vpop.f32.mrf.mxu0
    %v9618 = vadd.f32 0.0, %v9617
    %9619 = vdwg.mxu0
    %v9620 = vadd.f32 %v9538, %v9616
    %v9621 = vadd.f32 %v9539, %v9618
    %v9622 = vld [vmem:[#allocation2 + $0x5c] sm:$0x3]
    %s9623 = scalar_lea.vmem %s8, 1472
    %v9624 = vld [vmem:[%s9623] sm:$0xff]
    %v9625 = vld [vmem:[%s9623 + $0x8] sm:$0xff]
    %v9626 = vld [vmem:[%s9623 + $0x10] sm:$0xff]
    %v9627 = vld [vmem:[%s9623 + $0x18] sm:$0xff]
    %v9629 = vsel %vm1538, %v9622, 0
    %9631 = vmatprep.subr.mxu0 0.0
    %9632 = vmatpush1.msra.mxu0 0.0
    %9633 = vmatprep.subr.mxu0 0.0
    %9634 = vmatpush1.msra.mxu0 0.0
    %9635 = vmatprep.subr.mxu0 0.0
    %9636 = vmatpush1.msra.mxu0 0.0
    %9637 = vmatprep.subr.mxu0 0.0
    %9638 = vmatpush1.msra.mxu0 0.0
    %9639 = vmatprep.subr.mxu0 0.0
    %9640 = vmatpush1.msra.mxu0 0.0
    %9641 = vmatprep.subr.mxu0 0.0
    %9642 = vmatpush1.msra.mxu0 0.0
    %9643 = vmatprep.subr.mxu0 0.0
    %9644 = vmatpush1.msra.mxu0 0.0
    %9645 = vmatprep.subr.mxu0 0.0
    %9646 = vmatpush1.msra.mxu0 0.0
    %9647 = vmatprep.subr.mxu0 0.0
    %9648 = vmatpush1.msra.mxu0 0.0
    %9649 = vmatprep.subr.mxu0 0.0
    %9650 = vmatpush1.msra.mxu0 0.0
    %9651 = vmatprep.subr.mxu0 0.0
    %9652 = vmatpush1.msra.mxu0 0.0
    %9653 = vmatprep.subr.mxu0 0.0
    %9654 = vmatpush1.msra.mxu0 0.0
    %9655 = vmatprep.subr.mxu0 0.0
    %9656 = vmatpush1.msra.mxu0 0.0
    %9657 = vmatprep.subr.mxu0 0.0
    %9658 = vmatpush1.msra.mxu0 0.0
    %9659 = vmatprep.subr.mxu0 %v9627
    %9660 = vmatpush1.msra.mxu0 %v9626
    %9661 = vmatprep.subr.mxu0 %v9625
    %9662 = vmatpush1.msra.mxu0 %v9624
    %9663 = vmatprep.subr.mxu0 0.0
    %9664 = vmatpush2.msra.mxu0 0.0
    %9665 = vmatprep.subr.mxu0 0.0
    %9666 = vmatpush2.msra.mxu0 0.0
    %9667 = vmatprep.subr.mxu0 0.0
    %9668 = vmatpush2.msra.mxu0 0.0
    %9669 = vmatprep.subr.mxu0 0.0
    %9670 = vmatpush2.msra.mxu0 0.0
    %9671 = vmatprep.subr.mxu0 0.0
    %9672 = vmatpush2.msra.mxu0 0.0
    %9673 = vmatprep.subr.mxu0 0.0
    %9674 = vmatpush2.msra.mxu0 0.0
    %9675 = vmatprep.subr.mxu0 0.0
    %9676 = vmatpush2.msra.mxu0 0.0
    %9677 = vmatprep.subr.mxu0 0.0
    %9678 = vmatpush2.msra.mxu0 0.0
    %9679 = vmatprep.subr.mxu0 0.0
    %9680 = vmatpush2.msra.mxu0 0.0
    %9681 = vmatprep.subr.mxu0 0.0
    %9682 = vmatpush2.msra.mxu0 0.0
    %9683 = vmatprep.subr.mxu0 0.0
    %9684 = vmatpush2.msra.mxu0 0.0
    %9685 = vmatprep.subr.mxu0 0.0
    %9686 = vmatpush2.msra.mxu0 0.0
    %9687 = vmatprep.subr.mxu0 0.0
    %9688 = vmatpush2.msra.mxu0 0.0
    %9689 = vmatprep.subr.mxu0 0.0
    %9690 = vmatpush2.msra.mxu0 0.0
    %9691 = vmatprep.subr.mxu0 0.0
    %9692 = vmatpush2.msra.mxu0 0.0
    %9693 = vmatprep.subr.mxu0 0.0
    %9694 = vmatpush2.msra.mxu0 0.0
    %9695 = vmatprep.mubr.f32.mxu0 0.0
    %9696 = vmatmul.mubr.f32.gmra.mxu0 %v9629
    %v9697 = vpop.f32.mrf.mxu0
    %v9698 = vadd.f32 0.0, %v9697
    %v9699 = vpop.f32.mrf.mxu0
    %v9700 = vadd.f32 0.0, %v9699
    %9701 = vdwg.mxu0
    %v9702 = vadd.f32 %v9620, %v9698
    %v9703 = vadd.f32 %v9621, %v9700
    %v9704 = vld [vmem:[#allocation2 + $0x5e] sm:$0x3]
    %s9705 = scalar_lea.vmem %s8, 1504
    %v9706 = vld [vmem:[%s9705] sm:$0xff]
    %v9707 = vld [vmem:[%s9705 + $0x8] sm:$0xff]
    %v9708 = vld [vmem:[%s9705 + $0x10] sm:$0xff]
    %v9709 = vld [vmem:[%s9705 + $0x18] sm:$0xff]
    %v9711 = vsel %vm1538, %v9704, 0
    %9713 = vmatprep.subr.mxu0 0.0
    %9714 = vmatpush1.msra.mxu0 0.0
    %9715 = vmatprep.subr.mxu0 0.0
    %9716 = vmatpush1.msra.mxu0 0.0
    %9717 = vmatprep.subr.mxu0 0.0
    %9718 = vmatpush1.msra.mxu0 0.0
    %9719 = vmatprep.subr.mxu0 0.0
    %9720 = vmatpush1.msra.mxu0 0.0
    %9721 = vmatprep.subr.mxu0 0.0
    %9722 = vmatpush1.msra.mxu0 0.0
    %9723 = vmatprep.subr.mxu0 0.0
    %9724 = vmatpush1.msra.mxu0 0.0
    %9725 = vmatprep.subr.mxu0 0.0
    %9726 = vmatpush1.msra.mxu0 0.0
    %9727 = vmatprep.subr.mxu0 0.0
    %9728 = vmatpush1.msra.mxu0 0.0
    %9729 = vmatprep.subr.mxu0 0.0
    %9730 = vmatpush1.msra.mxu0 0.0
    %9731 = vmatprep.subr.mxu0 0.0
    %9732 = vmatpush1.msra.mxu0 0.0
    %9733 = vmatprep.subr.mxu0 0.0
    %9734 = vmatpush1.msra.mxu0 0.0
    %9735 = vmatprep.subr.mxu0 0.0
    %9736 = vmatpush1.msra.mxu0 0.0
    %9737 = vmatprep.subr.mxu0 0.0
    %9738 = vmatpush1.msra.mxu0 0.0
    %9739 = vmatprep.subr.mxu0 0.0
    %9740 = vmatpush1.msra.mxu0 0.0
    %9741 = vmatprep.subr.mxu0 %v9709
    %9742 = vmatpush1.msra.mxu0 %v9708
    %9743 = vmatprep.subr.mxu0 %v9707
    %9744 = vmatpush1.msra.mxu0 %v9706
    %9745 = vmatprep.subr.mxu0 0.0
    %9746 = vmatpush2.msra.mxu0 0.0
    %9747 = vmatprep.subr.mxu0 0.0
    %9748 = vmatpush2.msra.mxu0 0.0
    %9749 = vmatprep.subr.mxu0 0.0
    %9750 = vmatpush2.msra.mxu0 0.0
    %9751 = vmatprep.subr.mxu0 0.0
    %9752 = vmatpush2.msra.mxu0 0.0
    %9753 = vmatprep.subr.mxu0 0.0
    %9754 = vmatpush2.msra.mxu0 0.0
    %9755 = vmatprep.subr.mxu0 0.0
    %9756 = vmatpush2.msra.mxu0 0.0
    %9757 = vmatprep.subr.mxu0 0.0
    %9758 = vmatpush2.msra.mxu0 0.0
    %9759 = vmatprep.subr.mxu0 0.0
    %9760 = vmatpush2.msra.mxu0 0.0
    %9761 = vmatprep.subr.mxu0 0.0
    %9762 = vmatpush2.msra.mxu0 0.0
    %9763 = vmatprep.subr.mxu0 0.0
    %9764 = vmatpush2.msra.mxu0 0.0
    %9765 = vmatprep.subr.mxu0 0.0
    %9766 = vmatpush2.msra.mxu0 0.0
    %9767 = vmatprep.subr.mxu0 0.0
    %9768 = vmatpush2.msra.mxu0 0.0
    %9769 = vmatprep.subr.mxu0 0.0
    %9770 = vmatpush2.msra.mxu0 0.0
    %9771 = vmatprep.subr.mxu0 0.0
    %9772 = vmatpush2.msra.mxu0 0.0
    %9773 = vmatprep.subr.mxu0 0.0
    %9774 = vmatpush2.msra.mxu0 0.0
    %9775 = vmatprep.subr.mxu0 0.0
    %9776 = vmatpush2.msra.mxu0 0.0
    %9777 = vmatprep.mubr.f32.mxu0 0.0
    %9778 = vmatmul.mubr.f32.gmra.mxu0 %v9711
    %v9779 = vpop.f32.mrf.mxu0
    %v9780 = vadd.f32 0.0, %v9779
    %v9781 = vpop.f32.mrf.mxu0
    %v9782 = vadd.f32 0.0, %v9781
    %9783 = vdwg.mxu0
    %v9784 = vadd.f32 %v9702, %v9780
    %v9785 = vadd.f32 %v9703, %v9782
    %v9786 = vld [vmem:[#allocation2 + $0x60] sm:$0x3]
    %s9787 = scalar_lea.vmem %s8, 1536
    %v9788 = vld [vmem:[%s9787] sm:$0xff]
    %v9789 = vld [vmem:[%s9787 + $0x8] sm:$0xff]
    %v9790 = vld [vmem:[%s9787 + $0x10] sm:$0xff]
    %v9791 = vld [vmem:[%s9787 + $0x18] sm:$0xff]
    %v9793 = vsel %vm1538, %v9786, 0
    %9795 = vmatprep.subr.mxu0 0.0
    %9796 = vmatpush1.msra.mxu0 0.0
    %9797 = vmatprep.subr.mxu0 0.0
    %9798 = vmatpush1.msra.mxu0 0.0
    %9799 = vmatprep.subr.mxu0 0.0
    %9800 = vmatpush1.msra.mxu0 0.0
    %9801 = vmatprep.subr.mxu0 0.0
    %9802 = vmatpush1.msra.mxu0 0.0
    %9803 = vmatprep.subr.mxu0 0.0
    %9804 = vmatpush1.msra.mxu0 0.0
    %9805 = vmatprep.subr.mxu0 0.0
    %9806 = vmatpush1.msra.mxu0 0.0
    %9807 = vmatprep.subr.mxu0 0.0
    %9808 = vmatpush1.msra.mxu0 0.0
    %9809 = vmatprep.subr.mxu0 0.0
    %9810 = vmatpush1.msra.mxu0 0.0
    %9811 = vmatprep.subr.mxu0 0.0
    %9812 = vmatpush1.msra.mxu0 0.0
    %9813 = vmatprep.subr.mxu0 0.0
    %9814 = vmatpush1.msra.mxu0 0.0
    %9815 = vmatprep.subr.mxu0 0.0
    %9816 = vmatpush1.msra.mxu0 0.0
    %9817 = vmatprep.subr.mxu0 0.0
    %9818 = vmatpush1.msra.mxu0 0.0
    %9819 = vmatprep.subr.mxu0 0.0
    %9820 = vmatpush1.msra.mxu0 0.0
    %9821 = vmatprep.subr.mxu0 0.0
    %9822 = vmatpush1.msra.mxu0 0.0
    %9823 = vmatprep.subr.mxu0 %v9791
    %9824 = vmatpush1.msra.mxu0 %v9790
    %9825 = vmatprep.subr.mxu0 %v9789
    %9826 = vmatpush1.msra.mxu0 %v9788
    %9827 = vmatprep.subr.mxu0 0.0
    %9828 = vmatpush2.msra.mxu0 0.0
    %9829 = vmatprep.subr.mxu0 0.0
    %9830 = vmatpush2.msra.mxu0 0.0
    %9831 = vmatprep.subr.mxu0 0.0
    %9832 = vmatpush2.msra.mxu0 0.0
    %9833 = vmatprep.subr.mxu0 0.0
    %9834 = vmatpush2.msra.mxu0 0.0
    %9835 = vmatprep.subr.mxu0 0.0
    %9836 = vmatpush2.msra.mxu0 0.0
    %9837 = vmatprep.subr.mxu0 0.0
    %9838 = vmatpush2.msra.mxu0 0.0
    %9839 = vmatprep.subr.mxu0 0.0
    %9840 = vmatpush2.msra.mxu0 0.0
    %9841 = vmatprep.subr.mxu0 0.0
    %9842 = vmatpush2.msra.mxu0 0.0
    %9843 = vmatprep.subr.mxu0 0.0
    %9844 = vmatpush2.msra.mxu0 0.0
    %9845 = vmatprep.subr.mxu0 0.0
    %9846 = vmatpush2.msra.mxu0 0.0
    %9847 = vmatprep.subr.mxu0 0.0
    %9848 = vmatpush2.msra.mxu0 0.0
    %9849 = vmatprep.subr.mxu0 0.0
    %9850 = vmatpush2.msra.mxu0 0.0
    %9851 = vmatprep.subr.mxu0 0.0
    %9852 = vmatpush2.msra.mxu0 0.0
    %9853 = vmatprep.subr.mxu0 0.0
    %9854 = vmatpush2.msra.mxu0 0.0
    %9855 = vmatprep.subr.mxu0 0.0
    %9856 = vmatpush2.msra.mxu0 0.0
    %9857 = vmatprep.subr.mxu0 0.0
    %9858 = vmatpush2.msra.mxu0 0.0
    %9859 = vmatprep.mubr.f32.mxu0 0.0
    %9860 = vmatmul.mubr.f32.gmra.mxu0 %v9793
    %v9861 = vpop.f32.mrf.mxu0
    %v9862 = vadd.f32 0.0, %v9861
    %v9863 = vpop.f32.mrf.mxu0
    %v9864 = vadd.f32 0.0, %v9863
    %9865 = vdwg.mxu0
    %v9866 = vadd.f32 %v9784, %v9862
    %v9867 = vadd.f32 %v9785, %v9864
    %v9868 = vld [vmem:[%s9] sm:$0x3]
    %v9870 = vlaneseq
    %v9871 = vshrl.u32 %v9870, 7
    %v9872 = vsub.s32 0, %v9871
    %v9873 = vrot.slane %v9868, %v9872
    %v9874 = vlaneseq
    %v9875 = vshrl.u32 %v9874, 7
    %v9876 = vsub.s32 1, %v9875
    %v9877 = vrot.slane %v9868, %v9876
    %v9880 = vadd.f32 %v9866, %v9873
    %v9881 = vadd.f32 %v9867, %v9877
    %v9882 = vsel %vm917, %v9880, 0.0
    %v9883 = vrot.slane %v9882, 4
    %v9884 = vadd.f32 %v9882, %v9883
    %v9885 = vrot.slane %v9884, 2
    %v9886 = vadd.f32 %v9884, %v9885
    %v9887 = vrot.slane %v9886, 1
    %v9888 = vadd.f32 %v9886, %v9887
    %v9889 = vsel %vm917, %v9881, 0.0
    %v9890 = vrot.slane %v9889, 4
    %v9891 = vadd.f32 %v9889, %v9890
    %v9892 = vrot.slane %v9891, 2
    %v9893 = vadd.f32 %v9891, %v9892
    %v9894 = vrot.slane %v9893, 1
    %v9895 = vadd.f32 %v9893, %v9894
    %v9896 = vrcp.pop 2.0
    %v9897 = vmul.f32 %v9888, %v9896
    %v9898 = vmul.f32 %v9895, %v9896
    %v9899 = vsub.f32 %v9880, %v9897
    %v9900 = vsub.f32 %v9881, %v9898
    %v9901 = vmul.f32 %v9899, %v9899
    %v9902 = vmul.f32 %v9900, %v9900
    %v9903 = vsel %vm917, %v9901, 0.0
    %v9904 = vrot.slane %v9903, 4
    %v9905 = vadd.f32 %v9903, %v9904
    %v9906 = vrot.slane %v9905, 2
    %v9907 = vadd.f32 %v9905, %v9906
    %v9908 = vrot.slane %v9907, 1
    %v9909 = vadd.f32 %v9907, %v9908
    %v9910 = vsel %vm917, %v9902, 0.0
    %v9911 = vrot.slane %v9910, 4
    %v9912 = vadd.f32 %v9910, %v9911
    %v9913 = vrot.slane %v9912, 2
    %v9914 = vadd.f32 %v9912, %v9913
    %v9915 = vrot.slane %v9914, 1
    %v9916 = vadd.f32 %v9914, %v9915
    %v9917 = vmul.f32 %v9909, %v9896
    %v9918 = vmul.f32 %v9916, %v9896
    %v9919 = vld [vmem:[%s10] sm:$0x3]
    %v9920 = vadd.f32 %v9917, 1e-05
    %v9921 = vadd.f32 %v9918, 1e-05
    %v9922 = vrsqrt.pop %v9920
    %v9923 = vrsqrt.pop %v9921
    %v9924 = vmul.f32 %v9899, %v9922
    %v9925 = vmul.f32 %v9900, %v9923
    %v9927 = vlaneseq
    %v9928 = vshrl.u32 %v9927, 7
    %v9929 = vsub.s32 0, %v9928
    %v9930 = vrot.slane %v9919, %v9929
    %v9931 = vlaneseq
    %v9932 = vshrl.u32 %v9931, 7
    %v9933 = vsub.s32 1, %v9932
    %v9934 = vrot.slane %v9919, %v9933
    %v9937 = vmul.f32 %v9930, %v9924
    %v9938 = vmul.f32 %v9934, %v9925
    %v9939 = vld [vmem:[%s11] sm:$0x3]
    %v9941 = vlaneseq
    %v9942 = vshrl.u32 %v9941, 7
    %v9943 = vsub.s32 0, %v9942
    %v9944 = vrot.slane %v9939, %v9943
    %v9945 = vlaneseq
    %v9946 = vshrl.u32 %v9945, 7
    %v9947 = vsub.s32 1, %v9946
    %v9948 = vrot.slane %v9939, %v9947
    %v9951 = vadd.f32 %v9937, %v9944
    %v9952 = vadd.f32 %v9938, %v9948
    %vm9953 = vcmp.ge.f32.partialorder %v9951, 0.0
    %vm9954 = vcmp.ge.f32.partialorder %v9952, 0.0
    %v9955 = vmul.f32 %v9951, 0.2
    %v9956 = vmul.f32 %v9952, 0.2
    %v9957 = vsel %vm9953, %v9951, %v9955
    %v9958 = vsel %vm9954, %v9952, %v9956
    %v9959 = vld [vmem:[#allocation3] sm:$0xff]
    %v9960 = vld [vmem:[#allocation3 + $0x8] sm:$0xff]
    %v9961 = vld [vmem:[#allocation3 + $0x10] sm:$0xff]
    %v9962 = vld [vmem:[#allocation3 + $0x18] sm:$0xff]
    %v9963 = vld [vmem:[#allocation3 + $0x20] sm:$0xff]
    %v9964 = vld [vmem:[#allocation3 + $0x28] sm:$0xff]
    %v9965 = vld [vmem:[#allocation3 + $0x30] sm:$0xff]
    %v9966 = vld [vmem:[#allocation3 + $0x38] sm:$0xff]
    %v9967 = vld [vmem:[#allocation3 + $0x40] sm:$0xff]
    %v9968 = vld [vmem:[#allocation3 + $0x48] sm:$0xff]
    %v9969 = vld [vmem:[#allocation3 + $0x50] sm:$0xff]
    %v9970 = vld [vmem:[#allocation3 + $0x58] sm:$0xff]
    %v9971 = vld [vmem:[#allocation3 + $0x60] sm:$0xff]
    %v9972 = vld [vmem:[#allocation3 + $0x68] sm:$0xff]
    %v9973 = vld [vmem:[#allocation3 + $0x70] sm:$0xff]
    %v9974 = vld [vmem:[#allocation3 + $0x78] sm:$0xff]
    %v9975 = vld [vmem:[#allocation3 + $0x80] sm:$0xff]
    %v9976 = vld [vmem:[#allocation3 + $0x88] sm:$0xff]
    %v9977 = vld [vmem:[#allocation3 + $0x90] sm:$0xff]
    %v9978 = vld [vmem:[#allocation3 + $0x98] sm:$0xff]
    %v9979 = vld [vmem:[#allocation3 + $0xa0] sm:$0xff]
    %v9980 = vld [vmem:[#allocation3 + $0xa8] sm:$0xff]
    %v9981 = vld [vmem:[#allocation3 + $0xb0] sm:$0xff]
    %v9982 = vld [vmem:[#allocation3 + $0xb8] sm:$0xff]
    %v9983 = vld [vmem:[#allocation3 + $0xc0] sm:$0xff]
    %v9984 = vld [vmem:[#allocation3 + $0xc8] sm:$0xff]
    %v9985 = vld [vmem:[#allocation3 + $0xd0] sm:$0xff]
    %v9986 = vld [vmem:[#allocation3 + $0xd8] sm:$0xff]
    %v9987 = vld [vmem:[#allocation3 + $0xe0] sm:$0xff]
    %v9988 = vld [vmem:[#allocation3 + $0xe8] sm:$0xff]
    %v9989 = vld [vmem:[#allocation3 + $0xf0] sm:$0xff]
    %v9990 = vld [vmem:[#allocation3 + $0xf8] sm:$0xff]
    %v9991 = vld [vmem:[%s13] sm:$0x1]
    %v9993 = vlaneseq
    %v9994 = vshrl.u32 %v9993, 7
    %v9995 = vsub.s32 0, %v9994
    %v9996 = vrot.slane %v9991, %v9995
    %9998 = vmatprep.subr.mxu0 0.0
    %9999 = vmatpush1.msra.mxu0 %v9974
    %10000 = vmatprep.subr.mxu0 0.0
    %10001 = vmatpush1.msra.mxu0 %v9973
    %10002 = vmatprep.subr.mxu0 0.0
    %10003 = vmatpush1.msra.mxu0 %v9972
    %10004 = vmatprep.subr.mxu0 0.0
    %10005 = vmatpush1.msra.mxu0 %v9971
    %10006 = vmatprep.subr.mxu0 0.0
    %10007 = vmatpush1.msra.mxu0 %v9970
    %10008 = vmatprep.subr.mxu0 0.0
    %10009 = vmatpush1.msra.mxu0 %v9969
    %10010 = vmatprep.subr.mxu0 0.0
    %10011 = vmatpush1.msra.mxu0 %v9968
    %10012 = vmatprep.subr.mxu0 0.0
    %10013 = vmatpush1.msra.mxu0 %v9967
    %10014 = vmatprep.subr.mxu0 0.0
    %10015 = vmatpush1.msra.mxu0 %v9966
    %10016 = vmatprep.subr.mxu0 0.0
    %10017 = vmatpush1.msra.mxu0 %v9965
    %10018 = vmatprep.subr.mxu0 0.0
    %10019 = vmatpush1.msra.mxu0 %v9964
    %10020 = vmatprep.subr.mxu0 0.0
    %10021 = vmatpush1.msra.mxu0 %v9963
    %10022 = vmatprep.subr.mxu0 0.0
    %10023 = vmatpush1.msra.mxu0 %v9962
    %10024 = vmatprep.subr.mxu0 0.0
    %10025 = vmatpush1.msra.mxu0 %v9961
    %10026 = vmatprep.subr.mxu0 0.0
    %10027 = vmatpush1.msra.mxu0 %v9960
    %10028 = vmatprep.subr.mxu0 0.0
    %10029 = vmatpush1.msra.mxu0 %v9959
    %10030 = vmatprep.subr.mxu0 0.0
    %10031 = vmatpush2.msra.mxu0 %v9990
    %10032 = vmatprep.subr.mxu0 0.0
    %10033 = vmatpush2.msra.mxu0 %v9989
    %10034 = vmatprep.subr.mxu0 0.0
    %10035 = vmatpush2.msra.mxu0 %v9988
    %10036 = vmatprep.subr.mxu0 0.0
    %10037 = vmatpush2.msra.mxu0 %v9987
    %10038 = vmatprep.subr.mxu0 0.0
    %10039 = vmatpush2.msra.mxu0 %v9986
    %10040 = vmatprep.subr.mxu0 0.0
    %10041 = vmatpush2.msra.mxu0 %v9985
    %10042 = vmatprep.subr.mxu0 0.0
    %10043 = vmatpush2.msra.mxu0 %v9984
    %10044 = vmatprep.subr.mxu0 0.0
    %10045 = vmatpush2.msra.mxu0 %v9983
    %10046 = vmatprep.subr.mxu0 0.0
    %10047 = vmatpush2.msra.mxu0 %v9982
    %10048 = vmatprep.subr.mxu0 0.0
    %10049 = vmatpush2.msra.mxu0 %v9981
    %10050 = vmatprep.subr.mxu0 0.0
    %10051 = vmatpush2.msra.mxu0 %v9980
    %10052 = vmatprep.subr.mxu0 0.0
    %10053 = vmatpush2.msra.mxu0 %v9979
    %10054 = vmatprep.subr.mxu0 0.0
    %10055 = vmatpush2.msra.mxu0 %v9978
    %10056 = vmatprep.subr.mxu0 0.0
    %10057 = vmatpush2.msra.mxu0 %v9977
    %10058 = vmatprep.subr.mxu0 0.0
    %10059 = vmatpush2.msra.mxu0 %v9976
    %10060 = vmatprep.subr.mxu0 0.0
    %10061 = vmatpush2.msra.mxu0 %v9975
    %10062 = vmatprep.mubr.f32.mxu0 %v9958
    %10063 = vmatmul.mubr.f32.gmra.mxu0 %v9957
    %v10064 = vpop.f32.mrf.mxu0
    %v10065 = vadd.f32 %v9996, %v10064
    %v10066 = vpop.f32.mrf.mxu0
    %10067 = vdwg.mxu0
    %10068 = vst [vmem:[#allocation6] sm:$0x3] %v10065
    // Predicated region
    $region62: #{encoder_forward.1} parent=1 // pred_check
      _
    $region63: #{encoder_forward.1} parent=1 // pred_check_branch
      %10070 = sbr.rel (0) target = $region65
    $region64: #{encoder_forward.1} parent=1 // pred_region
      %s10072 = ssub.s32 32, 32
      %10073 = vsyncadd [#allocation5], %s10072
      %s10075 = sshll.u32 [#allocation6], 4
      %s10076 = int_to_ptr.vmem [resolvable:$true] %s10075
      %10078 = dma.vmem_to_hbm [thread:$0]  %s10076, 32, %s14, [#allocation5]
    $region65: #{encoder_forward.1} parent=1 // pred_fallthru
      _
    // Predicated region
    $region66: #{encoder_forward.1} parent=1 // pred_check
      _
    $region67: #{encoder_forward.1} parent=1 // pred_check_branch
      %10080 = sbr.rel (0) target = $region69
    $region68: #{encoder_forward.1} parent=1 // pred_region
      %10081 = dma.done [#allocation5], 32
    $region69: #{encoder_forward.1} parent=1 // pred_fallthru
      _
    %10082 = vsyncpa [#allocation4], 1
    %10083 = vsyncpa [#allocation5], 1

</llo_original>
